<compile_context>
chip_gen: v5e
topology: v5e:2x2
jax: 0.10.0
libtpu: 0.0.40
codegen_flags: <defaults>
</compile_context>

<pallas_src>
import jax
import jax.numpy as jnp
from jax.experimental import pallas as pl
from jax.experimental.pallas import tpu as pltpu


# ---------------------------------------------------------------------------
# Config
# ---------------------------------------------------------------------------

STRIDES = (4, 8, 16, 32)
CHANNELS = (32, 64, 160, 256)       # mit_b0 channel config
EMBED_DIM = 64                      # cfg.decoder_embed_dim
E_PAD = 128                         # lane-dense padded embed width (>= EMBED_DIM)
F_PAD = 128                         # lane-dense padded fuse-conv width
NUM_CLASSES = 8                     # cfg.num_classes
CLS_PAD = 128                       # lane-dense padded classifier width
IN_CH = 3
BN_EPS = 1e-5
MAX_ROW_TILE = 4096                 # absolute cap on rows per grid step


def _detect_vmem_limit():
    """Per-generation VMEM limit: ~3/4 of capacity, capped at 96 MiB.
    v7x (64 MiB/TC) -> 48 MiB; v5e/v6e (128 MiB) -> 96 MiB; fallback 48 MiB."""
    try:
        cap = int(pltpu.get_tpu_info().vmem_capacity_bytes)
    except Exception:
        cap = 64 * 1024 * 1024
    return int(min((cap * 3) // 4, 96 * 1024 * 1024))


VMEM_LIMIT = _detect_vmem_limit()
ACT_BUDGET = VMEM_LIMIT // 2        # VMEM budget for row-blocked (pipelined) traffic


# ---------------------------------------------------------------------------
# Pallas kernels
# ---------------------------------------------------------------------------

def _stage_kernel(rgb_ref, mod_ref, wr_ref, wm_ref, b_ref, o_ref):
    """Fused per-stage pipeline with the patch-embed and the MLPDecoder projection
    folded into the weights: out = rgb @ Wr' + modal @ Wm' + b'.
    bf16 inputs/weights, f32 accumulation + bias, bf16 lane-dense output."""
    acc = jnp.dot(rgb_ref[...], wr_ref[...], preferred_element_type=jnp.float32)
    acc = acc + jnp.dot(mod_ref[...], wm_ref[...], preferred_element_type=jnp.float32)
    acc = acc + b_ref[...]                                      # f32 bias epilogue
    o_ref[...] = acc.astype(o_ref.dtype)


def _decoder_tail_kernel(x3_ref, x2_ref, x1_ref, x0_ref,
                         w3_ref, w2_ref, w1_ref, w0_ref,
                         fb_ref, wc_ref, bc_ref, o_ref):
    """MLPDecoder tail: concat-free 1x1 fuse conv (4 split dots, BN folded in, 128-lane
    padded), ReLU (f32), 1x1 classifier, bf16 lane-dense output."""
    h = jnp.dot(x3_ref[...], w3_ref[...], preferred_element_type=jnp.float32)
    h = h + jnp.dot(x2_ref[...], w2_ref[...], preferred_element_type=jnp.float32)
    h = h + jnp.dot(x1_ref[...], w1_ref[...], preferred_element_type=jnp.float32)
    h = h + jnp.dot(x0_ref[...], w0_ref[...], preferred_element_type=jnp.float32)
    h = jnp.maximum(h + fb_ref[...], 0.0)                       # fuse bias + ReLU (f32)
    out = jnp.dot(h.astype(wc_ref.dtype), wc_ref[...],
                  preferred_element_type=jnp.float32)
    o_ref[...] = (out + bc_ref[...]).astype(o_ref.dtype)


# ---------------------------------------------------------------------------
# Tiling helpers (VMEM-budget driven, never degenerate)
# ---------------------------------------------------------------------------

def _round_up(x, m):
    return ((x + m - 1) // m) * m


def _choose_row_tile(n, row_bytes, act_budget=ACT_BUDGET, max_tile=MAX_ROW_TILE):
    """Rows per grid step: as big as the VMEM activation budget allows (double-buffered),
    multiple of 16, capped so big problems get >= 2 grid steps (v7x dual-TC)."""
    tm = act_budget // max(row_bytes, 1)
    tm = max(16, min(max_tile, (tm // 16) * 16))
    if n >= 32:
        tm = min(tm, _round_up(-(-n // 2), 16))   # at least 2 grid steps
    tm = min(tm, _round_up(n, 16))
    return int(tm)


def _pad_rows(x, n_pad):
    n = x.shape[0]
    if n_pad == n:
        return x
    return jnp.pad(x, ((0, n_pad - n), (0, 0)))


# ---------------------------------------------------------------------------
# pallas_call wrappers (row-tiled, parallel grid, resident weights)
# ---------------------------------------------------------------------------

def _stage_call(rgb_p, mod_p, wr, wm, bias):
    n, kp = rgb_p.shape
    # per-row double-buffered traffic: 2 bf16 inputs + 1 bf16 output, x2 buffers
    row_bytes = 2 * 2 * kp * 2 + 2 * E_PAD * 2
    tm = _choose_row_tile(n, row_bytes)
    n_pad = _round_up(n, tm)
    rgb_p = _pad_rows(rgb_p, n_pad)
    mod_p = _pad_rows(mod_p, n_pad)
    grid = (n_pad // tm,)

    flops = 2 * 2 * n_pad * kp * E_PAD
    bytes_accessed = (2 * n_pad * kp * 2 + n_pad * E_PAD * 2    # bf16 activations
                      + 2 * kp * E_PAD * 2                      # bf16 folded weights
                      + E_PAD * 4)                              # f32 bias

    # NOTE: weights use constant index_maps; default double-buffering of them costs
    # <= ~3 MiB (stage 3) and fits comfortably inside the VMEM limit on all chips.
    out = pl.pallas_call(
        _stage_kernel,
        out_shape=jax.ShapeDtypeStruct((n_pad, E_PAD), jnp.bfloat16),
        grid=grid,
        in_specs=[
            pl.BlockSpec((tm, kp), lambda i: (i, 0)),           # rgb patches (tiled)
            pl.BlockSpec((tm, kp), lambda i: (i, 0)),           # modal patches (tiled)
            pl.BlockSpec((kp, E_PAD), lambda i: (0, 0)),        # Wr' (resident, folded)
            pl.BlockSpec((kp, E_PAD), lambda i: (0, 0)),        # Wm' (resident, folded)
            pl.BlockSpec((1, E_PAD), lambda i: (0, 0)),         # folded bias (f32)
        ],
        out_specs=pl.BlockSpec((tm, E_PAD), lambda i: (i, 0)),
        compiler_params=pltpu.CompilerParams(
            dimension_semantics=("parallel",),
            vmem_limit_bytes=VMEM_LIMIT),
        cost_estimate=pl.CostEstimate(
            flops=int(flops), transcendentals=0, bytes_accessed=int(bytes_accessed)),
    )(rgb_p, mod_p, wr, wm, bias)
    return out[:n] if n_pad != n else out


def _tail_call(x3, x2, x1, x0, w3, w2, w1, w0, fb, wc, bc):
    n = x3.shape[0]
    # per-row double-buffered traffic: 4 bf16 input streams + 1 bf16 output, x2 buffers
    row_bytes = 4 * 2 * E_PAD * 2 + 2 * CLS_PAD * 2
    tm = _choose_row_tile(n, row_bytes)
    n_pad = _round_up(n, tm)
    x3, x2, x1, x0 = (_pad_rows(x, n_pad) for x in (x3, x2, x1, x0))
    grid = (n_pad // tm,)

    flops = 4 * 2 * n_pad * E_PAD * F_PAD + 2 * n_pad * F_PAD * CLS_PAD
    bytes_accessed = (4 * n_pad * E_PAD * 2 + n_pad * CLS_PAD * 2
                      + 4 * E_PAD * F_PAD * 2 + F_PAD * CLS_PAD * 2
                      + (F_PAD + CLS_PAD) * 4)

    act_spec = pl.BlockSpec((tm, E_PAD), lambda i: (i, 0))
    wgt_spec = pl.BlockSpec((E_PAD, F_PAD), lambda i: (0, 0))

    out = pl.pallas_call(
        _decoder_tail_kernel,
        out_shape=jax.ShapeDtypeStruct((n_pad, CLS_PAD), jnp.bfloat16),
        grid=grid,
        in_specs=[
            act_spec, act_spec, act_spec, act_spec,             # 4 projected streams
            wgt_spec, wgt_spec, wgt_spec, wgt_spec,             # 4 fuse-weight chunks
            pl.BlockSpec((1, F_PAD), lambda i: (0, 0)),         # folded fuse bias (f32)
            pl.BlockSpec((F_PAD, CLS_PAD), lambda i: (0, 0)),   # classifier W (padded)
            pl.BlockSpec((1, CLS_PAD), lambda i: (0, 0)),       # classifier bias (f32)
        ],
        out_specs=pl.BlockSpec((tm, CLS_PAD), lambda i: (i, 0)),
        compiler_params=pltpu.CompilerParams(
            dimension_semantics=("parallel",),
            vmem_limit_bytes=VMEM_LIMIT),
        cost_estimate=pl.CostEstimate(
            flops=int(flops), transcendentals=0, bytes_accessed=int(bytes_accessed)),
    )(x3, x2, x1, x0, w3, w2, w1, w0, fb, wc, bc)
    return out[:n] if n_pad != n else out


# ---------------------------------------------------------------------------
# Glue: patch extraction (NHWC input, hoisted transpose)
# ---------------------------------------------------------------------------

def _extract_patches_nhwc(x_nhwc, patch):
    """NHWC -> (B*Hi*Wi, patch*patch*C) flattened patches, plus grid shape."""
    b, h, w, c = x_nhwc.shape
    hi, wi = h // patch, w // patch
    x = x_nhwc.reshape(b, hi, patch, wi, patch, c)
    x = jnp.transpose(x, (0, 1, 3, 2, 4, 5))                    # B,Hi,Wi,p,p,C
    return x.reshape(b * hi * wi, patch * patch * c), (b, hi, wi)


# ---------------------------------------------------------------------------
# Parameters (folded at build time: patch-embed @ decoder-proj, BN into fuse conv)
# ---------------------------------------------------------------------------

def init_params(key):
    params = {}
    keys = jax.random.split(key, 32)
    ki = iter(range(32))

    def nk():
        return keys[next(ki)]

    def kaiming(k, shape, fan_in):
        return jax.random.normal(k, shape, jnp.float32) * jnp.sqrt(2.0 / fan_in)

    # dual backbone patch embeddings + per-scale MLPDecoder projection, folded exactly:
    #   (rgb@Wr + mod@Wm + peb) @ Wp + pb == rgb@(Wr@Wp) + mod@(Wm@Wp) + (peb@Wp + pb)
    for s, (p, c) in enumerate(zip(STRIDES, CHANNELS)):
        fan_in = p * p * IN_CH
        wr = kaiming(nk(), (fan_in, c), fan_in)
        wm = kaiming(nk(), (fan_in, c), fan_in)
        peb = jnp.zeros((c,), jnp.float32)
        wp = kaiming(nk(), (c, EMBED_DIM), c)
        pb = jnp.zeros((EMBED_DIM,), jnp.float32)

        wr_f = jnp.pad(wr @ wp, ((0, 0), (0, E_PAD - EMBED_DIM)))
        wm_f = jnp.pad(wm @ wp, ((0, 0), (0, E_PAD - EMBED_DIM)))
        b_f = jnp.pad(peb @ wp + pb, (0, E_PAD - EMBED_DIM))
        params[f"stage{s}_wr"] = wr_f.astype(jnp.bfloat16)
        params[f"stage{s}_wm"] = wm_f.astype(jnp.bfloat16)
        params[f"stage{s}_b"] = b_f.reshape(1, E_PAD)

    # fuse conv (1x1): 4*EMBED_DIM -> EMBED_DIM, with eval-mode BatchNorm folded in
    fuse_in = 4 * EMBED_DIM
    fuse_w = kaiming(nk(), (fuse_in, EMBED_DIM), fuse_in)
    fuse_b = jnp.zeros((EMBED_DIM,), jnp.float32)

    gamma = 1.0 + 0.1 * jax.random.normal(nk(), (EMBED_DIM,), jnp.float32)
    beta = 0.1 * jax.random.normal(nk(), (EMBED_DIM,), jnp.float32)
    run_mean = jnp.zeros((EMBED_DIM,), jnp.float32)
    run_var = jnp.ones((EMBED_DIM,), jnp.float32)
    scale = gamma / jnp.sqrt(run_var + BN_EPS)
    shift = beta - run_mean * scale
    fuse_w_folded = fuse_w * scale[None, :]
    fuse_b_folded = fuse_b * scale + shift

    # split fuse weight row-blocks: cat([c4|c3|c2|c1]) == stages [3,2,1,0];
    # pad rows to E_PAD (matches zero-padded projections) and cols to F_PAD (lane-dense)
    for k_, s in enumerate((3, 2, 1, 0)):
        chunk = fuse_w_folded[k_ * EMBED_DIM:(k_ + 1) * EMBED_DIM, :]
        chunk = jnp.pad(chunk, ((0, E_PAD - EMBED_DIM), (0, F_PAD - EMBED_DIM)))
        params[f"fuse_w{s}"] = chunk.astype(jnp.bfloat16)
    params["fuse_b"] = jnp.pad(fuse_b_folded, (0, F_PAD - EMBED_DIM)).reshape(1, F_PAD)

    # classifier 1x1: EMBED_DIM -> NUM_CLASSES, zero-padded to (F_PAD, CLS_PAD)
    cls_w = kaiming(nk(), (EMBED_DIM, NUM_CLASSES), EMBED_DIM)
    params["cls_w"] = jnp.pad(
        cls_w, ((0, F_PAD - EMBED_DIM), (0, CLS_PAD - NUM_CLASSES))).astype(jnp.bfloat16)
    params["cls_b"] = jnp.zeros((1, CLS_PAD), jnp.float32)
    return params


# ---------------------------------------------------------------------------
# Forward
# ---------------------------------------------------------------------------

@jax.jit
def encoder_decoder_forward(params, rgb, modal_x):
    """rgb, modal_x: (B, 3, H, W) NCHW float32 -> (B, NUM_CLASSES, H, W) float32."""
    b, _, h, w = rgb.shape
    h4, w4 = h // STRIDES[0], w // STRIDES[0]

    # hoisted: one NCHW->NHWC transpose + bf16 cast per modality
    rgb_nhwc = jnp.transpose(rgb, (0, 2, 3, 1)).astype(jnp.bfloat16)
    mod_nhwc = jnp.transpose(modal_x, (0, 2, 3, 1)).astype(jnp.bfloat16)

    # ---- backbone (dual patch-embed + additive fusion) folded with per-scale
    # ---- MLPDecoder projection: one Pallas kernel per scale ------------------
    projected = []
    for s, p in enumerate(STRIDES):
        rgb_p, (bb, hi, wi) = _extract_patches_nhwc(rgb_nhwc, p)
        mod_p, _ = _extract_patches_nhwc(mod_nhwc, p)
        proj = _stage_call(                                     # (B*hi*wi, E_PAD) bf16
            rgb_p, mod_p,
            params[f"stage{s}_wr"], params[f"stage{s}_wm"], params[f"stage{s}_b"],
        )
        proj = proj.reshape(bb, hi, wi, E_PAD)
        if s > 0:
            # upsample to the 1/4-res grid (bilinear, align_corners=False);
            # stage 0 is already at 1/4 res -> skip the identity resize
            proj = jax.image.resize(proj, (bb, h4, w4, E_PAD), method="bilinear")
        projected.append(proj.reshape(bb * h4 * w4, E_PAD))

    # ---- decoder tail: split fuse conv (no concat) + folded BN + ReLU + classifier
    logits_pad = _tail_call(
        projected[3], projected[2], projected[1], projected[0],
        params["fuse_w3"], params["fuse_w2"], params["fuse_w1"], params["fuse_w0"],
        params["fuse_b"], params["cls_w"], params["cls_b"],
    )                                                           # (B*h4*w4, CLS_PAD) bf16

    logits = logits_pad[:b * h4 * w4, :NUM_CLASSES].reshape(b, h4, w4, NUM_CLASSES)
    # transpose to NCHW at 1/4 resolution, THEN bilinear upsample to full resolution
    logits = jnp.transpose(logits, (0, 3, 1, 2)).astype(jnp.float32)   # (B, K, h4, w4)
    logits = jax.image.resize(logits, (b, NUM_CLASSES, h, w), method="bilinear")
    return logits


# ---------------------------------------------------------------------------
# Main
# ---------------------------------------------------------------------------

if __name__ == "__main__":
    key = jax.random.PRNGKey(0)
    k_params, k_rgb, k_mod = jax.random.split(key, 3)

    B, H, W = 2, 32, 32
    rgb = jax.random.normal(k_rgb, (B, IN_CH, H, W), jnp.float32)
    modal_x = jax.random.normal(k_mod, (B, IN_CH, H, W), jnp.float32)

    params = init_params(k_params)
    out = encoder_decoder_forward(params, rgb, modal_x)
    out = jax.block_until_ready(out)

    assert out.shape == (B, NUM_CLASSES, H, W), out.shape
    assert out.dtype == jnp.float32
    assert bool(jnp.all(jnp.isfinite(out)))
    print("KERNEL_OK")
</pallas_src>

<mosaic_0001>
module attributes {stable_mosaic.version = 11 : i64} {
  func.func @_stage_kernel(%arg0: i32, %arg1: memref<16x3072xbf16, #tpu.memory_space<vmem>>, %arg2: memref<16x3072xbf16, #tpu.memory_space<vmem>>, %arg3: memref<3072x128xbf16, #tpu.memory_space<vmem>>, %arg4: memref<3072x128xbf16, #tpu.memory_space<vmem>>, %arg5: memref<1x128xf32, #tpu.memory_space<vmem>>, %arg6: memref<16x128xbf16, #tpu.memory_space<vmem>>) attributes {dimension_semantics = [#tpu.dimension_semantics<parallel>], iteration_bounds = array<i64: 1>, scalar_prefetch = 0 : i64, scratch_operands = 0 : i64, tpu.core_type = #tpu.core_type<tc>, window_params = [{transform_indices = @transform_0, window_bounds = array<i64: 16, 3072>}, {transform_indices = @transform_1, window_bounds = array<i64: 16, 3072>}, {pipeline_mode = #tpu.pipeline_mode<synchronous>, transform_indices = @transform_2, window_bounds = array<i64: 3072, 128>}, {pipeline_mode = #tpu.pipeline_mode<synchronous>, transform_indices = @transform_3, window_bounds = array<i64: 3072, 128>}, {pipeline_mode = #tpu.pipeline_mode<synchronous>, transform_indices = @transform_4, window_bounds = array<i64: 1, 128>}, {transform_indices = @transform_5, window_bounds = array<i64: 16, 128>}]} {
    %c0 = arith.constant 0 : index
    %c0_0 = arith.constant 0 : index
    %0 = vector.load %arg1[%c0, %c0_0] : memref<16x3072xbf16, #tpu.memory_space<vmem>>, vector<16x3072xbf16>
    %c0_1 = arith.constant 0 : index
    %c0_2 = arith.constant 0 : index
    %1 = vector.load %arg3[%c0_1, %c0_2] : memref<3072x128xbf16, #tpu.memory_space<vmem>>, vector<3072x128xbf16>
    %cst = arith.constant dense<0.000000e+00> : vector<16x128xf32>
    %2 = tpu.matmul %0, %1, %cst {dimension_numbers = #tpu.dot_dimension_numbers<[1], [0], [0], [1], [0, 0, 1, 1], [], []>} : vector<16x3072xbf16>, vector<3072x128xbf16>, vector<16x128xf32> -> vector<16x128xf32>
    %c0_3 = arith.constant 0 : index
    %c0_4 = arith.constant 0 : index
    %3 = vector.load %arg2[%c0_3, %c0_4] : memref<16x3072xbf16, #tpu.memory_space<vmem>>, vector<16x3072xbf16>
    %c0_5 = arith.constant 0 : index
    %c0_6 = arith.constant 0 : index
    %4 = vector.load %arg4[%c0_5, %c0_6] : memref<3072x128xbf16, #tpu.memory_space<vmem>>, vector<3072x128xbf16>
    %cst_7 = arith.constant dense<0.000000e+00> : vector<16x128xf32>
    %5 = tpu.matmul %3, %4, %cst_7 {dimension_numbers = #tpu.dot_dimension_numbers<[1], [0], [0], [1], [0, 0, 1, 1], [], []>} : vector<16x3072xbf16>, vector<3072x128xbf16>, vector<16x128xf32> -> vector<16x128xf32>
    %6 = arith.addf %2, %5 : vector<16x128xf32>
    %c0_8 = arith.constant 0 : index
    %c0_9 = arith.constant 0 : index
    %7 = vector.load %arg5[%c0_8, %c0_9] : memref<1x128xf32, #tpu.memory_space<vmem>>, vector<1x128xf32>
    %8 = vector.broadcast %7 : vector<1x128xf32> to vector<16x128xf32>
    %9 = arith.addf %6, %8 : vector<16x128xf32>
    %10 = arith.truncf %9 : vector<16x128xf32> to vector<16x128xbf16>
    %c0_10 = arith.constant 0 : index
    %c0_11 = arith.constant 0 : index
    %11 = vector.load %arg6[%c0_10, %c0_11] : memref<16x128xbf16, #tpu.memory_space<vmem>>, vector<16x128xbf16>
    tpu.vector_store %arg6[%c0_10, %c0_11], %10 {strides = array<i32>} : memref<16x128xbf16, #tpu.memory_space<vmem>>, vector<16x128xbf16>,
    return
  }
  func.func @transform_0(%arg0: i32) -> (i32, i32) {
    %c0_i32 = arith.constant 0 : i32
    %c0_i32_0 = arith.constant 0 : i32
    return %arg0, %c0_i32 : i32, i32
  }
  func.func @transform_1(%arg0: i32) -> (i32, i32) {
    %c0_i32 = arith.constant 0 : i32
    %c0_i32_0 = arith.constant 0 : i32
    return %arg0, %c0_i32 : i32, i32
  }
  func.func @transform_2(%arg0: i32) -> (i32, i32) {
    %c0_i32 = arith.constant 0 : i32
    %c0_i32_0 = arith.constant 0 : i32
    %c0_i32_1 = arith.constant 0 : i32
    return %c0_i32, %c0_i32_0 : i32, i32
  }
  func.func @transform_3(%arg0: i32) -> (i32, i32) {
    %c0_i32 = arith.constant 0 : i32
    %c0_i32_0 = arith.constant 0 : i32
    %c0_i32_1 = arith.constant 0 : i32
    return %c0_i32, %c0_i32_0 : i32, i32
  }
  func.func @transform_4(%arg0: i32) -> (i32, i32) {
    %c0_i32 = arith.constant 0 : i32
    %c0_i32_0 = arith.constant 0 : i32
    %c0_i32_1 = arith.constant 0 : i32
    return %c0_i32, %c0_i32_0 : i32, i32
  }
  func.func @transform_5(%arg0: i32) -> (i32, i32) {
    %c0_i32 = arith.constant 0 : i32
    %c0_i32_0 = arith.constant 0 : i32
    return %arg0, %c0_i32 : i32, i32
  }
}

module attributes {stable_mosaic.version = 11 : i64} {
  func.func @_stage_kernel(%arg0: i32, %arg1: memref<16x768xbf16, #tpu.memory_space<vmem>>, %arg2: memref<16x768xbf16, #tpu.memory_space<vmem>>, %arg3: memref<768x128xbf16, #tpu.memory_space<vmem>>, %arg4: memref<768x128xbf16, #tpu.memory_space<vmem>>, %arg5: memref<1x128xf32, #tpu.memory_space<vmem>>, %arg6: memref<16x128xbf16, #tpu.memory_space<vmem>>) attributes {dimension_semantics = [#tpu.dimension_semantics<parallel>], iteration_bounds = array<i64: 1>, scalar_prefetch = 0 : i64, scratch_operands = 0 : i64, tpu.core_type = #tpu.core_type<tc>, window_params = [{transform_indices = @transform_0, window_bounds = array<i64: 16, 768>}, {transform_indices = @transform_1, window_bounds = array<i64: 16, 768>}, {pipeline_mode = #tpu.pipeline_mode<synchronous>, transform_indices = @transform_2, window_bounds = array<i64: 768, 128>}, {pipeline_mode = #tpu.pipeline_mode<synchronous>, transform_indices = @transform_3, window_bounds = array<i64: 768, 128>}, {pipeline_mode = #tpu.pipeline_mode<synchronous>, transform_indices = @transform_4, window_bounds = array<i64: 1, 128>}, {transform_indices = @transform_5, window_bounds = array<i64: 16, 128>}]} {
    %c0 = arith.constant 0 : index
    %c0_0 = arith.constant 0 : index
    %0 = vector.load %arg1[%c0, %c0_0] : memref<16x768xbf16, #tpu.memory_space<vmem>>, vector<16x768xbf16>
    %c0_1 = arith.constant 0 : index
    %c0_2 = arith.constant 0 : index
    %1 = vector.load %arg3[%c0_1, %c0_2] : memref<768x128xbf16, #tpu.memory_space<vmem>>, vector<768x128xbf16>
    %cst = arith.constant dense<0.000000e+00> : vector<16x128xf32>
    %2 = tpu.matmul %0, %1, %cst {dimension_numbers = #tpu.dot_dimension_numbers<[1], [0], [0], [1], [0, 0, 1, 1], [], []>} : vector<16x768xbf16>, vector<768x128xbf16>, vector<16x128xf32> -> vector<16x128xf32>
    %c0_3 = arith.constant 0 : index
    %c0_4 = arith.constant 0 : index
    %3 = vector.load %arg2[%c0_3, %c0_4] : memref<16x768xbf16, #tpu.memory_space<vmem>>, vector<16x768xbf16>
    %c0_5 = arith.constant 0 : index
    %c0_6 = arith.constant 0 : index
    %4 = vector.load %arg4[%c0_5, %c0_6] : memref<768x128xbf16, #tpu.memory_space<vmem>>, vector<768x128xbf16>
    %cst_7 = arith.constant dense<0.000000e+00> : vector<16x128xf32>
    %5 = tpu.matmul %3, %4, %cst_7 {dimension_numbers = #tpu.dot_dimension_numbers<[1], [0], [0], [1], [0, 0, 1, 1], [], []>} : vector<16x768xbf16>, vector<768x128xbf16>, vector<16x128xf32> -> vector<16x128xf32>
    %6 = arith.addf %2, %5 : vector<16x128xf32>
    %c0_8 = arith.constant 0 : index
    %c0_9 = arith.constant 0 : index
    %7 = vector.load %arg5[%c0_8, %c0_9] : memref<1x128xf32, #tpu.memory_space<vmem>>, vector<1x128xf32>
    %8 = vector.broadcast %7 : vector<1x128xf32> to vector<16x128xf32>
    %9 = arith.addf %6, %8 : vector<16x128xf32>
    %10 = arith.truncf %9 : vector<16x128xf32> to vector<16x128xbf16>
    %c0_10 = arith.constant 0 : index
    %c0_11 = arith.constant 0 : index
    %11 = vector.load %arg6[%c0_10, %c0_11] : memref<16x128xbf16, #tpu.memory_space<vmem>>, vector<16x128xbf16>
    tpu.vector_store %arg6[%c0_10, %c0_11], %10 {strides = array<i32>} : memref<16x128xbf16, #tpu.memory_space<vmem>>, vector<16x128xbf16>,
    return
  }
  func.func @transform_0(%arg0: i32) -> (i32, i32) {
    %c0_i32 = arith.constant 0 : i32
    %c0_i32_0 = arith.constant 0 : i32
    return %arg0, %c0_i32 : i32, i32
  }
  func.func @transform_1(%arg0: i32) -> (i32, i32) {
    %c0_i32 = arith.constant 0 : i32
    %c0_i32_0 = arith.constant 0 : i32
    return %arg0, %c0_i32 : i32, i32
  }
  func.func @transform_2(%arg0: i32) -> (i32, i32) {
    %c0_i32 = arith.constant 0 : i32
    %c0_i32_0 = arith.constant 0 : i32
    %c0_i32_1 = arith.constant 0 : i32
    return %c0_i32, %c0_i32_0 : i32, i32
  }
  func.func @transform_3(%arg0: i32) -> (i32, i32) {
    %c0_i32 = arith.constant 0 : i32
    %c0_i32_0 = arith.constant 0 : i32
    %c0_i32_1 = arith.constant 0 : i32
    return %c0_i32, %c0_i32_0 : i32, i32
  }
  func.func @transform_4(%arg0: i32) -> (i32, i32) {
    %c0_i32 = arith.constant 0 : i32
    %c0_i32_0 = arith.constant 0 : i32
    %c0_i32_1 = arith.constant 0 : i32
    return %c0_i32, %c0_i32_0 : i32, i32
  }
  func.func @transform_5(%arg0: i32) -> (i32, i32) {
    %c0_i32 = arith.constant 0 : i32
    %c0_i32_0 = arith.constant 0 : i32
    return %arg0, %c0_i32 : i32, i32
  }
}

module attributes {stable_mosaic.version = 11 : i64} {
  func.func @_stage_kernel(%arg0: i32, %arg1: memref<16x192xbf16, #tpu.memory_space<vmem>>, %arg2: memref<16x192xbf16, #tpu.memory_space<vmem>>, %arg3: memref<192x128xbf16, #tpu.memory_space<vmem>>, %arg4: memref<192x128xbf16, #tpu.memory_space<vmem>>, %arg5: memref<1x128xf32, #tpu.memory_space<vmem>>, %arg6: memref<16x128xbf16, #tpu.memory_space<vmem>>) attributes {dimension_semantics = [#tpu.dimension_semantics<parallel>], iteration_bounds = array<i64: 2>, scalar_prefetch = 0 : i64, scratch_operands = 0 : i64, tpu.core_type = #tpu.core_type<tc>, window_params = [{transform_indices = @transform_0, window_bounds = array<i64: 16, 192>}, {transform_indices = @transform_1, window_bounds = array<i64: 16, 192>}, {pipeline_mode = #tpu.pipeline_mode<synchronous>, transform_indices = @transform_2, window_bounds = array<i64: 192, 128>}, {pipeline_mode = #tpu.pipeline_mode<synchronous>, transform_indices = @transform_3, window_bounds = array<i64: 192, 128>}, {pipeline_mode = #tpu.pipeline_mode<synchronous>, transform_indices = @transform_4, window_bounds = array<i64: 1, 128>}, {transform_indices = @transform_5, window_bounds = array<i64: 16, 128>}]} {
    %c0 = arith.constant 0 : index
    %c0_0 = arith.constant 0 : index
    %0 = vector.load %arg1[%c0, %c0_0] : memref<16x192xbf16, #tpu.memory_space<vmem>>, vector<16x192xbf16>
    %c0_1 = arith.constant 0 : index
    %c0_2 = arith.constant 0 : index
    %1 = vector.load %arg3[%c0_1, %c0_2] : memref<192x128xbf16, #tpu.memory_space<vmem>>, vector<192x128xbf16>
    %cst = arith.constant dense<0.000000e+00> : vector<16x128xf32>
    %2 = tpu.matmul %0, %1, %cst {dimension_numbers = #tpu.dot_dimension_numbers<[1], [0], [0], [1], [0, 0, 1, 1], [], []>} : vector<16x192xbf16>, vector<192x128xbf16>, vector<16x128xf32> -> vector<16x128xf32>
    %c0_3 = arith.constant 0 : index
    %c0_4 = arith.constant 0 : index
    %3 = vector.load %arg2[%c0_3, %c0_4] : memref<16x192xbf16, #tpu.memory_space<vmem>>, vector<16x192xbf16>
    %c0_5 = arith.constant 0 : index
    %c0_6 = arith.constant 0 : index
    %4 = vector.load %arg4[%c0_5, %c0_6] : memref<192x128xbf16, #tpu.memory_space<vmem>>, vector<192x128xbf16>
    %cst_7 = arith.constant dense<0.000000e+00> : vector<16x128xf32>
    %5 = tpu.matmul %3, %4, %cst_7 {dimension_numbers = #tpu.dot_dimension_numbers<[1], [0], [0], [1], [0, 0, 1, 1], [], []>} : vector<16x192xbf16>, vector<192x128xbf16>, vector<16x128xf32> -> vector<16x128xf32>
    %6 = arith.addf %2, %5 : vector<16x128xf32>
    %c0_8 = arith.constant 0 : index
    %c0_9 = arith.constant 0 : index
    %7 = vector.load %arg5[%c0_8, %c0_9] : memref<1x128xf32, #tpu.memory_space<vmem>>, vector<1x128xf32>
    %8 = vector.broadcast %7 : vector<1x128xf32> to vector<16x128xf32>
    %9 = arith.addf %6, %8 : vector<16x128xf32>
    %10 = arith.truncf %9 : vector<16x128xf32> to vector<16x128xbf16>
    %c0_10 = arith.constant 0 : index
    %c0_11 = arith.constant 0 : index
    %11 = vector.load %arg6[%c0_10, %c0_11] : memref<16x128xbf16, #tpu.memory_space<vmem>>, vector<16x128xbf16>
    tpu.vector_store %arg6[%c0_10, %c0_11], %10 {strides = array<i32>} : memref<16x128xbf16, #tpu.memory_space<vmem>>, vector<16x128xbf16>,
    return
  }
  func.func @transform_0(%arg0: i32) -> (i32, i32) {
    %c0_i32 = arith.constant 0 : i32
    %c0_i32_0 = arith.constant 0 : i32
    return %arg0, %c0_i32 : i32, i32
  }
  func.func @transform_1(%arg0: i32) -> (i32, i32) {
    %c0_i32 = arith.constant 0 : i32
    %c0_i32_0 = arith.constant 0 : i32
    return %arg0, %c0_i32 : i32, i32
  }
  func.func @transform_2(%arg0: i32) -> (i32, i32) {
    %c0_i32 = arith.constant 0 : i32
    %c0_i32_0 = arith.constant 0 : i32
    %c0_i32_1 = arith.constant 0 : i32
    return %c0_i32, %c0_i32_0 : i32, i32
  }
  func.func @transform_3(%arg0: i32) -> (i32, i32) {
    %c0_i32 = arith.constant 0 : i32
    %c0_i32_0 = arith.constant 0 : i32
    %c0_i32_1 = arith.constant 0 : i32
    return %c0_i32, %c0_i32_0 : i32, i32
  }
  func.func @transform_4(%arg0: i32) -> (i32, i32) {
    %c0_i32 = arith.constant 0 : i32
    %c0_i32_0 = arith.constant 0 : i32
    %c0_i32_1 = arith.constant 0 : i32
    return %c0_i32, %c0_i32_0 : i32, i32
  }
  func.func @transform_5(%arg0: i32) -> (i32, i32) {
    %c0_i32 = arith.constant 0 : i32
    %c0_i32_0 = arith.constant 0 : i32
    return %arg0, %c0_i32 : i32, i32
  }
}

module attributes {stable_mosaic.version = 11 : i64} {
  func.func @_stage_kernel(%arg0: i32, %arg1: memref<64x48xbf16, #tpu.memory_space<vmem>>, %arg2: memref<64x48xbf16, #tpu.memory_space<vmem>>, %arg3: memref<48x128xbf16, #tpu.memory_space<vmem>>, %arg4: memref<48x128xbf16, #tpu.memory_space<vmem>>, %arg5: memref<1x128xf32, #tpu.memory_space<vmem>>, %arg6: memref<64x128xbf16, #tpu.memory_space<vmem>>) attributes {dimension_semantics = [#tpu.dimension_semantics<parallel>], iteration_bounds = array<i64: 2>, scalar_prefetch = 0 : i64, scratch_operands = 0 : i64, tpu.core_type = #tpu.core_type<tc>, window_params = [{transform_indices = @transform_0, window_bounds = array<i64: 64, 48>}, {transform_indices = @transform_1, window_bounds = array<i64: 64, 48>}, {pipeline_mode = #tpu.pipeline_mode<synchronous>, transform_indices = @transform_2, window_bounds = array<i64: 48, 128>}, {pipeline_mode = #tpu.pipeline_mode<synchronous>, transform_indices = @transform_3, window_bounds = array<i64: 48, 128>}, {pipeline_mode = #tpu.pipeline_mode<synchronous>, transform_indices = @transform_4, window_bounds = array<i64: 1, 128>}, {transform_indices = @transform_5, window_bounds = array<i64: 64, 128>}]} {
    %c0 = arith.constant 0 : index
    %c0_0 = arith.constant 0 : index
    %0 = vector.load %arg1[%c0, %c0_0] : memref<64x48xbf16, #tpu.memory_space<vmem>>, vector<64x48xbf16>
    %c0_1 = arith.constant 0 : index
    %c0_2 = arith.constant 0 : index
    %1 = vector.load %arg3[%c0_1, %c0_2] : memref<48x128xbf16, #tpu.memory_space<vmem>>, vector<48x128xbf16>
    %cst = arith.constant dense<0.000000e+00> : vector<64x128xf32>
    %2 = tpu.matmul %0, %1, %cst {dimension_numbers = #tpu.dot_dimension_numbers<[1], [0], [0], [1], [0, 0, 1, 1], [], []>} : vector<64x48xbf16>, vector<48x128xbf16>, vector<64x128xf32> -> vector<64x128xf32>
    %c0_3 = arith.constant 0 : index
    %c0_4 = arith.constant 0 : index
    %3 = vector.load %arg2[%c0_3, %c0_4] : memref<64x48xbf16, #tpu.memory_space<vmem>>, vector<64x48xbf16>
    %c0_5 = arith.constant 0 : index
    %c0_6 = arith.constant 0 : index
    %4 = vector.load %arg4[%c0_5, %c0_6] : memref<48x128xbf16, #tpu.memory_space<vmem>>, vector<48x128xbf16>
    %cst_7 = arith.constant dense<0.000000e+00> : vector<64x128xf32>
    %5 = tpu.matmul %3, %4, %cst_7 {dimension_numbers = #tpu.dot_dimension_numbers<[1], [0], [0], [1], [0, 0, 1, 1], [], []>} : vector<64x48xbf16>, vector<48x128xbf16>, vector<64x128xf32> -> vector<64x128xf32>
    %6 = arith.addf %2, %5 : vector<64x128xf32>
    %c0_8 = arith.constant 0 : index
    %c0_9 = arith.constant 0 : index
    %7 = vector.load %arg5[%c0_8, %c0_9] : memref<1x128xf32, #tpu.memory_space<vmem>>, vector<1x128xf32>
    %8 = vector.broadcast %7 : vector<1x128xf32> to vector<64x128xf32>
    %9 = arith.addf %6, %8 : vector<64x128xf32>
    %10 = arith.truncf %9 : vector<64x128xf32> to vector<64x128xbf16>
    %c0_10 = arith.constant 0 : index
    %c0_11 = arith.constant 0 : index
    %11 = vector.load %arg6[%c0_10, %c0_11] : memref<64x128xbf16, #tpu.memory_space<vmem>>, vector<64x128xbf16>
    tpu.vector_store %arg6[%c0_10, %c0_11], %10 {strides = array<i32>} : memref<64x128xbf16, #tpu.memory_space<vmem>>, vector<64x128xbf16>,
    return
  }
  func.func @transform_0(%arg0: i32) -> (i32, i32) {
    %c0_i32 = arith.constant 0 : i32
    %c0_i32_0 = arith.constant 0 : i32
    return %arg0, %c0_i32 : i32, i32
  }
  func.func @transform_1(%arg0: i32) -> (i32, i32) {
    %c0_i32 = arith.constant 0 : i32
    %c0_i32_0 = arith.constant 0 : i32
    return %arg0, %c0_i32 : i32, i32
  }
  func.func @transform_2(%arg0: i32) -> (i32, i32) {
    %c0_i32 = arith.constant 0 : i32
    %c0_i32_0 = arith.constant 0 : i32
    %c0_i32_1 = arith.constant 0 : i32
    return %c0_i32, %c0_i32_0 : i32, i32
  }
  func.func @transform_3(%arg0: i32) -> (i32, i32) {
    %c0_i32 = arith.constant 0 : i32
    %c0_i32_0 = arith.constant 0 : i32
    %c0_i32_1 = arith.constant 0 : i32
    return %c0_i32, %c0_i32_0 : i32, i32
  }
  func.func @transform_4(%arg0: i32) -> (i32, i32) {
    %c0_i32 = arith.constant 0 : i32
    %c0_i32_0 = arith.constant 0 : i32
    %c0_i32_1 = arith.constant 0 : i32
    return %c0_i32, %c0_i32_0 : i32, i32
  }
  func.func @transform_5(%arg0: i32) -> (i32, i32) {
    %c0_i32 = arith.constant 0 : i32
    %c0_i32_0 = arith.constant 0 : i32
    return %arg0, %c0_i32 : i32, i32
  }
}

module attributes {stable_mosaic.version = 11 : i64} {
  func.func @_decoder_tail_kernel(%arg0: i32, %arg1: memref<64x128xbf16, #tpu.memory_space<vmem>>, %arg2: memref<64x128xbf16, #tpu.memory_space<vmem>>, %arg3: memref<64x128xbf16, #tpu.memory_space<vmem>>, %arg4: memref<64x128xbf16, #tpu.memory_space<vmem>>, %arg5: memref<128x128xbf16, #tpu.memory_space<vmem>>, %arg6: memref<128x128xbf16, #tpu.memory_space<vmem>>, %arg7: memref<128x128xbf16, #tpu.memory_space<vmem>>, %arg8: memref<128x128xbf16, #tpu.memory_space<vmem>>, %arg9: memref<1x128xf32, #tpu.memory_space<vmem>>, %arg10: memref<128x128xbf16, #tpu.memory_space<vmem>>, %arg11: memref<1x128xf32, #tpu.memory_space<vmem>>, %arg12: memref<64x128xbf16, #tpu.memory_space<vmem>>) attributes {dimension_semantics = [#tpu.dimension_semantics<parallel>], iteration_bounds = array<i64: 2>, scalar_prefetch = 0 : i64, scratch_operands = 0 : i64, tpu.core_type = #tpu.core_type<tc>, window_params = [{transform_indices = @transform_0, window_bounds = array<i64: 64, 128>}, {transform_indices = @transform_1, window_bounds = array<i64: 64, 128>}, {transform_indices = @transform_2, window_bounds = array<i64: 64, 128>}, {transform_indices = @transform_3, window_bounds = array<i64: 64, 128>}, {pipeline_mode = #tpu.pipeline_mode<synchronous>, transform_indices = @transform_4, window_bounds = array<i64: 128, 128>}, {pipeline_mode = #tpu.pipeline_mode<synchronous>, transform_indices = @transform_5, window_bounds = array<i64: 128, 128>}, {pipeline_mode = #tpu.pipeline_mode<synchronous>, transform_indices = @transform_6, window_bounds = array<i64: 128, 128>}, {pipeline_mode = #tpu.pipeline_mode<synchronous>, transform_indices = @transform_7, window_bounds = array<i64: 128, 128>}, {pipeline_mode = #tpu.pipeline_mode<synchronous>, transform_indices = @transform_8, window_bounds = array<i64: 1, 128>}, {pipeline_mode = #tpu.pipeline_mode<synchronous>, transform_indices = @transform_9, window_bounds = array<i64: 128, 128>}, {pipeline_mode = #tpu.pipeline_mode<synchronous>, transform_indices = @transform_10, window_bounds = array<i64: 1, 128>}, {transform_indices = @transform_11, window_bounds = array<i64: 64, 128>}]} {
    %c0 = arith.constant 0 : index
    %c0_0 = arith.constant 0 : index
    %0 = vector.load %arg1[%c0, %c0_0] : memref<64x128xbf16, #tpu.memory_space<vmem>>, vector<64x128xbf16>
    %c0_1 = arith.constant 0 : index
    %c0_2 = arith.constant 0 : index
    %1 = vector.load %arg5[%c0_1, %c0_2] : memref<128x128xbf16, #tpu.memory_space<vmem>>, vector<128x128xbf16>
    %cst = arith.constant dense<0.000000e+00> : vector<64x128xf32>
    %2 = tpu.matmul %0, %1, %cst {dimension_numbers = #tpu.dot_dimension_numbers<[1], [0], [0], [1], [0, 0, 1, 1], [], []>} : vector<64x128xbf16>, vector<128x128xbf16>, vector<64x128xf32> -> vector<64x128xf32>
    %c0_3 = arith.constant 0 : index
    %c0_4 = arith.constant 0 : index
    %3 = vector.load %arg2[%c0_3, %c0_4] : memref<64x128xbf16, #tpu.memory_space<vmem>>, vector<64x128xbf16>
    %c0_5 = arith.constant 0 : index
    %c0_6 = arith.constant 0 : index
    %4 = vector.load %arg6[%c0_5, %c0_6] : memref<128x128xbf16, #tpu.memory_space<vmem>>, vector<128x128xbf16>
    %cst_7 = arith.constant dense<0.000000e+00> : vector<64x128xf32>
    %5 = tpu.matmul %3, %4, %cst_7 {dimension_numbers = #tpu.dot_dimension_numbers<[1], [0], [0], [1], [0, 0, 1, 1], [], []>} : vector<64x128xbf16>, vector<128x128xbf16>, vector<64x128xf32> -> vector<64x128xf32>
    %6 = arith.addf %2, %5 : vector<64x128xf32>
    %c0_8 = arith.constant 0 : index
    %c0_9 = arith.constant 0 : index
    %7 = vector.load %arg3[%c0_8, %c0_9] : memref<64x128xbf16, #tpu.memory_space<vmem>>, vector<64x128xbf16>
    %c0_10 = arith.constant 0 : index
    %c0_11 = arith.constant 0 : index
    %8 = vector.load %arg7[%c0_10, %c0_11] : memref<128x128xbf16, #tpu.memory_space<vmem>>, vector<128x128xbf16>
    %cst_12 = arith.constant dense<0.000000e+00> : vector<64x128xf32>
    %9 = tpu.matmul %7, %8, %cst_12 {dimension_numbers = #tpu.dot_dimension_numbers<[1], [0], [0], [1], [0, 0, 1, 1], [], []>} : vector<64x128xbf16>, vector<128x128xbf16>, vector<64x128xf32> -> vector<64x128xf32>
    %10 = arith.addf %6, %9 : vector<64x128xf32>
    %c0_13 = arith.constant 0 : index
    %c0_14 = arith.constant 0 : index
    %11 = vector.load %arg4[%c0_13, %c0_14] : memref<64x128xbf16, #tpu.memory_space<vmem>>, vector<64x128xbf16>
    %c0_15 = arith.constant 0 : index
    %c0_16 = arith.constant 0 : index
    %12 = vector.load %arg8[%c0_15, %c0_16] : memref<128x128xbf16, #tpu.memory_space<vmem>>, vector<128x128xbf16>
    %cst_17 = arith.constant dense<0.000000e+00> : vector<64x128xf32>
    %13 = tpu.matmul %11, %12, %cst_17 {dimension_numbers = #tpu.dot_dimension_numbers<[1], [0], [0], [1], [0, 0, 1, 1], [], []>} : vector<64x128xbf16>, vector<128x128xbf16>, vector<64x128xf32> -> vector<64x128xf32>
    %14 = arith.addf %10, %13 : vector<64x128xf32>
    %c0_18 = arith.constant 0 : index
    %c0_19 = arith.constant 0 : index
    %15 = vector.load %arg9[%c0_18, %c0_19] : memref<1x128xf32, #tpu.memory_space<vmem>>, vector<1x128xf32>
    %16 = vector.broadcast %15 : vector<1x128xf32> to vector<64x128xf32>
    %17 = arith.addf %14, %16 : vector<64x128xf32>
    %cst_20 = arith.constant 0.000000e+00 : f32
    %18 = vector.broadcast %cst_20 : f32 to vector<64x128xf32>
    %19 = arith.maximumf %17, %18 : vector<64x128xf32>
    %20 = arith.truncf %19 : vector<64x128xf32> to vector<64x128xbf16>
    %c0_21 = arith.constant 0 : index
    %c0_22 = arith.constant 0 : index
    %21 = vector.load %arg10[%c0_21, %c0_22] : memref<128x128xbf16, #tpu.memory_space<vmem>>, vector<128x128xbf16>
    %cst_23 = arith.constant dense<0.000000e+00> : vector<64x128xf32>
    %22 = tpu.matmul %20, %21, %cst_23 {dimension_numbers = #tpu.dot_dimension_numbers<[1], [0], [0], [1], [0, 0, 1, 1], [], []>} : vector<64x128xbf16>, vector<128x128xbf16>, vector<64x128xf32> -> vector<64x128xf32>
    %c0_24 = arith.constant 0 : index
    %c0_25 = arith.constant 0 : index
    %23 = vector.load %arg11[%c0_24, %c0_25] : memref<1x128xf32, #tpu.memory_space<vmem>>, vector<1x128xf32>
    %24 = vector.broadcast %23 : vector<1x128xf32> to vector<64x128xf32>
    %25 = arith.addf %22, %24 : vector<64x128xf32>
    %26 = arith.truncf %25 : vector<64x128xf32> to vector<64x128xbf16>
    %c0_26 = arith.constant 0 : index
    %c0_27 = arith.constant 0 : index
    %27 = vector.load %arg12[%c0_26, %c0_27] : memref<64x128xbf16, #tpu.memory_space<vmem>>, vector<64x128xbf16>
    tpu.vector_store %arg12[%c0_26, %c0_27], %26 {strides = array<i32>} : memref<64x128xbf16, #tpu.memory_space<vmem>>, vector<64x128xbf16>,
    return
  }
  func.func @transform_0(%arg0: i32) -> (i32, i32) {
    %c0_i32 = arith.constant 0 : i32
    %c0_i32_0 = arith.constant 0 : i32
    return %arg0, %c0_i32 : i32, i32
  }
  func.func @transform_1(%arg0: i32) -> (i32, i32) {
    %c0_i32 = arith.constant 0 : i32
    %c0_i32_0 = arith.constant 0 : i32
    return %arg0, %c0_i32 : i32, i32
  }
  func.func @transform_2(%arg0: i32) -> (i32, i32) {
    %c0_i32 = arith.constant 0 : i32
    %c0_i32_0 = arith.constant 0 : i32
    return %arg0, %c0_i32 : i32, i32
  }
  func.func @transform_3(%arg0: i32) -> (i32, i32) {
    %c0_i32 = arith.constant 0 : i32
    %c0_i32_0 = arith.constant 0 : i32
    return %arg0, %c0_i32 : i32, i32
  }
  func.func @transform_4(%arg0: i32) -> (i32, i32) {
    %c0_i32 = arith.constant 0 : i32
    %c0_i32_0 = arith.constant 0 : i32
    %c0_i32_1 = arith.constant 0 : i32
    return %c0_i32, %c0_i32_0 : i32, i32
  }
  func.func @transform_5(%arg0: i32) -> (i32, i32) {
    %c0_i32 = arith.constant 0 : i32
    %c0_i32_0 = arith.constant 0 : i32
    %c0_i32_1 = arith.constant 0 : i32
    return %c0_i32, %c0_i32_0 : i32, i32
  }
  func.func @transform_6(%arg0: i32) -> (i32, i32) {
    %c0_i32 = arith.constant 0 : i32
    %c0_i32_0 = arith.constant 0 : i32
    %c0_i32_1 = arith.constant 0 : i32
    return %c0_i32, %c0_i32_0 : i32, i32
  }
  func.func @transform_7(%arg0: i32) -> (i32, i32) {
    %c0_i32 = arith.constant 0 : i32
    %c0_i32_0 = arith.constant 0 : i32
    %c0_i32_1 = arith.constant 0 : i32
    return %c0_i32, %c0_i32_0 : i32, i32
  }
  func.func @transform_8(%arg0: i32) -> (i32, i32) {
    %c0_i32 = arith.constant 0 : i32
    %c0_i32_0 = arith.constant 0 : i32
    %c0_i32_1 = arith.constant 0 : i32
    return %c0_i32, %c0_i32_0 : i32, i32
  }
  func.func @transform_9(%arg0: i32) -> (i32, i32) {
    %c0_i32 = arith.constant 0 : i32
    %c0_i32_0 = arith.constant 0 : i32
    %c0_i32_1 = arith.constant 0 : i32
    return %c0_i32, %c0_i32_0 : i32, i32
  }
  func.func @transform_10(%arg0: i32) -> (i32, i32) {
    %c0_i32 = arith.constant 0 : i32
    %c0_i32_0 = arith.constant 0 : i32
    %c0_i32_1 = arith.constant 0 : i32
    return %c0_i32, %c0_i32_0 : i32, i32
  }
  func.func @transform_11(%arg0: i32) -> (i32, i32) {
    %c0_i32 = arith.constant 0 : i32
    %c0_i32_0 = arith.constant 0 : i32
    return %arg0, %c0_i32 : i32, i32
  }
}

</mosaic_0001>

<llo_original>
// kernel: encoder_decoder_forward.7
$region0: #{encoder_decoder_forward.7}
  #allocation0 [shape = 'u32[]', space=smem, size = 0x4, offset = 0x4, fixed_abs, tag = 'smem constant byte address 0x4 - core index']
  #allocation1 [shape = 'u32[72,128]{1,0:T(1,128)}', space=vmem, size = 0x9000, scoped, tag = 'internal scratch']
  %s0 = inlined_call_operand.vmem [shape: bf16[16,768], index: 0, kind: input, shape index: {}]
  %s1 = inlined_call_operand.vmem [shape: bf16[16,768], index: 1, kind: input, shape index: {}]
  %s2 = inlined_call_operand.vmem [shape: bf16[768,128], index: 2, kind: input, shape index: {}]
  %s3 = inlined_call_operand.vmem [shape: bf16[768,128], index: 3, kind: input, shape index: {}]
  %s4 = inlined_call_operand.vmem [shape: f32[1,128], index: 4, kind: input, shape index: {}]
  %s5 = inlined_call_operand.vmem [shape: bf16[16,128], index: 5, kind: output, shape index: {}]
  %s6 = sld [smem:[#allocation0]]
  $region30: #{encoder_decoder_forward.7} parent=0
    _
  %s8 = ssub.s32 1, %s6
  %s9 = scalar_select 0, %s8, %s6
  // Predicated region
  $region2: #{encoder_decoder_forward.7} parent=0 // pred_check
    _
  $region3: #{encoder_decoder_forward.7} parent=0 // pred_check_branch
    %11 = sbr.rel (0) target = $region5
  $region4: #{encoder_decoder_forward.7} parent=0 // pred_region
    _
  $region5: #{encoder_decoder_forward.7} parent=0 // pred_fallthru
    _
  // Predicated region
  $region6: #{encoder_decoder_forward.7} parent=0 // pred_check
    _
  $region7: #{encoder_decoder_forward.7} parent=0 // pred_check_branch
    %13 = sbr.rel (0) target = $region9
  $region8: #{encoder_decoder_forward.7} parent=0 // pred_region
    _
  $region9: #{encoder_decoder_forward.7} parent=0 // pred_fallthru
    _
  // Predicated region
  $region10: #{encoder_decoder_forward.7} parent=0 // pred_check
    _
  $region11: #{encoder_decoder_forward.7} parent=0 // pred_check_branch
    %15 = sbr.rel (0) target = $region13
  $region12: #{encoder_decoder_forward.7} parent=0 // pred_region
    _
  $region13: #{encoder_decoder_forward.7} parent=0 // pred_fallthru
    _
  // Predicated region
  $region14: #{encoder_decoder_forward.7} parent=0 // pred_check
    _
  $region15: #{encoder_decoder_forward.7} parent=0 // pred_check_branch
    %17 = sbr.rel (0) target = $region17
  $region16: #{encoder_decoder_forward.7} parent=0 // pred_region
    _
  $region17: #{encoder_decoder_forward.7} parent=0 // pred_fallthru
    _
  // Predicated region
  $region18: #{encoder_decoder_forward.7} parent=0 // pred_check
    _
  $region19: #{encoder_decoder_forward.7} parent=0 // pred_check_branch
    %19 = sbr.rel (0) target = $region21
  $region20: #{encoder_decoder_forward.7} parent=0 // pred_region
    _
  $region21: #{encoder_decoder_forward.7} parent=0 // pred_fallthru
    _
  %v20 = vld [vmem:[%s0] sm:$0xff]
  %v21 = vld [vmem:[%s0 + $0x8] sm:$0xff]
  %v22 = vld [vmem:[%s0 + $0x10] sm:$0xff]
  %v23 = vld [vmem:[%s0 + $0x18] sm:$0xff]
  %v24 = vld [vmem:[%s0 + $0x20] sm:$0xff]
  %v25 = vld [vmem:[%s0 + $0x28] sm:$0xff]
  %v26 = vld [vmem:[%s2] sm:$0xf]
  %v27 = vld [vmem:[%s2 + $0x4] sm:$0xf]
  %v28 = vld [vmem:[%s2 + $0x8] sm:$0xf]
  %v29 = vld [vmem:[%s2 + $0xc] sm:$0xf]
  %v30 = vld [vmem:[%s2 + $0x10] sm:$0xf]
  %v31 = vld [vmem:[%s2 + $0x14] sm:$0xf]
  %v32 = vld [vmem:[%s2 + $0x18] sm:$0xf]
  %v33 = vld [vmem:[%s2 + $0x1c] sm:$0xf]
  %v34 = vld [vmem:[%s2 + $0x20] sm:$0xf]
  %v35 = vld [vmem:[%s2 + $0x24] sm:$0xf]
  %v36 = vld [vmem:[%s2 + $0x28] sm:$0xf]
  %v37 = vld [vmem:[%s2 + $0x2c] sm:$0xf]
  %v38 = vld [vmem:[%s2 + $0x30] sm:$0xf]
  %v39 = vld [vmem:[%s2 + $0x34] sm:$0xf]
  %v40 = vld [vmem:[%s2 + $0x38] sm:$0xf]
  %v41 = vld [vmem:[%s2 + $0x3c] sm:$0xf]
  %v42 = vld [vmem:[%s2 + $0x40] sm:$0xf]
  %v43 = vld [vmem:[%s2 + $0x44] sm:$0xf]
  %v44 = vld [vmem:[%s2 + $0x48] sm:$0xf]
  %v45 = vld [vmem:[%s2 + $0x4c] sm:$0xf]
  %v46 = vld [vmem:[%s2 + $0x50] sm:$0xf]
  %v47 = vld [vmem:[%s2 + $0x54] sm:$0xf]
  %v48 = vld [vmem:[%s2 + $0x58] sm:$0xf]
  %v49 = vld [vmem:[%s2 + $0x5c] sm:$0xf]
  %v50 = vld [vmem:[%s2 + $0x60] sm:$0xf]
  %v51 = vld [vmem:[%s2 + $0x64] sm:$0xf]
  %v52 = vld [vmem:[%s2 + $0x68] sm:$0xf]
  %v53 = vld [vmem:[%s2 + $0x6c] sm:$0xf]
  %v54 = vld [vmem:[%s2 + $0x70] sm:$0xf]
  %v55 = vld [vmem:[%s2 + $0x74] sm:$0xf]
  %v56 = vld [vmem:[%s2 + $0x78] sm:$0xf]
  %v57 = vld [vmem:[%s2 + $0x7c] sm:$0xf]
  %v58 = vld [vmem:[%s2 + $0x80] sm:$0xf]
  %v59 = vld [vmem:[%s2 + $0x84] sm:$0xf]
  %v60 = vld [vmem:[%s2 + $0x88] sm:$0xf]
  %v61 = vld [vmem:[%s2 + $0x8c] sm:$0xf]
  %v62 = vld [vmem:[%s2 + $0x90] sm:$0xf]
  %v63 = vld [vmem:[%s2 + $0x94] sm:$0xf]
  %v64 = vld [vmem:[%s2 + $0x98] sm:$0xf]
  %v65 = vld [vmem:[%s2 + $0x9c] sm:$0xf]
  %v66 = vld [vmem:[%s2 + $0xa0] sm:$0xf]
  %v67 = vld [vmem:[%s2 + $0xa4] sm:$0xf]
  %v68 = vld [vmem:[%s2 + $0xa8] sm:$0xf]
  %v69 = vld [vmem:[%s2 + $0xac] sm:$0xf]
  %v70 = vld [vmem:[%s2 + $0xb0] sm:$0xf]
  %v71 = vld [vmem:[%s2 + $0xb4] sm:$0xf]
  %v72 = vld [vmem:[%s2 + $0xb8] sm:$0xf]
  %v73 = vld [vmem:[%s2 + $0xbc] sm:$0xf]
  %v74 = vld [vmem:[%s2 + $0xc0] sm:$0xf]
  %v75 = vld [vmem:[%s2 + $0xc4] sm:$0xf]
  %v76 = vld [vmem:[%s2 + $0xc8] sm:$0xf]
  %v77 = vld [vmem:[%s2 + $0xcc] sm:$0xf]
  %v78 = vld [vmem:[%s2 + $0xd0] sm:$0xf]
  %v79 = vld [vmem:[%s2 + $0xd4] sm:$0xf]
  %v80 = vld [vmem:[%s2 + $0xd8] sm:$0xf]
  %v81 = vld [vmem:[%s2 + $0xdc] sm:$0xf]
  %v82 = vld [vmem:[%s2 + $0xe0] sm:$0xf]
  %v83 = vld [vmem:[%s2 + $0xe4] sm:$0xf]
  %v84 = vld [vmem:[%s2 + $0xe8] sm:$0xf]
  %v85 = vld [vmem:[%s2 + $0xec] sm:$0xf]
  %v86 = vld [vmem:[%s2 + $0xf0] sm:$0xf]
  %v87 = vld [vmem:[%s2 + $0xf4] sm:$0xf]
  %v88 = vld [vmem:[%s2 + $0xf8] sm:$0xf]
  %v89 = vld [vmem:[%s2 + $0xfc] sm:$0xf]
  %v90 = vld [vmem:[%s2 + $0x100] sm:$0xf]
  %v91 = vld [vmem:[%s2 + $0x104] sm:$0xf]
  %v92 = vld [vmem:[%s2 + $0x108] sm:$0xf]
  %v93 = vld [vmem:[%s2 + $0x10c] sm:$0xf]
  %v94 = vld [vmem:[%s2 + $0x110] sm:$0xf]
  %v95 = vld [vmem:[%s2 + $0x114] sm:$0xf]
  %v96 = vld [vmem:[%s2 + $0x118] sm:$0xf]
  %v97 = vld [vmem:[%s2 + $0x11c] sm:$0xf]
  %v98 = vld [vmem:[%s2 + $0x120] sm:$0xf]
  %v99 = vld [vmem:[%s2 + $0x124] sm:$0xf]
  %v100 = vld [vmem:[%s2 + $0x128] sm:$0xf]
  %v101 = vld [vmem:[%s2 + $0x12c] sm:$0xf]
  %v102 = vld [vmem:[%s2 + $0x130] sm:$0xf]
  %v103 = vld [vmem:[%s2 + $0x134] sm:$0xf]
  %v104 = vld [vmem:[%s2 + $0x138] sm:$0xf]
  %v105 = vld [vmem:[%s2 + $0x13c] sm:$0xf]
  %v106 = vld [vmem:[%s2 + $0x140] sm:$0xf]
  %v107 = vld [vmem:[%s2 + $0x144] sm:$0xf]
  %v108 = vld [vmem:[%s2 + $0x148] sm:$0xf]
  %v109 = vld [vmem:[%s2 + $0x14c] sm:$0xf]
  %v110 = vld [vmem:[%s2 + $0x150] sm:$0xf]
  %v111 = vld [vmem:[%s2 + $0x154] sm:$0xf]
  %v112 = vld [vmem:[%s2 + $0x158] sm:$0xf]
  %v113 = vld [vmem:[%s2 + $0x15c] sm:$0xf]
  %v114 = vld [vmem:[%s2 + $0x160] sm:$0xf]
  %v115 = vld [vmem:[%s2 + $0x164] sm:$0xf]
  %v116 = vld [vmem:[%s2 + $0x168] sm:$0xf]
  %v117 = vld [vmem:[%s2 + $0x16c] sm:$0xf]
  %v118 = vld [vmem:[%s2 + $0x170] sm:$0xf]
  %v119 = vld [vmem:[%s2 + $0x174] sm:$0xf]
  %v120 = vld [vmem:[%s2 + $0x178] sm:$0xf]
  %v121 = vld [vmem:[%s2 + $0x17c] sm:$0xf]
  %v122 = vld [vmem:[%s1] sm:$0xff]
  %v123 = vld [vmem:[%s1 + $0x8] sm:$0xff]
  %v124 = vld [vmem:[%s1 + $0x10] sm:$0xff]
  %v125 = vld [vmem:[%s1 + $0x18] sm:$0xff]
  %v126 = vld [vmem:[%s1 + $0x20] sm:$0xff]
  %v127 = vld [vmem:[%s1 + $0x28] sm:$0xff]
  %v128 = vld [vmem:[%s3] sm:$0xf]
  %v129 = vld [vmem:[%s3 + $0x4] sm:$0xf]
  %v130 = vld [vmem:[%s3 + $0x8] sm:$0xf]
  %v131 = vld [vmem:[%s3 + $0xc] sm:$0xf]
  %v132 = vld [vmem:[%s3 + $0x10] sm:$0xf]
  %v133 = vld [vmem:[%s3 + $0x14] sm:$0xf]
  %v134 = vld [vmem:[%s3 + $0x18] sm:$0xf]
  %v135 = vld [vmem:[%s3 + $0x1c] sm:$0xf]
  %v136 = vld [vmem:[%s3 + $0x20] sm:$0xf]
  %v137 = vld [vmem:[%s3 + $0x24] sm:$0xf]
  %v138 = vld [vmem:[%s3 + $0x28] sm:$0xf]
  %v139 = vld [vmem:[%s3 + $0x2c] sm:$0xf]
  %v140 = vld [vmem:[%s3 + $0x30] sm:$0xf]
  %v141 = vld [vmem:[%s3 + $0x34] sm:$0xf]
  %v142 = vld [vmem:[%s3 + $0x38] sm:$0xf]
  %v143 = vld [vmem:[%s3 + $0x3c] sm:$0xf]
  %v144 = vld [vmem:[%s3 + $0x40] sm:$0xf]
  %v145 = vld [vmem:[%s3 + $0x44] sm:$0xf]
  %v146 = vld [vmem:[%s3 + $0x48] sm:$0xf]
  %v147 = vld [vmem:[%s3 + $0x4c] sm:$0xf]
  %v148 = vld [vmem:[%s3 + $0x50] sm:$0xf]
  %v149 = vld [vmem:[%s3 + $0x54] sm:$0xf]
  %v150 = vld [vmem:[%s3 + $0x58] sm:$0xf]
  %v151 = vld [vmem:[%s3 + $0x5c] sm:$0xf]
  %v152 = vld [vmem:[%s3 + $0x60] sm:$0xf]
  %v153 = vld [vmem:[%s3 + $0x64] sm:$0xf]
  %v154 = vld [vmem:[%s3 + $0x68] sm:$0xf]
  %v155 = vld [vmem:[%s3 + $0x6c] sm:$0xf]
  %v156 = vld [vmem:[%s3 + $0x70] sm:$0xf]
  %v157 = vld [vmem:[%s3 + $0x74] sm:$0xf]
  %v158 = vld [vmem:[%s3 + $0x78] sm:$0xf]
  %v159 = vld [vmem:[%s3 + $0x7c] sm:$0xf]
  %v160 = vld [vmem:[%s3 + $0x80] sm:$0xf]
  %v161 = vld [vmem:[%s3 + $0x84] sm:$0xf]
  %v162 = vld [vmem:[%s3 + $0x88] sm:$0xf]
  %v163 = vld [vmem:[%s3 + $0x8c] sm:$0xf]
  %v164 = vld [vmem:[%s3 + $0x90] sm:$0xf]
  %v165 = vld [vmem:[%s3 + $0x94] sm:$0xf]
  %v166 = vld [vmem:[%s3 + $0x98] sm:$0xf]
  %v167 = vld [vmem:[%s3 + $0x9c] sm:$0xf]
  %v168 = vld [vmem:[%s3 + $0xa0] sm:$0xf]
  %v169 = vld [vmem:[%s3 + $0xa4] sm:$0xf]
  %v170 = vld [vmem:[%s3 + $0xa8] sm:$0xf]
  %v171 = vld [vmem:[%s3 + $0xac] sm:$0xf]
  %v172 = vld [vmem:[%s3 + $0xb0] sm:$0xf]
  %v173 = vld [vmem:[%s3 + $0xb4] sm:$0xf]
  %v174 = vld [vmem:[%s3 + $0xb8] sm:$0xf]
  %v175 = vld [vmem:[%s3 + $0xbc] sm:$0xf]
  %v176 = vld [vmem:[%s3 + $0xc0] sm:$0xf]
  %v177 = vld [vmem:[%s3 + $0xc4] sm:$0xf]
  %v178 = vld [vmem:[%s3 + $0xc8] sm:$0xf]
  %v179 = vld [vmem:[%s3 + $0xcc] sm:$0xf]
  %v180 = vld [vmem:[%s3 + $0xd0] sm:$0xf]
  %v181 = vld [vmem:[%s3 + $0xd4] sm:$0xf]
  %v182 = vld [vmem:[%s3 + $0xd8] sm:$0xf]
  %v183 = vld [vmem:[%s3 + $0xdc] sm:$0xf]
  %v184 = vld [vmem:[%s3 + $0xe0] sm:$0xf]
  %v185 = vld [vmem:[%s3 + $0xe4] sm:$0xf]
  %v186 = vld [vmem:[%s3 + $0xe8] sm:$0xf]
  %v187 = vld [vmem:[%s3 + $0xec] sm:$0xf]
  %v188 = vld [vmem:[%s3 + $0xf0] sm:$0xf]
  %v189 = vld [vmem:[%s3 + $0xf4] sm:$0xf]
  %v190 = vld [vmem:[%s3 + $0xf8] sm:$0xf]
  %v191 = vld [vmem:[%s3 + $0xfc] sm:$0xf]
  %v192 = vld [vmem:[%s3 + $0x100] sm:$0xf]
  %v193 = vld [vmem:[%s3 + $0x104] sm:$0xf]
  %v194 = vld [vmem:[%s3 + $0x108] sm:$0xf]
  %v195 = vld [vmem:[%s3 + $0x10c] sm:$0xf]
  %v196 = vld [vmem:[%s3 + $0x110] sm:$0xf]
  %v197 = vld [vmem:[%s3 + $0x114] sm:$0xf]
  %v198 = vld [vmem:[%s3 + $0x118] sm:$0xf]
  %v199 = vld [vmem:[%s3 + $0x11c] sm:$0xf]
  %v200 = vld [vmem:[%s3 + $0x120] sm:$0xf]
  %v201 = vld [vmem:[%s3 + $0x124] sm:$0xf]
  %v202 = vld [vmem:[%s3 + $0x128] sm:$0xf]
  %v203 = vld [vmem:[%s3 + $0x12c] sm:$0xf]
  %v204 = vld [vmem:[%s3 + $0x130] sm:$0xf]
  %v205 = vld [vmem:[%s3 + $0x134] sm:$0xf]
  %v206 = vld [vmem:[%s3 + $0x138] sm:$0xf]
  %v207 = vld [vmem:[%s3 + $0x13c] sm:$0xf]
  %v208 = vld [vmem:[%s3 + $0x140] sm:$0xf]
  %v209 = vld [vmem:[%s3 + $0x144] sm:$0xf]
  %v210 = vld [vmem:[%s3 + $0x148] sm:$0xf]
  %v211 = vld [vmem:[%s3 + $0x14c] sm:$0xf]
  %v212 = vld [vmem:[%s3 + $0x150] sm:$0xf]
  %v213 = vld [vmem:[%s3 + $0x154] sm:$0xf]
  %v214 = vld [vmem:[%s3 + $0x158] sm:$0xf]
  %v215 = vld [vmem:[%s3 + $0x15c] sm:$0xf]
  %v216 = vld [vmem:[%s3 + $0x160] sm:$0xf]
  %v217 = vld [vmem:[%s3 + $0x164] sm:$0xf]
  %v218 = vld [vmem:[%s3 + $0x168] sm:$0xf]
  %v219 = vld [vmem:[%s3 + $0x16c] sm:$0xf]
  %v220 = vld [vmem:[%s3 + $0x170] sm:$0xf]
  %v221 = vld [vmem:[%s3 + $0x174] sm:$0xf]
  %v222 = vld [vmem:[%s3 + $0x178] sm:$0xf]
  %v223 = vld [vmem:[%s3 + $0x17c] sm:$0xf]
  %v230 = vunpack.c.l.b16 %v122
  %v231 = vunpack.c.h.b16 %v122
  %v232 = vunpack.c.l.b16 %v123
  %v233 = vunpack.c.h.b16 %v123
  %v234 = vunpack.c.l.b16 %v124
  %v235 = vunpack.c.h.b16 %v124
  %v236 = vunpack.c.l.b16 %v125
  %v237 = vunpack.c.h.b16 %v125
  %v238 = vunpack.c.l.b16 %v126
  %v239 = vunpack.c.h.b16 %v126
  %v240 = vunpack.c.l.b16 %v127
  %v241 = vunpack.c.h.b16 %v127
  %v242 = vpack.c.b16 %v236, %v230
  %v243 = vpack.c.b16 %v237, %v231
  %v244 = vpack.c.b16 %v238, %v232
  %v245 = vpack.c.b16 %v239, %v233
  %v246 = vpack.c.b16 %v240, %v234
  %v247 = vpack.c.b16 %v241, %v235
  %v350 = vunpack.c.l.b16 %v128
  %v351 = vunpack.c.l.b16 %v129
  %v352 = vunpack.c.l.b16 %v130
  %v353 = vunpack.c.l.b16 %v131
  %v354 = vunpack.c.l.b16 %v132
  %v355 = vunpack.c.l.b16 %v133
  %v356 = vunpack.c.l.b16 %v134
  %v357 = vunpack.c.l.b16 %v135
  %v358 = vunpack.c.l.b16 %v136
  %v359 = vunpack.c.l.b16 %v137
  %v360 = vunpack.c.l.b16 %v138
  %v361 = vunpack.c.l.b16 %v139
  %v362 = vunpack.c.l.b16 %v140
  %v363 = vunpack.c.l.b16 %v141
  %v364 = vunpack.c.l.b16 %v142
  %v365 = vunpack.c.l.b16 %v143
  %v366 = vunpack.c.l.b16 %v144
  %v367 = vunpack.c.l.b16 %v145
  %v368 = vunpack.c.l.b16 %v146
  %v369 = vunpack.c.l.b16 %v147
  %v370 = vunpack.c.l.b16 %v148
  %v371 = vunpack.c.l.b16 %v149
  %v372 = vunpack.c.l.b16 %v150
  %v373 = vunpack.c.l.b16 %v151
  %v374 = vunpack.c.l.b16 %v152
  %v375 = vunpack.c.l.b16 %v153
  %v376 = vunpack.c.l.b16 %v154
  %v377 = vunpack.c.l.b16 %v155
  %v378 = vunpack.c.l.b16 %v156
  %v379 = vunpack.c.l.b16 %v157
  %v380 = vunpack.c.l.b16 %v158
  %v381 = vunpack.c.l.b16 %v159
  %v382 = vunpack.c.l.b16 %v160
  %v383 = vunpack.c.l.b16 %v161
  %v384 = vunpack.c.l.b16 %v162
  %v385 = vunpack.c.l.b16 %v163
  %v386 = vunpack.c.l.b16 %v164
  %v387 = vunpack.c.l.b16 %v165
  %v388 = vunpack.c.l.b16 %v166
  %v389 = vunpack.c.l.b16 %v167
  %v390 = vunpack.c.l.b16 %v168
  %v391 = vunpack.c.l.b16 %v169
  %v392 = vunpack.c.l.b16 %v170
  %v393 = vunpack.c.l.b16 %v171
  %v394 = vunpack.c.l.b16 %v172
  %v395 = vunpack.c.l.b16 %v173
  %v396 = vunpack.c.l.b16 %v174
  %v397 = vunpack.c.l.b16 %v175
  %v398 = vunpack.c.l.b16 %v176
  %v399 = vunpack.c.l.b16 %v177
  %v400 = vunpack.c.l.b16 %v178
  %v401 = vunpack.c.l.b16 %v179
  %v402 = vunpack.c.l.b16 %v180
  %v403 = vunpack.c.l.b16 %v181
  %v404 = vunpack.c.l.b16 %v182
  %v405 = vunpack.c.l.b16 %v183
  %v406 = vunpack.c.l.b16 %v184
  %v407 = vunpack.c.l.b16 %v185
  %v408 = vunpack.c.l.b16 %v186
  %v409 = vunpack.c.l.b16 %v187
  %v410 = vunpack.c.l.b16 %v188
  %v411 = vunpack.c.l.b16 %v189
  %v412 = vunpack.c.l.b16 %v190
  %v413 = vunpack.c.l.b16 %v191
  %v414 = vunpack.c.l.b16 %v192
  %v415 = vunpack.c.l.b16 %v193
  %v416 = vunpack.c.l.b16 %v194
  %v417 = vunpack.c.l.b16 %v195
  %v418 = vunpack.c.l.b16 %v196
  %v419 = vunpack.c.l.b16 %v197
  %v420 = vunpack.c.l.b16 %v198
  %v421 = vunpack.c.l.b16 %v199
  %v422 = vunpack.c.l.b16 %v200
  %v423 = vunpack.c.l.b16 %v201
  %v424 = vunpack.c.l.b16 %v202
  %v425 = vunpack.c.l.b16 %v203
  %v426 = vunpack.c.l.b16 %v204
  %v427 = vunpack.c.l.b16 %v205
  %v428 = vunpack.c.l.b16 %v206
  %v429 = vunpack.c.l.b16 %v207
  %v430 = vunpack.c.l.b16 %v208
  %v431 = vunpack.c.l.b16 %v209
  %v432 = vunpack.c.l.b16 %v210
  %v433 = vunpack.c.l.b16 %v211
  %v434 = vunpack.c.l.b16 %v212
  %v435 = vunpack.c.l.b16 %v213
  %v436 = vunpack.c.l.b16 %v214
  %v437 = vunpack.c.l.b16 %v215
  %v438 = vunpack.c.l.b16 %v216
  %v439 = vunpack.c.l.b16 %v217
  %v440 = vunpack.c.l.b16 %v218
  %v441 = vunpack.c.l.b16 %v219
  %v442 = vunpack.c.l.b16 %v220
  %v443 = vunpack.c.l.b16 %v221
  %v444 = vunpack.c.l.b16 %v222
  %v445 = vunpack.c.l.b16 %v223
  %v446 = vpack.c.b16 %v351, %v350
  %v447 = vpack.c.b16 %v353, %v352
  %v448 = vpack.c.b16 %v355, %v354
  %v449 = vpack.c.b16 %v357, %v356
  %v450 = vpack.c.b16 %v359, %v358
  %v451 = vpack.c.b16 %v361, %v360
  %v452 = vpack.c.b16 %v363, %v362
  %v453 = vpack.c.b16 %v365, %v364
  %v454 = vpack.c.b16 %v367, %v366
  %v455 = vpack.c.b16 %v369, %v368
  %v456 = vpack.c.b16 %v371, %v370
  %v457 = vpack.c.b16 %v373, %v372
  %v458 = vpack.c.b16 %v375, %v374
  %v459 = vpack.c.b16 %v377, %v376
  %v460 = vpack.c.b16 %v379, %v378
  %v461 = vpack.c.b16 %v381, %v380
  %v462 = vpack.c.b16 %v383, %v382
  %v463 = vpack.c.b16 %v385, %v384
  %v464 = vpack.c.b16 %v387, %v386
  %v465 = vpack.c.b16 %v389, %v388
  %v466 = vpack.c.b16 %v391, %v390
  %v467 = vpack.c.b16 %v393, %v392
  %v468 = vpack.c.b16 %v395, %v394
  %v469 = vpack.c.b16 %v397, %v396
  %v470 = vpack.c.b16 %v399, %v398
  %v471 = vpack.c.b16 %v401, %v400
  %v472 = vpack.c.b16 %v403, %v402
  %v473 = vpack.c.b16 %v405, %v404
  %v474 = vpack.c.b16 %v407, %v406
  %v475 = vpack.c.b16 %v409, %v408
  %v476 = vpack.c.b16 %v411, %v410
  %v477 = vpack.c.b16 %v413, %v412
  %v478 = vpack.c.b16 %v415, %v414
  %v479 = vpack.c.b16 %v417, %v416
  %v480 = vpack.c.b16 %v419, %v418
  %v481 = vpack.c.b16 %v421, %v420
  %v482 = vpack.c.b16 %v423, %v422
  %v483 = vpack.c.b16 %v425, %v424
  %v484 = vpack.c.b16 %v427, %v426
  %v485 = vpack.c.b16 %v429, %v428
  %v486 = vpack.c.b16 %v431, %v430
  %v487 = vpack.c.b16 %v433, %v432
  %v488 = vpack.c.b16 %v435, %v434
  %v489 = vpack.c.b16 %v437, %v436
  %v490 = vpack.c.b16 %v439, %v438
  %v491 = vpack.c.b16 %v441, %v440
  %v492 = vpack.c.b16 %v443, %v442
  %v493 = vpack.c.b16 %v445, %v444
  %542 = vmatpush.bf16.msra.mxu0 %v453
  %543 = vmatpush.bf16.msra.mxu0 %v452
  %544 = vmatpush.bf16.msra.mxu0 %v451
  %545 = vmatpush.bf16.msra.mxu0 %v450
  %546 = vmatpush.bf16.msra.mxu0 %v449
  %547 = vmatpush.bf16.msra.mxu0 %v448
  %548 = vmatpush.bf16.msra.mxu0 %v447
  %549 = vmatpush.bf16.msra.mxu0 %v446
  %550 = vmatmul.bf16.gmra.mxu0 %v242
  %v551 = vpop.f32.mrf.mxu0
  %v552 = vadd.f32 0.0, %v551
  %v553 = vpop.f32.mrf.mxu0
  %v554 = vadd.f32 0.0, %v553
  %555 = vdwg.mxu0
  %556 = vmatpush.bf16.msra.mxu0 %v461
  %557 = vmatpush.bf16.msra.mxu0 %v460
  %558 = vmatpush.bf16.msra.mxu0 %v459
  %559 = vmatpush.bf16.msra.mxu0 %v458
  %560 = vmatpush.bf16.msra.mxu0 %v457
  %561 = vmatpush.bf16.msra.mxu0 %v456
  %562 = vmatpush.bf16.msra.mxu0 %v455
  %563 = vmatpush.bf16.msra.mxu0 %v454
  %564 = vmatmul.bf16.gmra.mxu0 %v243
  %v565 = vpop.f32.mrf.mxu0
  %v566 = vadd.f32 %v552, %v565
  %v567 = vpop.f32.mrf.mxu0
  %v568 = vadd.f32 %v554, %v567
  %569 = vdwg.mxu0
  %570 = vmatpush.bf16.msra.mxu0 %v469
  %571 = vmatpush.bf16.msra.mxu0 %v468
  %572 = vmatpush.bf16.msra.mxu0 %v467
  %573 = vmatpush.bf16.msra.mxu0 %v466
  %574 = vmatpush.bf16.msra.mxu0 %v465
  %575 = vmatpush.bf16.msra.mxu0 %v464
  %576 = vmatpush.bf16.msra.mxu0 %v463
  %577 = vmatpush.bf16.msra.mxu0 %v462
  %578 = vmatmul.bf16.gmra.mxu0 %v244
  %v579 = vpop.f32.mrf.mxu0
  %v580 = vadd.f32 %v566, %v579
  %v581 = vpop.f32.mrf.mxu0
  %v582 = vadd.f32 %v568, %v581
  %583 = vdwg.mxu0
  %584 = vmatpush.bf16.msra.mxu0 %v477
  %585 = vmatpush.bf16.msra.mxu0 %v476
  %586 = vmatpush.bf16.msra.mxu0 %v475
  %587 = vmatpush.bf16.msra.mxu0 %v474
  %588 = vmatpush.bf16.msra.mxu0 %v473
  %589 = vmatpush.bf16.msra.mxu0 %v472
  %590 = vmatpush.bf16.msra.mxu0 %v471
  %591 = vmatpush.bf16.msra.mxu0 %v470
  %592 = vmatmul.bf16.gmra.mxu0 %v245
  %v593 = vpop.f32.mrf.mxu0
  %v594 = vadd.f32 %v580, %v593
  %v595 = vpop.f32.mrf.mxu0
  %v596 = vadd.f32 %v582, %v595
  %597 = vdwg.mxu0
  %598 = vmatpush.bf16.msra.mxu0 %v485
  %599 = vmatpush.bf16.msra.mxu0 %v484
  %600 = vmatpush.bf16.msra.mxu0 %v483
  %601 = vmatpush.bf16.msra.mxu0 %v482
  %602 = vmatpush.bf16.msra.mxu0 %v481
  %603 = vmatpush.bf16.msra.mxu0 %v480
  %604 = vmatpush.bf16.msra.mxu0 %v479
  %605 = vmatpush.bf16.msra.mxu0 %v478
  %606 = vmatmul.bf16.gmra.mxu0 %v246
  %v607 = vpop.f32.mrf.mxu0
  %v608 = vadd.f32 %v594, %v607
  %v609 = vpop.f32.mrf.mxu0
  %v610 = vadd.f32 %v596, %v609
  %611 = vdwg.mxu0
  %612 = vmatpush.bf16.msra.mxu0 %v493
  %613 = vmatpush.bf16.msra.mxu0 %v492
  %614 = vmatpush.bf16.msra.mxu0 %v491
  %615 = vmatpush.bf16.msra.mxu0 %v490
  %616 = vmatpush.bf16.msra.mxu0 %v489
  %617 = vmatpush.bf16.msra.mxu0 %v488
  %618 = vmatpush.bf16.msra.mxu0 %v487
  %619 = vmatpush.bf16.msra.mxu0 %v486
  %620 = vmatmul.bf16.gmra.mxu0 %v247
  %v621 = vpop.f32.mrf.mxu0
  %v622 = vadd.f32 %v608, %v621
  %v623 = vpop.f32.mrf.mxu0
  %v624 = vadd.f32 %v610, %v623
  %625 = vdwg.mxu0
  %v632 = vunpack.c.l.b16 %v20
  %v633 = vunpack.c.h.b16 %v20
  %v634 = vunpack.c.l.b16 %v21
  %v635 = vunpack.c.h.b16 %v21
  %v636 = vunpack.c.l.b16 %v22
  %v637 = vunpack.c.h.b16 %v22
  %v638 = vunpack.c.l.b16 %v23
  %v639 = vunpack.c.h.b16 %v23
  %v640 = vunpack.c.l.b16 %v24
  %v641 = vunpack.c.h.b16 %v24
  %v642 = vunpack.c.l.b16 %v25
  %v643 = vunpack.c.h.b16 %v25
  %v644 = vpack.c.b16 %v638, %v632
  %v645 = vpack.c.b16 %v639, %v633
  %v646 = vpack.c.b16 %v640, %v634
  %v647 = vpack.c.b16 %v641, %v635
  %v648 = vpack.c.b16 %v642, %v636
  %v649 = vpack.c.b16 %v643, %v637
  %v752 = vunpack.c.l.b16 %v26
  %v753 = vunpack.c.l.b16 %v27
  %v754 = vunpack.c.l.b16 %v28
  %v755 = vunpack.c.l.b16 %v29
  %v756 = vunpack.c.l.b16 %v30
  %v757 = vunpack.c.l.b16 %v31
  %v758 = vunpack.c.l.b16 %v32
  %v759 = vunpack.c.l.b16 %v33
  %v760 = vunpack.c.l.b16 %v34
  %v761 = vunpack.c.l.b16 %v35
  %v762 = vunpack.c.l.b16 %v36
  %v763 = vunpack.c.l.b16 %v37
  %v764 = vunpack.c.l.b16 %v38
  %v765 = vunpack.c.l.b16 %v39
  %v766 = vunpack.c.l.b16 %v40
  %v767 = vunpack.c.l.b16 %v41
  %v768 = vunpack.c.l.b16 %v42
  %v769 = vunpack.c.l.b16 %v43
  %v770 = vunpack.c.l.b16 %v44
  %v771 = vunpack.c.l.b16 %v45
  %v772 = vunpack.c.l.b16 %v46
  %v773 = vunpack.c.l.b16 %v47
  %v774 = vunpack.c.l.b16 %v48
  %v775 = vunpack.c.l.b16 %v49
  %v776 = vunpack.c.l.b16 %v50
  %v777 = vunpack.c.l.b16 %v51
  %v778 = vunpack.c.l.b16 %v52
  %v779 = vunpack.c.l.b16 %v53
  %v780 = vunpack.c.l.b16 %v54
  %v781 = vunpack.c.l.b16 %v55
  %v782 = vunpack.c.l.b16 %v56
  %v783 = vunpack.c.l.b16 %v57
  %v784 = vunpack.c.l.b16 %v58
  %v785 = vunpack.c.l.b16 %v59
  %v786 = vunpack.c.l.b16 %v60
  %v787 = vunpack.c.l.b16 %v61
  %v788 = vunpack.c.l.b16 %v62
  %v789 = vunpack.c.l.b16 %v63
  %v790 = vunpack.c.l.b16 %v64
  %v791 = vunpack.c.l.b16 %v65
  %v792 = vunpack.c.l.b16 %v66
  %v793 = vunpack.c.l.b16 %v67
  %v794 = vunpack.c.l.b16 %v68
  %v795 = vunpack.c.l.b16 %v69
  %v796 = vunpack.c.l.b16 %v70
  %v797 = vunpack.c.l.b16 %v71
  %v798 = vunpack.c.l.b16 %v72
  %v799 = vunpack.c.l.b16 %v73
  %v800 = vunpack.c.l.b16 %v74
  %v801 = vunpack.c.l.b16 %v75
  %v802 = vunpack.c.l.b16 %v76
  %v803 = vunpack.c.l.b16 %v77
  %v804 = vunpack.c.l.b16 %v78
  %v805 = vunpack.c.l.b16 %v79
  %v806 = vunpack.c.l.b16 %v80
  %v807 = vunpack.c.l.b16 %v81
  %v808 = vunpack.c.l.b16 %v82
  %v809 = vunpack.c.l.b16 %v83
  %v810 = vunpack.c.l.b16 %v84
  %v811 = vunpack.c.l.b16 %v85
  %v812 = vunpack.c.l.b16 %v86
  %v813 = vunpack.c.l.b16 %v87
  %v814 = vunpack.c.l.b16 %v88
  %v815 = vunpack.c.l.b16 %v89
  %v816 = vunpack.c.l.b16 %v90
  %v817 = vunpack.c.l.b16 %v91
  %v818 = vunpack.c.l.b16 %v92
  %v819 = vunpack.c.l.b16 %v93
  %v820 = vunpack.c.l.b16 %v94
  %v821 = vunpack.c.l.b16 %v95
  %v822 = vunpack.c.l.b16 %v96
  %v823 = vunpack.c.l.b16 %v97
  %v824 = vunpack.c.l.b16 %v98
  %v825 = vunpack.c.l.b16 %v99
  %v826 = vunpack.c.l.b16 %v100
  %v827 = vunpack.c.l.b16 %v101
  %v828 = vunpack.c.l.b16 %v102
  %v829 = vunpack.c.l.b16 %v103
  %v830 = vunpack.c.l.b16 %v104
  %v831 = vunpack.c.l.b16 %v105
  %v832 = vunpack.c.l.b16 %v106
  %v833 = vunpack.c.l.b16 %v107
  %v834 = vunpack.c.l.b16 %v108
  %v835 = vunpack.c.l.b16 %v109
  %v836 = vunpack.c.l.b16 %v110
  %v837 = vunpack.c.l.b16 %v111
  %v838 = vunpack.c.l.b16 %v112
  %v839 = vunpack.c.l.b16 %v113
  %v840 = vunpack.c.l.b16 %v114
  %v841 = vunpack.c.l.b16 %v115
  %v842 = vunpack.c.l.b16 %v116
  %v843 = vunpack.c.l.b16 %v117
  %v844 = vunpack.c.l.b16 %v118
  %v845 = vunpack.c.l.b16 %v119
  %v846 = vunpack.c.l.b16 %v120
  %v847 = vunpack.c.l.b16 %v121
  %v848 = vpack.c.b16 %v753, %v752
  %v849 = vpack.c.b16 %v755, %v754
  %v850 = vpack.c.b16 %v757, %v756
  %v851 = vpack.c.b16 %v759, %v758
  %v852 = vpack.c.b16 %v761, %v760
  %v853 = vpack.c.b16 %v763, %v762
  %v854 = vpack.c.b16 %v765, %v764
  %v855 = vpack.c.b16 %v767, %v766
  %v856 = vpack.c.b16 %v769, %v768
  %v857 = vpack.c.b16 %v771, %v770
  %v858 = vpack.c.b16 %v773, %v772
  %v859 = vpack.c.b16 %v775, %v774
  %v860 = vpack.c.b16 %v777, %v776
  %v861 = vpack.c.b16 %v779, %v778
  %v862 = vpack.c.b16 %v781, %v780
  %v863 = vpack.c.b16 %v783, %v782
  %v864 = vpack.c.b16 %v785, %v784
  %v865 = vpack.c.b16 %v787, %v786
  %v866 = vpack.c.b16 %v789, %v788
  %v867 = vpack.c.b16 %v791, %v790
  %v868 = vpack.c.b16 %v793, %v792
  %v869 = vpack.c.b16 %v795, %v794
  %v870 = vpack.c.b16 %v797, %v796
  %v871 = vpack.c.b16 %v799, %v798
  %v872 = vpack.c.b16 %v801, %v800
  %v873 = vpack.c.b16 %v803, %v802
  %v874 = vpack.c.b16 %v805, %v804
  %v875 = vpack.c.b16 %v807, %v806
  %v876 = vpack.c.b16 %v809, %v808
  %v877 = vpack.c.b16 %v811, %v810
  %v878 = vpack.c.b16 %v813, %v812
  %v879 = vpack.c.b16 %v815, %v814
  %v880 = vpack.c.b16 %v817, %v816
  %v881 = vpack.c.b16 %v819, %v818
  %v882 = vpack.c.b16 %v821, %v820
  %v883 = vpack.c.b16 %v823, %v822
  %v884 = vpack.c.b16 %v825, %v824
  %v885 = vpack.c.b16 %v827, %v826
  %v886 = vpack.c.b16 %v829, %v828
  %v887 = vpack.c.b16 %v831, %v830
  %v888 = vpack.c.b16 %v833, %v832
  %v889 = vpack.c.b16 %v835, %v834
  %v890 = vpack.c.b16 %v837, %v836
  %v891 = vpack.c.b16 %v839, %v838
  %v892 = vpack.c.b16 %v841, %v840
  %v893 = vpack.c.b16 %v843, %v842
  %v894 = vpack.c.b16 %v845, %v844
  %v895 = vpack.c.b16 %v847, %v846
  %944 = vmatpush.bf16.msra.mxu0 %v855
  %945 = vmatpush.bf16.msra.mxu0 %v854
  %946 = vmatpush.bf16.msra.mxu0 %v853
  %947 = vmatpush.bf16.msra.mxu0 %v852
  %948 = vmatpush.bf16.msra.mxu0 %v851
  %949 = vmatpush.bf16.msra.mxu0 %v850
  %950 = vmatpush.bf16.msra.mxu0 %v849
  %951 = vmatpush.bf16.msra.mxu0 %v848
  %952 = vmatmul.bf16.gmra.mxu0 %v644
  %v953 = vpop.f32.mrf.mxu0
  %v954 = vadd.f32 %v622, %v953
  %v955 = vpop.f32.mrf.mxu0
  %v956 = vadd.f32 %v624, %v955
  %957 = vdwg.mxu0
  %958 = vmatpush.bf16.msra.mxu0 %v863
  %959 = vmatpush.bf16.msra.mxu0 %v862
  %960 = vmatpush.bf16.msra.mxu0 %v861
  %961 = vmatpush.bf16.msra.mxu0 %v860
  %962 = vmatpush.bf16.msra.mxu0 %v859
  %963 = vmatpush.bf16.msra.mxu0 %v858
  %964 = vmatpush.bf16.msra.mxu0 %v857
  %965 = vmatpush.bf16.msra.mxu0 %v856
  %966 = vmatmul.bf16.gmra.mxu0 %v645
  %v967 = vpop.f32.mrf.mxu0
  %v968 = vadd.f32 %v954, %v967
  %v969 = vpop.f32.mrf.mxu0
  %v970 = vadd.f32 %v956, %v969
  %971 = vdwg.mxu0
  %972 = vmatpush.bf16.msra.mxu0 %v871
  %973 = vmatpush.bf16.msra.mxu0 %v870
  %974 = vmatpush.bf16.msra.mxu0 %v869
  %975 = vmatpush.bf16.msra.mxu0 %v868
  %976 = vmatpush.bf16.msra.mxu0 %v867
  %977 = vmatpush.bf16.msra.mxu0 %v866
  %978 = vmatpush.bf16.msra.mxu0 %v865
  %979 = vmatpush.bf16.msra.mxu0 %v864
  %980 = vmatmul.bf16.gmra.mxu0 %v646
  %v981 = vpop.f32.mrf.mxu0
  %v982 = vadd.f32 %v968, %v981
  %v983 = vpop.f32.mrf.mxu0
  %v984 = vadd.f32 %v970, %v983
  %985 = vdwg.mxu0
  %986 = vmatpush.bf16.msra.mxu0 %v879
  %987 = vmatpush.bf16.msra.mxu0 %v878
  %988 = vmatpush.bf16.msra.mxu0 %v877
  %989 = vmatpush.bf16.msra.mxu0 %v876
  %990 = vmatpush.bf16.msra.mxu0 %v875
  %991 = vmatpush.bf16.msra.mxu0 %v874
  %992 = vmatpush.bf16.msra.mxu0 %v873
  %993 = vmatpush.bf16.msra.mxu0 %v872
  %994 = vmatmul.bf16.gmra.mxu0 %v647
  %v995 = vpop.f32.mrf.mxu0
  %v996 = vadd.f32 %v982, %v995
  %v997 = vpop.f32.mrf.mxu0
  %v998 = vadd.f32 %v984, %v997
  %999 = vdwg.mxu0
  %1000 = vmatpush.bf16.msra.mxu0 %v887
  %1001 = vmatpush.bf16.msra.mxu0 %v886
  %1002 = vmatpush.bf16.msra.mxu0 %v885
  %1003 = vmatpush.bf16.msra.mxu0 %v884
  %1004 = vmatpush.bf16.msra.mxu0 %v883
  %1005 = vmatpush.bf16.msra.mxu0 %v882
  %1006 = vmatpush.bf16.msra.mxu0 %v881
  %1007 = vmatpush.bf16.msra.mxu0 %v880
  %1008 = vmatmul.bf16.gmra.mxu0 %v648
  %v1009 = vpop.f32.mrf.mxu0
  %v1010 = vadd.f32 %v996, %v1009
  %v1011 = vpop.f32.mrf.mxu0
  %v1012 = vadd.f32 %v998, %v1011
  %1013 = vdwg.mxu0
  %1014 = vmatpush.bf16.msra.mxu0 %v895
  %1015 = vmatpush.bf16.msra.mxu0 %v894
  %1016 = vmatpush.bf16.msra.mxu0 %v893
  %1017 = vmatpush.bf16.msra.mxu0 %v892
  %1018 = vmatpush.bf16.msra.mxu0 %v891
  %1019 = vmatpush.bf16.msra.mxu0 %v890
  %1020 = vmatpush.bf16.msra.mxu0 %v889
  %1021 = vmatpush.bf16.msra.mxu0 %v888
  %1022 = vmatmul.bf16.gmra.mxu0 %v649
  %v1023 = vpop.f32.mrf.mxu0
  %v1024 = vadd.f32 %v1010, %v1023
  %v1025 = vpop.f32.mrf.mxu0
  %v1026 = vadd.f32 %v1012, %v1025
  %1027 = vdwg.mxu0
  %v1028 = vld [vmem:[%s4] sm:$0x1]
  %v1030 = vperm.slane %v1028, 0
  %v1032 = vadd.f32 %v1024, %v1030
  %v1033 = vadd.f32 %v1026, %v1030
  %v1034 = vpack.c.bf16 %v1032, %v1032
  %v1035 = vpack.c.bf16 %v1033, %v1033
  %1036 = vst [vmem:[%s5] sm:$0xf] %v1034
  %1037 = vst [vmem:[%s5 + $0x4] sm:$0xf] %v1035
  // Predicated region
  $region22: #{encoder_decoder_forward.7} parent=0 // pred_check
    _
  $region23: #{encoder_decoder_forward.7} parent=0 // pred_check_branch
    %1039 = sbr.rel (0) target = $region25
  $region24: #{encoder_decoder_forward.7} parent=0 // pred_region
    _
  $region25: #{encoder_decoder_forward.7} parent=0 // pred_fallthru
    _
  // Predicated region
  $region26: #{encoder_decoder_forward.7} parent=0 // pred_check
    _
  $region27: #{encoder_decoder_forward.7} parent=0 // pred_check_branch
    %1041 = sbr.rel (0) target = $region29
  $region28: #{encoder_decoder_forward.7} parent=0 // pred_region
    _
  $region29: #{encoder_decoder_forward.7} parent=0 // pred_fallthru
    _

// kernel: encoder_decoder_forward.8
$region0: #{encoder_decoder_forward.8}
  #allocation0 [shape = 'u32[]', space=smem, size = 0x4, offset = 0x4, fixed_abs, tag = 'smem constant byte address 0x4 - core index']
  #allocation1 [shape = 'u32[72,128]{1,0:T(1,128)}', space=vmem, size = 0x9000, scoped, tag = 'internal scratch']
  %s0 = inlined_call_operand.vmem [shape: bf16[16,3072], index: 0, kind: input, shape index: {}]
  %s1 = inlined_call_operand.vmem [shape: bf16[16,3072], index: 1, kind: input, shape index: {}]
  %s2 = inlined_call_operand.vmem [shape: bf16[3072,128], index: 2, kind: input, shape index: {}]
  %s3 = inlined_call_operand.vmem [shape: bf16[3072,128], index: 3, kind: input, shape index: {}]
  %s4 = inlined_call_operand.vmem [shape: f32[1,128], index: 4, kind: input, shape index: {}]
  %s5 = inlined_call_operand.vmem [shape: bf16[16,128], index: 5, kind: output, shape index: {}]
  %s6 = sld [smem:[#allocation0]]
  $region30: #{encoder_decoder_forward.8} parent=0
    _
  %s8 = ssub.s32 1, %s6
  %s9 = scalar_select 0, %s8, %s6
  // Predicated region
  $region2: #{encoder_decoder_forward.8} parent=0 // pred_check
    _
  $region3: #{encoder_decoder_forward.8} parent=0 // pred_check_branch
    %11 = sbr.rel (0) target = $region5
  $region4: #{encoder_decoder_forward.8} parent=0 // pred_region
    _
  $region5: #{encoder_decoder_forward.8} parent=0 // pred_fallthru
    _
  // Predicated region
  $region6: #{encoder_decoder_forward.8} parent=0 // pred_check
    _
  $region7: #{encoder_decoder_forward.8} parent=0 // pred_check_branch
    %13 = sbr.rel (0) target = $region9
  $region8: #{encoder_decoder_forward.8} parent=0 // pred_region
    _
  $region9: #{encoder_decoder_forward.8} parent=0 // pred_fallthru
    _
  // Predicated region
  $region10: #{encoder_decoder_forward.8} parent=0 // pred_check
    _
  $region11: #{encoder_decoder_forward.8} parent=0 // pred_check_branch
    %15 = sbr.rel (0) target = $region13
  $region12: #{encoder_decoder_forward.8} parent=0 // pred_region
    _
  $region13: #{encoder_decoder_forward.8} parent=0 // pred_fallthru
    _
  // Predicated region
  $region14: #{encoder_decoder_forward.8} parent=0 // pred_check
    _
  $region15: #{encoder_decoder_forward.8} parent=0 // pred_check_branch
    %17 = sbr.rel (0) target = $region17
  $region16: #{encoder_decoder_forward.8} parent=0 // pred_region
    _
  $region17: #{encoder_decoder_forward.8} parent=0 // pred_fallthru
    _
  // Predicated region
  $region18: #{encoder_decoder_forward.8} parent=0 // pred_check
    _
  $region19: #{encoder_decoder_forward.8} parent=0 // pred_check_branch
    %19 = sbr.rel (0) target = $region21
  $region20: #{encoder_decoder_forward.8} parent=0 // pred_region
    _
  $region21: #{encoder_decoder_forward.8} parent=0 // pred_fallthru
    _
  %v20 = vld [vmem:[%s0] sm:$0xff]
  %v21 = vld [vmem:[%s0 + $0x8] sm:$0xff]
  %v22 = vld [vmem:[%s0 + $0x10] sm:$0xff]
  %v23 = vld [vmem:[%s0 + $0x18] sm:$0xff]
  %v24 = vld [vmem:[%s0 + $0x20] sm:$0xff]
  %v25 = vld [vmem:[%s0 + $0x28] sm:$0xff]
  %v26 = vld [vmem:[%s0 + $0x30] sm:$0xff]
  %v27 = vld [vmem:[%s0 + $0x38] sm:$0xff]
  %v28 = vld [vmem:[%s0 + $0x40] sm:$0xff]
  %v29 = vld [vmem:[%s0 + $0x48] sm:$0xff]
  %v30 = vld [vmem:[%s0 + $0x50] sm:$0xff]
  %v31 = vld [vmem:[%s0 + $0x58] sm:$0xff]
  %v32 = vld [vmem:[%s0 + $0x60] sm:$0xff]
  %v33 = vld [vmem:[%s0 + $0x68] sm:$0xff]
  %v34 = vld [vmem:[%s0 + $0x70] sm:$0xff]
  %v35 = vld [vmem:[%s0 + $0x78] sm:$0xff]
  %v36 = vld [vmem:[%s0 + $0x80] sm:$0xff]
  %v37 = vld [vmem:[%s0 + $0x88] sm:$0xff]
  %v38 = vld [vmem:[%s0 + $0x90] sm:$0xff]
  %v39 = vld [vmem:[%s0 + $0x98] sm:$0xff]
  %v40 = vld [vmem:[%s0 + $0xa0] sm:$0xff]
  %v41 = vld [vmem:[%s0 + $0xa8] sm:$0xff]
  %v42 = vld [vmem:[%s0 + $0xb0] sm:$0xff]
  %v43 = vld [vmem:[%s0 + $0xb8] sm:$0xff]
  %v44 = vld [vmem:[%s2] sm:$0xf]
  %v45 = vld [vmem:[%s2 + $0x4] sm:$0xf]
  %v46 = vld [vmem:[%s2 + $0x8] sm:$0xf]
  %v47 = vld [vmem:[%s2 + $0xc] sm:$0xf]
  %v48 = vld [vmem:[%s2 + $0x10] sm:$0xf]
  %v49 = vld [vmem:[%s2 + $0x14] sm:$0xf]
  %v50 = vld [vmem:[%s2 + $0x18] sm:$0xf]
  %v51 = vld [vmem:[%s2 + $0x1c] sm:$0xf]
  %v52 = vld [vmem:[%s2 + $0x20] sm:$0xf]
  %v53 = vld [vmem:[%s2 + $0x24] sm:$0xf]
  %v54 = vld [vmem:[%s2 + $0x28] sm:$0xf]
  %v55 = vld [vmem:[%s2 + $0x2c] sm:$0xf]
  %v56 = vld [vmem:[%s2 + $0x30] sm:$0xf]
  %v57 = vld [vmem:[%s2 + $0x34] sm:$0xf]
  %v58 = vld [vmem:[%s2 + $0x38] sm:$0xf]
  %v59 = vld [vmem:[%s2 + $0x3c] sm:$0xf]
  %v60 = vld [vmem:[%s2 + $0x40] sm:$0xf]
  %v61 = vld [vmem:[%s2 + $0x44] sm:$0xf]
  %v62 = vld [vmem:[%s2 + $0x48] sm:$0xf]
  %v63 = vld [vmem:[%s2 + $0x4c] sm:$0xf]
  %v64 = vld [vmem:[%s2 + $0x50] sm:$0xf]
  %v65 = vld [vmem:[%s2 + $0x54] sm:$0xf]
  %v66 = vld [vmem:[%s2 + $0x58] sm:$0xf]
  %v67 = vld [vmem:[%s2 + $0x5c] sm:$0xf]
  %v68 = vld [vmem:[%s2 + $0x60] sm:$0xf]
  %v69 = vld [vmem:[%s2 + $0x64] sm:$0xf]
  %v70 = vld [vmem:[%s2 + $0x68] sm:$0xf]
  %v71 = vld [vmem:[%s2 + $0x6c] sm:$0xf]
  %v72 = vld [vmem:[%s2 + $0x70] sm:$0xf]
  %v73 = vld [vmem:[%s2 + $0x74] sm:$0xf]
  %v74 = vld [vmem:[%s2 + $0x78] sm:$0xf]
  %v75 = vld [vmem:[%s2 + $0x7c] sm:$0xf]
  %v76 = vld [vmem:[%s2 + $0x80] sm:$0xf]
  %v77 = vld [vmem:[%s2 + $0x84] sm:$0xf]
  %v78 = vld [vmem:[%s2 + $0x88] sm:$0xf]
  %v79 = vld [vmem:[%s2 + $0x8c] sm:$0xf]
  %v80 = vld [vmem:[%s2 + $0x90] sm:$0xf]
  %v81 = vld [vmem:[%s2 + $0x94] sm:$0xf]
  %v82 = vld [vmem:[%s2 + $0x98] sm:$0xf]
  %v83 = vld [vmem:[%s2 + $0x9c] sm:$0xf]
  %v84 = vld [vmem:[%s2 + $0xa0] sm:$0xf]
  %v85 = vld [vmem:[%s2 + $0xa4] sm:$0xf]
  %v86 = vld [vmem:[%s2 + $0xa8] sm:$0xf]
  %v87 = vld [vmem:[%s2 + $0xac] sm:$0xf]
  %v88 = vld [vmem:[%s2 + $0xb0] sm:$0xf]
  %v89 = vld [vmem:[%s2 + $0xb4] sm:$0xf]
  %v90 = vld [vmem:[%s2 + $0xb8] sm:$0xf]
  %v91 = vld [vmem:[%s2 + $0xbc] sm:$0xf]
  %v92 = vld [vmem:[%s2 + $0xc0] sm:$0xf]
  %v93 = vld [vmem:[%s2 + $0xc4] sm:$0xf]
  %v94 = vld [vmem:[%s2 + $0xc8] sm:$0xf]
  %v95 = vld [vmem:[%s2 + $0xcc] sm:$0xf]
  %v96 = vld [vmem:[%s2 + $0xd0] sm:$0xf]
  %v97 = vld [vmem:[%s2 + $0xd4] sm:$0xf]
  %v98 = vld [vmem:[%s2 + $0xd8] sm:$0xf]
  %v99 = vld [vmem:[%s2 + $0xdc] sm:$0xf]
  %v100 = vld [vmem:[%s2 + $0xe0] sm:$0xf]
  %v101 = vld [vmem:[%s2 + $0xe4] sm:$0xf]
  %v102 = vld [vmem:[%s2 + $0xe8] sm:$0xf]
  %v103 = vld [vmem:[%s2 + $0xec] sm:$0xf]
  %v104 = vld [vmem:[%s2 + $0xf0] sm:$0xf]
  %v105 = vld [vmem:[%s2 + $0xf4] sm:$0xf]
  %v106 = vld [vmem:[%s2 + $0xf8] sm:$0xf]
  %v107 = vld [vmem:[%s2 + $0xfc] sm:$0xf]
  %v108 = vld [vmem:[%s2 + $0x100] sm:$0xf]
  %v109 = vld [vmem:[%s2 + $0x104] sm:$0xf]
  %v110 = vld [vmem:[%s2 + $0x108] sm:$0xf]
  %v111 = vld [vmem:[%s2 + $0x10c] sm:$0xf]
  %v112 = vld [vmem:[%s2 + $0x110] sm:$0xf]
  %v113 = vld [vmem:[%s2 + $0x114] sm:$0xf]
  %v114 = vld [vmem:[%s2 + $0x118] sm:$0xf]
  %v115 = vld [vmem:[%s2 + $0x11c] sm:$0xf]
  %v116 = vld [vmem:[%s2 + $0x120] sm:$0xf]
  %v117 = vld [vmem:[%s2 + $0x124] sm:$0xf]
  %v118 = vld [vmem:[%s2 + $0x128] sm:$0xf]
  %v119 = vld [vmem:[%s2 + $0x12c] sm:$0xf]
  %v120 = vld [vmem:[%s2 + $0x130] sm:$0xf]
  %v121 = vld [vmem:[%s2 + $0x134] sm:$0xf]
  %v122 = vld [vmem:[%s2 + $0x138] sm:$0xf]
  %v123 = vld [vmem:[%s2 + $0x13c] sm:$0xf]
  %v124 = vld [vmem:[%s2 + $0x140] sm:$0xf]
  %v125 = vld [vmem:[%s2 + $0x144] sm:$0xf]
  %v126 = vld [vmem:[%s2 + $0x148] sm:$0xf]
  %v127 = vld [vmem:[%s2 + $0x14c] sm:$0xf]
  %v128 = vld [vmem:[%s2 + $0x150] sm:$0xf]
  %v129 = vld [vmem:[%s2 + $0x154] sm:$0xf]
  %v130 = vld [vmem:[%s2 + $0x158] sm:$0xf]
  %v131 = vld [vmem:[%s2 + $0x15c] sm:$0xf]
  %v132 = vld [vmem:[%s2 + $0x160] sm:$0xf]
  %v133 = vld [vmem:[%s2 + $0x164] sm:$0xf]
  %v134 = vld [vmem:[%s2 + $0x168] sm:$0xf]
  %v135 = vld [vmem:[%s2 + $0x16c] sm:$0xf]
  %v136 = vld [vmem:[%s2 + $0x170] sm:$0xf]
  %v137 = vld [vmem:[%s2 + $0x174] sm:$0xf]
  %v138 = vld [vmem:[%s2 + $0x178] sm:$0xf]
  %v139 = vld [vmem:[%s2 + $0x17c] sm:$0xf]
  %v140 = vld [vmem:[%s2 + $0x180] sm:$0xf]
  %v141 = vld [vmem:[%s2 + $0x184] sm:$0xf]
  %v142 = vld [vmem:[%s2 + $0x188] sm:$0xf]
  %v143 = vld [vmem:[%s2 + $0x18c] sm:$0xf]
  %v144 = vld [vmem:[%s2 + $0x190] sm:$0xf]
  %v145 = vld [vmem:[%s2 + $0x194] sm:$0xf]
  %v146 = vld [vmem:[%s2 + $0x198] sm:$0xf]
  %v147 = vld [vmem:[%s2 + $0x19c] sm:$0xf]
  %v148 = vld [vmem:[%s2 + $0x1a0] sm:$0xf]
  %v149 = vld [vmem:[%s2 + $0x1a4] sm:$0xf]
  %v150 = vld [vmem:[%s2 + $0x1a8] sm:$0xf]
  %v151 = vld [vmem:[%s2 + $0x1ac] sm:$0xf]
  %v152 = vld [vmem:[%s2 + $0x1b0] sm:$0xf]
  %v153 = vld [vmem:[%s2 + $0x1b4] sm:$0xf]
  %v154 = vld [vmem:[%s2 + $0x1b8] sm:$0xf]
  %v155 = vld [vmem:[%s2 + $0x1bc] sm:$0xf]
  %v156 = vld [vmem:[%s2 + $0x1c0] sm:$0xf]
  %v157 = vld [vmem:[%s2 + $0x1c4] sm:$0xf]
  %v158 = vld [vmem:[%s2 + $0x1c8] sm:$0xf]
  %v159 = vld [vmem:[%s2 + $0x1cc] sm:$0xf]
  %v160 = vld [vmem:[%s2 + $0x1d0] sm:$0xf]
  %v161 = vld [vmem:[%s2 + $0x1d4] sm:$0xf]
  %v162 = vld [vmem:[%s2 + $0x1d8] sm:$0xf]
  %v163 = vld [vmem:[%s2 + $0x1dc] sm:$0xf]
  %v164 = vld [vmem:[%s2 + $0x1e0] sm:$0xf]
  %v165 = vld [vmem:[%s2 + $0x1e4] sm:$0xf]
  %v166 = vld [vmem:[%s2 + $0x1e8] sm:$0xf]
  %v167 = vld [vmem:[%s2 + $0x1ec] sm:$0xf]
  %v168 = vld [vmem:[%s2 + $0x1f0] sm:$0xf]
  %v169 = vld [vmem:[%s2 + $0x1f4] sm:$0xf]
  %v170 = vld [vmem:[%s2 + $0x1f8] sm:$0xf]
  %v171 = vld [vmem:[%s2 + $0x1fc] sm:$0xf]
  %v172 = vld [vmem:[%s2 + $0x200] sm:$0xf]
  %v173 = vld [vmem:[%s2 + $0x204] sm:$0xf]
  %v174 = vld [vmem:[%s2 + $0x208] sm:$0xf]
  %v175 = vld [vmem:[%s2 + $0x20c] sm:$0xf]
  %v176 = vld [vmem:[%s2 + $0x210] sm:$0xf]
  %v177 = vld [vmem:[%s2 + $0x214] sm:$0xf]
  %v178 = vld [vmem:[%s2 + $0x218] sm:$0xf]
  %v179 = vld [vmem:[%s2 + $0x21c] sm:$0xf]
  %v180 = vld [vmem:[%s2 + $0x220] sm:$0xf]
  %v181 = vld [vmem:[%s2 + $0x224] sm:$0xf]
  %v182 = vld [vmem:[%s2 + $0x228] sm:$0xf]
  %v183 = vld [vmem:[%s2 + $0x22c] sm:$0xf]
  %v184 = vld [vmem:[%s2 + $0x230] sm:$0xf]
  %v185 = vld [vmem:[%s2 + $0x234] sm:$0xf]
  %v186 = vld [vmem:[%s2 + $0x238] sm:$0xf]
  %v187 = vld [vmem:[%s2 + $0x23c] sm:$0xf]
  %v188 = vld [vmem:[%s2 + $0x240] sm:$0xf]
  %v189 = vld [vmem:[%s2 + $0x244] sm:$0xf]
  %v190 = vld [vmem:[%s2 + $0x248] sm:$0xf]
  %v191 = vld [vmem:[%s2 + $0x24c] sm:$0xf]
  %v192 = vld [vmem:[%s2 + $0x250] sm:$0xf]
  %v193 = vld [vmem:[%s2 + $0x254] sm:$0xf]
  %v194 = vld [vmem:[%s2 + $0x258] sm:$0xf]
  %v195 = vld [vmem:[%s2 + $0x25c] sm:$0xf]
  %v196 = vld [vmem:[%s2 + $0x260] sm:$0xf]
  %v197 = vld [vmem:[%s2 + $0x264] sm:$0xf]
  %v198 = vld [vmem:[%s2 + $0x268] sm:$0xf]
  %v199 = vld [vmem:[%s2 + $0x26c] sm:$0xf]
  %v200 = vld [vmem:[%s2 + $0x270] sm:$0xf]
  %v201 = vld [vmem:[%s2 + $0x274] sm:$0xf]
  %v202 = vld [vmem:[%s2 + $0x278] sm:$0xf]
  %v203 = vld [vmem:[%s2 + $0x27c] sm:$0xf]
  %v204 = vld [vmem:[%s2 + $0x280] sm:$0xf]
  %v205 = vld [vmem:[%s2 + $0x284] sm:$0xf]
  %v206 = vld [vmem:[%s2 + $0x288] sm:$0xf]
  %v207 = vld [vmem:[%s2 + $0x28c] sm:$0xf]
  %v208 = vld [vmem:[%s2 + $0x290] sm:$0xf]
  %v209 = vld [vmem:[%s2 + $0x294] sm:$0xf]
  %v210 = vld [vmem:[%s2 + $0x298] sm:$0xf]
  %v211 = vld [vmem:[%s2 + $0x29c] sm:$0xf]
  %v212 = vld [vmem:[%s2 + $0x2a0] sm:$0xf]
  %v213 = vld [vmem:[%s2 + $0x2a4] sm:$0xf]
  %v214 = vld [vmem:[%s2 + $0x2a8] sm:$0xf]
  %v215 = vld [vmem:[%s2 + $0x2ac] sm:$0xf]
  %v216 = vld [vmem:[%s2 + $0x2b0] sm:$0xf]
  %v217 = vld [vmem:[%s2 + $0x2b4] sm:$0xf]
  %v218 = vld [vmem:[%s2 + $0x2b8] sm:$0xf]
  %v219 = vld [vmem:[%s2 + $0x2bc] sm:$0xf]
  %v220 = vld [vmem:[%s2 + $0x2c0] sm:$0xf]
  %v221 = vld [vmem:[%s2 + $0x2c4] sm:$0xf]
  %v222 = vld [vmem:[%s2 + $0x2c8] sm:$0xf]
  %v223 = vld [vmem:[%s2 + $0x2cc] sm:$0xf]
  %v224 = vld [vmem:[%s2 + $0x2d0] sm:$0xf]
  %v225 = vld [vmem:[%s2 + $0x2d4] sm:$0xf]
  %v226 = vld [vmem:[%s2 + $0x2d8] sm:$0xf]
  %v227 = vld [vmem:[%s2 + $0x2dc] sm:$0xf]
  %v228 = vld [vmem:[%s2 + $0x2e0] sm:$0xf]
  %v229 = vld [vmem:[%s2 + $0x2e4] sm:$0xf]
  %v230 = vld [vmem:[%s2 + $0x2e8] sm:$0xf]
  %v231 = vld [vmem:[%s2 + $0x2ec] sm:$0xf]
  %v232 = vld [vmem:[%s2 + $0x2f0] sm:$0xf]
  %v233 = vld [vmem:[%s2 + $0x2f4] sm:$0xf]
  %v234 = vld [vmem:[%s2 + $0x2f8] sm:$0xf]
  %v235 = vld [vmem:[%s2 + $0x2fc] sm:$0xf]
  %v236 = vld [vmem:[%s2 + $0x300] sm:$0xf]
  %v237 = vld [vmem:[%s2 + $0x304] sm:$0xf]
  %v238 = vld [vmem:[%s2 + $0x308] sm:$0xf]
  %v239 = vld [vmem:[%s2 + $0x30c] sm:$0xf]
  %v240 = vld [vmem:[%s2 + $0x310] sm:$0xf]
  %v241 = vld [vmem:[%s2 + $0x314] sm:$0xf]
  %v242 = vld [vmem:[%s2 + $0x318] sm:$0xf]
  %v243 = vld [vmem:[%s2 + $0x31c] sm:$0xf]
  %v244 = vld [vmem:[%s2 + $0x320] sm:$0xf]
  %v245 = vld [vmem:[%s2 + $0x324] sm:$0xf]
  %v246 = vld [vmem:[%s2 + $0x328] sm:$0xf]
  %v247 = vld [vmem:[%s2 + $0x32c] sm:$0xf]
  %v248 = vld [vmem:[%s2 + $0x330] sm:$0xf]
  %v249 = vld [vmem:[%s2 + $0x334] sm:$0xf]
  %v250 = vld [vmem:[%s2 + $0x338] sm:$0xf]
  %v251 = vld [vmem:[%s2 + $0x33c] sm:$0xf]
  %v252 = vld [vmem:[%s2 + $0x340] sm:$0xf]
  %v253 = vld [vmem:[%s2 + $0x344] sm:$0xf]
  %v254 = vld [vmem:[%s2 + $0x348] sm:$0xf]
  %v255 = vld [vmem:[%s2 + $0x34c] sm:$0xf]
  %v256 = vld [vmem:[%s2 + $0x350] sm:$0xf]
  %v257 = vld [vmem:[%s2 + $0x354] sm:$0xf]
  %v258 = vld [vmem:[%s2 + $0x358] sm:$0xf]
  %v259 = vld [vmem:[%s2 + $0x35c] sm:$0xf]
  %v260 = vld [vmem:[%s2 + $0x360] sm:$0xf]
  %v261 = vld [vmem:[%s2 + $0x364] sm:$0xf]
  %v262 = vld [vmem:[%s2 + $0x368] sm:$0xf]
  %v263 = vld [vmem:[%s2 + $0x36c] sm:$0xf]
  %v264 = vld [vmem:[%s2 + $0x370] sm:$0xf]
  %v265 = vld [vmem:[%s2 + $0x374] sm:$0xf]
  %v266 = vld [vmem:[%s2 + $0x378] sm:$0xf]
  %v267 = vld [vmem:[%s2 + $0x37c] sm:$0xf]
  %v268 = vld [vmem:[%s2 + $0x380] sm:$0xf]
  %v269 = vld [vmem:[%s2 + $0x384] sm:$0xf]
  %v270 = vld [vmem:[%s2 + $0x388] sm:$0xf]
  %v271 = vld [vmem:[%s2 + $0x38c] sm:$0xf]
  %v272 = vld [vmem:[%s2 + $0x390] sm:$0xf]
  %v273 = vld [vmem:[%s2 + $0x394] sm:$0xf]
  %v274 = vld [vmem:[%s2 + $0x398] sm:$0xf]
  %v275 = vld [vmem:[%s2 + $0x39c] sm:$0xf]
  %v276 = vld [vmem:[%s2 + $0x3a0] sm:$0xf]
  %v277 = vld [vmem:[%s2 + $0x3a4] sm:$0xf]
  %v278 = vld [vmem:[%s2 + $0x3a8] sm:$0xf]
  %v279 = vld [vmem:[%s2 + $0x3ac] sm:$0xf]
  %v280 = vld [vmem:[%s2 + $0x3b0] sm:$0xf]
  %v281 = vld [vmem:[%s2 + $0x3b4] sm:$0xf]
  %v282 = vld [vmem:[%s2 + $0x3b8] sm:$0xf]
  %v283 = vld [vmem:[%s2 + $0x3bc] sm:$0xf]
  %v284 = vld [vmem:[%s2 + $0x3c0] sm:$0xf]
  %v285 = vld [vmem:[%s2 + $0x3c4] sm:$0xf]
  %v286 = vld [vmem:[%s2 + $0x3c8] sm:$0xf]
  %v287 = vld [vmem:[%s2 + $0x3cc] sm:$0xf]
  %v288 = vld [vmem:[%s2 + $0x3d0] sm:$0xf]
  %v289 = vld [vmem:[%s2 + $0x3d4] sm:$0xf]
  %v290 = vld [vmem:[%s2 + $0x3d8] sm:$0xf]
  %v291 = vld [vmem:[%s2 + $0x3dc] sm:$0xf]
  %v292 = vld [vmem:[%s2 + $0x3e0] sm:$0xf]
  %v293 = vld [vmem:[%s2 + $0x3e4] sm:$0xf]
  %v294 = vld [vmem:[%s2 + $0x3e8] sm:$0xf]
  %v295 = vld [vmem:[%s2 + $0x3ec] sm:$0xf]
  %v296 = vld [vmem:[%s2 + $0x3f0] sm:$0xf]
  %v297 = vld [vmem:[%s2 + $0x3f4] sm:$0xf]
  %v298 = vld [vmem:[%s2 + $0x3f8] sm:$0xf]
  %v299 = vld [vmem:[%s2 + $0x3fc] sm:$0xf]
  %v300 = vld [vmem:[%s2 + $0x400] sm:$0xf]
  %v301 = vld [vmem:[%s2 + $0x404] sm:$0xf]
  %v302 = vld [vmem:[%s2 + $0x408] sm:$0xf]
  %v303 = vld [vmem:[%s2 + $0x40c] sm:$0xf]
  %v304 = vld [vmem:[%s2 + $0x410] sm:$0xf]
  %v305 = vld [vmem:[%s2 + $0x414] sm:$0xf]
  %v306 = vld [vmem:[%s2 + $0x418] sm:$0xf]
  %v307 = vld [vmem:[%s2 + $0x41c] sm:$0xf]
  %v308 = vld [vmem:[%s2 + $0x420] sm:$0xf]
  %v309 = vld [vmem:[%s2 + $0x424] sm:$0xf]
  %v310 = vld [vmem:[%s2 + $0x428] sm:$0xf]
  %v311 = vld [vmem:[%s2 + $0x42c] sm:$0xf]
  %v312 = vld [vmem:[%s2 + $0x430] sm:$0xf]
  %v313 = vld [vmem:[%s2 + $0x434] sm:$0xf]
  %v314 = vld [vmem:[%s2 + $0x438] sm:$0xf]
  %v315 = vld [vmem:[%s2 + $0x43c] sm:$0xf]
  %v316 = vld [vmem:[%s2 + $0x440] sm:$0xf]
  %v317 = vld [vmem:[%s2 + $0x444] sm:$0xf]
  %v318 = vld [vmem:[%s2 + $0x448] sm:$0xf]
  %v319 = vld [vmem:[%s2 + $0x44c] sm:$0xf]
  %v320 = vld [vmem:[%s2 + $0x450] sm:$0xf]
  %v321 = vld [vmem:[%s2 + $0x454] sm:$0xf]
  %v322 = vld [vmem:[%s2 + $0x458] sm:$0xf]
  %v323 = vld [vmem:[%s2 + $0x45c] sm:$0xf]
  %v324 = vld [vmem:[%s2 + $0x460] sm:$0xf]
  %v325 = vld [vmem:[%s2 + $0x464] sm:$0xf]
  %v326 = vld [vmem:[%s2 + $0x468] sm:$0xf]
  %v327 = vld [vmem:[%s2 + $0x46c] sm:$0xf]
  %v328 = vld [vmem:[%s2 + $0x470] sm:$0xf]
  %v329 = vld [vmem:[%s2 + $0x474] sm:$0xf]
  %v330 = vld [vmem:[%s2 + $0x478] sm:$0xf]
  %v331 = vld [vmem:[%s2 + $0x47c] sm:$0xf]
  %v332 = vld [vmem:[%s2 + $0x480] sm:$0xf]
  %v333 = vld [vmem:[%s2 + $0x484] sm:$0xf]
  %v334 = vld [vmem:[%s2 + $0x488] sm:$0xf]
  %v335 = vld [vmem:[%s2 + $0x48c] sm:$0xf]
  %v336 = vld [vmem:[%s2 + $0x490] sm:$0xf]
  %v337 = vld [vmem:[%s2 + $0x494] sm:$0xf]
  %v338 = vld [vmem:[%s2 + $0x498] sm:$0xf]
  %v339 = vld [vmem:[%s2 + $0x49c] sm:$0xf]
  %v340 = vld [vmem:[%s2 + $0x4a0] sm:$0xf]
  %v341 = vld [vmem:[%s2 + $0x4a4] sm:$0xf]
  %v342 = vld [vmem:[%s2 + $0x4a8] sm:$0xf]
  %v343 = vld [vmem:[%s2 + $0x4ac] sm:$0xf]
  %v344 = vld [vmem:[%s2 + $0x4b0] sm:$0xf]
  %v345 = vld [vmem:[%s2 + $0x4b4] sm:$0xf]
  %v346 = vld [vmem:[%s2 + $0x4b8] sm:$0xf]
  %v347 = vld [vmem:[%s2 + $0x4bc] sm:$0xf]
  %v348 = vld [vmem:[%s2 + $0x4c0] sm:$0xf]
  %v349 = vld [vmem:[%s2 + $0x4c4] sm:$0xf]
  %v350 = vld [vmem:[%s2 + $0x4c8] sm:$0xf]
  %v351 = vld [vmem:[%s2 + $0x4cc] sm:$0xf]
  %v352 = vld [vmem:[%s2 + $0x4d0] sm:$0xf]
  %v353 = vld [vmem:[%s2 + $0x4d4] sm:$0xf]
  %v354 = vld [vmem:[%s2 + $0x4d8] sm:$0xf]
  %v355 = vld [vmem:[%s2 + $0x4dc] sm:$0xf]
  %v356 = vld [vmem:[%s2 + $0x4e0] sm:$0xf]
  %v357 = vld [vmem:[%s2 + $0x4e4] sm:$0xf]
  %v358 = vld [vmem:[%s2 + $0x4e8] sm:$0xf]
  %v359 = vld [vmem:[%s2 + $0x4ec] sm:$0xf]
  %v360 = vld [vmem:[%s2 + $0x4f0] sm:$0xf]
  %v361 = vld [vmem:[%s2 + $0x4f4] sm:$0xf]
  %v362 = vld [vmem:[%s2 + $0x4f8] sm:$0xf]
  %v363 = vld [vmem:[%s2 + $0x4fc] sm:$0xf]
  %v364 = vld [vmem:[%s2 + $0x500] sm:$0xf]
  %v365 = vld [vmem:[%s2 + $0x504] sm:$0xf]
  %v366 = vld [vmem:[%s2 + $0x508] sm:$0xf]
  %v367 = vld [vmem:[%s2 + $0x50c] sm:$0xf]
  %v368 = vld [vmem:[%s2 + $0x510] sm:$0xf]
  %v369 = vld [vmem:[%s2 + $0x514] sm:$0xf]
  %v370 = vld [vmem:[%s2 + $0x518] sm:$0xf]
  %v371 = vld [vmem:[%s2 + $0x51c] sm:$0xf]
  %v372 = vld [vmem:[%s2 + $0x520] sm:$0xf]
  %v373 = vld [vmem:[%s2 + $0x524] sm:$0xf]
  %v374 = vld [vmem:[%s2 + $0x528] sm:$0xf]
  %v375 = vld [vmem:[%s2 + $0x52c] sm:$0xf]
  %v376 = vld [vmem:[%s2 + $0x530] sm:$0xf]
  %v377 = vld [vmem:[%s2 + $0x534] sm:$0xf]
  %v378 = vld [vmem:[%s2 + $0x538] sm:$0xf]
  %v379 = vld [vmem:[%s2 + $0x53c] sm:$0xf]
  %v380 = vld [vmem:[%s2 + $0x540] sm:$0xf]
  %v381 = vld [vmem:[%s2 + $0x544] sm:$0xf]
  %v382 = vld [vmem:[%s2 + $0x548] sm:$0xf]
  %v383 = vld [vmem:[%s2 + $0x54c] sm:$0xf]
  %v384 = vld [vmem:[%s2 + $0x550] sm:$0xf]
  %v385 = vld [vmem:[%s2 + $0x554] sm:$0xf]
  %v386 = vld [vmem:[%s2 + $0x558] sm:$0xf]
  %v387 = vld [vmem:[%s2 + $0x55c] sm:$0xf]
  %v388 = vld [vmem:[%s2 + $0x560] sm:$0xf]
  %v389 = vld [vmem:[%s2 + $0x564] sm:$0xf]
  %v390 = vld [vmem:[%s2 + $0x568] sm:$0xf]
  %v391 = vld [vmem:[%s2 + $0x56c] sm:$0xf]
  %v392 = vld [vmem:[%s2 + $0x570] sm:$0xf]
  %v393 = vld [vmem:[%s2 + $0x574] sm:$0xf]
  %v394 = vld [vmem:[%s2 + $0x578] sm:$0xf]
  %v395 = vld [vmem:[%s2 + $0x57c] sm:$0xf]
  %v396 = vld [vmem:[%s2 + $0x580] sm:$0xf]
  %v397 = vld [vmem:[%s2 + $0x584] sm:$0xf]
  %v398 = vld [vmem:[%s2 + $0x588] sm:$0xf]
  %v399 = vld [vmem:[%s2 + $0x58c] sm:$0xf]
  %v400 = vld [vmem:[%s2 + $0x590] sm:$0xf]
  %v401 = vld [vmem:[%s2 + $0x594] sm:$0xf]
  %v402 = vld [vmem:[%s2 + $0x598] sm:$0xf]
  %v403 = vld [vmem:[%s2 + $0x59c] sm:$0xf]
  %v404 = vld [vmem:[%s2 + $0x5a0] sm:$0xf]
  %v405 = vld [vmem:[%s2 + $0x5a4] sm:$0xf]
  %v406 = vld [vmem:[%s2 + $0x5a8] sm:$0xf]
  %v407 = vld [vmem:[%s2 + $0x5ac] sm:$0xf]
  %v408 = vld [vmem:[%s2 + $0x5b0] sm:$0xf]
  %v409 = vld [vmem:[%s2 + $0x5b4] sm:$0xf]
  %v410 = vld [vmem:[%s2 + $0x5b8] sm:$0xf]
  %v411 = vld [vmem:[%s2 + $0x5bc] sm:$0xf]
  %v412 = vld [vmem:[%s2 + $0x5c0] sm:$0xf]
  %v413 = vld [vmem:[%s2 + $0x5c4] sm:$0xf]
  %v414 = vld [vmem:[%s2 + $0x5c8] sm:$0xf]
  %v415 = vld [vmem:[%s2 + $0x5cc] sm:$0xf]
  %v416 = vld [vmem:[%s2 + $0x5d0] sm:$0xf]
  %v417 = vld [vmem:[%s2 + $0x5d4] sm:$0xf]
  %v418 = vld [vmem:[%s2 + $0x5d8] sm:$0xf]
  %v419 = vld [vmem:[%s2 + $0x5dc] sm:$0xf]
  %v420 = vld [vmem:[%s2 + $0x5e0] sm:$0xf]
  %v421 = vld [vmem:[%s2 + $0x5e4] sm:$0xf]
  %v422 = vld [vmem:[%s2 + $0x5e8] sm:$0xf]
  %v423 = vld [vmem:[%s2 + $0x5ec] sm:$0xf]
  %v424 = vld [vmem:[%s2 + $0x5f0] sm:$0xf]
  %v425 = vld [vmem:[%s2 + $0x5f4] sm:$0xf]
  %v426 = vld [vmem:[%s2 + $0x5f8] sm:$0xf]
  %v427 = vld [vmem:[%s2 + $0x5fc] sm:$0xf]
  %v428 = vld [vmem:[%s1] sm:$0xff]
  %v429 = vld [vmem:[%s1 + $0x8] sm:$0xff]
  %v430 = vld [vmem:[%s1 + $0x10] sm:$0xff]
  %v431 = vld [vmem:[%s1 + $0x18] sm:$0xff]
  %v432 = vld [vmem:[%s1 + $0x20] sm:$0xff]
  %v433 = vld [vmem:[%s1 + $0x28] sm:$0xff]
  %v434 = vld [vmem:[%s1 + $0x30] sm:$0xff]
  %v435 = vld [vmem:[%s1 + $0x38] sm:$0xff]
  %v436 = vld [vmem:[%s1 + $0x40] sm:$0xff]
  %v437 = vld [vmem:[%s1 + $0x48] sm:$0xff]
  %v438 = vld [vmem:[%s1 + $0x50] sm:$0xff]
  %v439 = vld [vmem:[%s1 + $0x58] sm:$0xff]
  %v440 = vld [vmem:[%s1 + $0x60] sm:$0xff]
  %v441 = vld [vmem:[%s1 + $0x68] sm:$0xff]
  %v442 = vld [vmem:[%s1 + $0x70] sm:$0xff]
  %v443 = vld [vmem:[%s1 + $0x78] sm:$0xff]
  %v444 = vld [vmem:[%s1 + $0x80] sm:$0xff]
  %v445 = vld [vmem:[%s1 + $0x88] sm:$0xff]
  %v446 = vld [vmem:[%s1 + $0x90] sm:$0xff]
  %v447 = vld [vmem:[%s1 + $0x98] sm:$0xff]
  %v448 = vld [vmem:[%s1 + $0xa0] sm:$0xff]
  %v449 = vld [vmem:[%s1 + $0xa8] sm:$0xff]
  %v450 = vld [vmem:[%s1 + $0xb0] sm:$0xff]
  %v451 = vld [vmem:[%s1 + $0xb8] sm:$0xff]
  %v452 = vld [vmem:[%s3] sm:$0xf]
  %v453 = vld [vmem:[%s3 + $0x4] sm:$0xf]
  %v454 = vld [vmem:[%s3 + $0x8] sm:$0xf]
  %v455 = vld [vmem:[%s3 + $0xc] sm:$0xf]
  %v456 = vld [vmem:[%s3 + $0x10] sm:$0xf]
  %v457 = vld [vmem:[%s3 + $0x14] sm:$0xf]
  %v458 = vld [vmem:[%s3 + $0x18] sm:$0xf]
  %v459 = vld [vmem:[%s3 + $0x1c] sm:$0xf]
  %v460 = vld [vmem:[%s3 + $0x20] sm:$0xf]
  %v461 = vld [vmem:[%s3 + $0x24] sm:$0xf]
  %v462 = vld [vmem:[%s3 + $0x28] sm:$0xf]
  %v463 = vld [vmem:[%s3 + $0x2c] sm:$0xf]
  %v464 = vld [vmem:[%s3 + $0x30] sm:$0xf]
  %v465 = vld [vmem:[%s3 + $0x34] sm:$0xf]
  %v466 = vld [vmem:[%s3 + $0x38] sm:$0xf]
  %v467 = vld [vmem:[%s3 + $0x3c] sm:$0xf]
  %v468 = vld [vmem:[%s3 + $0x40] sm:$0xf]
  %v469 = vld [vmem:[%s3 + $0x44] sm:$0xf]
  %v470 = vld [vmem:[%s3 + $0x48] sm:$0xf]
  %v471 = vld [vmem:[%s3 + $0x4c] sm:$0xf]
  %v472 = vld [vmem:[%s3 + $0x50] sm:$0xf]
  %v473 = vld [vmem:[%s3 + $0x54] sm:$0xf]
  %v474 = vld [vmem:[%s3 + $0x58] sm:$0xf]
  %v475 = vld [vmem:[%s3 + $0x5c] sm:$0xf]
  %v476 = vld [vmem:[%s3 + $0x60] sm:$0xf]
  %v477 = vld [vmem:[%s3 + $0x64] sm:$0xf]
  %v478 = vld [vmem:[%s3 + $0x68] sm:$0xf]
  %v479 = vld [vmem:[%s3 + $0x6c] sm:$0xf]
  %v480 = vld [vmem:[%s3 + $0x70] sm:$0xf]
  %v481 = vld [vmem:[%s3 + $0x74] sm:$0xf]
  %v482 = vld [vmem:[%s3 + $0x78] sm:$0xf]
  %v483 = vld [vmem:[%s3 + $0x7c] sm:$0xf]
  %v484 = vld [vmem:[%s3 + $0x80] sm:$0xf]
  %v485 = vld [vmem:[%s3 + $0x84] sm:$0xf]
  %v486 = vld [vmem:[%s3 + $0x88] sm:$0xf]
  %v487 = vld [vmem:[%s3 + $0x8c] sm:$0xf]
  %v488 = vld [vmem:[%s3 + $0x90] sm:$0xf]
  %v489 = vld [vmem:[%s3 + $0x94] sm:$0xf]
  %v490 = vld [vmem:[%s3 + $0x98] sm:$0xf]
  %v491 = vld [vmem:[%s3 + $0x9c] sm:$0xf]
  %v492 = vld [vmem:[%s3 + $0xa0] sm:$0xf]
  %v493 = vld [vmem:[%s3 + $0xa4] sm:$0xf]
  %v494 = vld [vmem:[%s3 + $0xa8] sm:$0xf]
  %v495 = vld [vmem:[%s3 + $0xac] sm:$0xf]
  %v496 = vld [vmem:[%s3 + $0xb0] sm:$0xf]
  %v497 = vld [vmem:[%s3 + $0xb4] sm:$0xf]
  %v498 = vld [vmem:[%s3 + $0xb8] sm:$0xf]
  %v499 = vld [vmem:[%s3 + $0xbc] sm:$0xf]
  %v500 = vld [vmem:[%s3 + $0xc0] sm:$0xf]
  %v501 = vld [vmem:[%s3 + $0xc4] sm:$0xf]
  %v502 = vld [vmem:[%s3 + $0xc8] sm:$0xf]
  %v503 = vld [vmem:[%s3 + $0xcc] sm:$0xf]
  %v504 = vld [vmem:[%s3 + $0xd0] sm:$0xf]
  %v505 = vld [vmem:[%s3 + $0xd4] sm:$0xf]
  %v506 = vld [vmem:[%s3 + $0xd8] sm:$0xf]
  %v507 = vld [vmem:[%s3 + $0xdc] sm:$0xf]
  %v508 = vld [vmem:[%s3 + $0xe0] sm:$0xf]
  %v509 = vld [vmem:[%s3 + $0xe4] sm:$0xf]
  %v510 = vld [vmem:[%s3 + $0xe8] sm:$0xf]
  %v511 = vld [vmem:[%s3 + $0xec] sm:$0xf]
  %v512 = vld [vmem:[%s3 + $0xf0] sm:$0xf]
  %v513 = vld [vmem:[%s3 + $0xf4] sm:$0xf]
  %v514 = vld [vmem:[%s3 + $0xf8] sm:$0xf]
  %v515 = vld [vmem:[%s3 + $0xfc] sm:$0xf]
  %v516 = vld [vmem:[%s3 + $0x100] sm:$0xf]
  %v517 = vld [vmem:[%s3 + $0x104] sm:$0xf]
  %v518 = vld [vmem:[%s3 + $0x108] sm:$0xf]
  %v519 = vld [vmem:[%s3 + $0x10c] sm:$0xf]
  %v520 = vld [vmem:[%s3 + $0x110] sm:$0xf]
  %v521 = vld [vmem:[%s3 + $0x114] sm:$0xf]
  %v522 = vld [vmem:[%s3 + $0x118] sm:$0xf]
  %v523 = vld [vmem:[%s3 + $0x11c] sm:$0xf]
  %v524 = vld [vmem:[%s3 + $0x120] sm:$0xf]
  %v525 = vld [vmem:[%s3 + $0x124] sm:$0xf]
  %v526 = vld [vmem:[%s3 + $0x128] sm:$0xf]
  %v527 = vld [vmem:[%s3 + $0x12c] sm:$0xf]
  %v528 = vld [vmem:[%s3 + $0x130] sm:$0xf]
  %v529 = vld [vmem:[%s3 + $0x134] sm:$0xf]
  %v530 = vld [vmem:[%s3 + $0x138] sm:$0xf]
  %v531 = vld [vmem:[%s3 + $0x13c] sm:$0xf]
  %v532 = vld [vmem:[%s3 + $0x140] sm:$0xf]
  %v533 = vld [vmem:[%s3 + $0x144] sm:$0xf]
  %v534 = vld [vmem:[%s3 + $0x148] sm:$0xf]
  %v535 = vld [vmem:[%s3 + $0x14c] sm:$0xf]
  %v536 = vld [vmem:[%s3 + $0x150] sm:$0xf]
  %v537 = vld [vmem:[%s3 + $0x154] sm:$0xf]
  %v538 = vld [vmem:[%s3 + $0x158] sm:$0xf]
  %v539 = vld [vmem:[%s3 + $0x15c] sm:$0xf]
  %v540 = vld [vmem:[%s3 + $0x160] sm:$0xf]
  %v541 = vld [vmem:[%s3 + $0x164] sm:$0xf]
  %v542 = vld [vmem:[%s3 + $0x168] sm:$0xf]
  %v543 = vld [vmem:[%s3 + $0x16c] sm:$0xf]
  %v544 = vld [vmem:[%s3 + $0x170] sm:$0xf]
  %v545 = vld [vmem:[%s3 + $0x174] sm:$0xf]
  %v546 = vld [vmem:[%s3 + $0x178] sm:$0xf]
  %v547 = vld [vmem:[%s3 + $0x17c] sm:$0xf]
  %v548 = vld [vmem:[%s3 + $0x180] sm:$0xf]
  %v549 = vld [vmem:[%s3 + $0x184] sm:$0xf]
  %v550 = vld [vmem:[%s3 + $0x188] sm:$0xf]
  %v551 = vld [vmem:[%s3 + $0x18c] sm:$0xf]
  %v552 = vld [vmem:[%s3 + $0x190] sm:$0xf]
  %v553 = vld [vmem:[%s3 + $0x194] sm:$0xf]
  %v554 = vld [vmem:[%s3 + $0x198] sm:$0xf]
  %v555 = vld [vmem:[%s3 + $0x19c] sm:$0xf]
  %v556 = vld [vmem:[%s3 + $0x1a0] sm:$0xf]
  %v557 = vld [vmem:[%s3 + $0x1a4] sm:$0xf]
  %v558 = vld [vmem:[%s3 + $0x1a8] sm:$0xf]
  %v559 = vld [vmem:[%s3 + $0x1ac] sm:$0xf]
  %v560 = vld [vmem:[%s3 + $0x1b0] sm:$0xf]
  %v561 = vld [vmem:[%s3 + $0x1b4] sm:$0xf]
  %v562 = vld [vmem:[%s3 + $0x1b8] sm:$0xf]
  %v563 = vld [vmem:[%s3 + $0x1bc] sm:$0xf]
  %v564 = vld [vmem:[%s3 + $0x1c0] sm:$0xf]
  %v565 = vld [vmem:[%s3 + $0x1c4] sm:$0xf]
  %v566 = vld [vmem:[%s3 + $0x1c8] sm:$0xf]
  %v567 = vld [vmem:[%s3 + $0x1cc] sm:$0xf]
  %v568 = vld [vmem:[%s3 + $0x1d0] sm:$0xf]
  %v569 = vld [vmem:[%s3 + $0x1d4] sm:$0xf]
  %v570 = vld [vmem:[%s3 + $0x1d8] sm:$0xf]
  %v571 = vld [vmem:[%s3 + $0x1dc] sm:$0xf]
  %v572 = vld [vmem:[%s3 + $0x1e0] sm:$0xf]
  %v573 = vld [vmem:[%s3 + $0x1e4] sm:$0xf]
  %v574 = vld [vmem:[%s3 + $0x1e8] sm:$0xf]
  %v575 = vld [vmem:[%s3 + $0x1ec] sm:$0xf]
  %v576 = vld [vmem:[%s3 + $0x1f0] sm:$0xf]
  %v577 = vld [vmem:[%s3 + $0x1f4] sm:$0xf]
  %v578 = vld [vmem:[%s3 + $0x1f8] sm:$0xf]
  %v579 = vld [vmem:[%s3 + $0x1fc] sm:$0xf]
  %v580 = vld [vmem:[%s3 + $0x200] sm:$0xf]
  %v581 = vld [vmem:[%s3 + $0x204] sm:$0xf]
  %v582 = vld [vmem:[%s3 + $0x208] sm:$0xf]
  %v583 = vld [vmem:[%s3 + $0x20c] sm:$0xf]
  %v584 = vld [vmem:[%s3 + $0x210] sm:$0xf]
  %v585 = vld [vmem:[%s3 + $0x214] sm:$0xf]
  %v586 = vld [vmem:[%s3 + $0x218] sm:$0xf]
  %v587 = vld [vmem:[%s3 + $0x21c] sm:$0xf]
  %v588 = vld [vmem:[%s3 + $0x220] sm:$0xf]
  %v589 = vld [vmem:[%s3 + $0x224] sm:$0xf]
  %v590 = vld [vmem:[%s3 + $0x228] sm:$0xf]
  %v591 = vld [vmem:[%s3 + $0x22c] sm:$0xf]
  %v592 = vld [vmem:[%s3 + $0x230] sm:$0xf]
  %v593 = vld [vmem:[%s3 + $0x234] sm:$0xf]
  %v594 = vld [vmem:[%s3 + $0x238] sm:$0xf]
  %v595 = vld [vmem:[%s3 + $0x23c] sm:$0xf]
  %v596 = vld [vmem:[%s3 + $0x240] sm:$0xf]
  %v597 = vld [vmem:[%s3 + $0x244] sm:$0xf]
  %v598 = vld [vmem:[%s3 + $0x248] sm:$0xf]
  %v599 = vld [vmem:[%s3 + $0x24c] sm:$0xf]
  %v600 = vld [vmem:[%s3 + $0x250] sm:$0xf]
  %v601 = vld [vmem:[%s3 + $0x254] sm:$0xf]
  %v602 = vld [vmem:[%s3 + $0x258] sm:$0xf]
  %v603 = vld [vmem:[%s3 + $0x25c] sm:$0xf]
  %v604 = vld [vmem:[%s3 + $0x260] sm:$0xf]
  %v605 = vld [vmem:[%s3 + $0x264] sm:$0xf]
  %v606 = vld [vmem:[%s3 + $0x268] sm:$0xf]
  %v607 = vld [vmem:[%s3 + $0x26c] sm:$0xf]
  %v608 = vld [vmem:[%s3 + $0x270] sm:$0xf]
  %v609 = vld [vmem:[%s3 + $0x274] sm:$0xf]
  %v610 = vld [vmem:[%s3 + $0x278] sm:$0xf]
  %v611 = vld [vmem:[%s3 + $0x27c] sm:$0xf]
  %v612 = vld [vmem:[%s3 + $0x280] sm:$0xf]
  %v613 = vld [vmem:[%s3 + $0x284] sm:$0xf]
  %v614 = vld [vmem:[%s3 + $0x288] sm:$0xf]
  %v615 = vld [vmem:[%s3 + $0x28c] sm:$0xf]
  %v616 = vld [vmem:[%s3 + $0x290] sm:$0xf]
  %v617 = vld [vmem:[%s3 + $0x294] sm:$0xf]
  %v618 = vld [vmem:[%s3 + $0x298] sm:$0xf]
  %v619 = vld [vmem:[%s3 + $0x29c] sm:$0xf]
  %v620 = vld [vmem:[%s3 + $0x2a0] sm:$0xf]
  %v621 = vld [vmem:[%s3 + $0x2a4] sm:$0xf]
  %v622 = vld [vmem:[%s3 + $0x2a8] sm:$0xf]
  %v623 = vld [vmem:[%s3 + $0x2ac] sm:$0xf]
  %v624 = vld [vmem:[%s3 + $0x2b0] sm:$0xf]
  %v625 = vld [vmem:[%s3 + $0x2b4] sm:$0xf]
  %v626 = vld [vmem:[%s3 + $0x2b8] sm:$0xf]
  %v627 = vld [vmem:[%s3 + $0x2bc] sm:$0xf]
  %v628 = vld [vmem:[%s3 + $0x2c0] sm:$0xf]
  %v629 = vld [vmem:[%s3 + $0x2c4] sm:$0xf]
  %v630 = vld [vmem:[%s3 + $0x2c8] sm:$0xf]
  %v631 = vld [vmem:[%s3 + $0x2cc] sm:$0xf]
  %v632 = vld [vmem:[%s3 + $0x2d0] sm:$0xf]
  %v633 = vld [vmem:[%s3 + $0x2d4] sm:$0xf]
  %v634 = vld [vmem:[%s3 + $0x2d8] sm:$0xf]
  %v635 = vld [vmem:[%s3 + $0x2dc] sm:$0xf]
  %v636 = vld [vmem:[%s3 + $0x2e0] sm:$0xf]
  %v637 = vld [vmem:[%s3 + $0x2e4] sm:$0xf]
  %v638 = vld [vmem:[%s3 + $0x2e8] sm:$0xf]
  %v639 = vld [vmem:[%s3 + $0x2ec] sm:$0xf]
  %v640 = vld [vmem:[%s3 + $0x2f0] sm:$0xf]
  %v641 = vld [vmem:[%s3 + $0x2f4] sm:$0xf]
  %v642 = vld [vmem:[%s3 + $0x2f8] sm:$0xf]
  %v643 = vld [vmem:[%s3 + $0x2fc] sm:$0xf]
  %v644 = vld [vmem:[%s3 + $0x300] sm:$0xf]
  %v645 = vld [vmem:[%s3 + $0x304] sm:$0xf]
  %v646 = vld [vmem:[%s3 + $0x308] sm:$0xf]
  %v647 = vld [vmem:[%s3 + $0x30c] sm:$0xf]
  %v648 = vld [vmem:[%s3 + $0x310] sm:$0xf]
  %v649 = vld [vmem:[%s3 + $0x314] sm:$0xf]
  %v650 = vld [vmem:[%s3 + $0x318] sm:$0xf]
  %v651 = vld [vmem:[%s3 + $0x31c] sm:$0xf]
  %v652 = vld [vmem:[%s3 + $0x320] sm:$0xf]
  %v653 = vld [vmem:[%s3 + $0x324] sm:$0xf]
  %v654 = vld [vmem:[%s3 + $0x328] sm:$0xf]
  %v655 = vld [vmem:[%s3 + $0x32c] sm:$0xf]
  %v656 = vld [vmem:[%s3 + $0x330] sm:$0xf]
  %v657 = vld [vmem:[%s3 + $0x334] sm:$0xf]
  %v658 = vld [vmem:[%s3 + $0x338] sm:$0xf]
  %v659 = vld [vmem:[%s3 + $0x33c] sm:$0xf]
  %v660 = vld [vmem:[%s3 + $0x340] sm:$0xf]
  %v661 = vld [vmem:[%s3 + $0x344] sm:$0xf]
  %v662 = vld [vmem:[%s3 + $0x348] sm:$0xf]
  %v663 = vld [vmem:[%s3 + $0x34c] sm:$0xf]
  %v664 = vld [vmem:[%s3 + $0x350] sm:$0xf]
  %v665 = vld [vmem:[%s3 + $0x354] sm:$0xf]
  %v666 = vld [vmem:[%s3 + $0x358] sm:$0xf]
  %v667 = vld [vmem:[%s3 + $0x35c] sm:$0xf]
  %v668 = vld [vmem:[%s3 + $0x360] sm:$0xf]
  %v669 = vld [vmem:[%s3 + $0x364] sm:$0xf]
  %v670 = vld [vmem:[%s3 + $0x368] sm:$0xf]
  %v671 = vld [vmem:[%s3 + $0x36c] sm:$0xf]
  %v672 = vld [vmem:[%s3 + $0x370] sm:$0xf]
  %v673 = vld [vmem:[%s3 + $0x374] sm:$0xf]
  %v674 = vld [vmem:[%s3 + $0x378] sm:$0xf]
  %v675 = vld [vmem:[%s3 + $0x37c] sm:$0xf]
  %v676 = vld [vmem:[%s3 + $0x380] sm:$0xf]
  %v677 = vld [vmem:[%s3 + $0x384] sm:$0xf]
  %v678 = vld [vmem:[%s3 + $0x388] sm:$0xf]
  %v679 = vld [vmem:[%s3 + $0x38c] sm:$0xf]
  %v680 = vld [vmem:[%s3 + $0x390] sm:$0xf]
  %v681 = vld [vmem:[%s3 + $0x394] sm:$0xf]
  %v682 = vld [vmem:[%s3 + $0x398] sm:$0xf]
  %v683 = vld [vmem:[%s3 + $0x39c] sm:$0xf]
  %v684 = vld [vmem:[%s3 + $0x3a0] sm:$0xf]
  %v685 = vld [vmem:[%s3 + $0x3a4] sm:$0xf]
  %v686 = vld [vmem:[%s3 + $0x3a8] sm:$0xf]
  %v687 = vld [vmem:[%s3 + $0x3ac] sm:$0xf]
  %v688 = vld [vmem:[%s3 + $0x3b0] sm:$0xf]
  %v689 = vld [vmem:[%s3 + $0x3b4] sm:$0xf]
  %v690 = vld [vmem:[%s3 + $0x3b8] sm:$0xf]
  %v691 = vld [vmem:[%s3 + $0x3bc] sm:$0xf]
  %v692 = vld [vmem:[%s3 + $0x3c0] sm:$0xf]
  %v693 = vld [vmem:[%s3 + $0x3c4] sm:$0xf]
  %v694 = vld [vmem:[%s3 + $0x3c8] sm:$0xf]
  %v695 = vld [vmem:[%s3 + $0x3cc] sm:$0xf]
  %v696 = vld [vmem:[%s3 + $0x3d0] sm:$0xf]
  %v697 = vld [vmem:[%s3 + $0x3d4] sm:$0xf]
  %v698 = vld [vmem:[%s3 + $0x3d8] sm:$0xf]
  %v699 = vld [vmem:[%s3 + $0x3dc] sm:$0xf]
  %v700 = vld [vmem:[%s3 + $0x3e0] sm:$0xf]
  %v701 = vld [vmem:[%s3 + $0x3e4] sm:$0xf]
  %v702 = vld [vmem:[%s3 + $0x3e8] sm:$0xf]
  %v703 = vld [vmem:[%s3 + $0x3ec] sm:$0xf]
  %v704 = vld [vmem:[%s3 + $0x3f0] sm:$0xf]
  %v705 = vld [vmem:[%s3 + $0x3f4] sm:$0xf]
  %v706 = vld [vmem:[%s3 + $0x3f8] sm:$0xf]
  %v707 = vld [vmem:[%s3 + $0x3fc] sm:$0xf]
  %v708 = vld [vmem:[%s3 + $0x400] sm:$0xf]
  %v709 = vld [vmem:[%s3 + $0x404] sm:$0xf]
  %v710 = vld [vmem:[%s3 + $0x408] sm:$0xf]
  %v711 = vld [vmem:[%s3 + $0x40c] sm:$0xf]
  %v712 = vld [vmem:[%s3 + $0x410] sm:$0xf]
  %v713 = vld [vmem:[%s3 + $0x414] sm:$0xf]
  %v714 = vld [vmem:[%s3 + $0x418] sm:$0xf]
  %v715 = vld [vmem:[%s3 + $0x41c] sm:$0xf]
  %v716 = vld [vmem:[%s3 + $0x420] sm:$0xf]
  %v717 = vld [vmem:[%s3 + $0x424] sm:$0xf]
  %v718 = vld [vmem:[%s3 + $0x428] sm:$0xf]
  %v719 = vld [vmem:[%s3 + $0x42c] sm:$0xf]
  %v720 = vld [vmem:[%s3 + $0x430] sm:$0xf]
  %v721 = vld [vmem:[%s3 + $0x434] sm:$0xf]
  %v722 = vld [vmem:[%s3 + $0x438] sm:$0xf]
  %v723 = vld [vmem:[%s3 + $0x43c] sm:$0xf]
  %v724 = vld [vmem:[%s3 + $0x440] sm:$0xf]
  %v725 = vld [vmem:[%s3 + $0x444] sm:$0xf]
  %v726 = vld [vmem:[%s3 + $0x448] sm:$0xf]
  %v727 = vld [vmem:[%s3 + $0x44c] sm:$0xf]
  %v728 = vld [vmem:[%s3 + $0x450] sm:$0xf]
  %v729 = vld [vmem:[%s3 + $0x454] sm:$0xf]
  %v730 = vld [vmem:[%s3 + $0x458] sm:$0xf]
  %v731 = vld [vmem:[%s3 + $0x45c] sm:$0xf]
  %v732 = vld [vmem:[%s3 + $0x460] sm:$0xf]
  %v733 = vld [vmem:[%s3 + $0x464] sm:$0xf]
  %v734 = vld [vmem:[%s3 + $0x468] sm:$0xf]
  %v735 = vld [vmem:[%s3 + $0x46c] sm:$0xf]
  %v736 = vld [vmem:[%s3 + $0x470] sm:$0xf]
  %v737 = vld [vmem:[%s3 + $0x474] sm:$0xf]
  %v738 = vld [vmem:[%s3 + $0x478] sm:$0xf]
  %v739 = vld [vmem:[%s3 + $0x47c] sm:$0xf]
  %v740 = vld [vmem:[%s3 + $0x480] sm:$0xf]
  %v741 = vld [vmem:[%s3 + $0x484] sm:$0xf]
  %v742 = vld [vmem:[%s3 + $0x488] sm:$0xf]
  %v743 = vld [vmem:[%s3 + $0x48c] sm:$0xf]
  %v744 = vld [vmem:[%s3 + $0x490] sm:$0xf]
  %v745 = vld [vmem:[%s3 + $0x494] sm:$0xf]
  %v746 = vld [vmem:[%s3 + $0x498] sm:$0xf]
  %v747 = vld [vmem:[%s3 + $0x49c] sm:$0xf]
  %v748 = vld [vmem:[%s3 + $0x4a0] sm:$0xf]
  %v749 = vld [vmem:[%s3 + $0x4a4] sm:$0xf]
  %v750 = vld [vmem:[%s3 + $0x4a8] sm:$0xf]
  %v751 = vld [vmem:[%s3 + $0x4ac] sm:$0xf]
  %v752 = vld [vmem:[%s3 + $0x4b0] sm:$0xf]
  %v753 = vld [vmem:[%s3 + $0x4b4] sm:$0xf]
  %v754 = vld [vmem:[%s3 + $0x4b8] sm:$0xf]
  %v755 = vld [vmem:[%s3 + $0x4bc] sm:$0xf]
  %v756 = vld [vmem:[%s3 + $0x4c0] sm:$0xf]
  %v757 = vld [vmem:[%s3 + $0x4c4] sm:$0xf]
  %v758 = vld [vmem:[%s3 + $0x4c8] sm:$0xf]
  %v759 = vld [vmem:[%s3 + $0x4cc] sm:$0xf]
  %v760 = vld [vmem:[%s3 + $0x4d0] sm:$0xf]
  %v761 = vld [vmem:[%s3 + $0x4d4] sm:$0xf]
  %v762 = vld [vmem:[%s3 + $0x4d8] sm:$0xf]
  %v763 = vld [vmem:[%s3 + $0x4dc] sm:$0xf]
  %v764 = vld [vmem:[%s3 + $0x4e0] sm:$0xf]
  %v765 = vld [vmem:[%s3 + $0x4e4] sm:$0xf]
  %v766 = vld [vmem:[%s3 + $0x4e8] sm:$0xf]
  %v767 = vld [vmem:[%s3 + $0x4ec] sm:$0xf]
  %v768 = vld [vmem:[%s3 + $0x4f0] sm:$0xf]
  %v769 = vld [vmem:[%s3 + $0x4f4] sm:$0xf]
  %v770 = vld [vmem:[%s3 + $0x4f8] sm:$0xf]
  %v771 = vld [vmem:[%s3 + $0x4fc] sm:$0xf]
  %v772 = vld [vmem:[%s3 + $0x500] sm:$0xf]
  %v773 = vld [vmem:[%s3 + $0x504] sm:$0xf]
  %v774 = vld [vmem:[%s3 + $0x508] sm:$0xf]
  %v775 = vld [vmem:[%s3 + $0x50c] sm:$0xf]
  %v776 = vld [vmem:[%s3 + $0x510] sm:$0xf]
  %v777 = vld [vmem:[%s3 + $0x514] sm:$0xf]
  %v778 = vld [vmem:[%s3 + $0x518] sm:$0xf]
  %v779 = vld [vmem:[%s3 + $0x51c] sm:$0xf]
  %v780 = vld [vmem:[%s3 + $0x520] sm:$0xf]
  %v781 = vld [vmem:[%s3 + $0x524] sm:$0xf]
  %v782 = vld [vmem:[%s3 + $0x528] sm:$0xf]
  %v783 = vld [vmem:[%s3 + $0x52c] sm:$0xf]
  %v784 = vld [vmem:[%s3 + $0x530] sm:$0xf]
  %v785 = vld [vmem:[%s3 + $0x534] sm:$0xf]
  %v786 = vld [vmem:[%s3 + $0x538] sm:$0xf]
  %v787 = vld [vmem:[%s3 + $0x53c] sm:$0xf]
  %v788 = vld [vmem:[%s3 + $0x540] sm:$0xf]
  %v789 = vld [vmem:[%s3 + $0x544] sm:$0xf]
  %v790 = vld [vmem:[%s3 + $0x548] sm:$0xf]
  %v791 = vld [vmem:[%s3 + $0x54c] sm:$0xf]
  %v792 = vld [vmem:[%s3 + $0x550] sm:$0xf]
  %v793 = vld [vmem:[%s3 + $0x554] sm:$0xf]
  %v794 = vld [vmem:[%s3 + $0x558] sm:$0xf]
  %v795 = vld [vmem:[%s3 + $0x55c] sm:$0xf]
  %v796 = vld [vmem:[%s3 + $0x560] sm:$0xf]
  %v797 = vld [vmem:[%s3 + $0x564] sm:$0xf]
  %v798 = vld [vmem:[%s3 + $0x568] sm:$0xf]
  %v799 = vld [vmem:[%s3 + $0x56c] sm:$0xf]
  %v800 = vld [vmem:[%s3 + $0x570] sm:$0xf]
  %v801 = vld [vmem:[%s3 + $0x574] sm:$0xf]
  %v802 = vld [vmem:[%s3 + $0x578] sm:$0xf]
  %v803 = vld [vmem:[%s3 + $0x57c] sm:$0xf]
  %v804 = vld [vmem:[%s3 + $0x580] sm:$0xf]
  %v805 = vld [vmem:[%s3 + $0x584] sm:$0xf]
  %v806 = vld [vmem:[%s3 + $0x588] sm:$0xf]
  %v807 = vld [vmem:[%s3 + $0x58c] sm:$0xf]
  %v808 = vld [vmem:[%s3 + $0x590] sm:$0xf]
  %v809 = vld [vmem:[%s3 + $0x594] sm:$0xf]
  %v810 = vld [vmem:[%s3 + $0x598] sm:$0xf]
  %v811 = vld [vmem:[%s3 + $0x59c] sm:$0xf]
  %v812 = vld [vmem:[%s3 + $0x5a0] sm:$0xf]
  %v813 = vld [vmem:[%s3 + $0x5a4] sm:$0xf]
  %v814 = vld [vmem:[%s3 + $0x5a8] sm:$0xf]
  %v815 = vld [vmem:[%s3 + $0x5ac] sm:$0xf]
  %v816 = vld [vmem:[%s3 + $0x5b0] sm:$0xf]
  %v817 = vld [vmem:[%s3 + $0x5b4] sm:$0xf]
  %v818 = vld [vmem:[%s3 + $0x5b8] sm:$0xf]
  %v819 = vld [vmem:[%s3 + $0x5bc] sm:$0xf]
  %v820 = vld [vmem:[%s3 + $0x5c0] sm:$0xf]
  %v821 = vld [vmem:[%s3 + $0x5c4] sm:$0xf]
  %v822 = vld [vmem:[%s3 + $0x5c8] sm:$0xf]
  %v823 = vld [vmem:[%s3 + $0x5cc] sm:$0xf]
  %v824 = vld [vmem:[%s3 + $0x5d0] sm:$0xf]
  %v825 = vld [vmem:[%s3 + $0x5d4] sm:$0xf]
  %v826 = vld [vmem:[%s3 + $0x5d8] sm:$0xf]
  %v827 = vld [vmem:[%s3 + $0x5dc] sm:$0xf]
  %v828 = vld [vmem:[%s3 + $0x5e0] sm:$0xf]
  %v829 = vld [vmem:[%s3 + $0x5e4] sm:$0xf]
  %v830 = vld [vmem:[%s3 + $0x5e8] sm:$0xf]
  %v831 = vld [vmem:[%s3 + $0x5ec] sm:$0xf]
  %v832 = vld [vmem:[%s3 + $0x5f0] sm:$0xf]
  %v833 = vld [vmem:[%s3 + $0x5f4] sm:$0xf]
  %v834 = vld [vmem:[%s3 + $0x5f8] sm:$0xf]
  %v835 = vld [vmem:[%s3 + $0x5fc] sm:$0xf]
  %v860 = vunpack.c.l.b16 %v428
  %v861 = vunpack.c.h.b16 %v428
  %v862 = vunpack.c.l.b16 %v429
  %v863 = vunpack.c.h.b16 %v429
  %v864 = vunpack.c.l.b16 %v430
  %v865 = vunpack.c.h.b16 %v430
  %v866 = vunpack.c.l.b16 %v431
  %v867 = vunpack.c.h.b16 %v431
  %v868 = vunpack.c.l.b16 %v432
  %v869 = vunpack.c.h.b16 %v432
  %v870 = vunpack.c.l.b16 %v433
  %v871 = vunpack.c.h.b16 %v433
  %v872 = vunpack.c.l.b16 %v434
  %v873 = vunpack.c.h.b16 %v434
  %v874 = vunpack.c.l.b16 %v435
  %v875 = vunpack.c.h.b16 %v435
  %v876 = vunpack.c.l.b16 %v436
  %v877 = vunpack.c.h.b16 %v436
  %v878 = vunpack.c.l.b16 %v437
  %v879 = vunpack.c.h.b16 %v437
  %v880 = vunpack.c.l.b16 %v438
  %v881 = vunpack.c.h.b16 %v438
  %v882 = vunpack.c.l.b16 %v439
  %v883 = vunpack.c.h.b16 %v439
  %v884 = vunpack.c.l.b16 %v440
  %v885 = vunpack.c.h.b16 %v440
  %v886 = vunpack.c.l.b16 %v441
  %v887 = vunpack.c.h.b16 %v441
  %v888 = vunpack.c.l.b16 %v442
  %v889 = vunpack.c.h.b16 %v442
  %v890 = vunpack.c.l.b16 %v443
  %v891 = vunpack.c.h.b16 %v443
  %v892 = vunpack.c.l.b16 %v444
  %v893 = vunpack.c.h.b16 %v444
  %v894 = vunpack.c.l.b16 %v445
  %v895 = vunpack.c.h.b16 %v445
  %v896 = vunpack.c.l.b16 %v446
  %v897 = vunpack.c.h.b16 %v446
  %v898 = vunpack.c.l.b16 %v447
  %v899 = vunpack.c.h.b16 %v447
  %v900 = vunpack.c.l.b16 %v448
  %v901 = vunpack.c.h.b16 %v448
  %v902 = vunpack.c.l.b16 %v449
  %v903 = vunpack.c.h.b16 %v449
  %v904 = vunpack.c.l.b16 %v450
  %v905 = vunpack.c.h.b16 %v450
  %v906 = vunpack.c.l.b16 %v451
  %v907 = vunpack.c.h.b16 %v451
  %v908 = vpack.c.b16 %v884, %v860
  %v909 = vpack.c.b16 %v885, %v861
  %v910 = vpack.c.b16 %v886, %v862
  %v911 = vpack.c.b16 %v887, %v863
  %v912 = vpack.c.b16 %v888, %v864
  %v913 = vpack.c.b16 %v889, %v865
  %v914 = vpack.c.b16 %v890, %v866
  %v915 = vpack.c.b16 %v891, %v867
  %v916 = vpack.c.b16 %v892, %v868
  %v917 = vpack.c.b16 %v893, %v869
  %v918 = vpack.c.b16 %v894, %v870
  %v919 = vpack.c.b16 %v895, %v871
  %v920 = vpack.c.b16 %v896, %v872
  %v921 = vpack.c.b16 %v897, %v873
  %v922 = vpack.c.b16 %v898, %v874
  %v923 = vpack.c.b16 %v899, %v875
  %v924 = vpack.c.b16 %v900, %v876
  %v925 = vpack.c.b16 %v901, %v877
  %v926 = vpack.c.b16 %v902, %v878
  %v927 = vpack.c.b16 %v903, %v879
  %v928 = vpack.c.b16 %v904, %v880
  %v929 = vpack.c.b16 %v905, %v881
  %v930 = vpack.c.b16 %v906, %v882
  %v931 = vpack.c.b16 %v907, %v883
  %v1340 = vunpack.c.l.b16 %v452
  %v1341 = vunpack.c.l.b16 %v453
  %v1342 = vunpack.c.l.b16 %v454
  %v1343 = vunpack.c.l.b16 %v455
  %v1344 = vunpack.c.l.b16 %v456
  %v1345 = vunpack.c.l.b16 %v457
  %v1346 = vunpack.c.l.b16 %v458
  %v1347 = vunpack.c.l.b16 %v459
  %v1348 = vunpack.c.l.b16 %v460
  %v1349 = vunpack.c.l.b16 %v461
  %v1350 = vunpack.c.l.b16 %v462
  %v1351 = vunpack.c.l.b16 %v463
  %v1352 = vunpack.c.l.b16 %v464
  %v1353 = vunpack.c.l.b16 %v465
  %v1354 = vunpack.c.l.b16 %v466
  %v1355 = vunpack.c.l.b16 %v467
  %v1356 = vunpack.c.l.b16 %v468
  %v1357 = vunpack.c.l.b16 %v469
  %v1358 = vunpack.c.l.b16 %v470
  %v1359 = vunpack.c.l.b16 %v471
  %v1360 = vunpack.c.l.b16 %v472
  %v1361 = vunpack.c.l.b16 %v473
  %v1362 = vunpack.c.l.b16 %v474
  %v1363 = vunpack.c.l.b16 %v475
  %v1364 = vunpack.c.l.b16 %v476
  %v1365 = vunpack.c.l.b16 %v477
  %v1366 = vunpack.c.l.b16 %v478
  %v1367 = vunpack.c.l.b16 %v479
  %v1368 = vunpack.c.l.b16 %v480
  %v1369 = vunpack.c.l.b16 %v481
  %v1370 = vunpack.c.l.b16 %v482
  %v1371 = vunpack.c.l.b16 %v483
  %v1372 = vunpack.c.l.b16 %v484
  %v1373 = vunpack.c.l.b16 %v485
  %v1374 = vunpack.c.l.b16 %v486
  %v1375 = vunpack.c.l.b16 %v487
  %v1376 = vunpack.c.l.b16 %v488
  %v1377 = vunpack.c.l.b16 %v489
  %v1378 = vunpack.c.l.b16 %v490
  %v1379 = vunpack.c.l.b16 %v491
  %v1380 = vunpack.c.l.b16 %v492
  %v1381 = vunpack.c.l.b16 %v493
  %v1382 = vunpack.c.l.b16 %v494
  %v1383 = vunpack.c.l.b16 %v495
  %v1384 = vunpack.c.l.b16 %v496
  %v1385 = vunpack.c.l.b16 %v497
  %v1386 = vunpack.c.l.b16 %v498
  %v1387 = vunpack.c.l.b16 %v499
  %v1388 = vunpack.c.l.b16 %v500
  %v1389 = vunpack.c.l.b16 %v501
  %v1390 = vunpack.c.l.b16 %v502
  %v1391 = vunpack.c.l.b16 %v503
  %v1392 = vunpack.c.l.b16 %v504
  %v1393 = vunpack.c.l.b16 %v505
  %v1394 = vunpack.c.l.b16 %v506
  %v1395 = vunpack.c.l.b16 %v507
  %v1396 = vunpack.c.l.b16 %v508
  %v1397 = vunpack.c.l.b16 %v509
  %v1398 = vunpack.c.l.b16 %v510
  %v1399 = vunpack.c.l.b16 %v511
  %v1400 = vunpack.c.l.b16 %v512
  %v1401 = vunpack.c.l.b16 %v513
  %v1402 = vunpack.c.l.b16 %v514
  %v1403 = vunpack.c.l.b16 %v515
  %v1404 = vunpack.c.l.b16 %v516
  %v1405 = vunpack.c.l.b16 %v517
  %v1406 = vunpack.c.l.b16 %v518
  %v1407 = vunpack.c.l.b16 %v519
  %v1408 = vunpack.c.l.b16 %v520
  %v1409 = vunpack.c.l.b16 %v521
  %v1410 = vunpack.c.l.b16 %v522
  %v1411 = vunpack.c.l.b16 %v523
  %v1412 = vunpack.c.l.b16 %v524
  %v1413 = vunpack.c.l.b16 %v525
  %v1414 = vunpack.c.l.b16 %v526
  %v1415 = vunpack.c.l.b16 %v527
  %v1416 = vunpack.c.l.b16 %v528
  %v1417 = vunpack.c.l.b16 %v529
  %v1418 = vunpack.c.l.b16 %v530
  %v1419 = vunpack.c.l.b16 %v531
  %v1420 = vunpack.c.l.b16 %v532
  %v1421 = vunpack.c.l.b16 %v533
  %v1422 = vunpack.c.l.b16 %v534
  %v1423 = vunpack.c.l.b16 %v535
  %v1424 = vunpack.c.l.b16 %v536
  %v1425 = vunpack.c.l.b16 %v537
  %v1426 = vunpack.c.l.b16 %v538
  %v1427 = vunpack.c.l.b16 %v539
  %v1428 = vunpack.c.l.b16 %v540
  %v1429 = vunpack.c.l.b16 %v541
  %v1430 = vunpack.c.l.b16 %v542
  %v1431 = vunpack.c.l.b16 %v543
  %v1432 = vunpack.c.l.b16 %v544
  %v1433 = vunpack.c.l.b16 %v545
  %v1434 = vunpack.c.l.b16 %v546
  %v1435 = vunpack.c.l.b16 %v547
  %v1436 = vunpack.c.l.b16 %v548
  %v1437 = vunpack.c.l.b16 %v549
  %v1438 = vunpack.c.l.b16 %v550
  %v1439 = vunpack.c.l.b16 %v551
  %v1440 = vunpack.c.l.b16 %v552
  %v1441 = vunpack.c.l.b16 %v553
  %v1442 = vunpack.c.l.b16 %v554
  %v1443 = vunpack.c.l.b16 %v555
  %v1444 = vunpack.c.l.b16 %v556
  %v1445 = vunpack.c.l.b16 %v557
  %v1446 = vunpack.c.l.b16 %v558
  %v1447 = vunpack.c.l.b16 %v559
  %v1448 = vunpack.c.l.b16 %v560
  %v1449 = vunpack.c.l.b16 %v561
  %v1450 = vunpack.c.l.b16 %v562
  %v1451 = vunpack.c.l.b16 %v563
  %v1452 = vunpack.c.l.b16 %v564
  %v1453 = vunpack.c.l.b16 %v565
  %v1454 = vunpack.c.l.b16 %v566
  %v1455 = vunpack.c.l.b16 %v567
  %v1456 = vunpack.c.l.b16 %v568
  %v1457 = vunpack.c.l.b16 %v569
  %v1458 = vunpack.c.l.b16 %v570
  %v1459 = vunpack.c.l.b16 %v571
  %v1460 = vunpack.c.l.b16 %v572
  %v1461 = vunpack.c.l.b16 %v573
  %v1462 = vunpack.c.l.b16 %v574
  %v1463 = vunpack.c.l.b16 %v575
  %v1464 = vunpack.c.l.b16 %v576
  %v1465 = vunpack.c.l.b16 %v577
  %v1466 = vunpack.c.l.b16 %v578
  %v1467 = vunpack.c.l.b16 %v579
  %v1468 = vunpack.c.l.b16 %v580
  %v1469 = vunpack.c.l.b16 %v581
  %v1470 = vunpack.c.l.b16 %v582
  %v1471 = vunpack.c.l.b16 %v583
  %v1472 = vunpack.c.l.b16 %v584
  %v1473 = vunpack.c.l.b16 %v585
  %v1474 = vunpack.c.l.b16 %v586
  %v1475 = vunpack.c.l.b16 %v587
  %v1476 = vunpack.c.l.b16 %v588
  %v1477 = vunpack.c.l.b16 %v589
  %v1478 = vunpack.c.l.b16 %v590
  %v1479 = vunpack.c.l.b16 %v591
  %v1480 = vunpack.c.l.b16 %v592
  %v1481 = vunpack.c.l.b16 %v593
  %v1482 = vunpack.c.l.b16 %v594
  %v1483 = vunpack.c.l.b16 %v595
  %v1484 = vunpack.c.l.b16 %v596
  %v1485 = vunpack.c.l.b16 %v597
  %v1486 = vunpack.c.l.b16 %v598
  %v1487 = vunpack.c.l.b16 %v599
  %v1488 = vunpack.c.l.b16 %v600
  %v1489 = vunpack.c.l.b16 %v601
  %v1490 = vunpack.c.l.b16 %v602
  %v1491 = vunpack.c.l.b16 %v603
  %v1492 = vunpack.c.l.b16 %v604
  %v1493 = vunpack.c.l.b16 %v605
  %v1494 = vunpack.c.l.b16 %v606
  %v1495 = vunpack.c.l.b16 %v607
  %v1496 = vunpack.c.l.b16 %v608
  %v1497 = vunpack.c.l.b16 %v609
  %v1498 = vunpack.c.l.b16 %v610
  %v1499 = vunpack.c.l.b16 %v611
  %v1500 = vunpack.c.l.b16 %v612
  %v1501 = vunpack.c.l.b16 %v613
  %v1502 = vunpack.c.l.b16 %v614
  %v1503 = vunpack.c.l.b16 %v615
  %v1504 = vunpack.c.l.b16 %v616
  %v1505 = vunpack.c.l.b16 %v617
  %v1506 = vunpack.c.l.b16 %v618
  %v1507 = vunpack.c.l.b16 %v619
  %v1508 = vunpack.c.l.b16 %v620
  %v1509 = vunpack.c.l.b16 %v621
  %v1510 = vunpack.c.l.b16 %v622
  %v1511 = vunpack.c.l.b16 %v623
  %v1512 = vunpack.c.l.b16 %v624
  %v1513 = vunpack.c.l.b16 %v625
  %v1514 = vunpack.c.l.b16 %v626
  %v1515 = vunpack.c.l.b16 %v627
  %v1516 = vunpack.c.l.b16 %v628
  %v1517 = vunpack.c.l.b16 %v629
  %v1518 = vunpack.c.l.b16 %v630
  %v1519 = vunpack.c.l.b16 %v631
  %v1520 = vunpack.c.l.b16 %v632
  %v1521 = vunpack.c.l.b16 %v633
  %v1522 = vunpack.c.l.b16 %v634
  %v1523 = vunpack.c.l.b16 %v635
  %v1524 = vunpack.c.l.b16 %v636
  %v1525 = vunpack.c.l.b16 %v637
  %v1526 = vunpack.c.l.b16 %v638
  %v1527 = vunpack.c.l.b16 %v639
  %v1528 = vunpack.c.l.b16 %v640
  %v1529 = vunpack.c.l.b16 %v641
  %v1530 = vunpack.c.l.b16 %v642
  %v1531 = vunpack.c.l.b16 %v643
  %v1532 = vunpack.c.l.b16 %v644
  %v1533 = vunpack.c.l.b16 %v645
  %v1534 = vunpack.c.l.b16 %v646
  %v1535 = vunpack.c.l.b16 %v647
  %v1536 = vunpack.c.l.b16 %v648
  %v1537 = vunpack.c.l.b16 %v649
  %v1538 = vunpack.c.l.b16 %v650
  %v1539 = vunpack.c.l.b16 %v651
  %v1540 = vunpack.c.l.b16 %v652
  %v1541 = vunpack.c.l.b16 %v653
  %v1542 = vunpack.c.l.b16 %v654
  %v1543 = vunpack.c.l.b16 %v655
  %v1544 = vunpack.c.l.b16 %v656
  %v1545 = vunpack.c.l.b16 %v657
  %v1546 = vunpack.c.l.b16 %v658
  %v1547 = vunpack.c.l.b16 %v659
  %v1548 = vunpack.c.l.b16 %v660
  %v1549 = vunpack.c.l.b16 %v661
  %v1550 = vunpack.c.l.b16 %v662
  %v1551 = vunpack.c.l.b16 %v663
  %v1552 = vunpack.c.l.b16 %v664
  %v1553 = vunpack.c.l.b16 %v665
  %v1554 = vunpack.c.l.b16 %v666
  %v1555 = vunpack.c.l.b16 %v667
  %v1556 = vunpack.c.l.b16 %v668
  %v1557 = vunpack.c.l.b16 %v669
  %v1558 = vunpack.c.l.b16 %v670
  %v1559 = vunpack.c.l.b16 %v671
  %v1560 = vunpack.c.l.b16 %v672
  %v1561 = vunpack.c.l.b16 %v673
  %v1562 = vunpack.c.l.b16 %v674
  %v1563 = vunpack.c.l.b16 %v675
  %v1564 = vunpack.c.l.b16 %v676
  %v1565 = vunpack.c.l.b16 %v677
  %v1566 = vunpack.c.l.b16 %v678
  %v1567 = vunpack.c.l.b16 %v679
  %v1568 = vunpack.c.l.b16 %v680
  %v1569 = vunpack.c.l.b16 %v681
  %v1570 = vunpack.c.l.b16 %v682
  %v1571 = vunpack.c.l.b16 %v683
  %v1572 = vunpack.c.l.b16 %v684
  %v1573 = vunpack.c.l.b16 %v685
  %v1574 = vunpack.c.l.b16 %v686
  %v1575 = vunpack.c.l.b16 %v687
  %v1576 = vunpack.c.l.b16 %v688
  %v1577 = vunpack.c.l.b16 %v689
  %v1578 = vunpack.c.l.b16 %v690
  %v1579 = vunpack.c.l.b16 %v691
  %v1580 = vunpack.c.l.b16 %v692
  %v1581 = vunpack.c.l.b16 %v693
  %v1582 = vunpack.c.l.b16 %v694
  %v1583 = vunpack.c.l.b16 %v695
  %v1584 = vunpack.c.l.b16 %v696
  %v1585 = vunpack.c.l.b16 %v697
  %v1586 = vunpack.c.l.b16 %v698
  %v1587 = vunpack.c.l.b16 %v699
  %v1588 = vunpack.c.l.b16 %v700
  %v1589 = vunpack.c.l.b16 %v701
  %v1590 = vunpack.c.l.b16 %v702
  %v1591 = vunpack.c.l.b16 %v703
  %v1592 = vunpack.c.l.b16 %v704
  %v1593 = vunpack.c.l.b16 %v705
  %v1594 = vunpack.c.l.b16 %v706
  %v1595 = vunpack.c.l.b16 %v707
  %v1596 = vunpack.c.l.b16 %v708
  %v1597 = vunpack.c.l.b16 %v709
  %v1598 = vunpack.c.l.b16 %v710
  %v1599 = vunpack.c.l.b16 %v711
  %v1600 = vunpack.c.l.b16 %v712
  %v1601 = vunpack.c.l.b16 %v713
  %v1602 = vunpack.c.l.b16 %v714
  %v1603 = vunpack.c.l.b16 %v715
  %v1604 = vunpack.c.l.b16 %v716
  %v1605 = vunpack.c.l.b16 %v717
  %v1606 = vunpack.c.l.b16 %v718
  %v1607 = vunpack.c.l.b16 %v719
  %v1608 = vunpack.c.l.b16 %v720
  %v1609 = vunpack.c.l.b16 %v721
  %v1610 = vunpack.c.l.b16 %v722
  %v1611 = vunpack.c.l.b16 %v723
  %v1612 = vunpack.c.l.b16 %v724
  %v1613 = vunpack.c.l.b16 %v725
  %v1614 = vunpack.c.l.b16 %v726
  %v1615 = vunpack.c.l.b16 %v727
  %v1616 = vunpack.c.l.b16 %v728
  %v1617 = vunpack.c.l.b16 %v729
  %v1618 = vunpack.c.l.b16 %v730
  %v1619 = vunpack.c.l.b16 %v731
  %v1620 = vunpack.c.l.b16 %v732
  %v1621 = vunpack.c.l.b16 %v733
  %v1622 = vunpack.c.l.b16 %v734
  %v1623 = vunpack.c.l.b16 %v735
  %v1624 = vunpack.c.l.b16 %v736
  %v1625 = vunpack.c.l.b16 %v737
  %v1626 = vunpack.c.l.b16 %v738
  %v1627 = vunpack.c.l.b16 %v739
  %v1628 = vunpack.c.l.b16 %v740
  %v1629 = vunpack.c.l.b16 %v741
  %v1630 = vunpack.c.l.b16 %v742
  %v1631 = vunpack.c.l.b16 %v743
  %v1632 = vunpack.c.l.b16 %v744
  %v1633 = vunpack.c.l.b16 %v745
  %v1634 = vunpack.c.l.b16 %v746
  %v1635 = vunpack.c.l.b16 %v747
  %v1636 = vunpack.c.l.b16 %v748
  %v1637 = vunpack.c.l.b16 %v749
  %v1638 = vunpack.c.l.b16 %v750
  %v1639 = vunpack.c.l.b16 %v751
  %v1640 = vunpack.c.l.b16 %v752
  %v1641 = vunpack.c.l.b16 %v753
  %v1642 = vunpack.c.l.b16 %v754
  %v1643 = vunpack.c.l.b16 %v755
  %v1644 = vunpack.c.l.b16 %v756
  %v1645 = vunpack.c.l.b16 %v757
  %v1646 = vunpack.c.l.b16 %v758
  %v1647 = vunpack.c.l.b16 %v759
  %v1648 = vunpack.c.l.b16 %v760
  %v1649 = vunpack.c.l.b16 %v761
  %v1650 = vunpack.c.l.b16 %v762
  %v1651 = vunpack.c.l.b16 %v763
  %v1652 = vunpack.c.l.b16 %v764
  %v1653 = vunpack.c.l.b16 %v765
  %v1654 = vunpack.c.l.b16 %v766
  %v1655 = vunpack.c.l.b16 %v767
  %v1656 = vunpack.c.l.b16 %v768
  %v1657 = vunpack.c.l.b16 %v769
  %v1658 = vunpack.c.l.b16 %v770
  %v1659 = vunpack.c.l.b16 %v771
  %v1660 = vunpack.c.l.b16 %v772
  %v1661 = vunpack.c.l.b16 %v773
  %v1662 = vunpack.c.l.b16 %v774
  %v1663 = vunpack.c.l.b16 %v775
  %v1664 = vunpack.c.l.b16 %v776
  %v1665 = vunpack.c.l.b16 %v777
  %v1666 = vunpack.c.l.b16 %v778
  %v1667 = vunpack.c.l.b16 %v779
  %v1668 = vunpack.c.l.b16 %v780
  %v1669 = vunpack.c.l.b16 %v781
  %v1670 = vunpack.c.l.b16 %v782
  %v1671 = vunpack.c.l.b16 %v783
  %v1672 = vunpack.c.l.b16 %v784
  %v1673 = vunpack.c.l.b16 %v785
  %v1674 = vunpack.c.l.b16 %v786
  %v1675 = vunpack.c.l.b16 %v787
  %v1676 = vunpack.c.l.b16 %v788
  %v1677 = vunpack.c.l.b16 %v789
  %v1678 = vunpack.c.l.b16 %v790
  %v1679 = vunpack.c.l.b16 %v791
  %v1680 = vunpack.c.l.b16 %v792
  %v1681 = vunpack.c.l.b16 %v793
  %v1682 = vunpack.c.l.b16 %v794
  %v1683 = vunpack.c.l.b16 %v795
  %v1684 = vunpack.c.l.b16 %v796
  %v1685 = vunpack.c.l.b16 %v797
  %v1686 = vunpack.c.l.b16 %v798
  %v1687 = vunpack.c.l.b16 %v799
  %v1688 = vunpack.c.l.b16 %v800
  %v1689 = vunpack.c.l.b16 %v801
  %v1690 = vunpack.c.l.b16 %v802
  %v1691 = vunpack.c.l.b16 %v803
  %v1692 = vunpack.c.l.b16 %v804
  %v1693 = vunpack.c.l.b16 %v805
  %v1694 = vunpack.c.l.b16 %v806
  %v1695 = vunpack.c.l.b16 %v807
  %v1696 = vunpack.c.l.b16 %v808
  %v1697 = vunpack.c.l.b16 %v809
  %v1698 = vunpack.c.l.b16 %v810
  %v1699 = vunpack.c.l.b16 %v811
  %v1700 = vunpack.c.l.b16 %v812
  %v1701 = vunpack.c.l.b16 %v813
  %v1702 = vunpack.c.l.b16 %v814
  %v1703 = vunpack.c.l.b16 %v815
  %v1704 = vunpack.c.l.b16 %v816
  %v1705 = vunpack.c.l.b16 %v817
  %v1706 = vunpack.c.l.b16 %v818
  %v1707 = vunpack.c.l.b16 %v819
  %v1708 = vunpack.c.l.b16 %v820
  %v1709 = vunpack.c.l.b16 %v821
  %v1710 = vunpack.c.l.b16 %v822
  %v1711 = vunpack.c.l.b16 %v823
  %v1712 = vunpack.c.l.b16 %v824
  %v1713 = vunpack.c.l.b16 %v825
  %v1714 = vunpack.c.l.b16 %v826
  %v1715 = vunpack.c.l.b16 %v827
  %v1716 = vunpack.c.l.b16 %v828
  %v1717 = vunpack.c.l.b16 %v829
  %v1718 = vunpack.c.l.b16 %v830
  %v1719 = vunpack.c.l.b16 %v831
  %v1720 = vunpack.c.l.b16 %v832
  %v1721 = vunpack.c.l.b16 %v833
  %v1722 = vunpack.c.l.b16 %v834
  %v1723 = vunpack.c.l.b16 %v835
  %v1724 = vpack.c.b16 %v1341, %v1340
  %v1725 = vpack.c.b16 %v1343, %v1342
  %v1726 = vpack.c.b16 %v1345, %v1344
  %v1727 = vpack.c.b16 %v1347, %v1346
  %v1728 = vpack.c.b16 %v1349, %v1348
  %v1729 = vpack.c.b16 %v1351, %v1350
  %v1730 = vpack.c.b16 %v1353, %v1352
  %v1731 = vpack.c.b16 %v1355, %v1354
  %v1732 = vpack.c.b16 %v1357, %v1356
  %v1733 = vpack.c.b16 %v1359, %v1358
  %v1734 = vpack.c.b16 %v1361, %v1360
  %v1735 = vpack.c.b16 %v1363, %v1362
  %v1736 = vpack.c.b16 %v1365, %v1364
  %v1737 = vpack.c.b16 %v1367, %v1366
  %v1738 = vpack.c.b16 %v1369, %v1368
  %v1739 = vpack.c.b16 %v1371, %v1370
  %v1740 = vpack.c.b16 %v1373, %v1372
  %v1741 = vpack.c.b16 %v1375, %v1374
  %v1742 = vpack.c.b16 %v1377, %v1376
  %v1743 = vpack.c.b16 %v1379, %v1378
  %v1744 = vpack.c.b16 %v1381, %v1380
  %v1745 = vpack.c.b16 %v1383, %v1382
  %v1746 = vpack.c.b16 %v1385, %v1384
  %v1747 = vpack.c.b16 %v1387, %v1386
  %v1748 = vpack.c.b16 %v1389, %v1388
  %v1749 = vpack.c.b16 %v1391, %v1390
  %v1750 = vpack.c.b16 %v1393, %v1392
  %v1751 = vpack.c.b16 %v1395, %v1394
  %v1752 = vpack.c.b16 %v1397, %v1396
  %v1753 = vpack.c.b16 %v1399, %v1398
  %v1754 = vpack.c.b16 %v1401, %v1400
  %v1755 = vpack.c.b16 %v1403, %v1402
  %v1756 = vpack.c.b16 %v1405, %v1404
  %v1757 = vpack.c.b16 %v1407, %v1406
  %v1758 = vpack.c.b16 %v1409, %v1408
  %v1759 = vpack.c.b16 %v1411, %v1410
  %v1760 = vpack.c.b16 %v1413, %v1412
  %v1761 = vpack.c.b16 %v1415, %v1414
  %v1762 = vpack.c.b16 %v1417, %v1416
  %v1763 = vpack.c.b16 %v1419, %v1418
  %v1764 = vpack.c.b16 %v1421, %v1420
  %v1765 = vpack.c.b16 %v1423, %v1422
  %v1766 = vpack.c.b16 %v1425, %v1424
  %v1767 = vpack.c.b16 %v1427, %v1426
  %v1768 = vpack.c.b16 %v1429, %v1428
  %v1769 = vpack.c.b16 %v1431, %v1430
  %v1770 = vpack.c.b16 %v1433, %v1432
  %v1771 = vpack.c.b16 %v1435, %v1434
  %v1772 = vpack.c.b16 %v1437, %v1436
  %v1773 = vpack.c.b16 %v1439, %v1438
  %v1774 = vpack.c.b16 %v1441, %v1440
  %v1775 = vpack.c.b16 %v1443, %v1442
  %v1776 = vpack.c.b16 %v1445, %v1444
  %v1777 = vpack.c.b16 %v1447, %v1446
  %v1778 = vpack.c.b16 %v1449, %v1448
  %v1779 = vpack.c.b16 %v1451, %v1450
  %v1780 = vpack.c.b16 %v1453, %v1452
  %v1781 = vpack.c.b16 %v1455, %v1454
  %v1782 = vpack.c.b16 %v1457, %v1456
  %v1783 = vpack.c.b16 %v1459, %v1458
  %v1784 = vpack.c.b16 %v1461, %v1460
  %v1785 = vpack.c.b16 %v1463, %v1462
  %v1786 = vpack.c.b16 %v1465, %v1464
  %v1787 = vpack.c.b16 %v1467, %v1466
  %v1788 = vpack.c.b16 %v1469, %v1468
  %v1789 = vpack.c.b16 %v1471, %v1470
  %v1790 = vpack.c.b16 %v1473, %v1472
  %v1791 = vpack.c.b16 %v1475, %v1474
  %v1792 = vpack.c.b16 %v1477, %v1476
  %v1793 = vpack.c.b16 %v1479, %v1478
  %v1794 = vpack.c.b16 %v1481, %v1480
  %v1795 = vpack.c.b16 %v1483, %v1482
  %v1796 = vpack.c.b16 %v1485, %v1484
  %v1797 = vpack.c.b16 %v1487, %v1486
  %v1798 = vpack.c.b16 %v1489, %v1488
  %v1799 = vpack.c.b16 %v1491, %v1490
  %v1800 = vpack.c.b16 %v1493, %v1492
  %v1801 = vpack.c.b16 %v1495, %v1494
  %v1802 = vpack.c.b16 %v1497, %v1496
  %v1803 = vpack.c.b16 %v1499, %v1498
  %v1804 = vpack.c.b16 %v1501, %v1500
  %v1805 = vpack.c.b16 %v1503, %v1502
  %v1806 = vpack.c.b16 %v1505, %v1504
  %v1807 = vpack.c.b16 %v1507, %v1506
  %v1808 = vpack.c.b16 %v1509, %v1508
  %v1809 = vpack.c.b16 %v1511, %v1510
  %v1810 = vpack.c.b16 %v1513, %v1512
  %v1811 = vpack.c.b16 %v1515, %v1514
  %v1812 = vpack.c.b16 %v1517, %v1516
  %v1813 = vpack.c.b16 %v1519, %v1518
  %v1814 = vpack.c.b16 %v1521, %v1520
  %v1815 = vpack.c.b16 %v1523, %v1522
  %v1816 = vpack.c.b16 %v1525, %v1524
  %v1817 = vpack.c.b16 %v1527, %v1526
  %v1818 = vpack.c.b16 %v1529, %v1528
  %v1819 = vpack.c.b16 %v1531, %v1530
  %v1820 = vpack.c.b16 %v1533, %v1532
  %v1821 = vpack.c.b16 %v1535, %v1534
  %v1822 = vpack.c.b16 %v1537, %v1536
  %v1823 = vpack.c.b16 %v1539, %v1538
  %v1824 = vpack.c.b16 %v1541, %v1540
  %v1825 = vpack.c.b16 %v1543, %v1542
  %v1826 = vpack.c.b16 %v1545, %v1544
  %v1827 = vpack.c.b16 %v1547, %v1546
  %v1828 = vpack.c.b16 %v1549, %v1548
  %v1829 = vpack.c.b16 %v1551, %v1550
  %v1830 = vpack.c.b16 %v1553, %v1552
  %v1831 = vpack.c.b16 %v1555, %v1554
  %v1832 = vpack.c.b16 %v1557, %v1556
  %v1833 = vpack.c.b16 %v1559, %v1558
  %v1834 = vpack.c.b16 %v1561, %v1560
  %v1835 = vpack.c.b16 %v1563, %v1562
  %v1836 = vpack.c.b16 %v1565, %v1564
  %v1837 = vpack.c.b16 %v1567, %v1566
  %v1838 = vpack.c.b16 %v1569, %v1568
  %v1839 = vpack.c.b16 %v1571, %v1570
  %v1840 = vpack.c.b16 %v1573, %v1572
  %v1841 = vpack.c.b16 %v1575, %v1574
  %v1842 = vpack.c.b16 %v1577, %v1576
  %v1843 = vpack.c.b16 %v1579, %v1578
  %v1844 = vpack.c.b16 %v1581, %v1580
  %v1845 = vpack.c.b16 %v1583, %v1582
  %v1846 = vpack.c.b16 %v1585, %v1584
  %v1847 = vpack.c.b16 %v1587, %v1586
  %v1848 = vpack.c.b16 %v1589, %v1588
  %v1849 = vpack.c.b16 %v1591, %v1590
  %v1850 = vpack.c.b16 %v1593, %v1592
  %v1851 = vpack.c.b16 %v1595, %v1594
  %v1852 = vpack.c.b16 %v1597, %v1596
  %v1853 = vpack.c.b16 %v1599, %v1598
  %v1854 = vpack.c.b16 %v1601, %v1600
  %v1855 = vpack.c.b16 %v1603, %v1602
  %v1856 = vpack.c.b16 %v1605, %v1604
  %v1857 = vpack.c.b16 %v1607, %v1606
  %v1858 = vpack.c.b16 %v1609, %v1608
  %v1859 = vpack.c.b16 %v1611, %v1610
  %v1860 = vpack.c.b16 %v1613, %v1612
  %v1861 = vpack.c.b16 %v1615, %v1614
  %v1862 = vpack.c.b16 %v1617, %v1616
  %v1863 = vpack.c.b16 %v1619, %v1618
  %v1864 = vpack.c.b16 %v1621, %v1620
  %v1865 = vpack.c.b16 %v1623, %v1622
  %v1866 = vpack.c.b16 %v1625, %v1624
  %v1867 = vpack.c.b16 %v1627, %v1626
  %v1868 = vpack.c.b16 %v1629, %v1628
  %v1869 = vpack.c.b16 %v1631, %v1630
  %v1870 = vpack.c.b16 %v1633, %v1632
  %v1871 = vpack.c.b16 %v1635, %v1634
  %v1872 = vpack.c.b16 %v1637, %v1636
  %v1873 = vpack.c.b16 %v1639, %v1638
  %v1874 = vpack.c.b16 %v1641, %v1640
  %v1875 = vpack.c.b16 %v1643, %v1642
  %v1876 = vpack.c.b16 %v1645, %v1644
  %v1877 = vpack.c.b16 %v1647, %v1646
  %v1878 = vpack.c.b16 %v1649, %v1648
  %v1879 = vpack.c.b16 %v1651, %v1650
  %v1880 = vpack.c.b16 %v1653, %v1652
  %v1881 = vpack.c.b16 %v1655, %v1654
  %v1882 = vpack.c.b16 %v1657, %v1656
  %v1883 = vpack.c.b16 %v1659, %v1658
  %v1884 = vpack.c.b16 %v1661, %v1660
  %v1885 = vpack.c.b16 %v1663, %v1662
  %v1886 = vpack.c.b16 %v1665, %v1664
  %v1887 = vpack.c.b16 %v1667, %v1666
  %v1888 = vpack.c.b16 %v1669, %v1668
  %v1889 = vpack.c.b16 %v1671, %v1670
  %v1890 = vpack.c.b16 %v1673, %v1672
  %v1891 = vpack.c.b16 %v1675, %v1674
  %v1892 = vpack.c.b16 %v1677, %v1676
  %v1893 = vpack.c.b16 %v1679, %v1678
  %v1894 = vpack.c.b16 %v1681, %v1680
  %v1895 = vpack.c.b16 %v1683, %v1682
  %v1896 = vpack.c.b16 %v1685, %v1684
  %v1897 = vpack.c.b16 %v1687, %v1686
  %v1898 = vpack.c.b16 %v1689, %v1688
  %v1899 = vpack.c.b16 %v1691, %v1690
  %v1900 = vpack.c.b16 %v1693, %v1692
  %v1901 = vpack.c.b16 %v1695, %v1694
  %v1902 = vpack.c.b16 %v1697, %v1696
  %v1903 = vpack.c.b16 %v1699, %v1698
  %v1904 = vpack.c.b16 %v1701, %v1700
  %v1905 = vpack.c.b16 %v1703, %v1702
  %v1906 = vpack.c.b16 %v1705, %v1704
  %v1907 = vpack.c.b16 %v1707, %v1706
  %v1908 = vpack.c.b16 %v1709, %v1708
  %v1909 = vpack.c.b16 %v1711, %v1710
  %v1910 = vpack.c.b16 %v1713, %v1712
  %v1911 = vpack.c.b16 %v1715, %v1714
  %v1912 = vpack.c.b16 %v1717, %v1716
  %v1913 = vpack.c.b16 %v1719, %v1718
  %v1914 = vpack.c.b16 %v1721, %v1720
  %v1915 = vpack.c.b16 %v1723, %v1722
  %2108 = vmatpush.bf16.msra.mxu0 %v1731
  %2109 = vmatpush.bf16.msra.mxu0 %v1730
  %2110 = vmatpush.bf16.msra.mxu0 %v1729
  %2111 = vmatpush.bf16.msra.mxu0 %v1728
  %2112 = vmatpush.bf16.msra.mxu0 %v1727
  %2113 = vmatpush.bf16.msra.mxu0 %v1726
  %2114 = vmatpush.bf16.msra.mxu0 %v1725
  %2115 = vmatpush.bf16.msra.mxu0 %v1724
  %2116 = vmatmul.bf16.gmra.mxu0 %v908
  %v2117 = vpop.f32.mrf.mxu0
  %v2118 = vadd.f32 0.0, %v2117
  %v2119 = vpop.f32.mrf.mxu0
  %v2120 = vadd.f32 0.0, %v2119
  %2121 = vdwg.mxu0
  %2122 = vmatpush.bf16.msra.mxu0 %v1739
  %2123 = vmatpush.bf16.msra.mxu0 %v1738
  %2124 = vmatpush.bf16.msra.mxu0 %v1737
  %2125 = vmatpush.bf16.msra.mxu0 %v1736
  %2126 = vmatpush.bf16.msra.mxu0 %v1735
  %2127 = vmatpush.bf16.msra.mxu0 %v1734
  %2128 = vmatpush.bf16.msra.mxu0 %v1733
  %2129 = vmatpush.bf16.msra.mxu0 %v1732
  %2130 = vmatmul.bf16.gmra.mxu0 %v909
  %v2131 = vpop.f32.mrf.mxu0
  %v2132 = vadd.f32 %v2118, %v2131
  %v2133 = vpop.f32.mrf.mxu0
  %v2134 = vadd.f32 %v2120, %v2133
  %2135 = vdwg.mxu0
  %2136 = vmatpush.bf16.msra.mxu0 %v1747
  %2137 = vmatpush.bf16.msra.mxu0 %v1746
  %2138 = vmatpush.bf16.msra.mxu0 %v1745
  %2139 = vmatpush.bf16.msra.mxu0 %v1744
  %2140 = vmatpush.bf16.msra.mxu0 %v1743
  %2141 = vmatpush.bf16.msra.mxu0 %v1742
  %2142 = vmatpush.bf16.msra.mxu0 %v1741
  %2143 = vmatpush.bf16.msra.mxu0 %v1740
  %2144 = vmatmul.bf16.gmra.mxu0 %v910
  %v2145 = vpop.f32.mrf.mxu0
  %v2146 = vadd.f32 %v2132, %v2145
  %v2147 = vpop.f32.mrf.mxu0
  %v2148 = vadd.f32 %v2134, %v2147
  %2149 = vdwg.mxu0
  %2150 = vmatpush.bf16.msra.mxu0 %v1755
  %2151 = vmatpush.bf16.msra.mxu0 %v1754
  %2152 = vmatpush.bf16.msra.mxu0 %v1753
  %2153 = vmatpush.bf16.msra.mxu0 %v1752
  %2154 = vmatpush.bf16.msra.mxu0 %v1751
  %2155 = vmatpush.bf16.msra.mxu0 %v1750
  %2156 = vmatpush.bf16.msra.mxu0 %v1749
  %2157 = vmatpush.bf16.msra.mxu0 %v1748
  %2158 = vmatmul.bf16.gmra.mxu0 %v911
  %v2159 = vpop.f32.mrf.mxu0
  %v2160 = vadd.f32 %v2146, %v2159
  %v2161 = vpop.f32.mrf.mxu0
  %v2162 = vadd.f32 %v2148, %v2161
  %2163 = vdwg.mxu0
  %2164 = vmatpush.bf16.msra.mxu0 %v1763
  %2165 = vmatpush.bf16.msra.mxu0 %v1762
  %2166 = vmatpush.bf16.msra.mxu0 %v1761
  %2167 = vmatpush.bf16.msra.mxu0 %v1760
  %2168 = vmatpush.bf16.msra.mxu0 %v1759
  %2169 = vmatpush.bf16.msra.mxu0 %v1758
  %2170 = vmatpush.bf16.msra.mxu0 %v1757
  %2171 = vmatpush.bf16.msra.mxu0 %v1756
  %2172 = vmatmul.bf16.gmra.mxu0 %v912
  %v2173 = vpop.f32.mrf.mxu0
  %v2174 = vadd.f32 %v2160, %v2173
  %v2175 = vpop.f32.mrf.mxu0
  %v2176 = vadd.f32 %v2162, %v2175
  %2177 = vdwg.mxu0
  %2178 = vmatpush.bf16.msra.mxu0 %v1771
  %2179 = vmatpush.bf16.msra.mxu0 %v1770
  %2180 = vmatpush.bf16.msra.mxu0 %v1769
  %2181 = vmatpush.bf16.msra.mxu0 %v1768
  %2182 = vmatpush.bf16.msra.mxu0 %v1767
  %2183 = vmatpush.bf16.msra.mxu0 %v1766
  %2184 = vmatpush.bf16.msra.mxu0 %v1765
  %2185 = vmatpush.bf16.msra.mxu0 %v1764
  %2186 = vmatmul.bf16.gmra.mxu0 %v913
  %v2187 = vpop.f32.mrf.mxu0
  %v2188 = vadd.f32 %v2174, %v2187
  %v2189 = vpop.f32.mrf.mxu0
  %v2190 = vadd.f32 %v2176, %v2189
  %2191 = vdwg.mxu0
  %2192 = vmatpush.bf16.msra.mxu0 %v1779
  %2193 = vmatpush.bf16.msra.mxu0 %v1778
  %2194 = vmatpush.bf16.msra.mxu0 %v1777
  %2195 = vmatpush.bf16.msra.mxu0 %v1776
  %2196 = vmatpush.bf16.msra.mxu0 %v1775
  %2197 = vmatpush.bf16.msra.mxu0 %v1774
  %2198 = vmatpush.bf16.msra.mxu0 %v1773
  %2199 = vmatpush.bf16.msra.mxu0 %v1772
  %2200 = vmatmul.bf16.gmra.mxu0 %v914
  %v2201 = vpop.f32.mrf.mxu0
  %v2202 = vadd.f32 %v2188, %v2201
  %v2203 = vpop.f32.mrf.mxu0
  %v2204 = vadd.f32 %v2190, %v2203
  %2205 = vdwg.mxu0
  %2206 = vmatpush.bf16.msra.mxu0 %v1787
  %2207 = vmatpush.bf16.msra.mxu0 %v1786
  %2208 = vmatpush.bf16.msra.mxu0 %v1785
  %2209 = vmatpush.bf16.msra.mxu0 %v1784
  %2210 = vmatpush.bf16.msra.mxu0 %v1783
  %2211 = vmatpush.bf16.msra.mxu0 %v1782
  %2212 = vmatpush.bf16.msra.mxu0 %v1781
  %2213 = vmatpush.bf16.msra.mxu0 %v1780
  %2214 = vmatmul.bf16.gmra.mxu0 %v915
  %v2215 = vpop.f32.mrf.mxu0
  %v2216 = vadd.f32 %v2202, %v2215
  %v2217 = vpop.f32.mrf.mxu0
  %v2218 = vadd.f32 %v2204, %v2217
  %2219 = vdwg.mxu0
  %2220 = vmatpush.bf16.msra.mxu0 %v1795
  %2221 = vmatpush.bf16.msra.mxu0 %v1794
  %2222 = vmatpush.bf16.msra.mxu0 %v1793
  %2223 = vmatpush.bf16.msra.mxu0 %v1792
  %2224 = vmatpush.bf16.msra.mxu0 %v1791
  %2225 = vmatpush.bf16.msra.mxu0 %v1790
  %2226 = vmatpush.bf16.msra.mxu0 %v1789
  %2227 = vmatpush.bf16.msra.mxu0 %v1788
  %2228 = vmatmul.bf16.gmra.mxu0 %v916
  %v2229 = vpop.f32.mrf.mxu0
  %v2230 = vadd.f32 %v2216, %v2229
  %v2231 = vpop.f32.mrf.mxu0
  %v2232 = vadd.f32 %v2218, %v2231
  %2233 = vdwg.mxu0
  %2234 = vmatpush.bf16.msra.mxu0 %v1803
  %2235 = vmatpush.bf16.msra.mxu0 %v1802
  %2236 = vmatpush.bf16.msra.mxu0 %v1801
  %2237 = vmatpush.bf16.msra.mxu0 %v1800
  %2238 = vmatpush.bf16.msra.mxu0 %v1799
  %2239 = vmatpush.bf16.msra.mxu0 %v1798
  %2240 = vmatpush.bf16.msra.mxu0 %v1797
  %2241 = vmatpush.bf16.msra.mxu0 %v1796
  %2242 = vmatmul.bf16.gmra.mxu0 %v917
  %v2243 = vpop.f32.mrf.mxu0
  %v2244 = vadd.f32 %v2230, %v2243
  %v2245 = vpop.f32.mrf.mxu0
  %v2246 = vadd.f32 %v2232, %v2245
  %2247 = vdwg.mxu0
  %2248 = vmatpush.bf16.msra.mxu0 %v1811
  %2249 = vmatpush.bf16.msra.mxu0 %v1810
  %2250 = vmatpush.bf16.msra.mxu0 %v1809
  %2251 = vmatpush.bf16.msra.mxu0 %v1808
  %2252 = vmatpush.bf16.msra.mxu0 %v1807
  %2253 = vmatpush.bf16.msra.mxu0 %v1806
  %2254 = vmatpush.bf16.msra.mxu0 %v1805
  %2255 = vmatpush.bf16.msra.mxu0 %v1804
  %2256 = vmatmul.bf16.gmra.mxu0 %v918
  %v2257 = vpop.f32.mrf.mxu0
  %v2258 = vadd.f32 %v2244, %v2257
  %v2259 = vpop.f32.mrf.mxu0
  %v2260 = vadd.f32 %v2246, %v2259
  %2261 = vdwg.mxu0
  %2262 = vmatpush.bf16.msra.mxu0 %v1819
  %2263 = vmatpush.bf16.msra.mxu0 %v1818
  %2264 = vmatpush.bf16.msra.mxu0 %v1817
  %2265 = vmatpush.bf16.msra.mxu0 %v1816
  %2266 = vmatpush.bf16.msra.mxu0 %v1815
  %2267 = vmatpush.bf16.msra.mxu0 %v1814
  %2268 = vmatpush.bf16.msra.mxu0 %v1813
  %2269 = vmatpush.bf16.msra.mxu0 %v1812
  %2270 = vmatmul.bf16.gmra.mxu0 %v919
  %v2271 = vpop.f32.mrf.mxu0
  %v2272 = vadd.f32 %v2258, %v2271
  %v2273 = vpop.f32.mrf.mxu0
  %v2274 = vadd.f32 %v2260, %v2273
  %2275 = vdwg.mxu0
  %2276 = vmatpush.bf16.msra.mxu0 %v1827
  %2277 = vmatpush.bf16.msra.mxu0 %v1826
  %2278 = vmatpush.bf16.msra.mxu0 %v1825
  %2279 = vmatpush.bf16.msra.mxu0 %v1824
  %2280 = vmatpush.bf16.msra.mxu0 %v1823
  %2281 = vmatpush.bf16.msra.mxu0 %v1822
  %2282 = vmatpush.bf16.msra.mxu0 %v1821
  %2283 = vmatpush.bf16.msra.mxu0 %v1820
  %2284 = vmatmul.bf16.gmra.mxu0 %v920
  %v2285 = vpop.f32.mrf.mxu0
  %v2286 = vadd.f32 %v2272, %v2285
  %v2287 = vpop.f32.mrf.mxu0
  %v2288 = vadd.f32 %v2274, %v2287
  %2289 = vdwg.mxu0
  %2290 = vmatpush.bf16.msra.mxu0 %v1835
  %2291 = vmatpush.bf16.msra.mxu0 %v1834
  %2292 = vmatpush.bf16.msra.mxu0 %v1833
  %2293 = vmatpush.bf16.msra.mxu0 %v1832
  %2294 = vmatpush.bf16.msra.mxu0 %v1831
  %2295 = vmatpush.bf16.msra.mxu0 %v1830
  %2296 = vmatpush.bf16.msra.mxu0 %v1829
  %2297 = vmatpush.bf16.msra.mxu0 %v1828
  %2298 = vmatmul.bf16.gmra.mxu0 %v921
  %v2299 = vpop.f32.mrf.mxu0
  %v2300 = vadd.f32 %v2286, %v2299
  %v2301 = vpop.f32.mrf.mxu0
  %v2302 = vadd.f32 %v2288, %v2301
  %2303 = vdwg.mxu0
  %2304 = vmatpush.bf16.msra.mxu0 %v1843
  %2305 = vmatpush.bf16.msra.mxu0 %v1842
  %2306 = vmatpush.bf16.msra.mxu0 %v1841
  %2307 = vmatpush.bf16.msra.mxu0 %v1840
  %2308 = vmatpush.bf16.msra.mxu0 %v1839
  %2309 = vmatpush.bf16.msra.mxu0 %v1838
  %2310 = vmatpush.bf16.msra.mxu0 %v1837
  %2311 = vmatpush.bf16.msra.mxu0 %v1836
  %2312 = vmatmul.bf16.gmra.mxu0 %v922
  %v2313 = vpop.f32.mrf.mxu0
  %v2314 = vadd.f32 %v2300, %v2313
  %v2315 = vpop.f32.mrf.mxu0
  %v2316 = vadd.f32 %v2302, %v2315
  %2317 = vdwg.mxu0
  %2318 = vmatpush.bf16.msra.mxu0 %v1851
  %2319 = vmatpush.bf16.msra.mxu0 %v1850
  %2320 = vmatpush.bf16.msra.mxu0 %v1849
  %2321 = vmatpush.bf16.msra.mxu0 %v1848
  %2322 = vmatpush.bf16.msra.mxu0 %v1847
  %2323 = vmatpush.bf16.msra.mxu0 %v1846
  %2324 = vmatpush.bf16.msra.mxu0 %v1845
  %2325 = vmatpush.bf16.msra.mxu0 %v1844
  %2326 = vmatmul.bf16.gmra.mxu0 %v923
  %v2327 = vpop.f32.mrf.mxu0
  %v2328 = vadd.f32 %v2314, %v2327
  %v2329 = vpop.f32.mrf.mxu0
  %v2330 = vadd.f32 %v2316, %v2329
  %2331 = vdwg.mxu0
  %2332 = vmatpush.bf16.msra.mxu0 %v1859
  %2333 = vmatpush.bf16.msra.mxu0 %v1858
  %2334 = vmatpush.bf16.msra.mxu0 %v1857
  %2335 = vmatpush.bf16.msra.mxu0 %v1856
  %2336 = vmatpush.bf16.msra.mxu0 %v1855
  %2337 = vmatpush.bf16.msra.mxu0 %v1854
  %2338 = vmatpush.bf16.msra.mxu0 %v1853
  %2339 = vmatpush.bf16.msra.mxu0 %v1852
  %2340 = vmatmul.bf16.gmra.mxu0 %v924
  %v2341 = vpop.f32.mrf.mxu0
  %v2342 = vadd.f32 %v2328, %v2341
  %v2343 = vpop.f32.mrf.mxu0
  %v2344 = vadd.f32 %v2330, %v2343
  %2345 = vdwg.mxu0
  %2346 = vmatpush.bf16.msra.mxu0 %v1867
  %2347 = vmatpush.bf16.msra.mxu0 %v1866
  %2348 = vmatpush.bf16.msra.mxu0 %v1865
  %2349 = vmatpush.bf16.msra.mxu0 %v1864
  %2350 = vmatpush.bf16.msra.mxu0 %v1863
  %2351 = vmatpush.bf16.msra.mxu0 %v1862
  %2352 = vmatpush.bf16.msra.mxu0 %v1861
  %2353 = vmatpush.bf16.msra.mxu0 %v1860
  %2354 = vmatmul.bf16.gmra.mxu0 %v925
  %v2355 = vpop.f32.mrf.mxu0
  %v2356 = vadd.f32 %v2342, %v2355
  %v2357 = vpop.f32.mrf.mxu0
  %v2358 = vadd.f32 %v2344, %v2357
  %2359 = vdwg.mxu0
  %2360 = vmatpush.bf16.msra.mxu0 %v1875
  %2361 = vmatpush.bf16.msra.mxu0 %v1874
  %2362 = vmatpush.bf16.msra.mxu0 %v1873
  %2363 = vmatpush.bf16.msra.mxu0 %v1872
  %2364 = vmatpush.bf16.msra.mxu0 %v1871
  %2365 = vmatpush.bf16.msra.mxu0 %v1870
  %2366 = vmatpush.bf16.msra.mxu0 %v1869
  %2367 = vmatpush.bf16.msra.mxu0 %v1868
  %2368 = vmatmul.bf16.gmra.mxu0 %v926
  %v2369 = vpop.f32.mrf.mxu0
  %v2370 = vadd.f32 %v2356, %v2369
  %v2371 = vpop.f32.mrf.mxu0
  %v2372 = vadd.f32 %v2358, %v2371
  %2373 = vdwg.mxu0
  %2374 = vmatpush.bf16.msra.mxu0 %v1883
  %2375 = vmatpush.bf16.msra.mxu0 %v1882
  %2376 = vmatpush.bf16.msra.mxu0 %v1881
  %2377 = vmatpush.bf16.msra.mxu0 %v1880
  %2378 = vmatpush.bf16.msra.mxu0 %v1879
  %2379 = vmatpush.bf16.msra.mxu0 %v1878
  %2380 = vmatpush.bf16.msra.mxu0 %v1877
  %2381 = vmatpush.bf16.msra.mxu0 %v1876
  %2382 = vmatmul.bf16.gmra.mxu0 %v927
  %v2383 = vpop.f32.mrf.mxu0
  %v2384 = vadd.f32 %v2370, %v2383
  %v2385 = vpop.f32.mrf.mxu0
  %v2386 = vadd.f32 %v2372, %v2385
  %2387 = vdwg.mxu0
  %2388 = vmatpush.bf16.msra.mxu0 %v1891
  %2389 = vmatpush.bf16.msra.mxu0 %v1890
  %2390 = vmatpush.bf16.msra.mxu0 %v1889
  %2391 = vmatpush.bf16.msra.mxu0 %v1888
  %2392 = vmatpush.bf16.msra.mxu0 %v1887
  %2393 = vmatpush.bf16.msra.mxu0 %v1886
  %2394 = vmatpush.bf16.msra.mxu0 %v1885
  %2395 = vmatpush.bf16.msra.mxu0 %v1884
  %2396 = vmatmul.bf16.gmra.mxu0 %v928
  %v2397 = vpop.f32.mrf.mxu0
  %v2398 = vadd.f32 %v2384, %v2397
  %v2399 = vpop.f32.mrf.mxu0
  %v2400 = vadd.f32 %v2386, %v2399
  %2401 = vdwg.mxu0
  %2402 = vmatpush.bf16.msra.mxu0 %v1899
  %2403 = vmatpush.bf16.msra.mxu0 %v1898
  %2404 = vmatpush.bf16.msra.mxu0 %v1897
  %2405 = vmatpush.bf16.msra.mxu0 %v1896
  %2406 = vmatpush.bf16.msra.mxu0 %v1895
  %2407 = vmatpush.bf16.msra.mxu0 %v1894
  %2408 = vmatpush.bf16.msra.mxu0 %v1893
  %2409 = vmatpush.bf16.msra.mxu0 %v1892
  %2410 = vmatmul.bf16.gmra.mxu0 %v929
  %v2411 = vpop.f32.mrf.mxu0
  %v2412 = vadd.f32 %v2398, %v2411
  %v2413 = vpop.f32.mrf.mxu0
  %v2414 = vadd.f32 %v2400, %v2413
  %2415 = vdwg.mxu0
  %2416 = vmatpush.bf16.msra.mxu0 %v1907
  %2417 = vmatpush.bf16.msra.mxu0 %v1906
  %2418 = vmatpush.bf16.msra.mxu0 %v1905
  %2419 = vmatpush.bf16.msra.mxu0 %v1904
  %2420 = vmatpush.bf16.msra.mxu0 %v1903
  %2421 = vmatpush.bf16.msra.mxu0 %v1902
  %2422 = vmatpush.bf16.msra.mxu0 %v1901
  %2423 = vmatpush.bf16.msra.mxu0 %v1900
  %2424 = vmatmul.bf16.gmra.mxu0 %v930
  %v2425 = vpop.f32.mrf.mxu0
  %v2426 = vadd.f32 %v2412, %v2425
  %v2427 = vpop.f32.mrf.mxu0
  %v2428 = vadd.f32 %v2414, %v2427
  %2429 = vdwg.mxu0
  %2430 = vmatpush.bf16.msra.mxu0 %v1915
  %2431 = vmatpush.bf16.msra.mxu0 %v1914
  %2432 = vmatpush.bf16.msra.mxu0 %v1913
  %2433 = vmatpush.bf16.msra.mxu0 %v1912
  %2434 = vmatpush.bf16.msra.mxu0 %v1911
  %2435 = vmatpush.bf16.msra.mxu0 %v1910
  %2436 = vmatpush.bf16.msra.mxu0 %v1909
  %2437 = vmatpush.bf16.msra.mxu0 %v1908
  %2438 = vmatmul.bf16.gmra.mxu0 %v931
  %v2439 = vpop.f32.mrf.mxu0
  %v2440 = vadd.f32 %v2426, %v2439
  %v2441 = vpop.f32.mrf.mxu0
  %v2442 = vadd.f32 %v2428, %v2441
  %2443 = vdwg.mxu0
  %v2468 = vunpack.c.l.b16 %v20
  %v2469 = vunpack.c.h.b16 %v20
  %v2470 = vunpack.c.l.b16 %v21
  %v2471 = vunpack.c.h.b16 %v21
  %v2472 = vunpack.c.l.b16 %v22
  %v2473 = vunpack.c.h.b16 %v22
  %v2474 = vunpack.c.l.b16 %v23
  %v2475 = vunpack.c.h.b16 %v23
  %v2476 = vunpack.c.l.b16 %v24
  %v2477 = vunpack.c.h.b16 %v24
  %v2478 = vunpack.c.l.b16 %v25
  %v2479 = vunpack.c.h.b16 %v25
  %v2480 = vunpack.c.l.b16 %v26
  %v2481 = vunpack.c.h.b16 %v26
  %v2482 = vunpack.c.l.b16 %v27
  %v2483 = vunpack.c.h.b16 %v27
  %v2484 = vunpack.c.l.b16 %v28
  %v2485 = vunpack.c.h.b16 %v28
  %v2486 = vunpack.c.l.b16 %v29
  %v2487 = vunpack.c.h.b16 %v29
  %v2488 = vunpack.c.l.b16 %v30
  %v2489 = vunpack.c.h.b16 %v30
  %v2490 = vunpack.c.l.b16 %v31
  %v2491 = vunpack.c.h.b16 %v31
  %v2492 = vunpack.c.l.b16 %v32
  %v2493 = vunpack.c.h.b16 %v32
  %v2494 = vunpack.c.l.b16 %v33
  %v2495 = vunpack.c.h.b16 %v33
  %v2496 = vunpack.c.l.b16 %v34
  %v2497 = vunpack.c.h.b16 %v34
  %v2498 = vunpack.c.l.b16 %v35
  %v2499 = vunpack.c.h.b16 %v35
  %v2500 = vunpack.c.l.b16 %v36
  %v2501 = vunpack.c.h.b16 %v36
  %v2502 = vunpack.c.l.b16 %v37
  %v2503 = vunpack.c.h.b16 %v37
  %v2504 = vunpack.c.l.b16 %v38
  %v2505 = vunpack.c.h.b16 %v38
  %v2506 = vunpack.c.l.b16 %v39
  %v2507 = vunpack.c.h.b16 %v39
  %v2508 = vunpack.c.l.b16 %v40
  %v2509 = vunpack.c.h.b16 %v40
  %v2510 = vunpack.c.l.b16 %v41
  %v2511 = vunpack.c.h.b16 %v41
  %v2512 = vunpack.c.l.b16 %v42
  %v2513 = vunpack.c.h.b16 %v42
  %v2514 = vunpack.c.l.b16 %v43
  %v2515 = vunpack.c.h.b16 %v43
  %v2516 = vpack.c.b16 %v2492, %v2468
  %v2517 = vpack.c.b16 %v2493, %v2469
  %v2518 = vpack.c.b16 %v2494, %v2470
  %v2519 = vpack.c.b16 %v2495, %v2471
  %v2520 = vpack.c.b16 %v2496, %v2472
  %v2521 = vpack.c.b16 %v2497, %v2473
  %v2522 = vpack.c.b16 %v2498, %v2474
  %v2523 = vpack.c.b16 %v2499, %v2475
  %v2524 = vpack.c.b16 %v2500, %v2476
  %v2525 = vpack.c.b16 %v2501, %v2477
  %v2526 = vpack.c.b16 %v2502, %v2478
  %v2527 = vpack.c.b16 %v2503, %v2479
  %v2528 = vpack.c.b16 %v2504, %v2480
  %v2529 = vpack.c.b16 %v2505, %v2481
  %v2530 = vpack.c.b16 %v2506, %v2482
  %v2531 = vpack.c.b16 %v2507, %v2483
  %v2532 = vpack.c.b16 %v2508, %v2484
  %v2533 = vpack.c.b16 %v2509, %v2485
  %v2534 = vpack.c.b16 %v2510, %v2486
  %v2535 = vpack.c.b16 %v2511, %v2487
  %v2536 = vpack.c.b16 %v2512, %v2488
  %v2537 = vpack.c.b16 %v2513, %v2489
  %v2538 = vpack.c.b16 %v2514, %v2490
  %v2539 = vpack.c.b16 %v2515, %v2491
  %v2948 = vunpack.c.l.b16 %v44
  %v2949 = vunpack.c.l.b16 %v45
  %v2950 = vunpack.c.l.b16 %v46
  %v2951 = vunpack.c.l.b16 %v47
  %v2952 = vunpack.c.l.b16 %v48
  %v2953 = vunpack.c.l.b16 %v49
  %v2954 = vunpack.c.l.b16 %v50
  %v2955 = vunpack.c.l.b16 %v51
  %v2956 = vunpack.c.l.b16 %v52
  %v2957 = vunpack.c.l.b16 %v53
  %v2958 = vunpack.c.l.b16 %v54
  %v2959 = vunpack.c.l.b16 %v55
  %v2960 = vunpack.c.l.b16 %v56
  %v2961 = vunpack.c.l.b16 %v57
  %v2962 = vunpack.c.l.b16 %v58
  %v2963 = vunpack.c.l.b16 %v59
  %v2964 = vunpack.c.l.b16 %v60
  %v2965 = vunpack.c.l.b16 %v61
  %v2966 = vunpack.c.l.b16 %v62
  %v2967 = vunpack.c.l.b16 %v63
  %v2968 = vunpack.c.l.b16 %v64
  %v2969 = vunpack.c.l.b16 %v65
  %v2970 = vunpack.c.l.b16 %v66
  %v2971 = vunpack.c.l.b16 %v67
  %v2972 = vunpack.c.l.b16 %v68
  %v2973 = vunpack.c.l.b16 %v69
  %v2974 = vunpack.c.l.b16 %v70
  %v2975 = vunpack.c.l.b16 %v71
  %v2976 = vunpack.c.l.b16 %v72
  %v2977 = vunpack.c.l.b16 %v73
  %v2978 = vunpack.c.l.b16 %v74
  %v2979 = vunpack.c.l.b16 %v75
  %v2980 = vunpack.c.l.b16 %v76
  %v2981 = vunpack.c.l.b16 %v77
  %v2982 = vunpack.c.l.b16 %v78
  %v2983 = vunpack.c.l.b16 %v79
  %v2984 = vunpack.c.l.b16 %v80
  %v2985 = vunpack.c.l.b16 %v81
  %v2986 = vunpack.c.l.b16 %v82
  %v2987 = vunpack.c.l.b16 %v83
  %v2988 = vunpack.c.l.b16 %v84
  %v2989 = vunpack.c.l.b16 %v85
  %v2990 = vunpack.c.l.b16 %v86
  %v2991 = vunpack.c.l.b16 %v87
  %v2992 = vunpack.c.l.b16 %v88
  %v2993 = vunpack.c.l.b16 %v89
  %v2994 = vunpack.c.l.b16 %v90
  %v2995 = vunpack.c.l.b16 %v91
  %v2996 = vunpack.c.l.b16 %v92
  %v2997 = vunpack.c.l.b16 %v93
  %v2998 = vunpack.c.l.b16 %v94
  %v2999 = vunpack.c.l.b16 %v95
  %v3000 = vunpack.c.l.b16 %v96
  %v3001 = vunpack.c.l.b16 %v97
  %v3002 = vunpack.c.l.b16 %v98
  %v3003 = vunpack.c.l.b16 %v99
  %v3004 = vunpack.c.l.b16 %v100
  %v3005 = vunpack.c.l.b16 %v101
  %v3006 = vunpack.c.l.b16 %v102
  %v3007 = vunpack.c.l.b16 %v103
  %v3008 = vunpack.c.l.b16 %v104
  %v3009 = vunpack.c.l.b16 %v105
  %v3010 = vunpack.c.l.b16 %v106
  %v3011 = vunpack.c.l.b16 %v107
  %v3012 = vunpack.c.l.b16 %v108
  %v3013 = vunpack.c.l.b16 %v109
  %v3014 = vunpack.c.l.b16 %v110
  %v3015 = vunpack.c.l.b16 %v111
  %v3016 = vunpack.c.l.b16 %v112
  %v3017 = vunpack.c.l.b16 %v113
  %v3018 = vunpack.c.l.b16 %v114
  %v3019 = vunpack.c.l.b16 %v115
  %v3020 = vunpack.c.l.b16 %v116
  %v3021 = vunpack.c.l.b16 %v117
  %v3022 = vunpack.c.l.b16 %v118
  %v3023 = vunpack.c.l.b16 %v119
  %v3024 = vunpack.c.l.b16 %v120
  %v3025 = vunpack.c.l.b16 %v121
  %v3026 = vunpack.c.l.b16 %v122
  %v3027 = vunpack.c.l.b16 %v123
  %v3028 = vunpack.c.l.b16 %v124
  %v3029 = vunpack.c.l.b16 %v125
  %v3030 = vunpack.c.l.b16 %v126
  %v3031 = vunpack.c.l.b16 %v127
  %v3032 = vunpack.c.l.b16 %v128
  %v3033 = vunpack.c.l.b16 %v129
  %v3034 = vunpack.c.l.b16 %v130
  %v3035 = vunpack.c.l.b16 %v131
  %v3036 = vunpack.c.l.b16 %v132
  %v3037 = vunpack.c.l.b16 %v133
  %v3038 = vunpack.c.l.b16 %v134
  %v3039 = vunpack.c.l.b16 %v135
  %v3040 = vunpack.c.l.b16 %v136
  %v3041 = vunpack.c.l.b16 %v137
  %v3042 = vunpack.c.l.b16 %v138
  %v3043 = vunpack.c.l.b16 %v139
  %v3044 = vunpack.c.l.b16 %v140
  %v3045 = vunpack.c.l.b16 %v141
  %v3046 = vunpack.c.l.b16 %v142
  %v3047 = vunpack.c.l.b16 %v143
  %v3048 = vunpack.c.l.b16 %v144
  %v3049 = vunpack.c.l.b16 %v145
  %v3050 = vunpack.c.l.b16 %v146
  %v3051 = vunpack.c.l.b16 %v147
  %v3052 = vunpack.c.l.b16 %v148
  %v3053 = vunpack.c.l.b16 %v149
  %v3054 = vunpack.c.l.b16 %v150
  %v3055 = vunpack.c.l.b16 %v151
  %v3056 = vunpack.c.l.b16 %v152
  %v3057 = vunpack.c.l.b16 %v153
  %v3058 = vunpack.c.l.b16 %v154
  %v3059 = vunpack.c.l.b16 %v155
  %v3060 = vunpack.c.l.b16 %v156
  %v3061 = vunpack.c.l.b16 %v157
  %v3062 = vunpack.c.l.b16 %v158
  %v3063 = vunpack.c.l.b16 %v159
  %v3064 = vunpack.c.l.b16 %v160
  %v3065 = vunpack.c.l.b16 %v161
  %v3066 = vunpack.c.l.b16 %v162
  %v3067 = vunpack.c.l.b16 %v163
  %v3068 = vunpack.c.l.b16 %v164
  %v3069 = vunpack.c.l.b16 %v165
  %v3070 = vunpack.c.l.b16 %v166
  %v3071 = vunpack.c.l.b16 %v167
  %v3072 = vunpack.c.l.b16 %v168
  %v3073 = vunpack.c.l.b16 %v169
  %v3074 = vunpack.c.l.b16 %v170
  %v3075 = vunpack.c.l.b16 %v171
  %v3076 = vunpack.c.l.b16 %v172
  %v3077 = vunpack.c.l.b16 %v173
  %v3078 = vunpack.c.l.b16 %v174
  %v3079 = vunpack.c.l.b16 %v175
  %v3080 = vunpack.c.l.b16 %v176
  %v3081 = vunpack.c.l.b16 %v177
  %v3082 = vunpack.c.l.b16 %v178
  %v3083 = vunpack.c.l.b16 %v179
  %v3084 = vunpack.c.l.b16 %v180
  %v3085 = vunpack.c.l.b16 %v181
  %v3086 = vunpack.c.l.b16 %v182
  %v3087 = vunpack.c.l.b16 %v183
  %v3088 = vunpack.c.l.b16 %v184
  %v3089 = vunpack.c.l.b16 %v185
  %v3090 = vunpack.c.l.b16 %v186
  %v3091 = vunpack.c.l.b16 %v187
  %v3092 = vunpack.c.l.b16 %v188
  %v3093 = vunpack.c.l.b16 %v189
  %v3094 = vunpack.c.l.b16 %v190
  %v3095 = vunpack.c.l.b16 %v191
  %v3096 = vunpack.c.l.b16 %v192
  %v3097 = vunpack.c.l.b16 %v193
  %v3098 = vunpack.c.l.b16 %v194
  %v3099 = vunpack.c.l.b16 %v195
  %v3100 = vunpack.c.l.b16 %v196
  %v3101 = vunpack.c.l.b16 %v197
  %v3102 = vunpack.c.l.b16 %v198
  %v3103 = vunpack.c.l.b16 %v199
  %v3104 = vunpack.c.l.b16 %v200
  %v3105 = vunpack.c.l.b16 %v201
  %v3106 = vunpack.c.l.b16 %v202
  %v3107 = vunpack.c.l.b16 %v203
  %v3108 = vunpack.c.l.b16 %v204
  %v3109 = vunpack.c.l.b16 %v205
  %v3110 = vunpack.c.l.b16 %v206
  %v3111 = vunpack.c.l.b16 %v207
  %v3112 = vunpack.c.l.b16 %v208
  %v3113 = vunpack.c.l.b16 %v209
  %v3114 = vunpack.c.l.b16 %v210
  %v3115 = vunpack.c.l.b16 %v211
  %v3116 = vunpack.c.l.b16 %v212
  %v3117 = vunpack.c.l.b16 %v213
  %v3118 = vunpack.c.l.b16 %v214
  %v3119 = vunpack.c.l.b16 %v215
  %v3120 = vunpack.c.l.b16 %v216
  %v3121 = vunpack.c.l.b16 %v217
  %v3122 = vunpack.c.l.b16 %v218
  %v3123 = vunpack.c.l.b16 %v219
  %v3124 = vunpack.c.l.b16 %v220
  %v3125 = vunpack.c.l.b16 %v221
  %v3126 = vunpack.c.l.b16 %v222
  %v3127 = vunpack.c.l.b16 %v223
  %v3128 = vunpack.c.l.b16 %v224
  %v3129 = vunpack.c.l.b16 %v225
  %v3130 = vunpack.c.l.b16 %v226
  %v3131 = vunpack.c.l.b16 %v227
  %v3132 = vunpack.c.l.b16 %v228
  %v3133 = vunpack.c.l.b16 %v229
  %v3134 = vunpack.c.l.b16 %v230
  %v3135 = vunpack.c.l.b16 %v231
  %v3136 = vunpack.c.l.b16 %v232
  %v3137 = vunpack.c.l.b16 %v233
  %v3138 = vunpack.c.l.b16 %v234
  %v3139 = vunpack.c.l.b16 %v235
  %v3140 = vunpack.c.l.b16 %v236
  %v3141 = vunpack.c.l.b16 %v237
  %v3142 = vunpack.c.l.b16 %v238
  %v3143 = vunpack.c.l.b16 %v239
  %v3144 = vunpack.c.l.b16 %v240
  %v3145 = vunpack.c.l.b16 %v241
  %v3146 = vunpack.c.l.b16 %v242
  %v3147 = vunpack.c.l.b16 %v243
  %v3148 = vunpack.c.l.b16 %v244
  %v3149 = vunpack.c.l.b16 %v245
  %v3150 = vunpack.c.l.b16 %v246
  %v3151 = vunpack.c.l.b16 %v247
  %v3152 = vunpack.c.l.b16 %v248
  %v3153 = vunpack.c.l.b16 %v249
  %v3154 = vunpack.c.l.b16 %v250
  %v3155 = vunpack.c.l.b16 %v251
  %v3156 = vunpack.c.l.b16 %v252
  %v3157 = vunpack.c.l.b16 %v253
  %v3158 = vunpack.c.l.b16 %v254
  %v3159 = vunpack.c.l.b16 %v255
  %v3160 = vunpack.c.l.b16 %v256
  %v3161 = vunpack.c.l.b16 %v257
  %v3162 = vunpack.c.l.b16 %v258
  %v3163 = vunpack.c.l.b16 %v259
  %v3164 = vunpack.c.l.b16 %v260
  %v3165 = vunpack.c.l.b16 %v261
  %v3166 = vunpack.c.l.b16 %v262
  %v3167 = vunpack.c.l.b16 %v263
  %v3168 = vunpack.c.l.b16 %v264
  %v3169 = vunpack.c.l.b16 %v265
  %v3170 = vunpack.c.l.b16 %v266
  %v3171 = vunpack.c.l.b16 %v267
  %v3172 = vunpack.c.l.b16 %v268
  %v3173 = vunpack.c.l.b16 %v269
  %v3174 = vunpack.c.l.b16 %v270
  %v3175 = vunpack.c.l.b16 %v271
  %v3176 = vunpack.c.l.b16 %v272
  %v3177 = vunpack.c.l.b16 %v273
  %v3178 = vunpack.c.l.b16 %v274
  %v3179 = vunpack.c.l.b16 %v275
  %v3180 = vunpack.c.l.b16 %v276
  %v3181 = vunpack.c.l.b16 %v277
  %v3182 = vunpack.c.l.b16 %v278
  %v3183 = vunpack.c.l.b16 %v279
  %v3184 = vunpack.c.l.b16 %v280
  %v3185 = vunpack.c.l.b16 %v281
  %v3186 = vunpack.c.l.b16 %v282
  %v3187 = vunpack.c.l.b16 %v283
  %v3188 = vunpack.c.l.b16 %v284
  %v3189 = vunpack.c.l.b16 %v285
  %v3190 = vunpack.c.l.b16 %v286
  %v3191 = vunpack.c.l.b16 %v287
  %v3192 = vunpack.c.l.b16 %v288
  %v3193 = vunpack.c.l.b16 %v289
  %v3194 = vunpack.c.l.b16 %v290
  %v3195 = vunpack.c.l.b16 %v291
  %v3196 = vunpack.c.l.b16 %v292
  %v3197 = vunpack.c.l.b16 %v293
  %v3198 = vunpack.c.l.b16 %v294
  %v3199 = vunpack.c.l.b16 %v295
  %v3200 = vunpack.c.l.b16 %v296
  %v3201 = vunpack.c.l.b16 %v297
  %v3202 = vunpack.c.l.b16 %v298
  %v3203 = vunpack.c.l.b16 %v299
  %v3204 = vunpack.c.l.b16 %v300
  %v3205 = vunpack.c.l.b16 %v301
  %v3206 = vunpack.c.l.b16 %v302
  %v3207 = vunpack.c.l.b16 %v303
  %v3208 = vunpack.c.l.b16 %v304
  %v3209 = vunpack.c.l.b16 %v305
  %v3210 = vunpack.c.l.b16 %v306
  %v3211 = vunpack.c.l.b16 %v307
  %v3212 = vunpack.c.l.b16 %v308
  %v3213 = vunpack.c.l.b16 %v309
  %v3214 = vunpack.c.l.b16 %v310
  %v3215 = vunpack.c.l.b16 %v311
  %v3216 = vunpack.c.l.b16 %v312
  %v3217 = vunpack.c.l.b16 %v313
  %v3218 = vunpack.c.l.b16 %v314
  %v3219 = vunpack.c.l.b16 %v315
  %v3220 = vunpack.c.l.b16 %v316
  %v3221 = vunpack.c.l.b16 %v317
  %v3222 = vunpack.c.l.b16 %v318
  %v3223 = vunpack.c.l.b16 %v319
  %v3224 = vunpack.c.l.b16 %v320
  %v3225 = vunpack.c.l.b16 %v321
  %v3226 = vunpack.c.l.b16 %v322
  %v3227 = vunpack.c.l.b16 %v323
  %v3228 = vunpack.c.l.b16 %v324
  %v3229 = vunpack.c.l.b16 %v325
  %v3230 = vunpack.c.l.b16 %v326
  %v3231 = vunpack.c.l.b16 %v327
  %v3232 = vunpack.c.l.b16 %v328
  %v3233 = vunpack.c.l.b16 %v329
  %v3234 = vunpack.c.l.b16 %v330
  %v3235 = vunpack.c.l.b16 %v331
  %v3236 = vunpack.c.l.b16 %v332
  %v3237 = vunpack.c.l.b16 %v333
  %v3238 = vunpack.c.l.b16 %v334
  %v3239 = vunpack.c.l.b16 %v335
  %v3240 = vunpack.c.l.b16 %v336
  %v3241 = vunpack.c.l.b16 %v337
  %v3242 = vunpack.c.l.b16 %v338
  %v3243 = vunpack.c.l.b16 %v339
  %v3244 = vunpack.c.l.b16 %v340
  %v3245 = vunpack.c.l.b16 %v341
  %v3246 = vunpack.c.l.b16 %v342
  %v3247 = vunpack.c.l.b16 %v343
  %v3248 = vunpack.c.l.b16 %v344
  %v3249 = vunpack.c.l.b16 %v345
  %v3250 = vunpack.c.l.b16 %v346
  %v3251 = vunpack.c.l.b16 %v347
  %v3252 = vunpack.c.l.b16 %v348
  %v3253 = vunpack.c.l.b16 %v349
  %v3254 = vunpack.c.l.b16 %v350
  %v3255 = vunpack.c.l.b16 %v351
  %v3256 = vunpack.c.l.b16 %v352
  %v3257 = vunpack.c.l.b16 %v353
  %v3258 = vunpack.c.l.b16 %v354
  %v3259 = vunpack.c.l.b16 %v355
  %v3260 = vunpack.c.l.b16 %v356
  %v3261 = vunpack.c.l.b16 %v357
  %v3262 = vunpack.c.l.b16 %v358
  %v3263 = vunpack.c.l.b16 %v359
  %v3264 = vunpack.c.l.b16 %v360
  %v3265 = vunpack.c.l.b16 %v361
  %v3266 = vunpack.c.l.b16 %v362
  %v3267 = vunpack.c.l.b16 %v363
  %v3268 = vunpack.c.l.b16 %v364
  %v3269 = vunpack.c.l.b16 %v365
  %v3270 = vunpack.c.l.b16 %v366
  %v3271 = vunpack.c.l.b16 %v367
  %v3272 = vunpack.c.l.b16 %v368
  %v3273 = vunpack.c.l.b16 %v369
  %v3274 = vunpack.c.l.b16 %v370
  %v3275 = vunpack.c.l.b16 %v371
  %v3276 = vunpack.c.l.b16 %v372
  %v3277 = vunpack.c.l.b16 %v373
  %v3278 = vunpack.c.l.b16 %v374
  %v3279 = vunpack.c.l.b16 %v375
  %v3280 = vunpack.c.l.b16 %v376
  %v3281 = vunpack.c.l.b16 %v377
  %v3282 = vunpack.c.l.b16 %v378
  %v3283 = vunpack.c.l.b16 %v379
  %v3284 = vunpack.c.l.b16 %v380
  %v3285 = vunpack.c.l.b16 %v381
  %v3286 = vunpack.c.l.b16 %v382
  %v3287 = vunpack.c.l.b16 %v383
  %v3288 = vunpack.c.l.b16 %v384
  %v3289 = vunpack.c.l.b16 %v385
  %v3290 = vunpack.c.l.b16 %v386
  %v3291 = vunpack.c.l.b16 %v387
  %v3292 = vunpack.c.l.b16 %v388
  %v3293 = vunpack.c.l.b16 %v389
  %v3294 = vunpack.c.l.b16 %v390
  %v3295 = vunpack.c.l.b16 %v391
  %v3296 = vunpack.c.l.b16 %v392
  %v3297 = vunpack.c.l.b16 %v393
  %v3298 = vunpack.c.l.b16 %v394
  %v3299 = vunpack.c.l.b16 %v395
  %v3300 = vunpack.c.l.b16 %v396
  %v3301 = vunpack.c.l.b16 %v397
  %v3302 = vunpack.c.l.b16 %v398
  %v3303 = vunpack.c.l.b16 %v399
  %v3304 = vunpack.c.l.b16 %v400
  %v3305 = vunpack.c.l.b16 %v401
  %v3306 = vunpack.c.l.b16 %v402
  %v3307 = vunpack.c.l.b16 %v403
  %v3308 = vunpack.c.l.b16 %v404
  %v3309 = vunpack.c.l.b16 %v405
  %v3310 = vunpack.c.l.b16 %v406
  %v3311 = vunpack.c.l.b16 %v407
  %v3312 = vunpack.c.l.b16 %v408
  %v3313 = vunpack.c.l.b16 %v409
  %v3314 = vunpack.c.l.b16 %v410
  %v3315 = vunpack.c.l.b16 %v411
  %v3316 = vunpack.c.l.b16 %v412
  %v3317 = vunpack.c.l.b16 %v413
  %v3318 = vunpack.c.l.b16 %v414
  %v3319 = vunpack.c.l.b16 %v415
  %v3320 = vunpack.c.l.b16 %v416
  %v3321 = vunpack.c.l.b16 %v417
  %v3322 = vunpack.c.l.b16 %v418
  %v3323 = vunpack.c.l.b16 %v419
  %v3324 = vunpack.c.l.b16 %v420
  %v3325 = vunpack.c.l.b16 %v421
  %v3326 = vunpack.c.l.b16 %v422
  %v3327 = vunpack.c.l.b16 %v423
  %v3328 = vunpack.c.l.b16 %v424
  %v3329 = vunpack.c.l.b16 %v425
  %v3330 = vunpack.c.l.b16 %v426
  %v3331 = vunpack.c.l.b16 %v427
  %v3332 = vpack.c.b16 %v2949, %v2948
  %v3333 = vpack.c.b16 %v2951, %v2950
  %v3334 = vpack.c.b16 %v2953, %v2952
  %v3335 = vpack.c.b16 %v2955, %v2954
  %v3336 = vpack.c.b16 %v2957, %v2956
  %v3337 = vpack.c.b16 %v2959, %v2958
  %v3338 = vpack.c.b16 %v2961, %v2960
  %v3339 = vpack.c.b16 %v2963, %v2962
  %v3340 = vpack.c.b16 %v2965, %v2964
  %v3341 = vpack.c.b16 %v2967, %v2966
  %v3342 = vpack.c.b16 %v2969, %v2968
  %v3343 = vpack.c.b16 %v2971, %v2970
  %v3344 = vpack.c.b16 %v2973, %v2972
  %v3345 = vpack.c.b16 %v2975, %v2974
  %v3346 = vpack.c.b16 %v2977, %v2976
  %v3347 = vpack.c.b16 %v2979, %v2978
  %v3348 = vpack.c.b16 %v2981, %v2980
  %v3349 = vpack.c.b16 %v2983, %v2982
  %v3350 = vpack.c.b16 %v2985, %v2984
  %v3351 = vpack.c.b16 %v2987, %v2986
  %v3352 = vpack.c.b16 %v2989, %v2988
  %v3353 = vpack.c.b16 %v2991, %v2990
  %v3354 = vpack.c.b16 %v2993, %v2992
  %v3355 = vpack.c.b16 %v2995, %v2994
  %v3356 = vpack.c.b16 %v2997, %v2996
  %v3357 = vpack.c.b16 %v2999, %v2998
  %v3358 = vpack.c.b16 %v3001, %v3000
  %v3359 = vpack.c.b16 %v3003, %v3002
  %v3360 = vpack.c.b16 %v3005, %v3004
  %v3361 = vpack.c.b16 %v3007, %v3006
  %v3362 = vpack.c.b16 %v3009, %v3008
  %v3363 = vpack.c.b16 %v3011, %v3010
  %v3364 = vpack.c.b16 %v3013, %v3012
  %v3365 = vpack.c.b16 %v3015, %v3014
  %v3366 = vpack.c.b16 %v3017, %v3016
  %v3367 = vpack.c.b16 %v3019, %v3018
  %v3368 = vpack.c.b16 %v3021, %v3020
  %v3369 = vpack.c.b16 %v3023, %v3022
  %v3370 = vpack.c.b16 %v3025, %v3024
  %v3371 = vpack.c.b16 %v3027, %v3026
  %v3372 = vpack.c.b16 %v3029, %v3028
  %v3373 = vpack.c.b16 %v3031, %v3030
  %v3374 = vpack.c.b16 %v3033, %v3032
  %v3375 = vpack.c.b16 %v3035, %v3034
  %v3376 = vpack.c.b16 %v3037, %v3036
  %v3377 = vpack.c.b16 %v3039, %v3038
  %v3378 = vpack.c.b16 %v3041, %v3040
  %v3379 = vpack.c.b16 %v3043, %v3042
  %v3380 = vpack.c.b16 %v3045, %v3044
  %v3381 = vpack.c.b16 %v3047, %v3046
  %v3382 = vpack.c.b16 %v3049, %v3048
  %v3383 = vpack.c.b16 %v3051, %v3050
  %v3384 = vpack.c.b16 %v3053, %v3052
  %v3385 = vpack.c.b16 %v3055, %v3054
  %v3386 = vpack.c.b16 %v3057, %v3056
  %v3387 = vpack.c.b16 %v3059, %v3058
  %v3388 = vpack.c.b16 %v3061, %v3060
  %v3389 = vpack.c.b16 %v3063, %v3062
  %v3390 = vpack.c.b16 %v3065, %v3064
  %v3391 = vpack.c.b16 %v3067, %v3066
  %v3392 = vpack.c.b16 %v3069, %v3068
  %v3393 = vpack.c.b16 %v3071, %v3070
  %v3394 = vpack.c.b16 %v3073, %v3072
  %v3395 = vpack.c.b16 %v3075, %v3074
  %v3396 = vpack.c.b16 %v3077, %v3076
  %v3397 = vpack.c.b16 %v3079, %v3078
  %v3398 = vpack.c.b16 %v3081, %v3080
  %v3399 = vpack.c.b16 %v3083, %v3082
  %v3400 = vpack.c.b16 %v3085, %v3084
  %v3401 = vpack.c.b16 %v3087, %v3086
  %v3402 = vpack.c.b16 %v3089, %v3088
  %v3403 = vpack.c.b16 %v3091, %v3090
  %v3404 = vpack.c.b16 %v3093, %v3092
  %v3405 = vpack.c.b16 %v3095, %v3094
  %v3406 = vpack.c.b16 %v3097, %v3096
  %v3407 = vpack.c.b16 %v3099, %v3098
  %v3408 = vpack.c.b16 %v3101, %v3100
  %v3409 = vpack.c.b16 %v3103, %v3102
  %v3410 = vpack.c.b16 %v3105, %v3104
  %v3411 = vpack.c.b16 %v3107, %v3106
  %v3412 = vpack.c.b16 %v3109, %v3108
  %v3413 = vpack.c.b16 %v3111, %v3110
  %v3414 = vpack.c.b16 %v3113, %v3112
  %v3415 = vpack.c.b16 %v3115, %v3114
  %v3416 = vpack.c.b16 %v3117, %v3116
  %v3417 = vpack.c.b16 %v3119, %v3118
  %v3418 = vpack.c.b16 %v3121, %v3120
  %v3419 = vpack.c.b16 %v3123, %v3122
  %v3420 = vpack.c.b16 %v3125, %v3124
  %v3421 = vpack.c.b16 %v3127, %v3126
  %v3422 = vpack.c.b16 %v3129, %v3128
  %v3423 = vpack.c.b16 %v3131, %v3130
  %v3424 = vpack.c.b16 %v3133, %v3132
  %v3425 = vpack.c.b16 %v3135, %v3134
  %v3426 = vpack.c.b16 %v3137, %v3136
  %v3427 = vpack.c.b16 %v3139, %v3138
  %v3428 = vpack.c.b16 %v3141, %v3140
  %v3429 = vpack.c.b16 %v3143, %v3142
  %v3430 = vpack.c.b16 %v3145, %v3144
  %v3431 = vpack.c.b16 %v3147, %v3146
  %v3432 = vpack.c.b16 %v3149, %v3148
  %v3433 = vpack.c.b16 %v3151, %v3150
  %v3434 = vpack.c.b16 %v3153, %v3152
  %v3435 = vpack.c.b16 %v3155, %v3154
  %v3436 = vpack.c.b16 %v3157, %v3156
  %v3437 = vpack.c.b16 %v3159, %v3158
  %v3438 = vpack.c.b16 %v3161, %v3160
  %v3439 = vpack.c.b16 %v3163, %v3162
  %v3440 = vpack.c.b16 %v3165, %v3164
  %v3441 = vpack.c.b16 %v3167, %v3166
  %v3442 = vpack.c.b16 %v3169, %v3168
  %v3443 = vpack.c.b16 %v3171, %v3170
  %v3444 = vpack.c.b16 %v3173, %v3172
  %v3445 = vpack.c.b16 %v3175, %v3174
  %v3446 = vpack.c.b16 %v3177, %v3176
  %v3447 = vpack.c.b16 %v3179, %v3178
  %v3448 = vpack.c.b16 %v3181, %v3180
  %v3449 = vpack.c.b16 %v3183, %v3182
  %v3450 = vpack.c.b16 %v3185, %v3184
  %v3451 = vpack.c.b16 %v3187, %v3186
  %v3452 = vpack.c.b16 %v3189, %v3188
  %v3453 = vpack.c.b16 %v3191, %v3190
  %v3454 = vpack.c.b16 %v3193, %v3192
  %v3455 = vpack.c.b16 %v3195, %v3194
  %v3456 = vpack.c.b16 %v3197, %v3196
  %v3457 = vpack.c.b16 %v3199, %v3198
  %v3458 = vpack.c.b16 %v3201, %v3200
  %v3459 = vpack.c.b16 %v3203, %v3202
  %v3460 = vpack.c.b16 %v3205, %v3204
  %v3461 = vpack.c.b16 %v3207, %v3206
  %v3462 = vpack.c.b16 %v3209, %v3208
  %v3463 = vpack.c.b16 %v3211, %v3210
  %v3464 = vpack.c.b16 %v3213, %v3212
  %v3465 = vpack.c.b16 %v3215, %v3214
  %v3466 = vpack.c.b16 %v3217, %v3216
  %v3467 = vpack.c.b16 %v3219, %v3218
  %v3468 = vpack.c.b16 %v3221, %v3220
  %v3469 = vpack.c.b16 %v3223, %v3222
  %v3470 = vpack.c.b16 %v3225, %v3224
  %v3471 = vpack.c.b16 %v3227, %v3226
  %v3472 = vpack.c.b16 %v3229, %v3228
  %v3473 = vpack.c.b16 %v3231, %v3230
  %v3474 = vpack.c.b16 %v3233, %v3232
  %v3475 = vpack.c.b16 %v3235, %v3234
  %v3476 = vpack.c.b16 %v3237, %v3236
  %v3477 = vpack.c.b16 %v3239, %v3238
  %v3478 = vpack.c.b16 %v3241, %v3240
  %v3479 = vpack.c.b16 %v3243, %v3242
  %v3480 = vpack.c.b16 %v3245, %v3244
  %v3481 = vpack.c.b16 %v3247, %v3246
  %v3482 = vpack.c.b16 %v3249, %v3248
  %v3483 = vpack.c.b16 %v3251, %v3250
  %v3484 = vpack.c.b16 %v3253, %v3252
  %v3485 = vpack.c.b16 %v3255, %v3254
  %v3486 = vpack.c.b16 %v3257, %v3256
  %v3487 = vpack.c.b16 %v3259, %v3258
  %v3488 = vpack.c.b16 %v3261, %v3260
  %v3489 = vpack.c.b16 %v3263, %v3262
  %v3490 = vpack.c.b16 %v3265, %v3264
  %v3491 = vpack.c.b16 %v3267, %v3266
  %v3492 = vpack.c.b16 %v3269, %v3268
  %v3493 = vpack.c.b16 %v3271, %v3270
  %v3494 = vpack.c.b16 %v3273, %v3272
  %v3495 = vpack.c.b16 %v3275, %v3274
  %v3496 = vpack.c.b16 %v3277, %v3276
  %v3497 = vpack.c.b16 %v3279, %v3278
  %v3498 = vpack.c.b16 %v3281, %v3280
  %v3499 = vpack.c.b16 %v3283, %v3282
  %v3500 = vpack.c.b16 %v3285, %v3284
  %v3501 = vpack.c.b16 %v3287, %v3286
  %v3502 = vpack.c.b16 %v3289, %v3288
  %v3503 = vpack.c.b16 %v3291, %v3290
  %v3504 = vpack.c.b16 %v3293, %v3292
  %v3505 = vpack.c.b16 %v3295, %v3294
  %v3506 = vpack.c.b16 %v3297, %v3296
  %v3507 = vpack.c.b16 %v3299, %v3298
  %v3508 = vpack.c.b16 %v3301, %v3300
  %v3509 = vpack.c.b16 %v3303, %v3302
  %v3510 = vpack.c.b16 %v3305, %v3304
  %v3511 = vpack.c.b16 %v3307, %v3306
  %v3512 = vpack.c.b16 %v3309, %v3308
  %v3513 = vpack.c.b16 %v3311, %v3310
  %v3514 = vpack.c.b16 %v3313, %v3312
  %v3515 = vpack.c.b16 %v3315, %v3314
  %v3516 = vpack.c.b16 %v3317, %v3316
  %v3517 = vpack.c.b16 %v3319, %v3318
  %v3518 = vpack.c.b16 %v3321, %v3320
  %v3519 = vpack.c.b16 %v3323, %v3322
  %v3520 = vpack.c.b16 %v3325, %v3324
  %v3521 = vpack.c.b16 %v3327, %v3326
  %v3522 = vpack.c.b16 %v3329, %v3328
  %v3523 = vpack.c.b16 %v3331, %v3330
  %3716 = vmatpush.bf16.msra.mxu0 %v3339
  %3717 = vmatpush.bf16.msra.mxu0 %v3338
  %3718 = vmatpush.bf16.msra.mxu0 %v3337
  %3719 = vmatpush.bf16.msra.mxu0 %v3336
  %3720 = vmatpush.bf16.msra.mxu0 %v3335
  %3721 = vmatpush.bf16.msra.mxu0 %v3334
  %3722 = vmatpush.bf16.msra.mxu0 %v3333
  %3723 = vmatpush.bf16.msra.mxu0 %v3332
  %3724 = vmatmul.bf16.gmra.mxu0 %v2516
  %v3725 = vpop.f32.mrf.mxu0
  %v3726 = vadd.f32 %v2440, %v3725
  %v3727 = vpop.f32.mrf.mxu0
  %v3728 = vadd.f32 %v2442, %v3727
  %3729 = vdwg.mxu0
  %3730 = vmatpush.bf16.msra.mxu0 %v3347
  %3731 = vmatpush.bf16.msra.mxu0 %v3346
  %3732 = vmatpush.bf16.msra.mxu0 %v3345
  %3733 = vmatpush.bf16.msra.mxu0 %v3344
  %3734 = vmatpush.bf16.msra.mxu0 %v3343
  %3735 = vmatpush.bf16.msra.mxu0 %v3342
  %3736 = vmatpush.bf16.msra.mxu0 %v3341
  %3737 = vmatpush.bf16.msra.mxu0 %v3340
  %3738 = vmatmul.bf16.gmra.mxu0 %v2517
  %v3739 = vpop.f32.mrf.mxu0
  %v3740 = vadd.f32 %v3726, %v3739
  %v3741 = vpop.f32.mrf.mxu0
  %v3742 = vadd.f32 %v3728, %v3741
  %3743 = vdwg.mxu0
  %3744 = vmatpush.bf16.msra.mxu0 %v3355
  %3745 = vmatpush.bf16.msra.mxu0 %v3354
  %3746 = vmatpush.bf16.msra.mxu0 %v3353
  %3747 = vmatpush.bf16.msra.mxu0 %v3352
  %3748 = vmatpush.bf16.msra.mxu0 %v3351
  %3749 = vmatpush.bf16.msra.mxu0 %v3350
  %3750 = vmatpush.bf16.msra.mxu0 %v3349
  %3751 = vmatpush.bf16.msra.mxu0 %v3348
  %3752 = vmatmul.bf16.gmra.mxu0 %v2518
  %v3753 = vpop.f32.mrf.mxu0
  %v3754 = vadd.f32 %v3740, %v3753
  %v3755 = vpop.f32.mrf.mxu0
  %v3756 = vadd.f32 %v3742, %v3755
  %3757 = vdwg.mxu0
  %3758 = vmatpush.bf16.msra.mxu0 %v3363
  %3759 = vmatpush.bf16.msra.mxu0 %v3362
  %3760 = vmatpush.bf16.msra.mxu0 %v3361
  %3761 = vmatpush.bf16.msra.mxu0 %v3360
  %3762 = vmatpush.bf16.msra.mxu0 %v3359
  %3763 = vmatpush.bf16.msra.mxu0 %v3358
  %3764 = vmatpush.bf16.msra.mxu0 %v3357
  %3765 = vmatpush.bf16.msra.mxu0 %v3356
  %3766 = vmatmul.bf16.gmra.mxu0 %v2519
  %v3767 = vpop.f32.mrf.mxu0
  %v3768 = vadd.f32 %v3754, %v3767
  %v3769 = vpop.f32.mrf.mxu0
  %v3770 = vadd.f32 %v3756, %v3769
  %3771 = vdwg.mxu0
  %3772 = vmatpush.bf16.msra.mxu0 %v3371
  %3773 = vmatpush.bf16.msra.mxu0 %v3370
  %3774 = vmatpush.bf16.msra.mxu0 %v3369
  %3775 = vmatpush.bf16.msra.mxu0 %v3368
  %3776 = vmatpush.bf16.msra.mxu0 %v3367
  %3777 = vmatpush.bf16.msra.mxu0 %v3366
  %3778 = vmatpush.bf16.msra.mxu0 %v3365
  %3779 = vmatpush.bf16.msra.mxu0 %v3364
  %3780 = vmatmul.bf16.gmra.mxu0 %v2520
  %v3781 = vpop.f32.mrf.mxu0
  %v3782 = vadd.f32 %v3768, %v3781
  %v3783 = vpop.f32.mrf.mxu0
  %v3784 = vadd.f32 %v3770, %v3783
  %3785 = vdwg.mxu0
  %3786 = vmatpush.bf16.msra.mxu0 %v3379
  %3787 = vmatpush.bf16.msra.mxu0 %v3378
  %3788 = vmatpush.bf16.msra.mxu0 %v3377
  %3789 = vmatpush.bf16.msra.mxu0 %v3376
  %3790 = vmatpush.bf16.msra.mxu0 %v3375
  %3791 = vmatpush.bf16.msra.mxu0 %v3374
  %3792 = vmatpush.bf16.msra.mxu0 %v3373
  %3793 = vmatpush.bf16.msra.mxu0 %v3372
  %3794 = vmatmul.bf16.gmra.mxu0 %v2521
  %v3795 = vpop.f32.mrf.mxu0
  %v3796 = vadd.f32 %v3782, %v3795
  %v3797 = vpop.f32.mrf.mxu0
  %v3798 = vadd.f32 %v3784, %v3797
  %3799 = vdwg.mxu0
  %3800 = vmatpush.bf16.msra.mxu0 %v3387
  %3801 = vmatpush.bf16.msra.mxu0 %v3386
  %3802 = vmatpush.bf16.msra.mxu0 %v3385
  %3803 = vmatpush.bf16.msra.mxu0 %v3384
  %3804 = vmatpush.bf16.msra.mxu0 %v3383
  %3805 = vmatpush.bf16.msra.mxu0 %v3382
  %3806 = vmatpush.bf16.msra.mxu0 %v3381
  %3807 = vmatpush.bf16.msra.mxu0 %v3380
  %3808 = vmatmul.bf16.gmra.mxu0 %v2522
  %v3809 = vpop.f32.mrf.mxu0
  %v3810 = vadd.f32 %v3796, %v3809
  %v3811 = vpop.f32.mrf.mxu0
  %v3812 = vadd.f32 %v3798, %v3811
  %3813 = vdwg.mxu0
  %3814 = vmatpush.bf16.msra.mxu0 %v3395
  %3815 = vmatpush.bf16.msra.mxu0 %v3394
  %3816 = vmatpush.bf16.msra.mxu0 %v3393
  %3817 = vmatpush.bf16.msra.mxu0 %v3392
  %3818 = vmatpush.bf16.msra.mxu0 %v3391
  %3819 = vmatpush.bf16.msra.mxu0 %v3390
  %3820 = vmatpush.bf16.msra.mxu0 %v3389
  %3821 = vmatpush.bf16.msra.mxu0 %v3388
  %3822 = vmatmul.bf16.gmra.mxu0 %v2523
  %v3823 = vpop.f32.mrf.mxu0
  %v3824 = vadd.f32 %v3810, %v3823
  %v3825 = vpop.f32.mrf.mxu0
  %v3826 = vadd.f32 %v3812, %v3825
  %3827 = vdwg.mxu0
  %3828 = vmatpush.bf16.msra.mxu0 %v3403
  %3829 = vmatpush.bf16.msra.mxu0 %v3402
  %3830 = vmatpush.bf16.msra.mxu0 %v3401
  %3831 = vmatpush.bf16.msra.mxu0 %v3400
  %3832 = vmatpush.bf16.msra.mxu0 %v3399
  %3833 = vmatpush.bf16.msra.mxu0 %v3398
  %3834 = vmatpush.bf16.msra.mxu0 %v3397
  %3835 = vmatpush.bf16.msra.mxu0 %v3396
  %3836 = vmatmul.bf16.gmra.mxu0 %v2524
  %v3837 = vpop.f32.mrf.mxu0
  %v3838 = vadd.f32 %v3824, %v3837
  %v3839 = vpop.f32.mrf.mxu0
  %v3840 = vadd.f32 %v3826, %v3839
  %3841 = vdwg.mxu0
  %3842 = vmatpush.bf16.msra.mxu0 %v3411
  %3843 = vmatpush.bf16.msra.mxu0 %v3410
  %3844 = vmatpush.bf16.msra.mxu0 %v3409
  %3845 = vmatpush.bf16.msra.mxu0 %v3408
  %3846 = vmatpush.bf16.msra.mxu0 %v3407
  %3847 = vmatpush.bf16.msra.mxu0 %v3406
  %3848 = vmatpush.bf16.msra.mxu0 %v3405
  %3849 = vmatpush.bf16.msra.mxu0 %v3404
  %3850 = vmatmul.bf16.gmra.mxu0 %v2525
  %v3851 = vpop.f32.mrf.mxu0
  %v3852 = vadd.f32 %v3838, %v3851
  %v3853 = vpop.f32.mrf.mxu0
  %v3854 = vadd.f32 %v3840, %v3853
  %3855 = vdwg.mxu0
  %3856 = vmatpush.bf16.msra.mxu0 %v3419
  %3857 = vmatpush.bf16.msra.mxu0 %v3418
  %3858 = vmatpush.bf16.msra.mxu0 %v3417
  %3859 = vmatpush.bf16.msra.mxu0 %v3416
  %3860 = vmatpush.bf16.msra.mxu0 %v3415
  %3861 = vmatpush.bf16.msra.mxu0 %v3414
  %3862 = vmatpush.bf16.msra.mxu0 %v3413
  %3863 = vmatpush.bf16.msra.mxu0 %v3412
  %3864 = vmatmul.bf16.gmra.mxu0 %v2526
  %v3865 = vpop.f32.mrf.mxu0
  %v3866 = vadd.f32 %v3852, %v3865
  %v3867 = vpop.f32.mrf.mxu0
  %v3868 = vadd.f32 %v3854, %v3867
  %3869 = vdwg.mxu0
  %3870 = vmatpush.bf16.msra.mxu0 %v3427
  %3871 = vmatpush.bf16.msra.mxu0 %v3426
  %3872 = vmatpush.bf16.msra.mxu0 %v3425
  %3873 = vmatpush.bf16.msra.mxu0 %v3424
  %3874 = vmatpush.bf16.msra.mxu0 %v3423
  %3875 = vmatpush.bf16.msra.mxu0 %v3422
  %3876 = vmatpush.bf16.msra.mxu0 %v3421
  %3877 = vmatpush.bf16.msra.mxu0 %v3420
  %3878 = vmatmul.bf16.gmra.mxu0 %v2527
  %v3879 = vpop.f32.mrf.mxu0
  %v3880 = vadd.f32 %v3866, %v3879
  %v3881 = vpop.f32.mrf.mxu0
  %v3882 = vadd.f32 %v3868, %v3881
  %3883 = vdwg.mxu0
  %3884 = vmatpush.bf16.msra.mxu0 %v3435
  %3885 = vmatpush.bf16.msra.mxu0 %v3434
  %3886 = vmatpush.bf16.msra.mxu0 %v3433
  %3887 = vmatpush.bf16.msra.mxu0 %v3432
  %3888 = vmatpush.bf16.msra.mxu0 %v3431
  %3889 = vmatpush.bf16.msra.mxu0 %v3430
  %3890 = vmatpush.bf16.msra.mxu0 %v3429
  %3891 = vmatpush.bf16.msra.mxu0 %v3428
  %3892 = vmatmul.bf16.gmra.mxu0 %v2528
  %v3893 = vpop.f32.mrf.mxu0
  %v3894 = vadd.f32 %v3880, %v3893
  %v3895 = vpop.f32.mrf.mxu0
  %v3896 = vadd.f32 %v3882, %v3895
  %3897 = vdwg.mxu0
  %3898 = vmatpush.bf16.msra.mxu0 %v3443
  %3899 = vmatpush.bf16.msra.mxu0 %v3442
  %3900 = vmatpush.bf16.msra.mxu0 %v3441
  %3901 = vmatpush.bf16.msra.mxu0 %v3440
  %3902 = vmatpush.bf16.msra.mxu0 %v3439
  %3903 = vmatpush.bf16.msra.mxu0 %v3438
  %3904 = vmatpush.bf16.msra.mxu0 %v3437
  %3905 = vmatpush.bf16.msra.mxu0 %v3436
  %3906 = vmatmul.bf16.gmra.mxu0 %v2529
  %v3907 = vpop.f32.mrf.mxu0
  %v3908 = vadd.f32 %v3894, %v3907
  %v3909 = vpop.f32.mrf.mxu0
  %v3910 = vadd.f32 %v3896, %v3909
  %3911 = vdwg.mxu0
  %3912 = vmatpush.bf16.msra.mxu0 %v3451
  %3913 = vmatpush.bf16.msra.mxu0 %v3450
  %3914 = vmatpush.bf16.msra.mxu0 %v3449
  %3915 = vmatpush.bf16.msra.mxu0 %v3448
  %3916 = vmatpush.bf16.msra.mxu0 %v3447
  %3917 = vmatpush.bf16.msra.mxu0 %v3446
  %3918 = vmatpush.bf16.msra.mxu0 %v3445
  %3919 = vmatpush.bf16.msra.mxu0 %v3444
  %3920 = vmatmul.bf16.gmra.mxu0 %v2530
  %v3921 = vpop.f32.mrf.mxu0
  %v3922 = vadd.f32 %v3908, %v3921
  %v3923 = vpop.f32.mrf.mxu0
  %v3924 = vadd.f32 %v3910, %v3923
  %3925 = vdwg.mxu0
  %3926 = vmatpush.bf16.msra.mxu0 %v3459
  %3927 = vmatpush.bf16.msra.mxu0 %v3458
  %3928 = vmatpush.bf16.msra.mxu0 %v3457
  %3929 = vmatpush.bf16.msra.mxu0 %v3456
  %3930 = vmatpush.bf16.msra.mxu0 %v3455
  %3931 = vmatpush.bf16.msra.mxu0 %v3454
  %3932 = vmatpush.bf16.msra.mxu0 %v3453
  %3933 = vmatpush.bf16.msra.mxu0 %v3452
  %3934 = vmatmul.bf16.gmra.mxu0 %v2531
  %v3935 = vpop.f32.mrf.mxu0
  %v3936 = vadd.f32 %v3922, %v3935
  %v3937 = vpop.f32.mrf.mxu0
  %v3938 = vadd.f32 %v3924, %v3937
  %3939 = vdwg.mxu0
  %3940 = vmatpush.bf16.msra.mxu0 %v3467
  %3941 = vmatpush.bf16.msra.mxu0 %v3466
  %3942 = vmatpush.bf16.msra.mxu0 %v3465
  %3943 = vmatpush.bf16.msra.mxu0 %v3464
  %3944 = vmatpush.bf16.msra.mxu0 %v3463
  %3945 = vmatpush.bf16.msra.mxu0 %v3462
  %3946 = vmatpush.bf16.msra.mxu0 %v3461
  %3947 = vmatpush.bf16.msra.mxu0 %v3460
  %3948 = vmatmul.bf16.gmra.mxu0 %v2532
  %v3949 = vpop.f32.mrf.mxu0
  %v3950 = vadd.f32 %v3936, %v3949
  %v3951 = vpop.f32.mrf.mxu0
  %v3952 = vadd.f32 %v3938, %v3951
  %3953 = vdwg.mxu0
  %3954 = vmatpush.bf16.msra.mxu0 %v3475
  %3955 = vmatpush.bf16.msra.mxu0 %v3474
  %3956 = vmatpush.bf16.msra.mxu0 %v3473
  %3957 = vmatpush.bf16.msra.mxu0 %v3472
  %3958 = vmatpush.bf16.msra.mxu0 %v3471
  %3959 = vmatpush.bf16.msra.mxu0 %v3470
  %3960 = vmatpush.bf16.msra.mxu0 %v3469
  %3961 = vmatpush.bf16.msra.mxu0 %v3468
  %3962 = vmatmul.bf16.gmra.mxu0 %v2533
  %v3963 = vpop.f32.mrf.mxu0
  %v3964 = vadd.f32 %v3950, %v3963
  %v3965 = vpop.f32.mrf.mxu0
  %v3966 = vadd.f32 %v3952, %v3965
  %3967 = vdwg.mxu0
  %3968 = vmatpush.bf16.msra.mxu0 %v3483
  %3969 = vmatpush.bf16.msra.mxu0 %v3482
  %3970 = vmatpush.bf16.msra.mxu0 %v3481
  %3971 = vmatpush.bf16.msra.mxu0 %v3480
  %3972 = vmatpush.bf16.msra.mxu0 %v3479
  %3973 = vmatpush.bf16.msra.mxu0 %v3478
  %3974 = vmatpush.bf16.msra.mxu0 %v3477
  %3975 = vmatpush.bf16.msra.mxu0 %v3476
  %3976 = vmatmul.bf16.gmra.mxu0 %v2534
  %v3977 = vpop.f32.mrf.mxu0
  %v3978 = vadd.f32 %v3964, %v3977
  %v3979 = vpop.f32.mrf.mxu0
  %v3980 = vadd.f32 %v3966, %v3979
  %3981 = vdwg.mxu0
  %3982 = vmatpush.bf16.msra.mxu0 %v3491
  %3983 = vmatpush.bf16.msra.mxu0 %v3490
  %3984 = vmatpush.bf16.msra.mxu0 %v3489
  %3985 = vmatpush.bf16.msra.mxu0 %v3488
  %3986 = vmatpush.bf16.msra.mxu0 %v3487
  %3987 = vmatpush.bf16.msra.mxu0 %v3486
  %3988 = vmatpush.bf16.msra.mxu0 %v3485
  %3989 = vmatpush.bf16.msra.mxu0 %v3484
  %3990 = vmatmul.bf16.gmra.mxu0 %v2535
  %v3991 = vpop.f32.mrf.mxu0
  %v3992 = vadd.f32 %v3978, %v3991
  %v3993 = vpop.f32.mrf.mxu0
  %v3994 = vadd.f32 %v3980, %v3993
  %3995 = vdwg.mxu0
  %3996 = vmatpush.bf16.msra.mxu0 %v3499
  %3997 = vmatpush.bf16.msra.mxu0 %v3498
  %3998 = vmatpush.bf16.msra.mxu0 %v3497
  %3999 = vmatpush.bf16.msra.mxu0 %v3496
  %4000 = vmatpush.bf16.msra.mxu0 %v3495
  %4001 = vmatpush.bf16.msra.mxu0 %v3494
  %4002 = vmatpush.bf16.msra.mxu0 %v3493
  %4003 = vmatpush.bf16.msra.mxu0 %v3492
  %4004 = vmatmul.bf16.gmra.mxu0 %v2536
  %v4005 = vpop.f32.mrf.mxu0
  %v4006 = vadd.f32 %v3992, %v4005
  %v4007 = vpop.f32.mrf.mxu0
  %v4008 = vadd.f32 %v3994, %v4007
  %4009 = vdwg.mxu0
  %4010 = vmatpush.bf16.msra.mxu0 %v3507
  %4011 = vmatpush.bf16.msra.mxu0 %v3506
  %4012 = vmatpush.bf16.msra.mxu0 %v3505
  %4013 = vmatpush.bf16.msra.mxu0 %v3504
  %4014 = vmatpush.bf16.msra.mxu0 %v3503
  %4015 = vmatpush.bf16.msra.mxu0 %v3502
  %4016 = vmatpush.bf16.msra.mxu0 %v3501
  %4017 = vmatpush.bf16.msra.mxu0 %v3500
  %4018 = vmatmul.bf16.gmra.mxu0 %v2537
  %v4019 = vpop.f32.mrf.mxu0
  %v4020 = vadd.f32 %v4006, %v4019
  %v4021 = vpop.f32.mrf.mxu0
  %v4022 = vadd.f32 %v4008, %v4021
  %4023 = vdwg.mxu0
  %4024 = vmatpush.bf16.msra.mxu0 %v3515
  %4025 = vmatpush.bf16.msra.mxu0 %v3514
  %4026 = vmatpush.bf16.msra.mxu0 %v3513
  %4027 = vmatpush.bf16.msra.mxu0 %v3512
  %4028 = vmatpush.bf16.msra.mxu0 %v3511
  %4029 = vmatpush.bf16.msra.mxu0 %v3510
  %4030 = vmatpush.bf16.msra.mxu0 %v3509
  %4031 = vmatpush.bf16.msra.mxu0 %v3508
  %4032 = vmatmul.bf16.gmra.mxu0 %v2538
  %v4033 = vpop.f32.mrf.mxu0
  %v4034 = vadd.f32 %v4020, %v4033
  %v4035 = vpop.f32.mrf.mxu0
  %v4036 = vadd.f32 %v4022, %v4035
  %4037 = vdwg.mxu0
  %4038 = vmatpush.bf16.msra.mxu0 %v3523
  %4039 = vmatpush.bf16.msra.mxu0 %v3522
  %4040 = vmatpush.bf16.msra.mxu0 %v3521
  %4041 = vmatpush.bf16.msra.mxu0 %v3520
  %4042 = vmatpush.bf16.msra.mxu0 %v3519
  %4043 = vmatpush.bf16.msra.mxu0 %v3518
  %4044 = vmatpush.bf16.msra.mxu0 %v3517
  %4045 = vmatpush.bf16.msra.mxu0 %v3516
  %4046 = vmatmul.bf16.gmra.mxu0 %v2539
  %v4047 = vpop.f32.mrf.mxu0
  %v4048 = vadd.f32 %v4034, %v4047
  %v4049 = vpop.f32.mrf.mxu0
  %v4050 = vadd.f32 %v4036, %v4049
  %4051 = vdwg.mxu0
  %v4052 = vld [vmem:[%s4] sm:$0x1]
  %v4054 = vperm.slane %v4052, 0
  %v4056 = vadd.f32 %v4048, %v4054
  %v4057 = vadd.f32 %v4050, %v4054
  %v4058 = vpack.c.bf16 %v4056, %v4056
  %v4059 = vpack.c.bf16 %v4057, %v4057
  %4060 = vst [vmem:[%s5] sm:$0xf] %v4058
  %4061 = vst [vmem:[%s5 + $0x4] sm:$0xf] %v4059
  // Predicated region
  $region22: #{encoder_decoder_forward.8} parent=0 // pred_check
    _
  $region23: #{encoder_decoder_forward.8} parent=0 // pred_check_branch
    %4063 = sbr.rel (0) target = $region25
  $region24: #{encoder_decoder_forward.8} parent=0 // pred_region
    _
  $region25: #{encoder_decoder_forward.8} parent=0 // pred_fallthru
    _
  // Predicated region
  $region26: #{encoder_decoder_forward.8} parent=0 // pred_check
    _
  $region27: #{encoder_decoder_forward.8} parent=0 // pred_check_branch
    %4065 = sbr.rel (0) target = $region29
  $region28: #{encoder_decoder_forward.8} parent=0 // pred_region
    _
  $region29: #{encoder_decoder_forward.8} parent=0 // pred_fallthru
    _

// kernel: encoder_decoder_forward.6
$region0: #{encoder_decoder_forward.6}
  #allocation0 [shape = 'u32[]', space=smem, size = 0x4, offset = 0x4, fixed_abs, tag = 'smem constant byte address 0x4 - core index']
  #allocation1 [shape = 'u32[72,128]{1,0:T(1,128)}', space=vmem, size = 0x9000, scoped, tag = 'internal scratch']
  %s0 = inlined_call_operand.vmem [shape: bf16[32,192], index: 0, kind: input, shape index: {}]
  %s1 = inlined_call_operand.vmem [shape: bf16[32,192], index: 1, kind: input, shape index: {}]
  %s2 = inlined_call_operand.vmem [shape: bf16[192,128], index: 2, kind: input, shape index: {}]
  %s3 = inlined_call_operand.vmem [shape: bf16[192,128], index: 3, kind: input, shape index: {}]
  %s4 = inlined_call_operand.vmem [shape: f32[1,128], index: 4, kind: input, shape index: {}]
  %s5 = inlined_call_operand.vmem [shape: bf16[32,128], index: 5, kind: output, shape index: {}]
  %s6 = sld [smem:[#allocation0]]
  $region53: #{encoder_decoder_forward.6} parent=0
    _
  %s8 = ssub.s32 1, %s6
  %s9 = scalar_select 0, %s8, %s6
  loop: start=0, step=1, limit=4
  $region2: #{encoder_decoder_forward.6} parent=0 // loop_pre_header
    _
  $region3: #{encoder_decoder_forward.6} parent=0 // loop_header
    %s11 = sphi 0, %s15
    %p12 = scmp.ge.s32.totalorder %s11, 4
    %s21 = sphi 0, %s23
    %s24 = sphi 0, %s21
    %s25 = sphi 0, %s24
    %s41 = sphi 0, %s25
    %s47 = sphi 0, %s49
    %s50 = sphi 0, %s47
    %s51 = sphi 0, %s50
    %s67 = sphi 0, %s51
    %s71 = sphi 0, %s71
    %s73 = sphi 0, %s71
    %s74 = sphi 0, %s73
    %s88 = sphi 0, %s74
    %s92 = sphi 0, %s92
    %s94 = sphi 0, %s92
    %s95 = sphi 0, %s94
    %s109 = sphi 0, %s95
    %s113 = sphi 0, %s113
    %s115 = sphi 0, %s113
    %s116 = sphi 0, %s115
    %s130 = sphi 0, %s116
    %s136 = sphi 0, %s138
    %s139 = sphi 0, %s136
    %s140 = sphi 0, %s139
    %s156 = sphi 0, %s140
  $region4: #{encoder_decoder_forward.6} parent=0 // loop_header_branch
    %14 = sbr.rel (%p12) target = $region8
  $region5: #{encoder_decoder_forward.6} parent=0 // loop_body
    %s16 = ssub.s32 %s11, 1
    %s17 = ssub.s32 %s11, 2
    %s18 = sadd.s32 %s11, 1
    %s19 = ssub.s32 %s11, %s18
    %p20 = scmp.eq.s32.totalorder %s19, 0
    %s22 = sadd.s32 %s21, 1
    %s23 = scalar_select %p20, %s21, %s22
    %p26 = pneg %p20
    %p27 = scmp.eq.s32.totalorder %s11, 1
    %p28 = por %p26, %p27
    %p29 = scmp.ne.s32.totalorder %s21, %s24
    %p30 = scmp.eq.s32.totalorder %s11, 0
    %p31 = por %p29, %p30
    %p32 = scmp.ne.s32.totalorder %s21, %s24
    %p33 = scmp.eq.s32.totalorder %s16, 1
    %p34 = por %p32, %p33
    %p35 = scmp.ne.s32.totalorder %s24, %s25
    %p36 = scmp.eq.s32.totalorder %s16, 0
    %p37 = por %p35, %p36
    %p38 = scmp.ne.s32.totalorder %s24, %s25
    %p39 = scmp.eq.s32.totalorder %s17, 1
    %p40 = por %p38, %p39
    %p42 = scmp.ne.s32.totalorder %s25, %s41
    %p43 = scmp.eq.s32.totalorder %s17, 0
    %p44 = por %p42, %p43
    %s45 = ssub.s32 %s11, %s18
    %p46 = scmp.eq.s32.totalorder %s45, 0
    %s48 = sadd.s32 %s47, 1
    %s49 = scalar_select %p46, %s47, %s48
    %p52 = pneg %p46
    %p53 = scmp.eq.s32.totalorder %s11, 1
    %p54 = por %p52, %p53
    %p55 = scmp.ne.s32.totalorder %s47, %s50
    %p56 = scmp.eq.s32.totalorder %s11, 0
    %p57 = por %p55, %p56
    %p58 = scmp.ne.s32.totalorder %s47, %s50
    %p59 = scmp.eq.s32.totalorder %s16, 1
    %p60 = por %p58, %p59
    %p61 = scmp.ne.s32.totalorder %s50, %s51
    %p62 = scmp.eq.s32.totalorder %s16, 0
    %p63 = por %p61, %p62
    %p64 = scmp.ne.s32.totalorder %s50, %s51
    %p65 = scmp.eq.s32.totalorder %s17, 1
    %p66 = por %p64, %p65
    %p68 = scmp.ne.s32.totalorder %s51, %s67
    %p69 = scmp.eq.s32.totalorder %s17, 0
    %p70 = por %p68, %p69
    %s72 = sadd.s32 %s71, 1
    %p75 = scmp.eq.s32.totalorder %s11, 1
    %p76 = scmp.ne.s32.totalorder %s71, %s73
    %p77 = scmp.eq.s32.totalorder %s11, 0
    %p78 = por %p76, %p77
    %p79 = scmp.ne.s32.totalorder %s71, %s73
    %p80 = scmp.eq.s32.totalorder %s16, 1
    %p81 = por %p79, %p80
    %p82 = scmp.ne.s32.totalorder %s73, %s74
    %p83 = scmp.eq.s32.totalorder %s16, 0
    %p84 = por %p82, %p83
    %p85 = scmp.ne.s32.totalorder %s73, %s74
    %p86 = scmp.eq.s32.totalorder %s17, 1
    %p87 = por %p85, %p86
    %p89 = scmp.ne.s32.totalorder %s74, %s88
    %p90 = scmp.eq.s32.totalorder %s17, 0
    %p91 = por %p89, %p90
    %s93 = sadd.s32 %s92, 1
    %p96 = scmp.eq.s32.totalorder %s11, 1
    %p97 = scmp.ne.s32.totalorder %s92, %s94
    %p98 = scmp.eq.s32.totalorder %s11, 0
    %p99 = por %p97, %p98
    %p100 = scmp.ne.s32.totalorder %s92, %s94
    %p101 = scmp.eq.s32.totalorder %s16, 1
    %p102 = por %p100, %p101
    %p103 = scmp.ne.s32.totalorder %s94, %s95
    %p104 = scmp.eq.s32.totalorder %s16, 0
    %p105 = por %p103, %p104
    %p106 = scmp.ne.s32.totalorder %s94, %s95
    %p107 = scmp.eq.s32.totalorder %s17, 1
    %p108 = por %p106, %p107
    %p110 = scmp.ne.s32.totalorder %s95, %s109
    %p111 = scmp.eq.s32.totalorder %s17, 0
    %p112 = por %p110, %p111
    %s114 = sadd.s32 %s113, 1
    %p117 = scmp.eq.s32.totalorder %s11, 1
    %p118 = scmp.ne.s32.totalorder %s113, %s115
    %p119 = scmp.eq.s32.totalorder %s11, 0
    %p120 = por %p118, %p119
    %p121 = scmp.ne.s32.totalorder %s113, %s115
    %p122 = scmp.eq.s32.totalorder %s16, 1
    %p123 = por %p121, %p122
    %p124 = scmp.ne.s32.totalorder %s115, %s116
    %p125 = scmp.eq.s32.totalorder %s16, 0
    %p126 = por %p124, %p125
    %p127 = scmp.ne.s32.totalorder %s115, %s116
    %p128 = scmp.eq.s32.totalorder %s17, 1
    %p129 = por %p127, %p128
    %p131 = scmp.ne.s32.totalorder %s116, %s130
    %p132 = scmp.eq.s32.totalorder %s17, 0
    %p133 = por %p131, %p132
    %s134 = ssub.s32 %s11, %s18
    %p135 = scmp.eq.s32.totalorder %s134, 0
    %s137 = sadd.s32 %s136, 1
    %s138 = scalar_select %p135, %s136, %s137
    %p141 = pneg %p135
    %p142 = scmp.eq.s32.totalorder %s11, 1
    %p143 = por %p141, %p142
    %p144 = scmp.ne.s32.totalorder %s136, %s139
    %p145 = scmp.eq.s32.totalorder %s11, 0
    %p146 = por %p144, %p145
    %p147 = scmp.ne.s32.totalorder %s136, %s139
    %p148 = scmp.eq.s32.totalorder %s16, 1
    %p149 = por %p147, %p148
    %p150 = scmp.ne.s32.totalorder %s139, %s140
    %p151 = scmp.eq.s32.totalorder %s16, 0
    %p152 = por %p150, %p151
    %p153 = scmp.ne.s32.totalorder %s139, %s140
    %p154 = scmp.eq.s32.totalorder %s17, 1
    %p155 = por %p153, %p154
    %p157 = scmp.ne.s32.totalorder %s140, %s156
    %p158 = scmp.eq.s32.totalorder %s17, 0
    %p159 = por %p157, %p158
    %p160 = scmp.le.s32.totalorder 1, %s11
    %p161 = scmp.lt.s32.totalorder %s11, 3
    %p162 = pnand %p160, %p161
    %p163 = pneg %p162
    // Predicated region
    $region9: #{encoder_decoder_forward.6} parent=5 // pred_check
      _
    $region10: #{encoder_decoder_forward.6} parent=5 // pred_check_branch
      %165 = sbr.rel (%p162) target = $region12
    $region11: #{encoder_decoder_forward.6} parent=5 // pred_region
      %s166 = ssub.s32 %s11, 1
      // Predicated region
      $region13: #{encoder_decoder_forward.6} parent=11 // pred_check
        %p167 = pneg %p84
      $region14: #{encoder_decoder_forward.6} parent=11 // pred_check_branch
        %169 = sbr.rel (%p167) target = $region16
      $region15: #{encoder_decoder_forward.6} parent=11 // pred_region
        _
      $region16: #{encoder_decoder_forward.6} parent=11 // pred_fallthru
        _
      // Predicated region
      $region17: #{encoder_decoder_forward.6} parent=11 // pred_check
        %p170 = pneg %p105
      $region18: #{encoder_decoder_forward.6} parent=11 // pred_check_branch
        %172 = sbr.rel (%p170) target = $region20
      $region19: #{encoder_decoder_forward.6} parent=11 // pred_region
        _
      $region20: #{encoder_decoder_forward.6} parent=11 // pred_fallthru
        _
      // Predicated region
      $region21: #{encoder_decoder_forward.6} parent=11 // pred_check
        %p173 = pneg %p126
      $region22: #{encoder_decoder_forward.6} parent=11 // pred_check_branch
        %175 = sbr.rel (%p173) target = $region24
      $region23: #{encoder_decoder_forward.6} parent=11 // pred_region
        _
      $region24: #{encoder_decoder_forward.6} parent=11 // pred_fallthru
        _
    $region12: #{encoder_decoder_forward.6} parent=5 // pred_fallthru
      _
    %p176 = scmp.lt.s32.totalorder %s11, 2
    // Predicated region
    $region25: #{encoder_decoder_forward.6} parent=5 // pred_check
      %p177 = pneg %p176
    $region26: #{encoder_decoder_forward.6} parent=5 // pred_check_branch
      %179 = sbr.rel (%p177) target = $region28
    $region27: #{encoder_decoder_forward.6} parent=5 // pred_region
      // Predicated region
      $region29: #{encoder_decoder_forward.6} parent=27 // pred_check
        %p180 = pneg %p31
      $region30: #{encoder_decoder_forward.6} parent=27 // pred_check_branch
        %182 = sbr.rel (%p180) target = $region32
      $region31: #{encoder_decoder_forward.6} parent=27 // pred_region
        %s183 = smul.u32 2, %s11
        %p184 = scmp.lt.s32.totalorder %s183, 3
        %s185 = scalar_select %p184, %s183, 3
        %s186 = smul.addr %s185, 2
        %s187 = smul.addr %s186, 4
        %s188 = scalar_lea.vmem %s0, %s187
        %s189 = smul.u32 2, %s11
      $region32: #{encoder_decoder_forward.6} parent=27 // pred_fallthru
        _
      // Predicated region
      $region33: #{encoder_decoder_forward.6} parent=27 // pred_check
        %p190 = pneg %p57
      $region34: #{encoder_decoder_forward.6} parent=27 // pred_check_branch
        %192 = sbr.rel (%p190) target = $region36
      $region35: #{encoder_decoder_forward.6} parent=27 // pred_region
        %s193 = smul.u32 2, %s11
        %p194 = scmp.lt.s32.totalorder %s193, 3
        %s195 = scalar_select %p194, %s193, 3
        %s196 = smul.addr %s195, 2
        %s197 = smul.addr %s196, 4
        %s198 = scalar_lea.vmem %s1, %s197
        %s199 = smul.u32 2, %s11
      $region36: #{encoder_decoder_forward.6} parent=27 // pred_fallthru
        _
    $region28: #{encoder_decoder_forward.6} parent=5 // pred_fallthru
      _
    %p200 = scmp.le.s32.totalorder 1, %s11
    %p201 = scmp.lt.s32.totalorder %s11, 3
    %p202 = pnand %p200, %p201
    %p203 = pneg %p202
    // Predicated region
    $region37: #{encoder_decoder_forward.6} parent=5 // pred_check
      _
    $region38: #{encoder_decoder_forward.6} parent=5 // pred_check_branch
      %205 = sbr.rel (%p202) target = $region40
    $region39: #{encoder_decoder_forward.6} parent=5 // pred_region
      %s206 = ssub.s32 %s11, 1
      %s207 = smul.u32 2, %s16
      %p208 = scmp.lt.s32.totalorder %s207, 3
      %s209 = scalar_select %p208, %s207, 3
      %s210 = smul.addr %s209, 2
      %s211 = smul.addr %s210, 4
      %s212 = scalar_lea.vmem %s0, %s211
      %p213 = pneg %p37
      %p214 = pneg %p34
      %s215 = smul.u32 2, %s16
      %p216 = scmp.lt.s32.totalorder %s215, 3
      %s217 = scalar_select %p216, %s215, 3
      %s218 = smul.addr %s217, 2
      %s219 = smul.addr %s218, 4
      %s220 = scalar_lea.vmem %s1, %s219
      %p221 = pneg %p63
      %p222 = pneg %p60
      %p223 = pneg %p84
      %p224 = pneg %p81
      %p225 = pneg %p105
      %p226 = pneg %p102
      %p227 = pneg %p126
      %p228 = pneg %p123
      %p229 = pneg %p152
      %p230 = pneg %p149
      %s231 = smul.u32 2, %s16
      %p232 = scmp.lt.s32.totalorder %s231, 3
      %s233 = scalar_select %p232, %s231, 3
      %s234 = smul.addr %s233, 4
      %s235 = scalar_lea.vmem %s5, %s234
      %s236 = smul.u32 2, %s16
      %p237 = scmp.lt.s32.totalorder %s236, 3
      %s238 = scalar_select %p237, %s236, 3
      %s239 = smul.addr %s238, 2
      %s240 = smul.addr %s239, 4
      %s241 = scalar_lea.vmem %s0, %s240
      %s242 = smul.u32 2, %s16
      %s243 = smul.u32 2, %s16
      %p244 = scmp.lt.s32.totalorder %s243, 3
      %s245 = scalar_select %p244, %s243, 3
      %s246 = smul.addr %s245, 2
      %s247 = smul.addr %s246, 4
      %s248 = scalar_lea.vmem %s1, %s247
      %s249 = smul.u32 2, %s16
      %s250 = smul.u32 2, %s16
      %p251 = scmp.lt.s32.totalorder %s250, 3
      %s252 = scalar_select %p251, %s250, 3
      %s253 = smul.addr %s252, 4
      %s254 = scalar_lea.vmem %s5, %s253
      %s255 = smul.u32 2, %s16
      %v257 = vld [vmem:[%s241] sm:$0xff]
      %v258 = vld [vmem:[%s241 + $0x8] sm:$0xff]
      %v259 = vld [vmem:[%s2] sm:$0xf]
      %v260 = vld [vmem:[%s2 + $0x4] sm:$0xf]
      %v261 = vld [vmem:[%s2 + $0x8] sm:$0xf]
      %v262 = vld [vmem:[%s2 + $0xc] sm:$0xf]
      %v263 = vld [vmem:[%s2 + $0x10] sm:$0xf]
      %v264 = vld [vmem:[%s2 + $0x14] sm:$0xf]
      %v265 = vld [vmem:[%s2 + $0x18] sm:$0xf]
      %v266 = vld [vmem:[%s2 + $0x1c] sm:$0xf]
      %v267 = vld [vmem:[%s2 + $0x20] sm:$0xf]
      %v268 = vld [vmem:[%s2 + $0x24] sm:$0xf]
      %v269 = vld [vmem:[%s2 + $0x28] sm:$0xf]
      %v270 = vld [vmem:[%s2 + $0x2c] sm:$0xf]
      %v271 = vld [vmem:[%s2 + $0x30] sm:$0xf]
      %v272 = vld [vmem:[%s2 + $0x34] sm:$0xf]
      %v273 = vld [vmem:[%s2 + $0x38] sm:$0xf]
      %v274 = vld [vmem:[%s2 + $0x3c] sm:$0xf]
      %v275 = vld [vmem:[%s2 + $0x40] sm:$0xf]
      %v276 = vld [vmem:[%s2 + $0x44] sm:$0xf]
      %v277 = vld [vmem:[%s2 + $0x48] sm:$0xf]
      %v278 = vld [vmem:[%s2 + $0x4c] sm:$0xf]
      %v279 = vld [vmem:[%s2 + $0x50] sm:$0xf]
      %v280 = vld [vmem:[%s2 + $0x54] sm:$0xf]
      %v281 = vld [vmem:[%s2 + $0x58] sm:$0xf]
      %v282 = vld [vmem:[%s2 + $0x5c] sm:$0xf]
      %v283 = vld [vmem:[%s248] sm:$0xff]
      %v284 = vld [vmem:[%s248 + $0x8] sm:$0xff]
      %v285 = vld [vmem:[%s3] sm:$0xf]
      %v286 = vld [vmem:[%s3 + $0x4] sm:$0xf]
      %v287 = vld [vmem:[%s3 + $0x8] sm:$0xf]
      %v288 = vld [vmem:[%s3 + $0xc] sm:$0xf]
      %v289 = vld [vmem:[%s3 + $0x10] sm:$0xf]
      %v290 = vld [vmem:[%s3 + $0x14] sm:$0xf]
      %v291 = vld [vmem:[%s3 + $0x18] sm:$0xf]
      %v292 = vld [vmem:[%s3 + $0x1c] sm:$0xf]
      %v293 = vld [vmem:[%s3 + $0x20] sm:$0xf]
      %v294 = vld [vmem:[%s3 + $0x24] sm:$0xf]
      %v295 = vld [vmem:[%s3 + $0x28] sm:$0xf]
      %v296 = vld [vmem:[%s3 + $0x2c] sm:$0xf]
      %v297 = vld [vmem:[%s3 + $0x30] sm:$0xf]
      %v298 = vld [vmem:[%s3 + $0x34] sm:$0xf]
      %v299 = vld [vmem:[%s3 + $0x38] sm:$0xf]
      %v300 = vld [vmem:[%s3 + $0x3c] sm:$0xf]
      %v301 = vld [vmem:[%s3 + $0x40] sm:$0xf]
      %v302 = vld [vmem:[%s3 + $0x44] sm:$0xf]
      %v303 = vld [vmem:[%s3 + $0x48] sm:$0xf]
      %v304 = vld [vmem:[%s3 + $0x4c] sm:$0xf]
      %v305 = vld [vmem:[%s3 + $0x50] sm:$0xf]
      %v306 = vld [vmem:[%s3 + $0x54] sm:$0xf]
      %v307 = vld [vmem:[%s3 + $0x58] sm:$0xf]
      %v308 = vld [vmem:[%s3 + $0x5c] sm:$0xf]
      %v311 = vunpack.c.l.b16 %v283
      %v312 = vunpack.c.h.b16 %v283
      %v313 = vunpack.c.l.b16 %v284
      %v314 = vunpack.c.h.b16 %v284
      %v315 = vpack.c.b16 %v313, %v311
      %v316 = vpack.c.b16 %v314, %v312
      %v342 = vunpack.c.l.b16 %v285
      %v343 = vunpack.c.l.b16 %v286
      %v344 = vunpack.c.l.b16 %v287
      %v345 = vunpack.c.l.b16 %v288
      %v346 = vunpack.c.l.b16 %v289
      %v347 = vunpack.c.l.b16 %v290
      %v348 = vunpack.c.l.b16 %v291
      %v349 = vunpack.c.l.b16 %v292
      %v350 = vunpack.c.l.b16 %v293
      %v351 = vunpack.c.l.b16 %v294
      %v352 = vunpack.c.l.b16 %v295
      %v353 = vunpack.c.l.b16 %v296
      %v354 = vunpack.c.l.b16 %v297
      %v355 = vunpack.c.l.b16 %v298
      %v356 = vunpack.c.l.b16 %v299
      %v357 = vunpack.c.l.b16 %v300
      %v358 = vunpack.c.l.b16 %v301
      %v359 = vunpack.c.l.b16 %v302
      %v360 = vunpack.c.l.b16 %v303
      %v361 = vunpack.c.l.b16 %v304
      %v362 = vunpack.c.l.b16 %v305
      %v363 = vunpack.c.l.b16 %v306
      %v364 = vunpack.c.l.b16 %v307
      %v365 = vunpack.c.l.b16 %v308
      %v366 = vpack.c.b16 %v343, %v342
      %v367 = vpack.c.b16 %v345, %v344
      %v368 = vpack.c.b16 %v347, %v346
      %v369 = vpack.c.b16 %v349, %v348
      %v370 = vpack.c.b16 %v351, %v350
      %v371 = vpack.c.b16 %v353, %v352
      %v372 = vpack.c.b16 %v355, %v354
      %v373 = vpack.c.b16 %v357, %v356
      %v374 = vpack.c.b16 %v359, %v358
      %v375 = vpack.c.b16 %v361, %v360
      %v376 = vpack.c.b16 %v363, %v362
      %v377 = vpack.c.b16 %v365, %v364
      %vm390 = vcmask 523264
      %v392 = vsel %vm390, %v316, 0
      %394 = vmatpush.bf16.msra.mxu0 %v373
      %395 = vmatpush.bf16.msra.mxu0 %v372
      %396 = vmatpush.bf16.msra.mxu0 %v371
      %397 = vmatpush.bf16.msra.mxu0 %v370
      %398 = vmatpush.bf16.msra.mxu0 %v369
      %399 = vmatpush.bf16.msra.mxu0 %v368
      %400 = vmatpush.bf16.msra.mxu0 %v367
      %401 = vmatpush.bf16.msra.mxu0 %v366
      %402 = vmatmul.bf16.gmra.mxu0 %v315
      %v403 = vpop.f32.mrf.mxu0
      %v404 = vadd.f32 0.0, %v403
      %v405 = vpop.f32.mrf.mxu0
      %v406 = vadd.f32 0.0, %v405
      %407 = vdwg.mxu0
      %408 = vmatpush.bf16.msra.mxu0 0
      %409 = vmatpush.bf16.msra.mxu0 0
      %410 = vmatpush.bf16.msra.mxu0 0
      %411 = vmatpush.bf16.msra.mxu0 0
      %412 = vmatpush.bf16.msra.mxu0 %v377
      %413 = vmatpush.bf16.msra.mxu0 %v376
      %414 = vmatpush.bf16.msra.mxu0 %v375
      %415 = vmatpush.bf16.msra.mxu0 %v374
      %416 = vmatmul.bf16.gmra.mxu0 %v392
      %v417 = vpop.f32.mrf.mxu0
      %v418 = vadd.f32 %v404, %v417
      %v419 = vpop.f32.mrf.mxu0
      %v420 = vadd.f32 %v406, %v419
      %421 = vdwg.mxu0
      %v424 = vunpack.c.l.b16 %v257
      %v425 = vunpack.c.h.b16 %v257
      %v426 = vunpack.c.l.b16 %v258
      %v427 = vunpack.c.h.b16 %v258
      %v428 = vpack.c.b16 %v426, %v424
      %v429 = vpack.c.b16 %v427, %v425
      %v455 = vunpack.c.l.b16 %v259
      %v456 = vunpack.c.l.b16 %v260
      %v457 = vunpack.c.l.b16 %v261
      %v458 = vunpack.c.l.b16 %v262
      %v459 = vunpack.c.l.b16 %v263
      %v460 = vunpack.c.l.b16 %v264
      %v461 = vunpack.c.l.b16 %v265
      %v462 = vunpack.c.l.b16 %v266
      %v463 = vunpack.c.l.b16 %v267
      %v464 = vunpack.c.l.b16 %v268
      %v465 = vunpack.c.l.b16 %v269
      %v466 = vunpack.c.l.b16 %v270
      %v467 = vunpack.c.l.b16 %v271
      %v468 = vunpack.c.l.b16 %v272
      %v469 = vunpack.c.l.b16 %v273
      %v470 = vunpack.c.l.b16 %v274
      %v471 = vunpack.c.l.b16 %v275
      %v472 = vunpack.c.l.b16 %v276
      %v473 = vunpack.c.l.b16 %v277
      %v474 = vunpack.c.l.b16 %v278
      %v475 = vunpack.c.l.b16 %v279
      %v476 = vunpack.c.l.b16 %v280
      %v477 = vunpack.c.l.b16 %v281
      %v478 = vunpack.c.l.b16 %v282
      %v479 = vpack.c.b16 %v456, %v455
      %v480 = vpack.c.b16 %v458, %v457
      %v481 = vpack.c.b16 %v460, %v459
      %v482 = vpack.c.b16 %v462, %v461
      %v483 = vpack.c.b16 %v464, %v463
      %v484 = vpack.c.b16 %v466, %v465
      %v485 = vpack.c.b16 %v468, %v467
      %v486 = vpack.c.b16 %v470, %v469
      %v487 = vpack.c.b16 %v472, %v471
      %v488 = vpack.c.b16 %v474, %v473
      %v489 = vpack.c.b16 %v476, %v475
      %v490 = vpack.c.b16 %v478, %v477
      %v504 = vsel %vm390, %v429, 0
      %506 = vmatpush.bf16.msra.mxu0 %v486
      %507 = vmatpush.bf16.msra.mxu0 %v485
      %508 = vmatpush.bf16.msra.mxu0 %v484
      %509 = vmatpush.bf16.msra.mxu0 %v483
      %510 = vmatpush.bf16.msra.mxu0 %v482
      %511 = vmatpush.bf16.msra.mxu0 %v481
      %512 = vmatpush.bf16.msra.mxu0 %v480
      %513 = vmatpush.bf16.msra.mxu0 %v479
      %514 = vmatmul.bf16.gmra.mxu0 %v428
      %v515 = vpop.f32.mrf.mxu0
      %v516 = vadd.f32 %v418, %v515
      %v517 = vpop.f32.mrf.mxu0
      %v518 = vadd.f32 %v420, %v517
      %519 = vdwg.mxu0
      %520 = vmatpush.bf16.msra.mxu0 0
      %521 = vmatpush.bf16.msra.mxu0 0
      %522 = vmatpush.bf16.msra.mxu0 0
      %523 = vmatpush.bf16.msra.mxu0 0
      %524 = vmatpush.bf16.msra.mxu0 %v490
      %525 = vmatpush.bf16.msra.mxu0 %v489
      %526 = vmatpush.bf16.msra.mxu0 %v488
      %527 = vmatpush.bf16.msra.mxu0 %v487
      %528 = vmatmul.bf16.gmra.mxu0 %v504
      %v529 = vpop.f32.mrf.mxu0
      %v530 = vadd.f32 %v516, %v529
      %v531 = vpop.f32.mrf.mxu0
      %v532 = vadd.f32 %v518, %v531
      %533 = vdwg.mxu0
      %v534 = vld [vmem:[%s4] sm:$0x1]
      %v536 = vperm.slane %v534, 0
      %v538 = vadd.f32 %v530, %v536
      %v539 = vadd.f32 %v532, %v536
      %v540 = vpack.c.bf16 %v538, %v538
      %v541 = vpack.c.bf16 %v539, %v539
      %542 = vst [vmem:[%s254] sm:$0xf] %v540
      %543 = vst [vmem:[%s254 + $0x4] sm:$0xf] %v541
      %s544 = smul.u32 2, %s16
      %p545 = scmp.lt.s32.totalorder %s544, 3
      %s546 = scalar_select %p545, %s544, 3
      %s547 = smul.addr %s546, 4
      %s548 = scalar_lea.vmem %s5, %s547
      // Predicated region
      $region41: #{encoder_decoder_forward.6} parent=39 // pred_check
        %p549 = pneg %p149
      $region42: #{encoder_decoder_forward.6} parent=39 // pred_check_branch
        %551 = sbr.rel (%p549) target = $region44
      $region43: #{encoder_decoder_forward.6} parent=39 // pred_region
        %s552 = smul.u32 2, %s16
      $region44: #{encoder_decoder_forward.6} parent=39 // pred_fallthru
        _
    $region40: #{encoder_decoder_forward.6} parent=5 // pred_fallthru
      _
    %p553 = scmp.le.s32.totalorder 2, %s11
    // Predicated region
    $region45: #{encoder_decoder_forward.6} parent=5 // pred_check
      %p554 = pneg %p553
    $region46: #{encoder_decoder_forward.6} parent=5 // pred_check_branch
      %556 = sbr.rel (%p554) target = $region48
    $region47: #{encoder_decoder_forward.6} parent=5 // pred_region
      %s557 = ssub.s32 %s11, 2
      // Predicated region
      $region49: #{encoder_decoder_forward.6} parent=47 // pred_check
        %p558 = pneg %p155
      $region50: #{encoder_decoder_forward.6} parent=47 // pred_check_branch
        %560 = sbr.rel (%p558) target = $region52
      $region51: #{encoder_decoder_forward.6} parent=47 // pred_region
        %s561 = smul.u32 2, %s17
        %p562 = scmp.lt.s32.totalorder %s561, 3
        %s563 = scalar_select %p562, %s561, 3
        %s564 = smul.addr %s563, 4
        %s565 = scalar_lea.vmem %s5, %s564
      $region52: #{encoder_decoder_forward.6} parent=47 // pred_fallthru
        _
    $region48: #{encoder_decoder_forward.6} parent=5 // pred_fallthru
      _
  $region6: #{encoder_decoder_forward.6} parent=0 // loop_footer
    %s15 = sadd.s32 1, %s11
  $region7: #{encoder_decoder_forward.6} parent=0 // loop_footer_branch
    %10 = sbr.rel target = $region3
  $region8: #{encoder_decoder_forward.6} parent=0 // loop_exit
    _

// kernel: encoder_decoder_forward.5
$region0: #{encoder_decoder_forward.5}
  #allocation0 [shape = 'u32[]', space=smem, size = 0x4, offset = 0x4, fixed_abs, tag = 'smem constant byte address 0x4 - core index']
  #allocation1 [shape = 'u32[72,128]{1,0:T(1,128)}', space=vmem, size = 0x9000, scoped, tag = 'internal scratch']
  %s0 = inlined_call_operand.vmem [shape: bf16[128,48], index: 0, kind: input, shape index: {}]
  %s1 = inlined_call_operand.vmem [shape: bf16[128,48], index: 1, kind: input, shape index: {}]
  %s2 = inlined_call_operand.vmem [shape: bf16[48,128], index: 2, kind: input, shape index: {}]
  %s3 = inlined_call_operand.vmem [shape: bf16[48,128], index: 3, kind: input, shape index: {}]
  %s4 = inlined_call_operand.vmem [shape: f32[1,128], index: 4, kind: input, shape index: {}]
  %s5 = inlined_call_operand.vmem [shape: bf16[128,128], index: 5, kind: output, shape index: {}]
  %s6 = sld [smem:[#allocation0]]
  $region53: #{encoder_decoder_forward.5} parent=0
    _
  %s8 = ssub.s32 1, %s6
  %s9 = scalar_select 0, %s8, %s6
  loop: start=0, step=1, limit=4
  $region2: #{encoder_decoder_forward.5} parent=0 // loop_pre_header
    _
  $region3: #{encoder_decoder_forward.5} parent=0 // loop_header
    %s11 = sphi 0, %s15
    %p12 = scmp.ge.s32.totalorder %s11, 4
    %s21 = sphi 0, %s23
    %s24 = sphi 0, %s21
    %s25 = sphi 0, %s24
    %s41 = sphi 0, %s25
    %s47 = sphi 0, %s49
    %s50 = sphi 0, %s47
    %s51 = sphi 0, %s50
    %s67 = sphi 0, %s51
    %s71 = sphi 0, %s71
    %s73 = sphi 0, %s71
    %s74 = sphi 0, %s73
    %s88 = sphi 0, %s74
    %s92 = sphi 0, %s92
    %s94 = sphi 0, %s92
    %s95 = sphi 0, %s94
    %s109 = sphi 0, %s95
    %s113 = sphi 0, %s113
    %s115 = sphi 0, %s113
    %s116 = sphi 0, %s115
    %s130 = sphi 0, %s116
    %s136 = sphi 0, %s138
    %s139 = sphi 0, %s136
    %s140 = sphi 0, %s139
    %s156 = sphi 0, %s140
  $region4: #{encoder_decoder_forward.5} parent=0 // loop_header_branch
    %14 = sbr.rel (%p12) target = $region8
  $region5: #{encoder_decoder_forward.5} parent=0 // loop_body
    %s16 = ssub.s32 %s11, 1
    %s17 = ssub.s32 %s11, 2
    %s18 = sadd.s32 %s11, 1
    %s19 = ssub.s32 %s11, %s18
    %p20 = scmp.eq.s32.totalorder %s19, 0
    %s22 = sadd.s32 %s21, 1
    %s23 = scalar_select %p20, %s21, %s22
    %p26 = pneg %p20
    %p27 = scmp.eq.s32.totalorder %s11, 1
    %p28 = por %p26, %p27
    %p29 = scmp.ne.s32.totalorder %s21, %s24
    %p30 = scmp.eq.s32.totalorder %s11, 0
    %p31 = por %p29, %p30
    %p32 = scmp.ne.s32.totalorder %s21, %s24
    %p33 = scmp.eq.s32.totalorder %s16, 1
    %p34 = por %p32, %p33
    %p35 = scmp.ne.s32.totalorder %s24, %s25
    %p36 = scmp.eq.s32.totalorder %s16, 0
    %p37 = por %p35, %p36
    %p38 = scmp.ne.s32.totalorder %s24, %s25
    %p39 = scmp.eq.s32.totalorder %s17, 1
    %p40 = por %p38, %p39
    %p42 = scmp.ne.s32.totalorder %s25, %s41
    %p43 = scmp.eq.s32.totalorder %s17, 0
    %p44 = por %p42, %p43
    %s45 = ssub.s32 %s11, %s18
    %p46 = scmp.eq.s32.totalorder %s45, 0
    %s48 = sadd.s32 %s47, 1
    %s49 = scalar_select %p46, %s47, %s48
    %p52 = pneg %p46
    %p53 = scmp.eq.s32.totalorder %s11, 1
    %p54 = por %p52, %p53
    %p55 = scmp.ne.s32.totalorder %s47, %s50
    %p56 = scmp.eq.s32.totalorder %s11, 0
    %p57 = por %p55, %p56
    %p58 = scmp.ne.s32.totalorder %s47, %s50
    %p59 = scmp.eq.s32.totalorder %s16, 1
    %p60 = por %p58, %p59
    %p61 = scmp.ne.s32.totalorder %s50, %s51
    %p62 = scmp.eq.s32.totalorder %s16, 0
    %p63 = por %p61, %p62
    %p64 = scmp.ne.s32.totalorder %s50, %s51
    %p65 = scmp.eq.s32.totalorder %s17, 1
    %p66 = por %p64, %p65
    %p68 = scmp.ne.s32.totalorder %s51, %s67
    %p69 = scmp.eq.s32.totalorder %s17, 0
    %p70 = por %p68, %p69
    %s72 = sadd.s32 %s71, 1
    %p75 = scmp.eq.s32.totalorder %s11, 1
    %p76 = scmp.ne.s32.totalorder %s71, %s73
    %p77 = scmp.eq.s32.totalorder %s11, 0
    %p78 = por %p76, %p77
    %p79 = scmp.ne.s32.totalorder %s71, %s73
    %p80 = scmp.eq.s32.totalorder %s16, 1
    %p81 = por %p79, %p80
    %p82 = scmp.ne.s32.totalorder %s73, %s74
    %p83 = scmp.eq.s32.totalorder %s16, 0
    %p84 = por %p82, %p83
    %p85 = scmp.ne.s32.totalorder %s73, %s74
    %p86 = scmp.eq.s32.totalorder %s17, 1
    %p87 = por %p85, %p86
    %p89 = scmp.ne.s32.totalorder %s74, %s88
    %p90 = scmp.eq.s32.totalorder %s17, 0
    %p91 = por %p89, %p90
    %s93 = sadd.s32 %s92, 1
    %p96 = scmp.eq.s32.totalorder %s11, 1
    %p97 = scmp.ne.s32.totalorder %s92, %s94
    %p98 = scmp.eq.s32.totalorder %s11, 0
    %p99 = por %p97, %p98
    %p100 = scmp.ne.s32.totalorder %s92, %s94
    %p101 = scmp.eq.s32.totalorder %s16, 1
    %p102 = por %p100, %p101
    %p103 = scmp.ne.s32.totalorder %s94, %s95
    %p104 = scmp.eq.s32.totalorder %s16, 0
    %p105 = por %p103, %p104
    %p106 = scmp.ne.s32.totalorder %s94, %s95
    %p107 = scmp.eq.s32.totalorder %s17, 1
    %p108 = por %p106, %p107
    %p110 = scmp.ne.s32.totalorder %s95, %s109
    %p111 = scmp.eq.s32.totalorder %s17, 0
    %p112 = por %p110, %p111
    %s114 = sadd.s32 %s113, 1
    %p117 = scmp.eq.s32.totalorder %s11, 1
    %p118 = scmp.ne.s32.totalorder %s113, %s115
    %p119 = scmp.eq.s32.totalorder %s11, 0
    %p120 = por %p118, %p119
    %p121 = scmp.ne.s32.totalorder %s113, %s115
    %p122 = scmp.eq.s32.totalorder %s16, 1
    %p123 = por %p121, %p122
    %p124 = scmp.ne.s32.totalorder %s115, %s116
    %p125 = scmp.eq.s32.totalorder %s16, 0
    %p126 = por %p124, %p125
    %p127 = scmp.ne.s32.totalorder %s115, %s116
    %p128 = scmp.eq.s32.totalorder %s17, 1
    %p129 = por %p127, %p128
    %p131 = scmp.ne.s32.totalorder %s116, %s130
    %p132 = scmp.eq.s32.totalorder %s17, 0
    %p133 = por %p131, %p132
    %s134 = ssub.s32 %s11, %s18
    %p135 = scmp.eq.s32.totalorder %s134, 0
    %s137 = sadd.s32 %s136, 1
    %s138 = scalar_select %p135, %s136, %s137
    %p141 = pneg %p135
    %p142 = scmp.eq.s32.totalorder %s11, 1
    %p143 = por %p141, %p142
    %p144 = scmp.ne.s32.totalorder %s136, %s139
    %p145 = scmp.eq.s32.totalorder %s11, 0
    %p146 = por %p144, %p145
    %p147 = scmp.ne.s32.totalorder %s136, %s139
    %p148 = scmp.eq.s32.totalorder %s16, 1
    %p149 = por %p147, %p148
    %p150 = scmp.ne.s32.totalorder %s139, %s140
    %p151 = scmp.eq.s32.totalorder %s16, 0
    %p152 = por %p150, %p151
    %p153 = scmp.ne.s32.totalorder %s139, %s140
    %p154 = scmp.eq.s32.totalorder %s17, 1
    %p155 = por %p153, %p154
    %p157 = scmp.ne.s32.totalorder %s140, %s156
    %p158 = scmp.eq.s32.totalorder %s17, 0
    %p159 = por %p157, %p158
    %p160 = scmp.le.s32.totalorder 1, %s11
    %p161 = scmp.lt.s32.totalorder %s11, 3
    %p162 = pnand %p160, %p161
    %p163 = pneg %p162
    // Predicated region
    $region9: #{encoder_decoder_forward.5} parent=5 // pred_check
      _
    $region10: #{encoder_decoder_forward.5} parent=5 // pred_check_branch
      %165 = sbr.rel (%p162) target = $region12
    $region11: #{encoder_decoder_forward.5} parent=5 // pred_region
      %s166 = ssub.s32 %s11, 1
      // Predicated region
      $region13: #{encoder_decoder_forward.5} parent=11 // pred_check
        %p167 = pneg %p84
      $region14: #{encoder_decoder_forward.5} parent=11 // pred_check_branch
        %169 = sbr.rel (%p167) target = $region16
      $region15: #{encoder_decoder_forward.5} parent=11 // pred_region
        _
      $region16: #{encoder_decoder_forward.5} parent=11 // pred_fallthru
        _
      // Predicated region
      $region17: #{encoder_decoder_forward.5} parent=11 // pred_check
        %p170 = pneg %p105
      $region18: #{encoder_decoder_forward.5} parent=11 // pred_check_branch
        %172 = sbr.rel (%p170) target = $region20
      $region19: #{encoder_decoder_forward.5} parent=11 // pred_region
        _
      $region20: #{encoder_decoder_forward.5} parent=11 // pred_fallthru
        _
      // Predicated region
      $region21: #{encoder_decoder_forward.5} parent=11 // pred_check
        %p173 = pneg %p126
      $region22: #{encoder_decoder_forward.5} parent=11 // pred_check_branch
        %175 = sbr.rel (%p173) target = $region24
      $region23: #{encoder_decoder_forward.5} parent=11 // pred_region
        _
      $region24: #{encoder_decoder_forward.5} parent=11 // pred_fallthru
        _
    $region12: #{encoder_decoder_forward.5} parent=5 // pred_fallthru
      _
    %p176 = scmp.lt.s32.totalorder %s11, 2
    // Predicated region
    $region25: #{encoder_decoder_forward.5} parent=5 // pred_check
      %p177 = pneg %p176
    $region26: #{encoder_decoder_forward.5} parent=5 // pred_check_branch
      %179 = sbr.rel (%p177) target = $region28
    $region27: #{encoder_decoder_forward.5} parent=5 // pred_region
      // Predicated region
      $region29: #{encoder_decoder_forward.5} parent=27 // pred_check
        %p180 = pneg %p31
      $region30: #{encoder_decoder_forward.5} parent=27 // pred_check_branch
        %182 = sbr.rel (%p180) target = $region32
      $region31: #{encoder_decoder_forward.5} parent=27 // pred_region
        %s183 = smul.u32 8, %s11
        %p184 = scmp.lt.s32.totalorder %s183, 15
        %s185 = scalar_select %p184, %s183, 15
        %s186 = smul.addr %s185, 4
        %s187 = scalar_lea.vmem %s0, %s186
        %s188 = smul.u32 8, %s11
      $region32: #{encoder_decoder_forward.5} parent=27 // pred_fallthru
        _
      // Predicated region
      $region33: #{encoder_decoder_forward.5} parent=27 // pred_check
        %p189 = pneg %p57
      $region34: #{encoder_decoder_forward.5} parent=27 // pred_check_branch
        %191 = sbr.rel (%p189) target = $region36
      $region35: #{encoder_decoder_forward.5} parent=27 // pred_region
        %s192 = smul.u32 8, %s11
        %p193 = scmp.lt.s32.totalorder %s192, 15
        %s194 = scalar_select %p193, %s192, 15
        %s195 = smul.addr %s194, 4
        %s196 = scalar_lea.vmem %s1, %s195
        %s197 = smul.u32 8, %s11
      $region36: #{encoder_decoder_forward.5} parent=27 // pred_fallthru
        _
    $region28: #{encoder_decoder_forward.5} parent=5 // pred_fallthru
      _
    %p198 = scmp.le.s32.totalorder 1, %s11
    %p199 = scmp.lt.s32.totalorder %s11, 3
    %p200 = pnand %p198, %p199
    %p201 = pneg %p200
    // Predicated region
    $region37: #{encoder_decoder_forward.5} parent=5 // pred_check
      _
    $region38: #{encoder_decoder_forward.5} parent=5 // pred_check_branch
      %203 = sbr.rel (%p200) target = $region40
    $region39: #{encoder_decoder_forward.5} parent=5 // pred_region
      %s204 = ssub.s32 %s11, 1
      %s205 = smul.u32 8, %s16
      %p206 = scmp.lt.s32.totalorder %s205, 15
      %s207 = scalar_select %p206, %s205, 15
      %s208 = smul.addr %s207, 4
      %s209 = scalar_lea.vmem %s0, %s208
      %p210 = pneg %p37
      %p211 = pneg %p34
      %s212 = smul.u32 8, %s16
      %p213 = scmp.lt.s32.totalorder %s212, 15
      %s214 = scalar_select %p213, %s212, 15
      %s215 = smul.addr %s214, 4
      %s216 = scalar_lea.vmem %s1, %s215
      %p217 = pneg %p63
      %p218 = pneg %p60
      %p219 = pneg %p84
      %p220 = pneg %p81
      %p221 = pneg %p105
      %p222 = pneg %p102
      %p223 = pneg %p126
      %p224 = pneg %p123
      %p225 = pneg %p152
      %p226 = pneg %p149
      %s227 = smul.u32 8, %s16
      %p228 = scmp.lt.s32.totalorder %s227, 15
      %s229 = scalar_select %p228, %s227, 15
      %s230 = smul.addr %s229, 4
      %s231 = scalar_lea.vmem %s5, %s230
      %s232 = smul.u32 8, %s16
      %p233 = scmp.lt.s32.totalorder %s232, 15
      %s234 = scalar_select %p233, %s232, 15
      %s235 = smul.addr %s234, 4
      %s236 = scalar_lea.vmem %s0, %s235
      %s237 = smul.u32 8, %s16
      %s238 = smul.u32 8, %s16
      %p239 = scmp.lt.s32.totalorder %s238, 15
      %s240 = scalar_select %p239, %s238, 15
      %s241 = smul.addr %s240, 4
      %s242 = scalar_lea.vmem %s1, %s241
      %s243 = smul.u32 8, %s16
      %s244 = smul.u32 8, %s16
      %p245 = scmp.lt.s32.totalorder %s244, 15
      %s246 = scalar_select %p245, %s244, 15
      %s247 = smul.addr %s246, 4
      %s248 = scalar_lea.vmem %s5, %s247
      %s249 = smul.u32 8, %s16
      %v251 = vld [vmem:[%s236] sm:$0xf]
      %v252 = vld [vmem:[%s236 + $0x4] sm:$0xf]
      %v253 = vld [vmem:[%s236 + $0x8] sm:$0xf]
      %v254 = vld [vmem:[%s236 + $0xc] sm:$0xf]
      %v255 = vld [vmem:[%s236 + $0x10] sm:$0xf]
      %v256 = vld [vmem:[%s236 + $0x14] sm:$0xf]
      %v257 = vld [vmem:[%s236 + $0x18] sm:$0xf]
      %v258 = vld [vmem:[%s236 + $0x1c] sm:$0xf]
      %v259 = vld [vmem:[%s2] sm:$0xf]
      %v260 = vld [vmem:[%s2 + $0x4] sm:$0xf]
      %v261 = vld [vmem:[%s2 + $0x8] sm:$0xf]
      %v262 = vld [vmem:[%s2 + $0xc] sm:$0xf]
      %v263 = vld [vmem:[%s2 + $0x10] sm:$0xf]
      %v264 = vld [vmem:[%s2 + $0x14] sm:$0xf]
      %v265 = vld [vmem:[%s242] sm:$0xf]
      %v266 = vld [vmem:[%s242 + $0x4] sm:$0xf]
      %v267 = vld [vmem:[%s242 + $0x8] sm:$0xf]
      %v268 = vld [vmem:[%s242 + $0xc] sm:$0xf]
      %v269 = vld [vmem:[%s242 + $0x10] sm:$0xf]
      %v270 = vld [vmem:[%s242 + $0x14] sm:$0xf]
      %v271 = vld [vmem:[%s242 + $0x18] sm:$0xf]
      %v272 = vld [vmem:[%s242 + $0x1c] sm:$0xf]
      %v273 = vld [vmem:[%s3] sm:$0xf]
      %v274 = vld [vmem:[%s3 + $0x4] sm:$0xf]
      %v275 = vld [vmem:[%s3 + $0x8] sm:$0xf]
      %v276 = vld [vmem:[%s3 + $0xc] sm:$0xf]
      %v277 = vld [vmem:[%s3 + $0x10] sm:$0xf]
      %v278 = vld [vmem:[%s3 + $0x14] sm:$0xf]
      %v287 = vunpack.c.l.b16 %v265
      %v288 = vunpack.c.l.b16 %v266
      %v289 = vunpack.c.l.b16 %v267
      %v290 = vunpack.c.l.b16 %v268
      %v291 = vunpack.c.l.b16 %v269
      %v292 = vunpack.c.l.b16 %v270
      %v293 = vunpack.c.l.b16 %v271
      %v294 = vunpack.c.l.b16 %v272
      %v295 = vpack.c.b16 %v288, %v287
      %v296 = vpack.c.b16 %v290, %v289
      %v297 = vpack.c.b16 %v292, %v291
      %v298 = vpack.c.b16 %v294, %v293
      %v305 = vunpack.c.l.b16 %v273
      %v306 = vunpack.c.l.b16 %v274
      %v307 = vunpack.c.l.b16 %v275
      %v308 = vunpack.c.l.b16 %v276
      %v309 = vunpack.c.l.b16 %v277
      %v310 = vunpack.c.l.b16 %v278
      %v311 = vpack.c.b16 %v306, %v305
      %v312 = vpack.c.b16 %v308, %v307
      %v313 = vpack.c.b16 %v310, %v309
      %vm317 = vcmask 392192
      %v319 = vsel %vm317, %v295, 0
      %v322 = vsel %vm317, %v296, 0
      %v325 = vsel %vm317, %v297, 0
      %v328 = vsel %vm317, %v298, 0
      %330 = vmatpush.bf16.msra.mxu0 0
      %331 = vmatpush.bf16.msra.mxu0 0
      %332 = vmatpush.bf16.msra.mxu0 0
      %333 = vmatpush.bf16.msra.mxu0 0
      %334 = vmatpush.bf16.msra.mxu0 0
      %335 = vmatpush.bf16.msra.mxu0 %v313
      %336 = vmatpush.bf16.msra.mxu0 %v312
      %337 = vmatpush.bf16.msra.mxu0 %v311
      %338 = vmatmul.bf16.gmra.mxu0 %v319
      %v339 = vpop.f32.mrf.mxu0
      %v340 = vadd.f32 0.0, %v339
      %v341 = vpop.f32.mrf.mxu0
      %v342 = vadd.f32 0.0, %v341
      %343 = vmatmul.bf16.gmra.mxu0 %v322
      %v344 = vpop.f32.mrf.mxu0
      %v345 = vadd.f32 0.0, %v344
      %v346 = vpop.f32.mrf.mxu0
      %v347 = vadd.f32 0.0, %v346
      %348 = vmatmul.bf16.gmra.mxu0 %v325
      %v349 = vpop.f32.mrf.mxu0
      %v350 = vadd.f32 0.0, %v349
      %v351 = vpop.f32.mrf.mxu0
      %v352 = vadd.f32 0.0, %v351
      %353 = vmatmul.bf16.gmra.mxu0 %v328
      %v354 = vpop.f32.mrf.mxu0
      %v355 = vadd.f32 0.0, %v354
      %v356 = vpop.f32.mrf.mxu0
      %v357 = vadd.f32 0.0, %v356
      %358 = vdwg.mxu0
      %v367 = vunpack.c.l.b16 %v251
      %v368 = vunpack.c.l.b16 %v252
      %v369 = vunpack.c.l.b16 %v253
      %v370 = vunpack.c.l.b16 %v254
      %v371 = vunpack.c.l.b16 %v255
      %v372 = vunpack.c.l.b16 %v256
      %v373 = vunpack.c.l.b16 %v257
      %v374 = vunpack.c.l.b16 %v258
      %v375 = vpack.c.b16 %v368, %v367
      %v376 = vpack.c.b16 %v370, %v369
      %v377 = vpack.c.b16 %v372, %v371
      %v378 = vpack.c.b16 %v374, %v373
      %v385 = vunpack.c.l.b16 %v259
      %v386 = vunpack.c.l.b16 %v260
      %v387 = vunpack.c.l.b16 %v261
      %v388 = vunpack.c.l.b16 %v262
      %v389 = vunpack.c.l.b16 %v263
      %v390 = vunpack.c.l.b16 %v264
      %v391 = vpack.c.b16 %v386, %v385
      %v392 = vpack.c.b16 %v388, %v387
      %v393 = vpack.c.b16 %v390, %v389
      %v398 = vsel %vm317, %v375, 0
      %v401 = vsel %vm317, %v376, 0
      %v404 = vsel %vm317, %v377, 0
      %v407 = vsel %vm317, %v378, 0
      %409 = vmatpush.bf16.msra.mxu0 0
      %410 = vmatpush.bf16.msra.mxu0 0
      %411 = vmatpush.bf16.msra.mxu0 0
      %412 = vmatpush.bf16.msra.mxu0 0
      %413 = vmatpush.bf16.msra.mxu0 0
      %414 = vmatpush.bf16.msra.mxu0 %v393
      %415 = vmatpush.bf16.msra.mxu0 %v392
      %416 = vmatpush.bf16.msra.mxu0 %v391
      %417 = vmatmul.bf16.gmra.mxu0 %v398
      %v418 = vpop.f32.mrf.mxu0
      %v419 = vadd.f32 %v340, %v418
      %v420 = vpop.f32.mrf.mxu0
      %v421 = vadd.f32 %v342, %v420
      %422 = vmatmul.bf16.gmra.mxu0 %v401
      %v423 = vpop.f32.mrf.mxu0
      %v424 = vadd.f32 %v345, %v423
      %v425 = vpop.f32.mrf.mxu0
      %v426 = vadd.f32 %v347, %v425
      %427 = vmatmul.bf16.gmra.mxu0 %v404
      %v428 = vpop.f32.mrf.mxu0
      %v429 = vadd.f32 %v350, %v428
      %v430 = vpop.f32.mrf.mxu0
      %v431 = vadd.f32 %v352, %v430
      %432 = vmatmul.bf16.gmra.mxu0 %v407
      %v433 = vpop.f32.mrf.mxu0
      %v434 = vadd.f32 %v355, %v433
      %v435 = vpop.f32.mrf.mxu0
      %v436 = vadd.f32 %v357, %v435
      %437 = vdwg.mxu0
      %v438 = vld [vmem:[%s4] sm:$0x1]
      %v440 = vperm.slane %v438, 0
      %v442 = vadd.f32 %v419, %v440
      %v443 = vadd.f32 %v421, %v440
      %v444 = vadd.f32 %v424, %v440
      %v445 = vadd.f32 %v426, %v440
      %v446 = vadd.f32 %v429, %v440
      %v447 = vadd.f32 %v431, %v440
      %v448 = vadd.f32 %v434, %v440
      %v449 = vadd.f32 %v436, %v440
      %v450 = vpack.c.bf16 %v442, %v442
      %v451 = vpack.c.bf16 %v443, %v443
      %v452 = vpack.c.bf16 %v444, %v444
      %v453 = vpack.c.bf16 %v445, %v445
      %v454 = vpack.c.bf16 %v446, %v446
      %v455 = vpack.c.bf16 %v447, %v447
      %v456 = vpack.c.bf16 %v448, %v448
      %v457 = vpack.c.bf16 %v449, %v449
      %458 = vst [vmem:[%s248] sm:$0xf] %v450
      %459 = vst [vmem:[%s248 + $0x4] sm:$0xf] %v451
      %460 = vst [vmem:[%s248 + $0x8] sm:$0xf] %v452
      %461 = vst [vmem:[%s248 + $0xc] sm:$0xf] %v453
      %462 = vst [vmem:[%s248 + $0x10] sm:$0xf] %v454
      %463 = vst [vmem:[%s248 + $0x14] sm:$0xf] %v455
      %464 = vst [vmem:[%s248 + $0x18] sm:$0xf] %v456
      %465 = vst [vmem:[%s248 + $0x1c] sm:$0xf] %v457
      %s466 = smul.u32 8, %s16
      %p467 = scmp.lt.s32.totalorder %s466, 15
      %s468 = scalar_select %p467, %s466, 15
      %s469 = smul.addr %s468, 4
      %s470 = scalar_lea.vmem %s5, %s469
      // Predicated region
      $region41: #{encoder_decoder_forward.5} parent=39 // pred_check
        %p471 = pneg %p149
      $region42: #{encoder_decoder_forward.5} parent=39 // pred_check_branch
        %473 = sbr.rel (%p471) target = $region44
      $region43: #{encoder_decoder_forward.5} parent=39 // pred_region
        %s474 = smul.u32 8, %s16
      $region44: #{encoder_decoder_forward.5} parent=39 // pred_fallthru
        _
    $region40: #{encoder_decoder_forward.5} parent=5 // pred_fallthru
      _
    %p475 = scmp.le.s32.totalorder 2, %s11
    // Predicated region
    $region45: #{encoder_decoder_forward.5} parent=5 // pred_check
      %p476 = pneg %p475
    $region46: #{encoder_decoder_forward.5} parent=5 // pred_check_branch
      %478 = sbr.rel (%p476) target = $region48
    $region47: #{encoder_decoder_forward.5} parent=5 // pred_region
      %s479 = ssub.s32 %s11, 2
      // Predicated region
      $region49: #{encoder_decoder_forward.5} parent=47 // pred_check
        %p480 = pneg %p155
      $region50: #{encoder_decoder_forward.5} parent=47 // pred_check_branch
        %482 = sbr.rel (%p480) target = $region52
      $region51: #{encoder_decoder_forward.5} parent=47 // pred_region
        %s483 = smul.u32 8, %s17
        %p484 = scmp.lt.s32.totalorder %s483, 15
        %s485 = scalar_select %p484, %s483, 15
        %s486 = smul.addr %s485, 4
        %s487 = scalar_lea.vmem %s5, %s486
      $region52: #{encoder_decoder_forward.5} parent=47 // pred_fallthru
        _
    $region48: #{encoder_decoder_forward.5} parent=5 // pred_fallthru
      _
  $region6: #{encoder_decoder_forward.5} parent=0 // loop_footer
    %s15 = sadd.s32 1, %s11
  $region7: #{encoder_decoder_forward.5} parent=0 // loop_footer_branch
    %10 = sbr.rel target = $region3
  $region8: #{encoder_decoder_forward.5} parent=0 // loop_exit
    _

// kernel: encoder_decoder_forward.9
$region0: #{encoder_decoder_forward.9}
  #allocation0 [shape = 'u32[]', space=smem, size = 0x4, offset = 0x4, fixed_abs, tag = 'smem constant byte address 0x4 - core index']
  #allocation1 [shape = 'u32[72,128]{1,0:T(1,128)}', space=vmem, size = 0x9000, scoped, tag = 'internal scratch']
  %s0 = inlined_call_operand.vmem [shape: bf16[128,128], index: 0, kind: input, shape index: {}]
  %s1 = inlined_call_operand.vmem [shape: bf16[128,128], index: 1, kind: input, shape index: {}]
  %s2 = inlined_call_operand.vmem [shape: bf16[128,128], index: 2, kind: input, shape index: {}]
  %s3 = inlined_call_operand.vmem [shape: bf16[128,128], index: 3, kind: input, shape index: {}]
  %s4 = inlined_call_operand.vmem [shape: bf16[128,128], index: 4, kind: input, shape index: {}]
  %s5 = inlined_call_operand.vmem [shape: bf16[128,128], index: 5, kind: input, shape index: {}]
  %s6 = inlined_call_operand.vmem [shape: bf16[128,128], index: 6, kind: input, shape index: {}]
  %s7 = inlined_call_operand.vmem [shape: bf16[128,128], index: 7, kind: input, shape index: {}]
  %s8 = inlined_call_operand.vmem [shape: f32[1,128], index: 8, kind: input, shape index: {}]
  %s9 = inlined_call_operand.vmem [shape: bf16[128,128], index: 9, kind: input, shape index: {}]
  %s10 = inlined_call_operand.vmem [shape: f32[1,128], index: 10, kind: input, shape index: {}]
  %s11 = inlined_call_operand.vmem [shape: bf16[128,128], index: 11, kind: output, shape index: {}]
  %s12 = sld [smem:[#allocation0]]
  $region77: #{encoder_decoder_forward.9} parent=0
    _
  %s14 = ssub.s32 1, %s12
  %s15 = scalar_select 0, %s14, %s12
  loop: start=0, step=1, limit=4
  $region2: #{encoder_decoder_forward.9} parent=0 // loop_pre_header
    _
  $region3: #{encoder_decoder_forward.9} parent=0 // loop_header
    %s17 = sphi 0, %s21
    %p18 = scmp.ge.s32.totalorder %s17, 4
    %s27 = sphi 0, %s29
    %s30 = sphi 0, %s27
    %s31 = sphi 0, %s30
    %s47 = sphi 0, %s31
    %s53 = sphi 0, %s55
    %s56 = sphi 0, %s53
    %s57 = sphi 0, %s56
    %s73 = sphi 0, %s57
    %s79 = sphi 0, %s81
    %s82 = sphi 0, %s79
    %s83 = sphi 0, %s82
    %s99 = sphi 0, %s83
    %s105 = sphi 0, %s107
    %s108 = sphi 0, %s105
    %s109 = sphi 0, %s108
    %s125 = sphi 0, %s109
    %s129 = sphi 0, %s129
    %s131 = sphi 0, %s129
    %s132 = sphi 0, %s131
    %s146 = sphi 0, %s132
    %s150 = sphi 0, %s150
    %s152 = sphi 0, %s150
    %s153 = sphi 0, %s152
    %s167 = sphi 0, %s153
    %s171 = sphi 0, %s171
    %s173 = sphi 0, %s171
    %s174 = sphi 0, %s173
    %s188 = sphi 0, %s174
    %s192 = sphi 0, %s192
    %s194 = sphi 0, %s192
    %s195 = sphi 0, %s194
    %s209 = sphi 0, %s195
    %s213 = sphi 0, %s213
    %s215 = sphi 0, %s213
    %s216 = sphi 0, %s215
    %s230 = sphi 0, %s216
    %s234 = sphi 0, %s234
    %s236 = sphi 0, %s234
    %s237 = sphi 0, %s236
    %s251 = sphi 0, %s237
    %s255 = sphi 0, %s255
    %s257 = sphi 0, %s255
    %s258 = sphi 0, %s257
    %s272 = sphi 0, %s258
    %s278 = sphi 0, %s280
    %s281 = sphi 0, %s278
    %s282 = sphi 0, %s281
    %s298 = sphi 0, %s282
  $region4: #{encoder_decoder_forward.9} parent=0 // loop_header_branch
    %20 = sbr.rel (%p18) target = $region8
  $region5: #{encoder_decoder_forward.9} parent=0 // loop_body
    %s22 = ssub.s32 %s17, 1
    %s23 = ssub.s32 %s17, 2
    %s24 = sadd.s32 %s17, 1
    %s25 = ssub.s32 %s17, %s24
    %p26 = scmp.eq.s32.totalorder %s25, 0
    %s28 = sadd.s32 %s27, 1
    %s29 = scalar_select %p26, %s27, %s28
    %p32 = pneg %p26
    %p33 = scmp.eq.s32.totalorder %s17, 1
    %p34 = por %p32, %p33
    %p35 = scmp.ne.s32.totalorder %s27, %s30
    %p36 = scmp.eq.s32.totalorder %s17, 0
    %p37 = por %p35, %p36
    %p38 = scmp.ne.s32.totalorder %s27, %s30
    %p39 = scmp.eq.s32.totalorder %s22, 1
    %p40 = por %p38, %p39
    %p41 = scmp.ne.s32.totalorder %s30, %s31
    %p42 = scmp.eq.s32.totalorder %s22, 0
    %p43 = por %p41, %p42
    %p44 = scmp.ne.s32.totalorder %s30, %s31
    %p45 = scmp.eq.s32.totalorder %s23, 1
    %p46 = por %p44, %p45
    %p48 = scmp.ne.s32.totalorder %s31, %s47
    %p49 = scmp.eq.s32.totalorder %s23, 0
    %p50 = por %p48, %p49
    %s51 = ssub.s32 %s17, %s24
    %p52 = scmp.eq.s32.totalorder %s51, 0
    %s54 = sadd.s32 %s53, 1
    %s55 = scalar_select %p52, %s53, %s54
    %p58 = pneg %p52
    %p59 = scmp.eq.s32.totalorder %s17, 1
    %p60 = por %p58, %p59
    %p61 = scmp.ne.s32.totalorder %s53, %s56
    %p62 = scmp.eq.s32.totalorder %s17, 0
    %p63 = por %p61, %p62
    %p64 = scmp.ne.s32.totalorder %s53, %s56
    %p65 = scmp.eq.s32.totalorder %s22, 1
    %p66 = por %p64, %p65
    %p67 = scmp.ne.s32.totalorder %s56, %s57
    %p68 = scmp.eq.s32.totalorder %s22, 0
    %p69 = por %p67, %p68
    %p70 = scmp.ne.s32.totalorder %s56, %s57
    %p71 = scmp.eq.s32.totalorder %s23, 1
    %p72 = por %p70, %p71
    %p74 = scmp.ne.s32.totalorder %s57, %s73
    %p75 = scmp.eq.s32.totalorder %s23, 0
    %p76 = por %p74, %p75
    %s77 = ssub.s32 %s17, %s24
    %p78 = scmp.eq.s32.totalorder %s77, 0
    %s80 = sadd.s32 %s79, 1
    %s81 = scalar_select %p78, %s79, %s80
    %p84 = pneg %p78
    %p85 = scmp.eq.s32.totalorder %s17, 1
    %p86 = por %p84, %p85
    %p87 = scmp.ne.s32.totalorder %s79, %s82
    %p88 = scmp.eq.s32.totalorder %s17, 0
    %p89 = por %p87, %p88
    %p90 = scmp.ne.s32.totalorder %s79, %s82
    %p91 = scmp.eq.s32.totalorder %s22, 1
    %p92 = por %p90, %p91
    %p93 = scmp.ne.s32.totalorder %s82, %s83
    %p94 = scmp.eq.s32.totalorder %s22, 0
    %p95 = por %p93, %p94
    %p96 = scmp.ne.s32.totalorder %s82, %s83
    %p97 = scmp.eq.s32.totalorder %s23, 1
    %p98 = por %p96, %p97
    %p100 = scmp.ne.s32.totalorder %s83, %s99
    %p101 = scmp.eq.s32.totalorder %s23, 0
    %p102 = por %p100, %p101
    %s103 = ssub.s32 %s17, %s24
    %p104 = scmp.eq.s32.totalorder %s103, 0
    %s106 = sadd.s32 %s105, 1
    %s107 = scalar_select %p104, %s105, %s106
    %p110 = pneg %p104
    %p111 = scmp.eq.s32.totalorder %s17, 1
    %p112 = por %p110, %p111
    %p113 = scmp.ne.s32.totalorder %s105, %s108
    %p114 = scmp.eq.s32.totalorder %s17, 0
    %p115 = por %p113, %p114
    %p116 = scmp.ne.s32.totalorder %s105, %s108
    %p117 = scmp.eq.s32.totalorder %s22, 1
    %p118 = por %p116, %p117
    %p119 = scmp.ne.s32.totalorder %s108, %s109
    %p120 = scmp.eq.s32.totalorder %s22, 0
    %p121 = por %p119, %p120
    %p122 = scmp.ne.s32.totalorder %s108, %s109
    %p123 = scmp.eq.s32.totalorder %s23, 1
    %p124 = por %p122, %p123
    %p126 = scmp.ne.s32.totalorder %s109, %s125
    %p127 = scmp.eq.s32.totalorder %s23, 0
    %p128 = por %p126, %p127
    %s130 = sadd.s32 %s129, 1
    %p133 = scmp.eq.s32.totalorder %s17, 1
    %p134 = scmp.ne.s32.totalorder %s129, %s131
    %p135 = scmp.eq.s32.totalorder %s17, 0
    %p136 = por %p134, %p135
    %p137 = scmp.ne.s32.totalorder %s129, %s131
    %p138 = scmp.eq.s32.totalorder %s22, 1
    %p139 = por %p137, %p138
    %p140 = scmp.ne.s32.totalorder %s131, %s132
    %p141 = scmp.eq.s32.totalorder %s22, 0
    %p142 = por %p140, %p141
    %p143 = scmp.ne.s32.totalorder %s131, %s132
    %p144 = scmp.eq.s32.totalorder %s23, 1
    %p145 = por %p143, %p144
    %p147 = scmp.ne.s32.totalorder %s132, %s146
    %p148 = scmp.eq.s32.totalorder %s23, 0
    %p149 = por %p147, %p148
    %s151 = sadd.s32 %s150, 1
    %p154 = scmp.eq.s32.totalorder %s17, 1
    %p155 = scmp.ne.s32.totalorder %s150, %s152
    %p156 = scmp.eq.s32.totalorder %s17, 0
    %p157 = por %p155, %p156
    %p158 = scmp.ne.s32.totalorder %s150, %s152
    %p159 = scmp.eq.s32.totalorder %s22, 1
    %p160 = por %p158, %p159
    %p161 = scmp.ne.s32.totalorder %s152, %s153
    %p162 = scmp.eq.s32.totalorder %s22, 0
    %p163 = por %p161, %p162
    %p164 = scmp.ne.s32.totalorder %s152, %s153
    %p165 = scmp.eq.s32.totalorder %s23, 1
    %p166 = por %p164, %p165
    %p168 = scmp.ne.s32.totalorder %s153, %s167
    %p169 = scmp.eq.s32.totalorder %s23, 0
    %p170 = por %p168, %p169
    %s172 = sadd.s32 %s171, 1
    %p175 = scmp.eq.s32.totalorder %s17, 1
    %p176 = scmp.ne.s32.totalorder %s171, %s173
    %p177 = scmp.eq.s32.totalorder %s17, 0
    %p178 = por %p176, %p177
    %p179 = scmp.ne.s32.totalorder %s171, %s173
    %p180 = scmp.eq.s32.totalorder %s22, 1
    %p181 = por %p179, %p180
    %p182 = scmp.ne.s32.totalorder %s173, %s174
    %p183 = scmp.eq.s32.totalorder %s22, 0
    %p184 = por %p182, %p183
    %p185 = scmp.ne.s32.totalorder %s173, %s174
    %p186 = scmp.eq.s32.totalorder %s23, 1
    %p187 = por %p185, %p186
    %p189 = scmp.ne.s32.totalorder %s174, %s188
    %p190 = scmp.eq.s32.totalorder %s23, 0
    %p191 = por %p189, %p190
    %s193 = sadd.s32 %s192, 1
    %p196 = scmp.eq.s32.totalorder %s17, 1
    %p197 = scmp.ne.s32.totalorder %s192, %s194
    %p198 = scmp.eq.s32.totalorder %s17, 0
    %p199 = por %p197, %p198
    %p200 = scmp.ne.s32.totalorder %s192, %s194
    %p201 = scmp.eq.s32.totalorder %s22, 1
    %p202 = por %p200, %p201
    %p203 = scmp.ne.s32.totalorder %s194, %s195
    %p204 = scmp.eq.s32.totalorder %s22, 0
    %p205 = por %p203, %p204
    %p206 = scmp.ne.s32.totalorder %s194, %s195
    %p207 = scmp.eq.s32.totalorder %s23, 1
    %p208 = por %p206, %p207
    %p210 = scmp.ne.s32.totalorder %s195, %s209
    %p211 = scmp.eq.s32.totalorder %s23, 0
    %p212 = por %p210, %p211
    %s214 = sadd.s32 %s213, 1
    %p217 = scmp.eq.s32.totalorder %s17, 1
    %p218 = scmp.ne.s32.totalorder %s213, %s215
    %p219 = scmp.eq.s32.totalorder %s17, 0
    %p220 = por %p218, %p219
    %p221 = scmp.ne.s32.totalorder %s213, %s215
    %p222 = scmp.eq.s32.totalorder %s22, 1
    %p223 = por %p221, %p222
    %p224 = scmp.ne.s32.totalorder %s215, %s216
    %p225 = scmp.eq.s32.totalorder %s22, 0
    %p226 = por %p224, %p225
    %p227 = scmp.ne.s32.totalorder %s215, %s216
    %p228 = scmp.eq.s32.totalorder %s23, 1
    %p229 = por %p227, %p228
    %p231 = scmp.ne.s32.totalorder %s216, %s230
    %p232 = scmp.eq.s32.totalorder %s23, 0
    %p233 = por %p231, %p232
    %s235 = sadd.s32 %s234, 1
    %p238 = scmp.eq.s32.totalorder %s17, 1
    %p239 = scmp.ne.s32.totalorder %s234, %s236
    %p240 = scmp.eq.s32.totalorder %s17, 0
    %p241 = por %p239, %p240
    %p242 = scmp.ne.s32.totalorder %s234, %s236
    %p243 = scmp.eq.s32.totalorder %s22, 1
    %p244 = por %p242, %p243
    %p245 = scmp.ne.s32.totalorder %s236, %s237
    %p246 = scmp.eq.s32.totalorder %s22, 0
    %p247 = por %p245, %p246
    %p248 = scmp.ne.s32.totalorder %s236, %s237
    %p249 = scmp.eq.s32.totalorder %s23, 1
    %p250 = por %p248, %p249
    %p252 = scmp.ne.s32.totalorder %s237, %s251
    %p253 = scmp.eq.s32.totalorder %s23, 0
    %p254 = por %p252, %p253
    %s256 = sadd.s32 %s255, 1
    %p259 = scmp.eq.s32.totalorder %s17, 1
    %p260 = scmp.ne.s32.totalorder %s255, %s257
    %p261 = scmp.eq.s32.totalorder %s17, 0
    %p262 = por %p260, %p261
    %p263 = scmp.ne.s32.totalorder %s255, %s257
    %p264 = scmp.eq.s32.totalorder %s22, 1
    %p265 = por %p263, %p264
    %p266 = scmp.ne.s32.totalorder %s257, %s258
    %p267 = scmp.eq.s32.totalorder %s22, 0
    %p268 = por %p266, %p267
    %p269 = scmp.ne.s32.totalorder %s257, %s258
    %p270 = scmp.eq.s32.totalorder %s23, 1
    %p271 = por %p269, %p270
    %p273 = scmp.ne.s32.totalorder %s258, %s272
    %p274 = scmp.eq.s32.totalorder %s23, 0
    %p275 = por %p273, %p274
    %s276 = ssub.s32 %s17, %s24
    %p277 = scmp.eq.s32.totalorder %s276, 0
    %s279 = sadd.s32 %s278, 1
    %s280 = scalar_select %p277, %s278, %s279
    %p283 = pneg %p277
    %p284 = scmp.eq.s32.totalorder %s17, 1
    %p285 = por %p283, %p284
    %p286 = scmp.ne.s32.totalorder %s278, %s281
    %p287 = scmp.eq.s32.totalorder %s17, 0
    %p288 = por %p286, %p287
    %p289 = scmp.ne.s32.totalorder %s278, %s281
    %p290 = scmp.eq.s32.totalorder %s22, 1
    %p291 = por %p289, %p290
    %p292 = scmp.ne.s32.totalorder %s281, %s282
    %p293 = scmp.eq.s32.totalorder %s22, 0
    %p294 = por %p292, %p293
    %p295 = scmp.ne.s32.totalorder %s281, %s282
    %p296 = scmp.eq.s32.totalorder %s23, 1
    %p297 = por %p295, %p296
    %p299 = scmp.ne.s32.totalorder %s282, %s298
    %p300 = scmp.eq.s32.totalorder %s23, 0
    %p301 = por %p299, %p300
    %p302 = scmp.le.s32.totalorder 1, %s17
    %p303 = scmp.lt.s32.totalorder %s17, 3
    %p304 = pnand %p302, %p303
    %p305 = pneg %p304
    // Predicated region
    $region9: #{encoder_decoder_forward.9} parent=5 // pred_check
      _
    $region10: #{encoder_decoder_forward.9} parent=5 // pred_check_branch
      %307 = sbr.rel (%p304) target = $region12
    $region11: #{encoder_decoder_forward.9} parent=5 // pred_region
      %s308 = ssub.s32 %s17, 1
      // Predicated region
      $region13: #{encoder_decoder_forward.9} parent=11 // pred_check
        %p309 = pneg %p142
      $region14: #{encoder_decoder_forward.9} parent=11 // pred_check_branch
        %311 = sbr.rel (%p309) target = $region16
      $region15: #{encoder_decoder_forward.9} parent=11 // pred_region
        _
      $region16: #{encoder_decoder_forward.9} parent=11 // pred_fallthru
        _
      // Predicated region
      $region17: #{encoder_decoder_forward.9} parent=11 // pred_check
        %p312 = pneg %p163
      $region18: #{encoder_decoder_forward.9} parent=11 // pred_check_branch
        %314 = sbr.rel (%p312) target = $region20
      $region19: #{encoder_decoder_forward.9} parent=11 // pred_region
        _
      $region20: #{encoder_decoder_forward.9} parent=11 // pred_fallthru
        _
      // Predicated region
      $region21: #{encoder_decoder_forward.9} parent=11 // pred_check
        %p315 = pneg %p184
      $region22: #{encoder_decoder_forward.9} parent=11 // pred_check_branch
        %317 = sbr.rel (%p315) target = $region24
      $region23: #{encoder_decoder_forward.9} parent=11 // pred_region
        _
      $region24: #{encoder_decoder_forward.9} parent=11 // pred_fallthru
        _
      // Predicated region
      $region25: #{encoder_decoder_forward.9} parent=11 // pred_check
        %p318 = pneg %p205
      $region26: #{encoder_decoder_forward.9} parent=11 // pred_check_branch
        %320 = sbr.rel (%p318) target = $region28
      $region27: #{encoder_decoder_forward.9} parent=11 // pred_region
        _
      $region28: #{encoder_decoder_forward.9} parent=11 // pred_fallthru
        _
      // Predicated region
      $region29: #{encoder_decoder_forward.9} parent=11 // pred_check
        %p321 = pneg %p226
      $region30: #{encoder_decoder_forward.9} parent=11 // pred_check_branch
        %323 = sbr.rel (%p321) target = $region32
      $region31: #{encoder_decoder_forward.9} parent=11 // pred_region
        _
      $region32: #{encoder_decoder_forward.9} parent=11 // pred_fallthru
        _
      // Predicated region
      $region33: #{encoder_decoder_forward.9} parent=11 // pred_check
        %p324 = pneg %p247
      $region34: #{encoder_decoder_forward.9} parent=11 // pred_check_branch
        %326 = sbr.rel (%p324) target = $region36
      $region35: #{encoder_decoder_forward.9} parent=11 // pred_region
        _
      $region36: #{encoder_decoder_forward.9} parent=11 // pred_fallthru
        _
      // Predicated region
      $region37: #{encoder_decoder_forward.9} parent=11 // pred_check
        %p327 = pneg %p268
      $region38: #{encoder_decoder_forward.9} parent=11 // pred_check_branch
        %329 = sbr.rel (%p327) target = $region40
      $region39: #{encoder_decoder_forward.9} parent=11 // pred_region
        _
      $region40: #{encoder_decoder_forward.9} parent=11 // pred_fallthru
        _
    $region12: #{encoder_decoder_forward.9} parent=5 // pred_fallthru
      _
    %p330 = scmp.lt.s32.totalorder %s17, 2
    // Predicated region
    $region41: #{encoder_decoder_forward.9} parent=5 // pred_check
      %p331 = pneg %p330
    $region42: #{encoder_decoder_forward.9} parent=5 // pred_check_branch
      %333 = sbr.rel (%p331) target = $region44
    $region43: #{encoder_decoder_forward.9} parent=5 // pred_region
      // Predicated region
      $region45: #{encoder_decoder_forward.9} parent=43 // pred_check
        %p334 = pneg %p37
      $region46: #{encoder_decoder_forward.9} parent=43 // pred_check_branch
        %336 = sbr.rel (%p334) target = $region48
      $region47: #{encoder_decoder_forward.9} parent=43 // pred_region
        %s337 = smul.u32 8, %s17
        %p338 = scmp.lt.s32.totalorder %s337, 15
        %s339 = scalar_select %p338, %s337, 15
        %s340 = smul.addr %s339, 4
        %s341 = scalar_lea.vmem %s0, %s340
        %s342 = smul.u32 8, %s17
      $region48: #{encoder_decoder_forward.9} parent=43 // pred_fallthru
        _
      // Predicated region
      $region49: #{encoder_decoder_forward.9} parent=43 // pred_check
        %p343 = pneg %p63
      $region50: #{encoder_decoder_forward.9} parent=43 // pred_check_branch
        %345 = sbr.rel (%p343) target = $region52
      $region51: #{encoder_decoder_forward.9} parent=43 // pred_region
        %s346 = smul.u32 8, %s17
        %p347 = scmp.lt.s32.totalorder %s346, 15
        %s348 = scalar_select %p347, %s346, 15
        %s349 = smul.addr %s348, 4
        %s350 = scalar_lea.vmem %s1, %s349
        %s351 = smul.u32 8, %s17
      $region52: #{encoder_decoder_forward.9} parent=43 // pred_fallthru
        _
      // Predicated region
      $region53: #{encoder_decoder_forward.9} parent=43 // pred_check
        %p352 = pneg %p89
      $region54: #{encoder_decoder_forward.9} parent=43 // pred_check_branch
        %354 = sbr.rel (%p352) target = $region56
      $region55: #{encoder_decoder_forward.9} parent=43 // pred_region
        %s355 = smul.u32 8, %s17
        %p356 = scmp.lt.s32.totalorder %s355, 15
        %s357 = scalar_select %p356, %s355, 15
        %s358 = smul.addr %s357, 4
        %s359 = scalar_lea.vmem %s2, %s358
        %s360 = smul.u32 8, %s17
      $region56: #{encoder_decoder_forward.9} parent=43 // pred_fallthru
        _
      // Predicated region
      $region57: #{encoder_decoder_forward.9} parent=43 // pred_check
        %p361 = pneg %p115
      $region58: #{encoder_decoder_forward.9} parent=43 // pred_check_branch
        %363 = sbr.rel (%p361) target = $region60
      $region59: #{encoder_decoder_forward.9} parent=43 // pred_region
        %s364 = smul.u32 8, %s17
        %p365 = scmp.lt.s32.totalorder %s364, 15
        %s366 = scalar_select %p365, %s364, 15
        %s367 = smul.addr %s366, 4
        %s368 = scalar_lea.vmem %s3, %s367
        %s369 = smul.u32 8, %s17
      $region60: #{encoder_decoder_forward.9} parent=43 // pred_fallthru
        _
    $region44: #{encoder_decoder_forward.9} parent=5 // pred_fallthru
      _
    %p370 = scmp.le.s32.totalorder 1, %s17
    %p371 = scmp.lt.s32.totalorder %s17, 3
    %p372 = pnand %p370, %p371
    %p373 = pneg %p372
    // Predicated region
    $region61: #{encoder_decoder_forward.9} parent=5 // pred_check
      _
    $region62: #{encoder_decoder_forward.9} parent=5 // pred_check_branch
      %375 = sbr.rel (%p372) target = $region64
    $region63: #{encoder_decoder_forward.9} parent=5 // pred_region
      %s376 = ssub.s32 %s17, 1
      %s377 = smul.u32 8, %s22
      %p378 = scmp.lt.s32.totalorder %s377, 15
      %s379 = scalar_select %p378, %s377, 15
      %s380 = smul.addr %s379, 4
      %s381 = scalar_lea.vmem %s0, %s380
      %p382 = pneg %p43
      %p383 = pneg %p40
      %s384 = smul.u32 8, %s22
      %p385 = scmp.lt.s32.totalorder %s384, 15
      %s386 = scalar_select %p385, %s384, 15
      %s387 = smul.addr %s386, 4
      %s388 = scalar_lea.vmem %s1, %s387
      %p389 = pneg %p69
      %p390 = pneg %p66
      %s391 = smul.u32 8, %s22
      %p392 = scmp.lt.s32.totalorder %s391, 15
      %s393 = scalar_select %p392, %s391, 15
      %s394 = smul.addr %s393, 4
      %s395 = scalar_lea.vmem %s2, %s394
      %p396 = pneg %p95
      %p397 = pneg %p92
      %s398 = smul.u32 8, %s22
      %p399 = scmp.lt.s32.totalorder %s398, 15
      %s400 = scalar_select %p399, %s398, 15
      %s401 = smul.addr %s400, 4
      %s402 = scalar_lea.vmem %s3, %s401
      %p403 = pneg %p121
      %p404 = pneg %p118
      %p405 = pneg %p142
      %p406 = pneg %p139
      %p407 = pneg %p163
      %p408 = pneg %p160
      %p409 = pneg %p184
      %p410 = pneg %p181
      %p411 = pneg %p205
      %p412 = pneg %p202
      %p413 = pneg %p226
      %p414 = pneg %p223
      %p415 = pneg %p247
      %p416 = pneg %p244
      %p417 = pneg %p268
      %p418 = pneg %p265
      %p419 = pneg %p294
      %p420 = pneg %p291
      %s421 = smul.u32 8, %s22
      %p422 = scmp.lt.s32.totalorder %s421, 15
      %s423 = scalar_select %p422, %s421, 15
      %s424 = smul.addr %s423, 4
      %s425 = scalar_lea.vmem %s11, %s424
      %s426 = smul.u32 8, %s22
      %p427 = scmp.lt.s32.totalorder %s426, 15
      %s428 = scalar_select %p427, %s426, 15
      %s429 = smul.addr %s428, 4
      %s430 = scalar_lea.vmem %s0, %s429
      %s431 = smul.u32 8, %s22
      %s432 = smul.u32 8, %s22
      %p433 = scmp.lt.s32.totalorder %s432, 15
      %s434 = scalar_select %p433, %s432, 15
      %s435 = smul.addr %s434, 4
      %s436 = scalar_lea.vmem %s1, %s435
      %s437 = smul.u32 8, %s22
      %s438 = smul.u32 8, %s22
      %p439 = scmp.lt.s32.totalorder %s438, 15
      %s440 = scalar_select %p439, %s438, 15
      %s441 = smul.addr %s440, 4
      %s442 = scalar_lea.vmem %s2, %s441
      %s443 = smul.u32 8, %s22
      %s444 = smul.u32 8, %s22
      %p445 = scmp.lt.s32.totalorder %s444, 15
      %s446 = scalar_select %p445, %s444, 15
      %s447 = smul.addr %s446, 4
      %s448 = scalar_lea.vmem %s3, %s447
      %s449 = smul.u32 8, %s22
      %s450 = smul.u32 8, %s22
      %p451 = scmp.lt.s32.totalorder %s450, 15
      %s452 = scalar_select %p451, %s450, 15
      %s453 = smul.addr %s452, 4
      %s454 = scalar_lea.vmem %s11, %s453
      %s455 = smul.u32 8, %s22
      %v456 = vld [vmem:[%s430] sm:$0xf]
      %v457 = vld [vmem:[%s430 + $0x4] sm:$0xf]
      %v458 = vld [vmem:[%s430 + $0x8] sm:$0xf]
      %v459 = vld [vmem:[%s430 + $0xc] sm:$0xf]
      %v460 = vld [vmem:[%s430 + $0x10] sm:$0xf]
      %v461 = vld [vmem:[%s430 + $0x14] sm:$0xf]
      %v462 = vld [vmem:[%s430 + $0x18] sm:$0xf]
      %v463 = vld [vmem:[%s430 + $0x1c] sm:$0xf]
      %v464 = vld [vmem:[%s4] sm:$0xf]
      %v465 = vld [vmem:[%s4 + $0x4] sm:$0xf]
      %v466 = vld [vmem:[%s4 + $0x8] sm:$0xf]
      %v467 = vld [vmem:[%s4 + $0xc] sm:$0xf]
      %v468 = vld [vmem:[%s4 + $0x10] sm:$0xf]
      %v469 = vld [vmem:[%s4 + $0x14] sm:$0xf]
      %v470 = vld [vmem:[%s4 + $0x18] sm:$0xf]
      %v471 = vld [vmem:[%s4 + $0x1c] sm:$0xf]
      %v472 = vld [vmem:[%s4 + $0x20] sm:$0xf]
      %v473 = vld [vmem:[%s4 + $0x24] sm:$0xf]
      %v474 = vld [vmem:[%s4 + $0x28] sm:$0xf]
      %v475 = vld [vmem:[%s4 + $0x2c] sm:$0xf]
      %v476 = vld [vmem:[%s4 + $0x30] sm:$0xf]
      %v477 = vld [vmem:[%s4 + $0x34] sm:$0xf]
      %v478 = vld [vmem:[%s4 + $0x38] sm:$0xf]
      %v479 = vld [vmem:[%s4 + $0x3c] sm:$0xf]
      %v480 = vld [vmem:[%s436] sm:$0xf]
      %v481 = vld [vmem:[%s436 + $0x4] sm:$0xf]
      %v482 = vld [vmem:[%s436 + $0x8] sm:$0xf]
      %v483 = vld [vmem:[%s436 + $0xc] sm:$0xf]
      %v484 = vld [vmem:[%s436 + $0x10] sm:$0xf]
      %v485 = vld [vmem:[%s436 + $0x14] sm:$0xf]
      %v486 = vld [vmem:[%s436 + $0x18] sm:$0xf]
      %v487 = vld [vmem:[%s436 + $0x1c] sm:$0xf]
      %v488 = vld [vmem:[%s5] sm:$0xf]
      %v489 = vld [vmem:[%s5 + $0x4] sm:$0xf]
      %v490 = vld [vmem:[%s5 + $0x8] sm:$0xf]
      %v491 = vld [vmem:[%s5 + $0xc] sm:$0xf]
      %v492 = vld [vmem:[%s5 + $0x10] sm:$0xf]
      %v493 = vld [vmem:[%s5 + $0x14] sm:$0xf]
      %v494 = vld [vmem:[%s5 + $0x18] sm:$0xf]
      %v495 = vld [vmem:[%s5 + $0x1c] sm:$0xf]
      %v496 = vld [vmem:[%s5 + $0x20] sm:$0xf]
      %v497 = vld [vmem:[%s5 + $0x24] sm:$0xf]
      %v498 = vld [vmem:[%s5 + $0x28] sm:$0xf]
      %v499 = vld [vmem:[%s5 + $0x2c] sm:$0xf]
      %v500 = vld [vmem:[%s5 + $0x30] sm:$0xf]
      %v501 = vld [vmem:[%s5 + $0x34] sm:$0xf]
      %v502 = vld [vmem:[%s5 + $0x38] sm:$0xf]
      %v503 = vld [vmem:[%s5 + $0x3c] sm:$0xf]
      %v512 = vunpack.c.l.b16 %v480
      %v513 = vunpack.c.l.b16 %v481
      %v514 = vunpack.c.l.b16 %v482
      %v515 = vunpack.c.l.b16 %v483
      %v516 = vunpack.c.l.b16 %v484
      %v517 = vunpack.c.l.b16 %v485
      %v518 = vunpack.c.l.b16 %v486
      %v519 = vunpack.c.l.b16 %v487
      %v520 = vpack.c.b16 %v513, %v512
      %v521 = vpack.c.b16 %v515, %v514
      %v522 = vpack.c.b16 %v517, %v516
      %v523 = vpack.c.b16 %v519, %v518
      %v544 = vunpack.c.l.b16 %v488
      %v545 = vunpack.c.l.b16 %v489
      %v546 = vunpack.c.l.b16 %v490
      %v547 = vunpack.c.l.b16 %v491
      %v548 = vunpack.c.l.b16 %v492
      %v549 = vunpack.c.l.b16 %v493
      %v550 = vunpack.c.l.b16 %v494
      %v551 = vunpack.c.l.b16 %v495
      %v552 = vunpack.c.l.b16 %v496
      %v553 = vunpack.c.l.b16 %v497
      %v554 = vunpack.c.l.b16 %v498
      %v555 = vunpack.c.l.b16 %v499
      %v556 = vunpack.c.l.b16 %v500
      %v557 = vunpack.c.l.b16 %v501
      %v558 = vunpack.c.l.b16 %v502
      %v559 = vunpack.c.l.b16 %v503
      %v560 = vpack.c.b16 %v545, %v544
      %v561 = vpack.c.b16 %v547, %v546
      %v562 = vpack.c.b16 %v549, %v548
      %v563 = vpack.c.b16 %v551, %v550
      %v564 = vpack.c.b16 %v553, %v552
      %v565 = vpack.c.b16 %v555, %v554
      %v566 = vpack.c.b16 %v557, %v556
      %v567 = vpack.c.b16 %v559, %v558
      %576 = vmatpush.bf16.msra.mxu0 %v567
      %577 = vmatpush.bf16.msra.mxu0 %v566
      %578 = vmatpush.bf16.msra.mxu0 %v565
      %579 = vmatpush.bf16.msra.mxu0 %v564
      %580 = vmatpush.bf16.msra.mxu0 %v563
      %581 = vmatpush.bf16.msra.mxu0 %v562
      %582 = vmatpush.bf16.msra.mxu0 %v561
      %583 = vmatpush.bf16.msra.mxu0 %v560
      %584 = vmatmul.bf16.gmra.mxu0 %v520
      %v585 = vpop.f32.mrf.mxu0
      %v586 = vadd.f32 0.0, %v585
      %v587 = vpop.f32.mrf.mxu0
      %v588 = vadd.f32 0.0, %v587
      %589 = vmatmul.bf16.gmra.mxu0 %v521
      %v590 = vpop.f32.mrf.mxu0
      %v591 = vadd.f32 0.0, %v590
      %v592 = vpop.f32.mrf.mxu0
      %v593 = vadd.f32 0.0, %v592
      %594 = vmatmul.bf16.gmra.mxu0 %v522
      %v595 = vpop.f32.mrf.mxu0
      %v596 = vadd.f32 0.0, %v595
      %v597 = vpop.f32.mrf.mxu0
      %v598 = vadd.f32 0.0, %v597
      %599 = vmatmul.bf16.gmra.mxu0 %v523
      %v600 = vpop.f32.mrf.mxu0
      %v601 = vadd.f32 0.0, %v600
      %v602 = vpop.f32.mrf.mxu0
      %v603 = vadd.f32 0.0, %v602
      %604 = vdwg.mxu0
      %v613 = vunpack.c.l.b16 %v456
      %v614 = vunpack.c.l.b16 %v457
      %v615 = vunpack.c.l.b16 %v458
      %v616 = vunpack.c.l.b16 %v459
      %v617 = vunpack.c.l.b16 %v460
      %v618 = vunpack.c.l.b16 %v461
      %v619 = vunpack.c.l.b16 %v462
      %v620 = vunpack.c.l.b16 %v463
      %v621 = vpack.c.b16 %v614, %v613
      %v622 = vpack.c.b16 %v616, %v615
      %v623 = vpack.c.b16 %v618, %v617
      %v624 = vpack.c.b16 %v620, %v619
      %v645 = vunpack.c.l.b16 %v464
      %v646 = vunpack.c.l.b16 %v465
      %v647 = vunpack.c.l.b16 %v466
      %v648 = vunpack.c.l.b16 %v467
      %v649 = vunpack.c.l.b16 %v468
      %v650 = vunpack.c.l.b16 %v469
      %v651 = vunpack.c.l.b16 %v470
      %v652 = vunpack.c.l.b16 %v471
      %v653 = vunpack.c.l.b16 %v472
      %v654 = vunpack.c.l.b16 %v473
      %v655 = vunpack.c.l.b16 %v474
      %v656 = vunpack.c.l.b16 %v475
      %v657 = vunpack.c.l.b16 %v476
      %v658 = vunpack.c.l.b16 %v477
      %v659 = vunpack.c.l.b16 %v478
      %v660 = vunpack.c.l.b16 %v479
      %v661 = vpack.c.b16 %v646, %v645
      %v662 = vpack.c.b16 %v648, %v647
      %v663 = vpack.c.b16 %v650, %v649
      %v664 = vpack.c.b16 %v652, %v651
      %v665 = vpack.c.b16 %v654, %v653
      %v666 = vpack.c.b16 %v656, %v655
      %v667 = vpack.c.b16 %v658, %v657
      %v668 = vpack.c.b16 %v660, %v659
      %677 = vmatpush.bf16.msra.mxu0 %v668
      %678 = vmatpush.bf16.msra.mxu0 %v667
      %679 = vmatpush.bf16.msra.mxu0 %v666
      %680 = vmatpush.bf16.msra.mxu0 %v665
      %681 = vmatpush.bf16.msra.mxu0 %v664
      %682 = vmatpush.bf16.msra.mxu0 %v663
      %683 = vmatpush.bf16.msra.mxu0 %v662
      %684 = vmatpush.bf16.msra.mxu0 %v661
      %685 = vmatmul.bf16.gmra.mxu0 %v621
      %v686 = vpop.f32.mrf.mxu0
      %v687 = vadd.f32 %v586, %v686
      %v688 = vpop.f32.mrf.mxu0
      %v689 = vadd.f32 %v588, %v688
      %690 = vmatmul.bf16.gmra.mxu0 %v622
      %v691 = vpop.f32.mrf.mxu0
      %v692 = vadd.f32 %v591, %v691
      %v693 = vpop.f32.mrf.mxu0
      %v694 = vadd.f32 %v593, %v693
      %695 = vmatmul.bf16.gmra.mxu0 %v623
      %v696 = vpop.f32.mrf.mxu0
      %v697 = vadd.f32 %v596, %v696
      %v698 = vpop.f32.mrf.mxu0
      %v699 = vadd.f32 %v598, %v698
      %700 = vmatmul.bf16.gmra.mxu0 %v624
      %v701 = vpop.f32.mrf.mxu0
      %v702 = vadd.f32 %v601, %v701
      %v703 = vpop.f32.mrf.mxu0
      %v704 = vadd.f32 %v603, %v703
      %705 = vdwg.mxu0
      %v706 = vld [vmem:[%s442] sm:$0xf]
      %v707 = vld [vmem:[%s442 + $0x4] sm:$0xf]
      %v708 = vld [vmem:[%s442 + $0x8] sm:$0xf]
      %v709 = vld [vmem:[%s442 + $0xc] sm:$0xf]
      %v710 = vld [vmem:[%s442 + $0x10] sm:$0xf]
      %v711 = vld [vmem:[%s442 + $0x14] sm:$0xf]
      %v712 = vld [vmem:[%s442 + $0x18] sm:$0xf]
      %v713 = vld [vmem:[%s442 + $0x1c] sm:$0xf]
      %v714 = vld [vmem:[%s6] sm:$0xf]
      %v715 = vld [vmem:[%s6 + $0x4] sm:$0xf]
      %v716 = vld [vmem:[%s6 + $0x8] sm:$0xf]
      %v717 = vld [vmem:[%s6 + $0xc] sm:$0xf]
      %v718 = vld [vmem:[%s6 + $0x10] sm:$0xf]
      %v719 = vld [vmem:[%s6 + $0x14] sm:$0xf]
      %v720 = vld [vmem:[%s6 + $0x18] sm:$0xf]
      %v721 = vld [vmem:[%s6 + $0x1c] sm:$0xf]
      %v722 = vld [vmem:[%s6 + $0x20] sm:$0xf]
      %v723 = vld [vmem:[%s6 + $0x24] sm:$0xf]
      %v724 = vld [vmem:[%s6 + $0x28] sm:$0xf]
      %v725 = vld [vmem:[%s6 + $0x2c] sm:$0xf]
      %v726 = vld [vmem:[%s6 + $0x30] sm:$0xf]
      %v727 = vld [vmem:[%s6 + $0x34] sm:$0xf]
      %v728 = vld [vmem:[%s6 + $0x38] sm:$0xf]
      %v729 = vld [vmem:[%s6 + $0x3c] sm:$0xf]
      %v738 = vunpack.c.l.b16 %v706
      %v739 = vunpack.c.l.b16 %v707
      %v740 = vunpack.c.l.b16 %v708
      %v741 = vunpack.c.l.b16 %v709
      %v742 = vunpack.c.l.b16 %v710
      %v743 = vunpack.c.l.b16 %v711
      %v744 = vunpack.c.l.b16 %v712
      %v745 = vunpack.c.l.b16 %v713
      %v746 = vpack.c.b16 %v739, %v738
      %v747 = vpack.c.b16 %v741, %v740
      %v748 = vpack.c.b16 %v743, %v742
      %v749 = vpack.c.b16 %v745, %v744
      %v770 = vunpack.c.l.b16 %v714
      %v771 = vunpack.c.l.b16 %v715
      %v772 = vunpack.c.l.b16 %v716
      %v773 = vunpack.c.l.b16 %v717
      %v774 = vunpack.c.l.b16 %v718
      %v775 = vunpack.c.l.b16 %v719
      %v776 = vunpack.c.l.b16 %v720
      %v777 = vunpack.c.l.b16 %v721
      %v778 = vunpack.c.l.b16 %v722
      %v779 = vunpack.c.l.b16 %v723
      %v780 = vunpack.c.l.b16 %v724
      %v781 = vunpack.c.l.b16 %v725
      %v782 = vunpack.c.l.b16 %v726
      %v783 = vunpack.c.l.b16 %v727
      %v784 = vunpack.c.l.b16 %v728
      %v785 = vunpack.c.l.b16 %v729
      %v786 = vpack.c.b16 %v771, %v770
      %v787 = vpack.c.b16 %v773, %v772
      %v788 = vpack.c.b16 %v775, %v774
      %v789 = vpack.c.b16 %v777, %v776
      %v790 = vpack.c.b16 %v779, %v778
      %v791 = vpack.c.b16 %v781, %v780
      %v792 = vpack.c.b16 %v783, %v782
      %v793 = vpack.c.b16 %v785, %v784
      %802 = vmatpush.bf16.msra.mxu0 %v793
      %803 = vmatpush.bf16.msra.mxu0 %v792
      %804 = vmatpush.bf16.msra.mxu0 %v791
      %805 = vmatpush.bf16.msra.mxu0 %v790
      %806 = vmatpush.bf16.msra.mxu0 %v789
      %807 = vmatpush.bf16.msra.mxu0 %v788
      %808 = vmatpush.bf16.msra.mxu0 %v787
      %809 = vmatpush.bf16.msra.mxu0 %v786
      %810 = vmatmul.bf16.gmra.mxu0 %v746
      %v811 = vpop.f32.mrf.mxu0
      %v812 = vadd.f32 0.0, %v811
      %v813 = vpop.f32.mrf.mxu0
      %v814 = vadd.f32 0.0, %v813
      %815 = vmatmul.bf16.gmra.mxu0 %v747
      %v816 = vpop.f32.mrf.mxu0
      %v817 = vadd.f32 0.0, %v816
      %v818 = vpop.f32.mrf.mxu0
      %v819 = vadd.f32 0.0, %v818
      %820 = vmatmul.bf16.gmra.mxu0 %v748
      %v821 = vpop.f32.mrf.mxu0
      %v822 = vadd.f32 0.0, %v821
      %v823 = vpop.f32.mrf.mxu0
      %v824 = vadd.f32 0.0, %v823
      %825 = vmatmul.bf16.gmra.mxu0 %v749
      %v826 = vpop.f32.mrf.mxu0
      %v827 = vadd.f32 0.0, %v826
      %v828 = vpop.f32.mrf.mxu0
      %v829 = vadd.f32 0.0, %v828
      %830 = vdwg.mxu0
      %v831 = vadd.f32 %v687, %v812
      %v832 = vadd.f32 %v689, %v814
      %v833 = vadd.f32 %v692, %v817
      %v834 = vadd.f32 %v694, %v819
      %v835 = vadd.f32 %v697, %v822
      %v836 = vadd.f32 %v699, %v824
      %v837 = vadd.f32 %v702, %v827
      %v838 = vadd.f32 %v704, %v829
      %v839 = vld [vmem:[%s448] sm:$0xf]
      %v840 = vld [vmem:[%s448 + $0x4] sm:$0xf]
      %v841 = vld [vmem:[%s448 + $0x8] sm:$0xf]
      %v842 = vld [vmem:[%s448 + $0xc] sm:$0xf]
      %v843 = vld [vmem:[%s448 + $0x10] sm:$0xf]
      %v844 = vld [vmem:[%s448 + $0x14] sm:$0xf]
      %v845 = vld [vmem:[%s448 + $0x18] sm:$0xf]
      %v846 = vld [vmem:[%s448 + $0x1c] sm:$0xf]
      %v847 = vld [vmem:[%s7] sm:$0xf]
      %v848 = vld [vmem:[%s7 + $0x4] sm:$0xf]
      %v849 = vld [vmem:[%s7 + $0x8] sm:$0xf]
      %v850 = vld [vmem:[%s7 + $0xc] sm:$0xf]
      %v851 = vld [vmem:[%s7 + $0x10] sm:$0xf]
      %v852 = vld [vmem:[%s7 + $0x14] sm:$0xf]
      %v853 = vld [vmem:[%s7 + $0x18] sm:$0xf]
      %v854 = vld [vmem:[%s7 + $0x1c] sm:$0xf]
      %v855 = vld [vmem:[%s7 + $0x20] sm:$0xf]
      %v856 = vld [vmem:[%s7 + $0x24] sm:$0xf]
      %v857 = vld [vmem:[%s7 + $0x28] sm:$0xf]
      %v858 = vld [vmem:[%s7 + $0x2c] sm:$0xf]
      %v859 = vld [vmem:[%s7 + $0x30] sm:$0xf]
      %v860 = vld [vmem:[%s7 + $0x34] sm:$0xf]
      %v861 = vld [vmem:[%s7 + $0x38] sm:$0xf]
      %v862 = vld [vmem:[%s7 + $0x3c] sm:$0xf]
      %v871 = vunpack.c.l.b16 %v839
      %v872 = vunpack.c.l.b16 %v840
      %v873 = vunpack.c.l.b16 %v841
      %v874 = vunpack.c.l.b16 %v842
      %v875 = vunpack.c.l.b16 %v843
      %v876 = vunpack.c.l.b16 %v844
      %v877 = vunpack.c.l.b16 %v845
      %v878 = vunpack.c.l.b16 %v846
      %v879 = vpack.c.b16 %v872, %v871
      %v880 = vpack.c.b16 %v874, %v873
      %v881 = vpack.c.b16 %v876, %v875
      %v882 = vpack.c.b16 %v878, %v877
      %v903 = vunpack.c.l.b16 %v847
      %v904 = vunpack.c.l.b16 %v848
      %v905 = vunpack.c.l.b16 %v849
      %v906 = vunpack.c.l.b16 %v850
      %v907 = vunpack.c.l.b16 %v851
      %v908 = vunpack.c.l.b16 %v852
      %v909 = vunpack.c.l.b16 %v853
      %v910 = vunpack.c.l.b16 %v854
      %v911 = vunpack.c.l.b16 %v855
      %v912 = vunpack.c.l.b16 %v856
      %v913 = vunpack.c.l.b16 %v857
      %v914 = vunpack.c.l.b16 %v858
      %v915 = vunpack.c.l.b16 %v859
      %v916 = vunpack.c.l.b16 %v860
      %v917 = vunpack.c.l.b16 %v861
      %v918 = vunpack.c.l.b16 %v862
      %v919 = vpack.c.b16 %v904, %v903
      %v920 = vpack.c.b16 %v906, %v905
      %v921 = vpack.c.b16 %v908, %v907
      %v922 = vpack.c.b16 %v910, %v909
      %v923 = vpack.c.b16 %v912, %v911
      %v924 = vpack.c.b16 %v914, %v913
      %v925 = vpack.c.b16 %v916, %v915
      %v926 = vpack.c.b16 %v918, %v917
      %935 = vmatpush.bf16.msra.mxu0 %v926
      %936 = vmatpush.bf16.msra.mxu0 %v925
      %937 = vmatpush.bf16.msra.mxu0 %v924
      %938 = vmatpush.bf16.msra.mxu0 %v923
      %939 = vmatpush.bf16.msra.mxu0 %v922
      %940 = vmatpush.bf16.msra.mxu0 %v921
      %941 = vmatpush.bf16.msra.mxu0 %v920
      %942 = vmatpush.bf16.msra.mxu0 %v919
      %943 = vmatmul.bf16.gmra.mxu0 %v879
      %v944 = vpop.f32.mrf.mxu0
      %v945 = vadd.f32 0.0, %v944
      %v946 = vpop.f32.mrf.mxu0
      %v947 = vadd.f32 0.0, %v946
      %948 = vmatmul.bf16.gmra.mxu0 %v880
      %v949 = vpop.f32.mrf.mxu0
      %v950 = vadd.f32 0.0, %v949
      %v951 = vpop.f32.mrf.mxu0
      %v952 = vadd.f32 0.0, %v951
      %953 = vmatmul.bf16.gmra.mxu0 %v881
      %v954 = vpop.f32.mrf.mxu0
      %v955 = vadd.f32 0.0, %v954
      %v956 = vpop.f32.mrf.mxu0
      %v957 = vadd.f32 0.0, %v956
      %958 = vmatmul.bf16.gmra.mxu0 %v882
      %v959 = vpop.f32.mrf.mxu0
      %v960 = vadd.f32 0.0, %v959
      %v961 = vpop.f32.mrf.mxu0
      %v962 = vadd.f32 0.0, %v961
      %963 = vdwg.mxu0
      %v964 = vadd.f32 %v831, %v945
      %v965 = vadd.f32 %v832, %v947
      %v966 = vadd.f32 %v833, %v950
      %v967 = vadd.f32 %v834, %v952
      %v968 = vadd.f32 %v835, %v955
      %v969 = vadd.f32 %v836, %v957
      %v970 = vadd.f32 %v837, %v960
      %v971 = vadd.f32 %v838, %v962
      %v972 = vld [vmem:[%s8] sm:$0x1]
      %v974 = vperm.slane %v972, 0
      %v976 = vadd.f32 %v964, %v974
      %v977 = vadd.f32 %v965, %v974
      %v978 = vadd.f32 %v966, %v974
      %v979 = vadd.f32 %v967, %v974
      %v980 = vadd.f32 %v968, %v974
      %v981 = vadd.f32 %v969, %v974
      %v982 = vadd.f32 %v970, %v974
      %v983 = vadd.f32 %v971, %v974
      %v984 = vmax.f32 %v976, 0.0
      %v985 = vmax.f32 %v977, 0.0
      %v986 = vmax.f32 %v978, 0.0
      %v987 = vmax.f32 %v979, 0.0
      %v988 = vmax.f32 %v980, 0.0
      %v989 = vmax.f32 %v981, 0.0
      %v990 = vmax.f32 %v982, 0.0
      %v991 = vmax.f32 %v983, 0.0
      %v992 = vpack.c.bf16 %v985, %v984
      %v993 = vpack.c.bf16 %v987, %v986
      %v994 = vpack.c.bf16 %v989, %v988
      %v995 = vpack.c.bf16 %v991, %v990
      %v996 = vld [vmem:[%s9] sm:$0xf]
      %v997 = vld [vmem:[%s9 + $0x4] sm:$0xf]
      %v998 = vld [vmem:[%s9 + $0x8] sm:$0xf]
      %v999 = vld [vmem:[%s9 + $0xc] sm:$0xf]
      %v1000 = vld [vmem:[%s9 + $0x10] sm:$0xf]
      %v1001 = vld [vmem:[%s9 + $0x14] sm:$0xf]
      %v1002 = vld [vmem:[%s9 + $0x18] sm:$0xf]
      %v1003 = vld [vmem:[%s9 + $0x1c] sm:$0xf]
      %v1004 = vld [vmem:[%s9 + $0x20] sm:$0xf]
      %v1005 = vld [vmem:[%s9 + $0x24] sm:$0xf]
      %v1006 = vld [vmem:[%s9 + $0x28] sm:$0xf]
      %v1007 = vld [vmem:[%s9 + $0x2c] sm:$0xf]
      %v1008 = vld [vmem:[%s9 + $0x30] sm:$0xf]
      %v1009 = vld [vmem:[%s9 + $0x34] sm:$0xf]
      %v1010 = vld [vmem:[%s9 + $0x38] sm:$0xf]
      %v1011 = vld [vmem:[%s9 + $0x3c] sm:$0xf]
      %v1012 = vld [vmem:[%s10] sm:$0x1]
      %v1014 = vperm.slane %v1012, 0
      %v1032 = vunpack.c.l.b16 %v996
      %v1033 = vunpack.c.l.b16 %v997
      %v1034 = vunpack.c.l.b16 %v998
      %v1035 = vunpack.c.l.b16 %v999
      %v1036 = vunpack.c.l.b16 %v1000
      %v1037 = vunpack.c.l.b16 %v1001
      %v1038 = vunpack.c.l.b16 %v1002
      %v1039 = vunpack.c.l.b16 %v1003
      %v1040 = vunpack.c.l.b16 %v1004
      %v1041 = vunpack.c.l.b16 %v1005
      %v1042 = vunpack.c.l.b16 %v1006
      %v1043 = vunpack.c.l.b16 %v1007
      %v1044 = vunpack.c.l.b16 %v1008
      %v1045 = vunpack.c.l.b16 %v1009
      %v1046 = vunpack.c.l.b16 %v1010
      %v1047 = vunpack.c.l.b16 %v1011
      %v1048 = vpack.c.b16 %v1033, %v1032
      %v1049 = vpack.c.b16 %v1035, %v1034
      %v1050 = vpack.c.b16 %v1037, %v1036
      %v1051 = vpack.c.b16 %v1039, %v1038
      %v1052 = vpack.c.b16 %v1041, %v1040
      %v1053 = vpack.c.b16 %v1043, %v1042
      %v1054 = vpack.c.b16 %v1045, %v1044
      %v1055 = vpack.c.b16 %v1047, %v1046
      %1064 = vmatpush.bf16.msra.mxu0 %v1055
      %1065 = vmatpush.bf16.msra.mxu0 %v1054
      %1066 = vmatpush.bf16.msra.mxu0 %v1053
      %1067 = vmatpush.bf16.msra.mxu0 %v1052
      %1068 = vmatpush.bf16.msra.mxu0 %v1051
      %1069 = vmatpush.bf16.msra.mxu0 %v1050
      %1070 = vmatpush.bf16.msra.mxu0 %v1049
      %1071 = vmatpush.bf16.msra.mxu0 %v1048
      %1072 = vmatmul.bf16.gmra.mxu0 %v992
      %v1073 = vpop.f32.mrf.mxu0
      %v1074 = vadd.f32 %v1014, %v1073
      %v1075 = vpop.f32.mrf.mxu0
      %v1076 = vadd.f32 %v1014, %v1075
      %1077 = vmatmul.bf16.gmra.mxu0 %v993
      %v1078 = vpop.f32.mrf.mxu0
      %v1079 = vadd.f32 %v1014, %v1078
      %v1080 = vpop.f32.mrf.mxu0
      %v1081 = vadd.f32 %v1014, %v1080
      %1082 = vmatmul.bf16.gmra.mxu0 %v994
      %v1083 = vpop.f32.mrf.mxu0
      %v1084 = vadd.f32 %v1014, %v1083
      %v1085 = vpop.f32.mrf.mxu0
      %v1086 = vadd.f32 %v1014, %v1085
      %1087 = vmatmul.bf16.gmra.mxu0 %v995
      %v1088 = vpop.f32.mrf.mxu0
      %v1089 = vadd.f32 %v1014, %v1088
      %v1090 = vpop.f32.mrf.mxu0
      %v1091 = vadd.f32 %v1014, %v1090
      %1092 = vdwg.mxu0
      %v1093 = vpack.c.bf16 %v1074, %v1074
      %v1094 = vpack.c.bf16 %v1076, %v1076
      %v1095 = vpack.c.bf16 %v1079, %v1079
      %v1096 = vpack.c.bf16 %v1081, %v1081
      %v1097 = vpack.c.bf16 %v1084, %v1084
      %v1098 = vpack.c.bf16 %v1086, %v1086
      %v1099 = vpack.c.bf16 %v1089, %v1089
      %v1100 = vpack.c.bf16 %v1091, %v1091
      %1101 = vst [vmem:[%s454] sm:$0xf] %v1093
      %1102 = vst [vmem:[%s454 + $0x4] sm:$0xf] %v1094
      %1103 = vst [vmem:[%s454 + $0x8] sm:$0xf] %v1095
      %1104 = vst [vmem:[%s454 + $0xc] sm:$0xf] %v1096
      %1105 = vst [vmem:[%s454 + $0x10] sm:$0xf] %v1097
      %1106 = vst [vmem:[%s454 + $0x14] sm:$0xf] %v1098
      %1107 = vst [vmem:[%s454 + $0x18] sm:$0xf] %v1099
      %1108 = vst [vmem:[%s454 + $0x1c] sm:$0xf] %v1100
      %s1109 = smul.u32 8, %s22
      %p1110 = scmp.lt.s32.totalorder %s1109, 15
      %s1111 = scalar_select %p1110, %s1109, 15
      %s1112 = smul.addr %s1111, 4
      %s1113 = scalar_lea.vmem %s11, %s1112
      // Predicated region
      $region65: #{encoder_decoder_forward.9} parent=63 // pred_check
        %p1114 = pneg %p291
      $region66: #{encoder_decoder_forward.9} parent=63 // pred_check_branch
        %1116 = sbr.rel (%p1114) target = $region68
      $region67: #{encoder_decoder_forward.9} parent=63 // pred_region
        %s1117 = smul.u32 8, %s22
      $region68: #{encoder_decoder_forward.9} parent=63 // pred_fallthru
        _
    $region64: #{encoder_decoder_forward.9} parent=5 // pred_fallthru
      _
    %p1118 = scmp.le.s32.totalorder 2, %s17
    // Predicated region
    $region69: #{encoder_decoder_forward.9} parent=5 // pred_check
      %p1119 = pneg %p1118
    $region70: #{encoder_decoder_forward.9} parent=5 // pred_check_branch
      %1121 = sbr.rel (%p1119) target = $region72
    $region71: #{encoder_decoder_forward.9} parent=5 // pred_region
      %s1122 = ssub.s32 %s17, 2
      // Predicated region
      $region73: #{encoder_decoder_forward.9} parent=71 // pred_check
        %p1123 = pneg %p297
      $region74: #{encoder_decoder_forward.9} parent=71 // pred_check_branch
        %1125 = sbr.rel (%p1123) target = $region76
      $region75: #{encoder_decoder_forward.9} parent=71 // pred_region
        %s1126 = smul.u32 8, %s23
        %p1127 = scmp.lt.s32.totalorder %s1126, 15
        %s1128 = scalar_select %p1127, %s1126, 15
        %s1129 = smul.addr %s1128, 4
        %s1130 = scalar_lea.vmem %s11, %s1129
      $region76: #{encoder_decoder_forward.9} parent=71 // pred_fallthru
        _
    $region72: #{encoder_decoder_forward.9} parent=5 // pred_fallthru
      _
  $region6: #{encoder_decoder_forward.9} parent=0 // loop_footer
    %s21 = sadd.s32 1, %s17
  $region7: #{encoder_decoder_forward.9} parent=0 // loop_footer_branch
    %16 = sbr.rel target = $region3
  $region8: #{encoder_decoder_forward.9} parent=0 // loop_exit
    _

</llo_original>
